<compile_context>
chip_gen: v7x
topology: tpu7x:2x2x1
jax: 0.10.0
libtpu: 0.0.40
codegen_flags: <defaults>
</compile_context>

<pallas_src>
from functools import partial

import jax
import jax.numpy as jnp
from jax.experimental import pallas as pl
from jax.experimental.pallas import tpu as pltpu


# ----------------------------------------------------------------------------
# In-kernel helpers
# ----------------------------------------------------------------------------
def _ln(t, g, b, eps):
    """Row-wise layernorm in f32. g, b broadcast as (1, D)."""
    t = t.astype(jnp.float32)
    mu = jnp.mean(t, axis=-1, keepdims=True)
    var = jnp.mean((t - mu) ** 2, axis=-1, keepdims=True)
    return (t - mu) * jax.lax.rsqrt(var + eps) * g + b


# ----------------------------------------------------------------------------
# The fused ViT kernel: one grid step = one block of `bt` images, all layers.
# ----------------------------------------------------------------------------
def _vit_kernel(patch_ref, pw_ref, clspos_ref, sln_ref,
                attw_ref, hbias_ref, lvec_ref, mlpw_ref, projw_ref,
                feat_ref, *, layers, heads, seq, bt, eps):
    bf16 = jnp.bfloat16
    f32 = jnp.float32
    d = pw_ref.shape[1]
    dh = d // heads

    # ---- patch-embed + CLS/pos + pre-LN (once per grid step) ----------------
    pe = jnp.dot(patch_ref[0].astype(bf16), pw_ref[...],
                 preferred_element_type=f32)                 # (bt*S, D); CLS rows 0
    tok = pe + clspos_ref[...]                               # CLS row = cls + pos[0]
    x0 = _ln(tok, sln_ref[0:1, :], sln_ref[1:2, :], eps)     # pre_layrnorm

    # ---- transformer layers, folded into the kernel -------------------------
    def layer_step(l, x):
        aw = attw_ref[l]        # (4H, D, dh) bf16: [q_h.., k_h.., v_h.., o_h^T..]
        hbv = hbias_ref[l]      # (3H, dh) f32:     [q_b_h.., k_b_h.., v_b_h..]
        vec = lvec_ref[l]       # (8, inter) f32 packed LN / bias rows
        mw = mlpw_ref[l]        # (2, D, inter) bf16: [fc1_w, fc2_w^T]

        ln1_g, ln1_b = vec[0:1, :d], vec[1:2, :d]
        ln2_g, ln2_b = vec[2:3, :d], vec[3:4, :d]
        o_b, fc2_b = vec[4:5, :d], vec[5:6, :d]
        fc1_b = vec[6:7, :]

        # ---------------- self-attention (pre-LN) ----------------
        h = _ln(x, ln1_g, ln1_b, eps).astype(bf16)           # (bt*S, D)

        # per-head Q/K/V for the whole batch block; head-major weights mean no
        # lane-offset slicing of a fused QKV result.  Q scale folded in weights.
        qkv = []
        for hh in range(heads):
            qh = jnp.dot(h, aw[hh], preferred_element_type=f32) \
                + hbv[hh:hh + 1, :]
            kh = jnp.dot(h, aw[heads + hh], preferred_element_type=f32) \
                + hbv[heads + hh:heads + hh + 1, :]
            vh = jnp.dot(h, aw[2 * heads + hh], preferred_element_type=f32) \
                + hbv[2 * heads + hh:2 * heads + hh + 1, :]
            qkv.append((qh.astype(bf16), kh.astype(bf16), vh.astype(bf16)))

        # attention is per image: static row-slices of the (bt*S, dh) tensors.
        ctx_rows = []
        for b in range(bt):
            r0 = b * seq
            ctx_b = None
            for hh in range(heads):
                qh, kh, vh = qkv[hh]
                qs = qh[r0:r0 + seq]
                ks = kh[r0:r0 + seq]
                vs = vh[r0:r0 + seq]
                # K^T folded into the contraction (no XLU transpose)
                s = jax.lax.dot_general(qs, ks, (((1,), (1,)), ((), ())),
                                        preferred_element_type=f32)   # (S, S)
                m = jnp.max(s, axis=-1, keepdims=True)
                pz = jnp.exp(s - m)
                pz = pz * pl.reciprocal(jnp.sum(pz, axis=-1, keepdims=True),
                                        approx=True)
                o = jnp.dot(pz.astype(bf16), vs,
                            preferred_element_type=f32)                # (S, dh)
                # per-head slice of the out-projection, stored transposed
                # (D, dh): summing over heads == concat(heads) @ W_o.
                c = jax.lax.dot_general(o.astype(bf16), aw[3 * heads + hh],
                                        (((1,), (1,)), ((), ())),
                                        preferred_element_type=f32)    # (S, D)
                ctx_b = c if ctx_b is None else ctx_b + c
            ctx_rows.append(ctx_b)
        ctx = ctx_rows[0] if bt == 1 else jnp.concatenate(ctx_rows, axis=0)
        x = x + ctx + o_b                                    # residual

        # ---------------- MLP (pre-LN, quick_gelu) ----------------
        h2 = _ln(x, ln2_g, ln2_b, eps)
        h2 = jnp.dot(h2.astype(bf16), mw[0],
                     preferred_element_type=f32) + fc1_b     # (bt*S, inter)
        h2 = h2 * jax.nn.sigmoid(1.702 * h2)                 # quick_gelu, f32 VPU
        h2 = jax.lax.dot_general(h2.astype(bf16), mw[1],     # fc2^T folded in
                                 (((1,), (1,)), ((), ())),
                                 preferred_element_type=f32) + fc2_b
        return x + h2                                        # residual

    x = jax.lax.fori_loop(0, layers, layer_step, x0, unroll=True)

    # ---- post-LN on CLS tokens + visual projection ---------------------------
    cls_rows = [x[b * seq:b * seq + 1, :] for b in range(bt)]
    cls = cls_rows[0] if bt == 1 else jnp.concatenate(cls_rows, axis=0)  # (bt, D)
    cls = _ln(cls, sln_ref[2:3, :], sln_ref[3:4, :], eps)
    feat_ref[0] = jnp.dot(cls.astype(bf16), projw_ref[...],
                          preferred_element_type=f32)                    # (bt, proj)


# ----------------------------------------------------------------------------
# Model config, deterministic synthetic ("natural") parameters, packing
# ----------------------------------------------------------------------------
CFG = dict(
    image_size=32,
    patch_size=8,
    num_channels=3,
    hidden=32,
    heads=4,
    layers=2,
    intermediate=64,
    proj_dim=24,
)


def init_params(key, cfg):
    """Natural (unpacked) CLIP-vision parameters, deterministic."""
    c, p, d = cfg["num_channels"], cfg["patch_size"], cfg["hidden"]
    inter, proj, L = cfg["intermediate"], cfg["proj_dim"], cfg["layers"]
    n_patches = (cfg["image_size"] // p) ** 2
    seq = n_patches + 1

    ks = jax.random.split(key, 24)

    def rnd(k, shape, s=0.02):
        return s * jax.random.normal(k, shape, dtype=jnp.float32)

    return dict(
        patch_w=rnd(ks[0], (c * p * p, d)),           # conv-as-matmul, no bias
        class_emb=rnd(ks[1], (d,)),
        pos_emb=rnd(ks[2], (seq, d)),
        pre_ln_g=1.0 + rnd(ks[3], (d,), 0.05), pre_ln_b=rnd(ks[4], (d,)),
        post_ln_g=1.0 + rnd(ks[5], (d,), 0.05), post_ln_b=rnd(ks[6], (d,)),
        proj_w=rnd(ks[7], (d, proj)),                 # visual_projection, no bias
        ln1_g=1.0 + rnd(ks[8], (L, d), 0.05), ln1_b=rnd(ks[9], (L, d)),
        ln2_g=1.0 + rnd(ks[10], (L, d), 0.05), ln2_b=rnd(ks[11], (L, d)),
        q_w=rnd(ks[12], (L, d, d)), q_b=rnd(ks[13], (L, d)),
        k_w=rnd(ks[14], (L, d, d)), k_b=rnd(ks[15], (L, d)),
        v_w=rnd(ks[16], (L, d, d)), v_b=rnd(ks[17], (L, d)),
        o_w=rnd(ks[18], (L, d, d)), o_b=rnd(ks[19], (L, d)),
        fc1_w=rnd(ks[20], (L, d, inter)), fc1_b=rnd(ks[21], (L, inter)),
        fc2_w=rnd(ks[22], (L, inter, d)), fc2_b=rnd(ks[23], (L, d)),
    )


def pack_params(nat, cfg):
    """Pack natural params into the few kernel buffers (bf16 weights)."""
    d, H, L = cfg["hidden"], cfg["heads"], cfg["layers"]
    inter = cfg["intermediate"]
    dh = d // H
    scale = dh ** -0.5
    bf16 = jnp.bfloat16
    assert d % H == 0 and inter >= d

    # attention weights, head-major: [q_0..q_{H-1}, k_.., v_.., o^T_..], (D, dh)
    att, hb = [], []
    for l in range(L):
        blocks = [nat["q_w"][l][:, h * dh:(h + 1) * dh] * scale for h in range(H)]
        blocks += [nat["k_w"][l][:, h * dh:(h + 1) * dh] for h in range(H)]
        blocks += [nat["v_w"][l][:, h * dh:(h + 1) * dh] for h in range(H)]
        blocks += [nat["o_w"][l][h * dh:(h + 1) * dh, :].T for h in range(H)]
        att.append(jnp.stack(blocks, 0))
        rows = [nat["q_b"][l][h * dh:(h + 1) * dh] * scale for h in range(H)]
        rows += [nat["k_b"][l][h * dh:(h + 1) * dh] for h in range(H)]
        rows += [nat["v_b"][l][h * dh:(h + 1) * dh] for h in range(H)]
        hb.append(jnp.stack(rows, 0))
    attw = jnp.stack(att, 0).astype(bf16)                     # (L, 4H, D, dh)
    hbias = jnp.stack(hb, 0).astype(jnp.float32)              # (L, 3H, dh)

    def pad_row(v):
        return jnp.pad(v, (0, inter - v.shape[0]))

    lv = []
    for l in range(L):
        rows = [pad_row(nat["ln1_g"][l]), pad_row(nat["ln1_b"][l]),
                pad_row(nat["ln2_g"][l]), pad_row(nat["ln2_b"][l]),
                pad_row(nat["o_b"][l]), pad_row(nat["fc2_b"][l]),
                nat["fc1_b"][l], jnp.zeros((inter,), jnp.float32)]
        lv.append(jnp.stack(rows, 0))
    lvec = jnp.stack(lv, 0).astype(jnp.float32)               # (L, 8, inter)

    mlpw = jnp.stack([jnp.stack([nat["fc1_w"][l], nat["fc2_w"][l].T], 0)
                      for l in range(L)], 0).astype(bf16)     # (L, 2, D, inter)

    sln = jnp.stack([nat["pre_ln_g"], nat["pre_ln_b"],
                     nat["post_ln_g"], nat["post_ln_b"]], 0).astype(jnp.float32)

    cls_pos = jnp.concatenate(
        [nat["class_emb"][None] + nat["pos_emb"][0:1], nat["pos_emb"][1:]], 0)

    return dict(patch_w=nat["patch_w"].astype(bf16), cls_pos=cls_pos, sln=sln,
                attw=attw, hbias=hbias, lvec=lvec, mlpw=mlpw,
                proj_w=nat["proj_w"].astype(bf16))


# ----------------------------------------------------------------------------
# Forward pass wrapper
# ----------------------------------------------------------------------------
def vision_encoder_forward(pixel_values, packed, cfg, block_b=None):
    """pixel_values: (B, C, H, W) f32 -> image features (B, proj_dim)."""
    B, C, Him, Wim = pixel_values.shape
    p, d, H, L = cfg["patch_size"], cfg["hidden"], cfg["heads"], cfg["layers"]
    inter, proj = cfg["intermediate"], cfg["proj_dim"]
    nph, npw = Him // p, Wim // p
    n_patches = nph * npw
    S = n_patches + 1
    cpp = C * p * p

    if block_b is None:
        block_b = (B if B <= 8 else
                   8 if B % 8 == 0 else 4 if B % 4 == 0 else
                   2 if B % 2 == 0 else 1)
    assert B % block_b == 0
    nblk = B // block_b
    M = block_b * S

    # --- glue: im2col with a zero row prepended per image for the CLS slot ---
    patches = pixel_values.reshape(B, C, nph, p, npw, p)
    patches = patches.transpose(0, 2, 4, 1, 3, 5).reshape(B, n_patches, cpp)
    patches = jnp.pad(patches, ((0, 0), (1, 0), (0, 0)))      # (B, S, cpp)
    patches = patches.reshape(nblk, M, cpp)                   # batch-blocked
    cls_pos_t = jnp.tile(packed["cls_pos"], (block_b, 1))     # (M, d)

    def _full(shape):
        n = len(shape)
        return pl.BlockSpec(shape, lambda i, n=n: (0,) * n)

    feats = pl.pallas_call(
        partial(_vit_kernel, layers=L, heads=H, seq=S, bt=block_b, eps=1e-5),
        out_shape=jax.ShapeDtypeStruct((nblk, block_b, proj), jnp.float32),
        grid=(nblk,),
        in_specs=[
            pl.BlockSpec((1, M, cpp), lambda i: (i, 0, 0)),   # patches (per block)
            _full((cpp, d)),                                  # patch_w   bf16
            _full((M, d)),                                    # cls + pos (tiled)
            _full((4, d)),                                    # pre/post LN g,b
            _full((L, 4 * H, d, d // H)),                     # attn weights bf16
            _full((L, 3 * H, d // H)),                        # q/k/v biases
            _full((L, 8, inter)),                             # LN / bias vectors
            _full((L, 2, d, inter)),                          # fc1 / fc2^T bf16
            _full((d, proj)),                                 # visual projection
        ],
        out_specs=pl.BlockSpec((1, block_b, proj), lambda i: (i, 0, 0)),
        compiler_params=pltpu.CompilerParams(
            dimension_semantics=("parallel",),
            vmem_limit_bytes=64 * 1024 * 1024),
    )(patches, packed["patch_w"], cls_pos_t, packed["sln"],
      packed["attw"], packed["hbias"], packed["lvec"], packed["mlpw"],
      packed["proj_w"])
    return feats.reshape(B, proj)


# ----------------------------------------------------------------------------
# Pure-JAX f32 reference (for a loose correctness check)
# ----------------------------------------------------------------------------
def reference_forward(pixel_values, nat, cfg):
    p, d, H, L = cfg["patch_size"], cfg["hidden"], cfg["heads"], cfg["layers"]
    B, C, Him, Wim = pixel_values.shape
    nph, npw = Him // p, Wim // p
    n_patches = nph * npw
    dh = d // H

    def ln(t, g, b):
        mu = t.mean(-1, keepdims=True)
        var = ((t - mu) ** 2).mean(-1, keepdims=True)
        return (t - mu) * jax.lax.rsqrt(var + 1e-5) * g + b

    patches = pixel_values.reshape(B, C, nph, p, npw, p)
    patches = patches.transpose(0, 2, 4, 1, 3, 5).reshape(B, n_patches, C * p * p)
    x = patches @ nat["patch_w"]
    cls = jnp.broadcast_to(nat["class_emb"], (B, 1, d))
    x = jnp.concatenate([cls, x], axis=1) + nat["pos_emb"][None]
    S = x.shape[1]
    x = ln(x, nat["pre_ln_g"], nat["pre_ln_b"])
    for l in range(L):
        h = ln(x, nat["ln1_g"][l], nat["ln1_b"][l])
        q = (h @ nat["q_w"][l] + nat["q_b"][l]).reshape(B, S, H, dh).transpose(0, 2, 1, 3)
        k = (h @ nat["k_w"][l] + nat["k_b"][l]).reshape(B, S, H, dh).transpose(0, 2, 1, 3)
        v = (h @ nat["v_w"][l] + nat["v_b"][l]).reshape(B, S, H, dh).transpose(0, 2, 1, 3)
        s = jnp.einsum('bhqd,bhkd->bhqk', q, k) * dh ** -0.5
        pr = jax.nn.softmax(s, axis=-1)
        o = jnp.einsum('bhqk,bhkd->bhqd', pr, v).transpose(0, 2, 1, 3).reshape(B, S, d)
        x = x + o @ nat["o_w"][l] + nat["o_b"][l]
        h = ln(x, nat["ln2_g"][l], nat["ln2_b"][l])
        h = h @ nat["fc1_w"][l] + nat["fc1_b"][l]
        h = h * jax.nn.sigmoid(1.702 * h)
        x = x + h @ nat["fc2_w"][l] + nat["fc2_b"][l]
    cls = ln(x[:, 0], nat["post_ln_g"], nat["post_ln_b"])
    return cls @ nat["proj_w"]


# ----------------------------------------------------------------------------
if __name__ == "__main__":
    key = jax.random.PRNGKey(0)
    pkey, xkey = jax.random.split(key)

    nat = init_params(pkey, CFG)
    packed = pack_params(nat, CFG)
    pixel_values = jax.random.normal(
        xkey,
        (2, CFG["num_channels"], CFG["image_size"], CFG["image_size"]),
        dtype=jnp.float32,
    )

    feats = vision_encoder_forward(pixel_values, packed, CFG)
    feats = jax.block_until_ready(feats)

    assert feats.shape == (2, CFG["proj_dim"]), feats.shape
    assert bool(jnp.all(jnp.isfinite(feats)))

    # loose check vs pure-JAX f32 reference (bf16 MXU + approx reciprocal)
    ref = reference_forward(pixel_values, nat, CFG)
    err = float(jnp.max(jnp.abs(feats - ref)))
    assert err < 3e-2, f"max abs err {err}"

    print("KERNEL_OK")
</pallas_src>

<mosaic_0001>
module attributes {stable_mosaic.version = 11 : i64} {
  func.func @_vit_kernel(%arg0: i32, %arg1: memref<1x34x192xf32, #tpu.memory_space<vmem>>, %arg2: memref<192x32xbf16, #tpu.memory_space<vmem>>, %arg3: memref<34x32xf32, #tpu.memory_space<vmem>>, %arg4: memref<4x32xf32, #tpu.memory_space<vmem>>, %arg5: memref<2x16x32x8xbf16, #tpu.memory_space<vmem>>, %arg6: memref<2x12x8xf32, #tpu.memory_space<vmem>>, %arg7: memref<2x8x64xf32, #tpu.memory_space<vmem>>, %arg8: memref<2x2x32x64xbf16, #tpu.memory_space<vmem>>, %arg9: memref<32x24xbf16, #tpu.memory_space<vmem>>, %arg10: memref<1x2x24xf32, #tpu.memory_space<vmem>>) attributes {dimension_semantics = [#tpu.dimension_semantics<parallel>], iteration_bounds = array<i64: 1>, scalar_prefetch = 0 : i64, scratch_operands = 0 : i64, tpu.core_type = #tpu.core_type<tc>, window_params = [{transform_indices = @transform_0, window_bounds = array<i64: 1, 34, 192>}, {pipeline_mode = #tpu.pipeline_mode<synchronous>, transform_indices = @transform_1, window_bounds = array<i64: 192, 32>}, {pipeline_mode = #tpu.pipeline_mode<synchronous>, transform_indices = @transform_2, window_bounds = array<i64: 34, 32>}, {pipeline_mode = #tpu.pipeline_mode<synchronous>, transform_indices = @transform_3, window_bounds = array<i64: 4, 32>}, {pipeline_mode = #tpu.pipeline_mode<synchronous>, transform_indices = @transform_4, window_bounds = array<i64: 2, 16, 32, 8>}, {pipeline_mode = #tpu.pipeline_mode<synchronous>, transform_indices = @transform_5, window_bounds = array<i64: 2, 12, 8>}, {pipeline_mode = #tpu.pipeline_mode<synchronous>, transform_indices = @transform_6, window_bounds = array<i64: 2, 8, 64>}, {pipeline_mode = #tpu.pipeline_mode<synchronous>, transform_indices = @transform_7, window_bounds = array<i64: 2, 2, 32, 64>}, {pipeline_mode = #tpu.pipeline_mode<synchronous>, transform_indices = @transform_8, window_bounds = array<i64: 32, 24>}, {transform_indices = @transform_9, window_bounds = array<i64: 1, 2, 24>}]} {
    %c0 = arith.constant 0 : index
    %c0_0 = arith.constant 0 : index
    %c0_1 = arith.constant 0 : index
    %0 = vector.load %arg1[%c0, %c0_0, %c0_1] : memref<1x34x192xf32, #tpu.memory_space<vmem>>, vector<1x34x192xf32>
    %1 = vector.shape_cast %0 : vector<1x34x192xf32> to vector<34x192xf32>
    %2 = arith.truncf %1 : vector<34x192xf32> to vector<34x192xbf16>
    %c0_2 = arith.constant 0 : index
    %c0_3 = arith.constant 0 : index
    %3 = vector.load %arg2[%c0_2, %c0_3] : memref<192x32xbf16, #tpu.memory_space<vmem>>, vector<192x32xbf16>
    %cst = arith.constant dense<0.000000e+00> : vector<34x32xf32>
    %4 = tpu.matmul %2, %3, %cst {dimension_numbers = #tpu.dot_dimension_numbers<[1], [0], [0], [1], [0, 0, 1, 1], [], []>} : vector<34x192xbf16>, vector<192x32xbf16>, vector<34x32xf32> -> vector<34x32xf32>
    %c0_4 = arith.constant 0 : index
    %c0_5 = arith.constant 0 : index
    %5 = vector.load %arg3[%c0_4, %c0_5] : memref<34x32xf32, #tpu.memory_space<vmem>>, vector<34x32xf32>
    %6 = arith.addf %4, %5 : vector<34x32xf32>
    %c0_6 = arith.constant 0 : index
    %c0_7 = arith.constant 0 : index
    %7 = vector.load %arg4[%c0_6, %c0_7] : memref<4x32xf32, #tpu.memory_space<vmem>>, vector<1x32xf32>
    %c1 = arith.constant 1 : index
    %c0_8 = arith.constant 0 : index
    %8 = vector.load %arg4[%c1, %c0_8] : memref<4x32xf32, #tpu.memory_space<vmem>>, vector<1x32xf32>
    %cst_9 = arith.constant dense<0.000000e+00> : vector<34xf32>
    %9 = vector.multi_reduction <add>, %6, %cst_9 [1] : vector<34x32xf32> to vector<34xf32>
    %10 = vector.shape_cast %9 : vector<34xf32> to vector<34x1xf32>
    %cst_10 = arith.constant 3.200000e+01 : f32
    %11 = vector.broadcast %cst_10 : f32 to vector<34x1xf32>
    %12 = arith.divf %10, %11 : vector<34x1xf32>
    %13 = vector.broadcast %12 : vector<34x1xf32> to vector<34x32xf32>
    %14 = arith.subf %6, %13 : vector<34x32xf32>
    %15 = arith.mulf %14, %14 : vector<34x32xf32>
    %cst_11 = arith.constant dense<0.000000e+00> : vector<34xf32>
    %16 = vector.multi_reduction <add>, %15, %cst_11 [1] : vector<34x32xf32> to vector<34xf32>
    %17 = vector.shape_cast %16 : vector<34xf32> to vector<34x1xf32>
    %cst_12 = arith.constant 3.200000e+01 : f32
    %18 = vector.broadcast %cst_12 : f32 to vector<34x1xf32>
    %19 = arith.divf %17, %18 : vector<34x1xf32>
    %20 = vector.broadcast %12 : vector<34x1xf32> to vector<34x32xf32>
    %21 = arith.subf %6, %20 : vector<34x32xf32>
    %cst_13 = arith.constant 9.99999974E-6 : f32
    %22 = vector.broadcast %cst_13 : f32 to vector<34x1xf32>
    %23 = arith.addf %19, %22 : vector<34x1xf32>
    %24 = math.rsqrt %23 : vector<34x1xf32>
    %25 = vector.broadcast %24 : vector<34x1xf32> to vector<34x32xf32>
    %26 = arith.mulf %21, %25 : vector<34x32xf32>
    %27 = vector.broadcast %7 : vector<1x32xf32> to vector<34x32xf32>
    %28 = arith.mulf %26, %27 : vector<34x32xf32>
    %29 = vector.broadcast %8 : vector<1x32xf32> to vector<34x32xf32>
    %30 = arith.addf %28, %29 : vector<34x32xf32>
    %c0_i32 = arith.constant 0 : i32
    %31 = arith.index_cast %c0_i32 : i32 to index
    %c0_14 = arith.constant 0 : index
    %c0_15 = arith.constant 0 : index
    %c0_16 = arith.constant 0 : index
    %32 = vector.load %arg5[%31, %c0_14, %c0_15, %c0_16] : memref<2x16x32x8xbf16, #tpu.memory_space<vmem>>, vector<1x16x32x8xbf16>
    %33 = vector.shape_cast %32 : vector<1x16x32x8xbf16> to vector<16x32x8xbf16>
    %34 = arith.index_cast %c0_i32 : i32 to index
    %c0_17 = arith.constant 0 : index
    %c0_18 = arith.constant 0 : index
    %35 = vector.load %arg6[%34, %c0_17, %c0_18] : memref<2x12x8xf32, #tpu.memory_space<vmem>>, vector<1x12x8xf32>
    %36 = vector.shape_cast %35 : vector<1x12x8xf32> to vector<12x8xf32>
    %37 = arith.index_cast %c0_i32 : i32 to index
    %c0_19 = arith.constant 0 : index
    %c0_20 = arith.constant 0 : index
    %38 = vector.load %arg7[%37, %c0_19, %c0_20] : memref<2x8x64xf32, #tpu.memory_space<vmem>>, vector<1x8x64xf32>
    %39 = vector.shape_cast %38 : vector<1x8x64xf32> to vector<8x64xf32>
    %40 = arith.index_cast %c0_i32 : i32 to index
    %c0_21 = arith.constant 0 : index
    %c0_22 = arith.constant 0 : index
    %c0_23 = arith.constant 0 : index
    %41 = vector.load %arg8[%40, %c0_21, %c0_22, %c0_23] : memref<2x2x32x64xbf16, #tpu.memory_space<vmem>>, vector<1x2x32x64xbf16>
    %42 = vector.shape_cast %41 : vector<1x2x32x64xbf16> to vector<2x32x64xbf16>
    %43 = vector.extract_strided_slice %39 {offsets = [0, 0], sizes = [1, 32], strides = [1, 1]} : vector<8x64xf32> to vector<1x32xf32>
    %44 = vector.extract_strided_slice %39 {offsets = [1, 0], sizes = [1, 32], strides = [1, 1]} : vector<8x64xf32> to vector<1x32xf32>
    %45 = vector.extract_strided_slice %39 {offsets = [2, 0], sizes = [1, 32], strides = [1, 1]} : vector<8x64xf32> to vector<1x32xf32>
    %46 = vector.extract_strided_slice %39 {offsets = [3, 0], sizes = [1, 32], strides = [1, 1]} : vector<8x64xf32> to vector<1x32xf32>
    %47 = vector.extract_strided_slice %39 {offsets = [4, 0], sizes = [1, 32], strides = [1, 1]} : vector<8x64xf32> to vector<1x32xf32>
    %48 = vector.extract_strided_slice %39 {offsets = [5, 0], sizes = [1, 32], strides = [1, 1]} : vector<8x64xf32> to vector<1x32xf32>
    %49 = vector.extract_strided_slice %39 {offsets = [6, 0], sizes = [1, 64], strides = [1, 1]} : vector<8x64xf32> to vector<1x64xf32>
    %cst_24 = arith.constant dense<0.000000e+00> : vector<34xf32>
    %50 = vector.multi_reduction <add>, %30, %cst_24 [1] : vector<34x32xf32> to vector<34xf32>
    %51 = vector.shape_cast %50 : vector<34xf32> to vector<34x1xf32>
    %cst_25 = arith.constant 3.200000e+01 : f32
    %52 = vector.broadcast %cst_25 : f32 to vector<34x1xf32>
    %53 = arith.divf %51, %52 : vector<34x1xf32>
    %54 = vector.broadcast %53 : vector<34x1xf32> to vector<34x32xf32>
    %55 = arith.subf %30, %54 : vector<34x32xf32>
    %56 = arith.mulf %55, %55 : vector<34x32xf32>
    %cst_26 = arith.constant dense<0.000000e+00> : vector<34xf32>
    %57 = vector.multi_reduction <add>, %56, %cst_26 [1] : vector<34x32xf32> to vector<34xf32>
    %58 = vector.shape_cast %57 : vector<34xf32> to vector<34x1xf32>
    %cst_27 = arith.constant 3.200000e+01 : f32
    %59 = vector.broadcast %cst_27 : f32 to vector<34x1xf32>
    %60 = arith.divf %58, %59 : vector<34x1xf32>
    %61 = vector.broadcast %53 : vector<34x1xf32> to vector<34x32xf32>
    %62 = arith.subf %30, %61 : vector<34x32xf32>
    %cst_28 = arith.constant 9.99999974E-6 : f32
    %63 = vector.broadcast %cst_28 : f32 to vector<34x1xf32>
    %64 = arith.addf %60, %63 : vector<34x1xf32>
    %65 = math.rsqrt %64 : vector<34x1xf32>
    %66 = vector.broadcast %65 : vector<34x1xf32> to vector<34x32xf32>
    %67 = arith.mulf %62, %66 : vector<34x32xf32>
    %68 = vector.broadcast %43 : vector<1x32xf32> to vector<34x32xf32>
    %69 = arith.mulf %67, %68 : vector<34x32xf32>
    %70 = vector.broadcast %44 : vector<1x32xf32> to vector<34x32xf32>
    %71 = arith.addf %69, %70 : vector<34x32xf32>
    %72 = arith.truncf %71 : vector<34x32xf32> to vector<34x32xbf16>
    %73 = vector.extract_strided_slice %33 {offsets = [0, 0, 0], sizes = [1, 32, 8], strides = [1, 1, 1]} : vector<16x32x8xbf16> to vector<1x32x8xbf16>
    %74 = vector.shape_cast %73 : vector<1x32x8xbf16> to vector<32x8xbf16>
    %cst_29 = arith.constant dense<0.000000e+00> : vector<34x8xf32>
    %75 = tpu.matmul %72, %74, %cst_29 {dimension_numbers = #tpu.dot_dimension_numbers<[1], [0], [0], [1], [0, 0, 1, 1], [], []>} : vector<34x32xbf16>, vector<32x8xbf16>, vector<34x8xf32> -> vector<34x8xf32>
    %76 = vector.extract_strided_slice %36 {offsets = [0, 0], sizes = [1, 8], strides = [1, 1]} : vector<12x8xf32> to vector<1x8xf32>
    %77 = vector.broadcast %76 : vector<1x8xf32> to vector<34x8xf32>
    %78 = arith.addf %75, %77 : vector<34x8xf32>
    %79 = vector.extract_strided_slice %33 {offsets = [4, 0, 0], sizes = [1, 32, 8], strides = [1, 1, 1]} : vector<16x32x8xbf16> to vector<1x32x8xbf16>
    %80 = vector.shape_cast %79 : vector<1x32x8xbf16> to vector<32x8xbf16>
    %cst_30 = arith.constant dense<0.000000e+00> : vector<34x8xf32>
    %81 = tpu.matmul %72, %80, %cst_30 {dimension_numbers = #tpu.dot_dimension_numbers<[1], [0], [0], [1], [0, 0, 1, 1], [], []>} : vector<34x32xbf16>, vector<32x8xbf16>, vector<34x8xf32> -> vector<34x8xf32>
    %82 = vector.extract_strided_slice %36 {offsets = [4, 0], sizes = [1, 8], strides = [1, 1]} : vector<12x8xf32> to vector<1x8xf32>
    %83 = vector.broadcast %82 : vector<1x8xf32> to vector<34x8xf32>
    %84 = arith.addf %81, %83 : vector<34x8xf32>
    %85 = vector.extract_strided_slice %33 {offsets = [8, 0, 0], sizes = [1, 32, 8], strides = [1, 1, 1]} : vector<16x32x8xbf16> to vector<1x32x8xbf16>
    %86 = vector.shape_cast %85 : vector<1x32x8xbf16> to vector<32x8xbf16>
    %cst_31 = arith.constant dense<0.000000e+00> : vector<34x8xf32>
    %87 = tpu.matmul %72, %86, %cst_31 {dimension_numbers = #tpu.dot_dimension_numbers<[1], [0], [0], [1], [0, 0, 1, 1], [], []>} : vector<34x32xbf16>, vector<32x8xbf16>, vector<34x8xf32> -> vector<34x8xf32>
    %88 = vector.extract_strided_slice %36 {offsets = [8, 0], sizes = [1, 8], strides = [1, 1]} : vector<12x8xf32> to vector<1x8xf32>
    %89 = vector.broadcast %88 : vector<1x8xf32> to vector<34x8xf32>
    %90 = arith.addf %87, %89 : vector<34x8xf32>
    %91 = arith.truncf %78 : vector<34x8xf32> to vector<34x8xbf16>
    %92 = arith.truncf %84 : vector<34x8xf32> to vector<34x8xbf16>
    %93 = arith.truncf %90 : vector<34x8xf32> to vector<34x8xbf16>
    %94 = vector.extract_strided_slice %33 {offsets = [1, 0, 0], sizes = [1, 32, 8], strides = [1, 1, 1]} : vector<16x32x8xbf16> to vector<1x32x8xbf16>
    %95 = vector.shape_cast %94 : vector<1x32x8xbf16> to vector<32x8xbf16>
    %cst_32 = arith.constant dense<0.000000e+00> : vector<34x8xf32>
    %96 = tpu.matmul %72, %95, %cst_32 {dimension_numbers = #tpu.dot_dimension_numbers<[1], [0], [0], [1], [0, 0, 1, 1], [], []>} : vector<34x32xbf16>, vector<32x8xbf16>, vector<34x8xf32> -> vector<34x8xf32>
    %97 = vector.extract_strided_slice %36 {offsets = [1, 0], sizes = [1, 8], strides = [1, 1]} : vector<12x8xf32> to vector<1x8xf32>
    %98 = vector.broadcast %97 : vector<1x8xf32> to vector<34x8xf32>
    %99 = arith.addf %96, %98 : vector<34x8xf32>
    %100 = vector.extract_strided_slice %33 {offsets = [5, 0, 0], sizes = [1, 32, 8], strides = [1, 1, 1]} : vector<16x32x8xbf16> to vector<1x32x8xbf16>
    %101 = vector.shape_cast %100 : vector<1x32x8xbf16> to vector<32x8xbf16>
    %cst_33 = arith.constant dense<0.000000e+00> : vector<34x8xf32>
    %102 = tpu.matmul %72, %101, %cst_33 {dimension_numbers = #tpu.dot_dimension_numbers<[1], [0], [0], [1], [0, 0, 1, 1], [], []>} : vector<34x32xbf16>, vector<32x8xbf16>, vector<34x8xf32> -> vector<34x8xf32>
    %103 = vector.extract_strided_slice %36 {offsets = [5, 0], sizes = [1, 8], strides = [1, 1]} : vector<12x8xf32> to vector<1x8xf32>
    %104 = vector.broadcast %103 : vector<1x8xf32> to vector<34x8xf32>
    %105 = arith.addf %102, %104 : vector<34x8xf32>
    %106 = vector.extract_strided_slice %33 {offsets = [9, 0, 0], sizes = [1, 32, 8], strides = [1, 1, 1]} : vector<16x32x8xbf16> to vector<1x32x8xbf16>
    %107 = vector.shape_cast %106 : vector<1x32x8xbf16> to vector<32x8xbf16>
    %cst_34 = arith.constant dense<0.000000e+00> : vector<34x8xf32>
    %108 = tpu.matmul %72, %107, %cst_34 {dimension_numbers = #tpu.dot_dimension_numbers<[1], [0], [0], [1], [0, 0, 1, 1], [], []>} : vector<34x32xbf16>, vector<32x8xbf16>, vector<34x8xf32> -> vector<34x8xf32>
    %109 = vector.extract_strided_slice %36 {offsets = [9, 0], sizes = [1, 8], strides = [1, 1]} : vector<12x8xf32> to vector<1x8xf32>
    %110 = vector.broadcast %109 : vector<1x8xf32> to vector<34x8xf32>
    %111 = arith.addf %108, %110 : vector<34x8xf32>
    %112 = arith.truncf %99 : vector<34x8xf32> to vector<34x8xbf16>
    %113 = arith.truncf %105 : vector<34x8xf32> to vector<34x8xbf16>
    %114 = arith.truncf %111 : vector<34x8xf32> to vector<34x8xbf16>
    %115 = vector.extract_strided_slice %33 {offsets = [2, 0, 0], sizes = [1, 32, 8], strides = [1, 1, 1]} : vector<16x32x8xbf16> to vector<1x32x8xbf16>
    %116 = vector.shape_cast %115 : vector<1x32x8xbf16> to vector<32x8xbf16>
    %cst_35 = arith.constant dense<0.000000e+00> : vector<34x8xf32>
    %117 = tpu.matmul %72, %116, %cst_35 {dimension_numbers = #tpu.dot_dimension_numbers<[1], [0], [0], [1], [0, 0, 1, 1], [], []>} : vector<34x32xbf16>, vector<32x8xbf16>, vector<34x8xf32> -> vector<34x8xf32>
    %118 = vector.extract_strided_slice %36 {offsets = [2, 0], sizes = [1, 8], strides = [1, 1]} : vector<12x8xf32> to vector<1x8xf32>
    %119 = vector.broadcast %118 : vector<1x8xf32> to vector<34x8xf32>
    %120 = arith.addf %117, %119 : vector<34x8xf32>
    %121 = vector.extract_strided_slice %33 {offsets = [6, 0, 0], sizes = [1, 32, 8], strides = [1, 1, 1]} : vector<16x32x8xbf16> to vector<1x32x8xbf16>
    %122 = vector.shape_cast %121 : vector<1x32x8xbf16> to vector<32x8xbf16>
    %cst_36 = arith.constant dense<0.000000e+00> : vector<34x8xf32>
    %123 = tpu.matmul %72, %122, %cst_36 {dimension_numbers = #tpu.dot_dimension_numbers<[1], [0], [0], [1], [0, 0, 1, 1], [], []>} : vector<34x32xbf16>, vector<32x8xbf16>, vector<34x8xf32> -> vector<34x8xf32>
    %124 = vector.extract_strided_slice %36 {offsets = [6, 0], sizes = [1, 8], strides = [1, 1]} : vector<12x8xf32> to vector<1x8xf32>
    %125 = vector.broadcast %124 : vector<1x8xf32> to vector<34x8xf32>
    %126 = arith.addf %123, %125 : vector<34x8xf32>
    %127 = vector.extract_strided_slice %33 {offsets = [10, 0, 0], sizes = [1, 32, 8], strides = [1, 1, 1]} : vector<16x32x8xbf16> to vector<1x32x8xbf16>
    %128 = vector.shape_cast %127 : vector<1x32x8xbf16> to vector<32x8xbf16>
    %cst_37 = arith.constant dense<0.000000e+00> : vector<34x8xf32>
    %129 = tpu.matmul %72, %128, %cst_37 {dimension_numbers = #tpu.dot_dimension_numbers<[1], [0], [0], [1], [0, 0, 1, 1], [], []>} : vector<34x32xbf16>, vector<32x8xbf16>, vector<34x8xf32> -> vector<34x8xf32>
    %130 = vector.extract_strided_slice %36 {offsets = [10, 0], sizes = [1, 8], strides = [1, 1]} : vector<12x8xf32> to vector<1x8xf32>
    %131 = vector.broadcast %130 : vector<1x8xf32> to vector<34x8xf32>
    %132 = arith.addf %129, %131 : vector<34x8xf32>
    %133 = arith.truncf %120 : vector<34x8xf32> to vector<34x8xbf16>
    %134 = arith.truncf %126 : vector<34x8xf32> to vector<34x8xbf16>
    %135 = arith.truncf %132 : vector<34x8xf32> to vector<34x8xbf16>
    %136 = vector.extract_strided_slice %33 {offsets = [3, 0, 0], sizes = [1, 32, 8], strides = [1, 1, 1]} : vector<16x32x8xbf16> to vector<1x32x8xbf16>
    %137 = vector.shape_cast %136 : vector<1x32x8xbf16> to vector<32x8xbf16>
    %cst_38 = arith.constant dense<0.000000e+00> : vector<34x8xf32>
    %138 = tpu.matmul %72, %137, %cst_38 {dimension_numbers = #tpu.dot_dimension_numbers<[1], [0], [0], [1], [0, 0, 1, 1], [], []>} : vector<34x32xbf16>, vector<32x8xbf16>, vector<34x8xf32> -> vector<34x8xf32>
    %139 = vector.extract_strided_slice %36 {offsets = [3, 0], sizes = [1, 8], strides = [1, 1]} : vector<12x8xf32> to vector<1x8xf32>
    %140 = vector.broadcast %139 : vector<1x8xf32> to vector<34x8xf32>
    %141 = arith.addf %138, %140 : vector<34x8xf32>
    %142 = vector.extract_strided_slice %33 {offsets = [7, 0, 0], sizes = [1, 32, 8], strides = [1, 1, 1]} : vector<16x32x8xbf16> to vector<1x32x8xbf16>
    %143 = vector.shape_cast %142 : vector<1x32x8xbf16> to vector<32x8xbf16>
    %cst_39 = arith.constant dense<0.000000e+00> : vector<34x8xf32>
    %144 = tpu.matmul %72, %143, %cst_39 {dimension_numbers = #tpu.dot_dimension_numbers<[1], [0], [0], [1], [0, 0, 1, 1], [], []>} : vector<34x32xbf16>, vector<32x8xbf16>, vector<34x8xf32> -> vector<34x8xf32>
    %145 = vector.extract_strided_slice %36 {offsets = [7, 0], sizes = [1, 8], strides = [1, 1]} : vector<12x8xf32> to vector<1x8xf32>
    %146 = vector.broadcast %145 : vector<1x8xf32> to vector<34x8xf32>
    %147 = arith.addf %144, %146 : vector<34x8xf32>
    %148 = vector.extract_strided_slice %33 {offsets = [11, 0, 0], sizes = [1, 32, 8], strides = [1, 1, 1]} : vector<16x32x8xbf16> to vector<1x32x8xbf16>
    %149 = vector.shape_cast %148 : vector<1x32x8xbf16> to vector<32x8xbf16>
    %cst_40 = arith.constant dense<0.000000e+00> : vector<34x8xf32>
    %150 = tpu.matmul %72, %149, %cst_40 {dimension_numbers = #tpu.dot_dimension_numbers<[1], [0], [0], [1], [0, 0, 1, 1], [], []>} : vector<34x32xbf16>, vector<32x8xbf16>, vector<34x8xf32> -> vector<34x8xf32>
    %151 = vector.extract_strided_slice %36 {offsets = [11, 0], sizes = [1, 8], strides = [1, 1]} : vector<12x8xf32> to vector<1x8xf32>
    %152 = vector.broadcast %151 : vector<1x8xf32> to vector<34x8xf32>
    %153 = arith.addf %150, %152 : vector<34x8xf32>
    %154 = arith.truncf %141 : vector<34x8xf32> to vector<34x8xbf16>
    %155 = arith.truncf %147 : vector<34x8xf32> to vector<34x8xbf16>
    %156 = arith.truncf %153 : vector<34x8xf32> to vector<34x8xbf16>
    %157 = vector.extract_strided_slice %91 {offsets = [0, 0], sizes = [17, 8], strides = [1, 1]} : vector<34x8xbf16> to vector<17x8xbf16>
    %158 = vector.extract_strided_slice %92 {offsets = [0, 0], sizes = [17, 8], strides = [1, 1]} : vector<34x8xbf16> to vector<17x8xbf16>
    %159 = vector.extract_strided_slice %93 {offsets = [0, 0], sizes = [17, 8], strides = [1, 1]} : vector<34x8xbf16> to vector<17x8xbf16>
    %cst_41 = arith.constant dense<0.000000e+00> : vector<17x17xf32>
    %160 = tpu.matmul %157, %158, %cst_41 {dimension_numbers = #tpu.dot_dimension_numbers<[1], [1], [0], [0], [0, 0, 1, 0], [], []>} : vector<17x8xbf16>, vector<17x8xbf16>, vector<17x17xf32> -> vector<17x17xf32>
    %cst_42 = arith.constant dense<0xFF800000> : vector<17xf32>
    %161 = vector.multi_reduction <maximumf>, %160, %cst_42 [1] : vector<17x17xf32> to vector<17xf32>
    %162 = vector.shape_cast %161 : vector<17xf32> to vector<17x1xf32>
    %163 = vector.broadcast %162 : vector<17x1xf32> to vector<17x17xf32>
    %164 = arith.subf %160, %163 : vector<17x17xf32>
    %165 = math.exp %164 : vector<17x17xf32>
    %cst_43 = arith.constant dense<0.000000e+00> : vector<17xf32>
    %166 = vector.multi_reduction <add>, %165, %cst_43 [1] : vector<17x17xf32> to vector<17xf32>
    %167 = vector.shape_cast %166 : vector<17xf32> to vector<17x1xf32>
    %168 = tpu.reciprocal %167 {approx = true} : vector<17x1xf32> -> vector<17x1xf32>
    %169 = vector.broadcast %168 : vector<17x1xf32> to vector<17x17xf32>
    %170 = arith.mulf %165, %169 : vector<17x17xf32>
    %171 = arith.truncf %170 : vector<17x17xf32> to vector<17x17xbf16>
    %cst_44 = arith.constant dense<0.000000e+00> : vector<17x8xf32>
    %172 = tpu.matmul %171, %159, %cst_44 {dimension_numbers = #tpu.dot_dimension_numbers<[1], [0], [0], [1], [0, 0, 1, 1], [], []>} : vector<17x17xbf16>, vector<17x8xbf16>, vector<17x8xf32> -> vector<17x8xf32>
    %173 = arith.truncf %172 : vector<17x8xf32> to vector<17x8xbf16>
    %174 = vector.extract_strided_slice %33 {offsets = [12, 0, 0], sizes = [1, 32, 8], strides = [1, 1, 1]} : vector<16x32x8xbf16> to vector<1x32x8xbf16>
    %175 = vector.shape_cast %174 : vector<1x32x8xbf16> to vector<32x8xbf16>
    %cst_45 = arith.constant dense<0.000000e+00> : vector<17x32xf32>
    %176 = tpu.matmul %173, %175, %cst_45 {dimension_numbers = #tpu.dot_dimension_numbers<[1], [1], [0], [0], [0, 0, 1, 0], [], []>} : vector<17x8xbf16>, vector<32x8xbf16>, vector<17x32xf32> -> vector<17x32xf32>
    %177 = vector.extract_strided_slice %112 {offsets = [0, 0], sizes = [17, 8], strides = [1, 1]} : vector<34x8xbf16> to vector<17x8xbf16>
    %178 = vector.extract_strided_slice %113 {offsets = [0, 0], sizes = [17, 8], strides = [1, 1]} : vector<34x8xbf16> to vector<17x8xbf16>
    %179 = vector.extract_strided_slice %114 {offsets = [0, 0], sizes = [17, 8], strides = [1, 1]} : vector<34x8xbf16> to vector<17x8xbf16>
    %cst_46 = arith.constant dense<0.000000e+00> : vector<17x17xf32>
    %180 = tpu.matmul %177, %178, %cst_46 {dimension_numbers = #tpu.dot_dimension_numbers<[1], [1], [0], [0], [0, 0, 1, 0], [], []>} : vector<17x8xbf16>, vector<17x8xbf16>, vector<17x17xf32> -> vector<17x17xf32>
    %cst_47 = arith.constant dense<0xFF800000> : vector<17xf32>
    %181 = vector.multi_reduction <maximumf>, %180, %cst_47 [1] : vector<17x17xf32> to vector<17xf32>
    %182 = vector.shape_cast %181 : vector<17xf32> to vector<17x1xf32>
    %183 = vector.broadcast %182 : vector<17x1xf32> to vector<17x17xf32>
    %184 = arith.subf %180, %183 : vector<17x17xf32>
    %185 = math.exp %184 : vector<17x17xf32>
    %cst_48 = arith.constant dense<0.000000e+00> : vector<17xf32>
    %186 = vector.multi_reduction <add>, %185, %cst_48 [1] : vector<17x17xf32> to vector<17xf32>
    %187 = vector.shape_cast %186 : vector<17xf32> to vector<17x1xf32>
    %188 = tpu.reciprocal %187 {approx = true} : vector<17x1xf32> -> vector<17x1xf32>
    %189 = vector.broadcast %188 : vector<17x1xf32> to vector<17x17xf32>
    %190 = arith.mulf %185, %189 : vector<17x17xf32>
    %191 = arith.truncf %190 : vector<17x17xf32> to vector<17x17xbf16>
    %cst_49 = arith.constant dense<0.000000e+00> : vector<17x8xf32>
    %192 = tpu.matmul %191, %179, %cst_49 {dimension_numbers = #tpu.dot_dimension_numbers<[1], [0], [0], [1], [0, 0, 1, 1], [], []>} : vector<17x17xbf16>, vector<17x8xbf16>, vector<17x8xf32> -> vector<17x8xf32>
    %193 = arith.truncf %192 : vector<17x8xf32> to vector<17x8xbf16>
    %194 = vector.extract_strided_slice %33 {offsets = [13, 0, 0], sizes = [1, 32, 8], strides = [1, 1, 1]} : vector<16x32x8xbf16> to vector<1x32x8xbf16>
    %195 = vector.shape_cast %194 : vector<1x32x8xbf16> to vector<32x8xbf16>
    %cst_50 = arith.constant dense<0.000000e+00> : vector<17x32xf32>
    %196 = tpu.matmul %193, %195, %cst_50 {dimension_numbers = #tpu.dot_dimension_numbers<[1], [1], [0], [0], [0, 0, 1, 0], [], []>} : vector<17x8xbf16>, vector<32x8xbf16>, vector<17x32xf32> -> vector<17x32xf32>
    %197 = arith.addf %176, %196 : vector<17x32xf32>
    %198 = vector.extract_strided_slice %133 {offsets = [0, 0], sizes = [17, 8], strides = [1, 1]} : vector<34x8xbf16> to vector<17x8xbf16>
    %199 = vector.extract_strided_slice %134 {offsets = [0, 0], sizes = [17, 8], strides = [1, 1]} : vector<34x8xbf16> to vector<17x8xbf16>
    %200 = vector.extract_strided_slice %135 {offsets = [0, 0], sizes = [17, 8], strides = [1, 1]} : vector<34x8xbf16> to vector<17x8xbf16>
    %cst_51 = arith.constant dense<0.000000e+00> : vector<17x17xf32>
    %201 = tpu.matmul %198, %199, %cst_51 {dimension_numbers = #tpu.dot_dimension_numbers<[1], [1], [0], [0], [0, 0, 1, 0], [], []>} : vector<17x8xbf16>, vector<17x8xbf16>, vector<17x17xf32> -> vector<17x17xf32>
    %cst_52 = arith.constant dense<0xFF800000> : vector<17xf32>
    %202 = vector.multi_reduction <maximumf>, %201, %cst_52 [1] : vector<17x17xf32> to vector<17xf32>
    %203 = vector.shape_cast %202 : vector<17xf32> to vector<17x1xf32>
    %204 = vector.broadcast %203 : vector<17x1xf32> to vector<17x17xf32>
    %205 = arith.subf %201, %204 : vector<17x17xf32>
    %206 = math.exp %205 : vector<17x17xf32>
    %cst_53 = arith.constant dense<0.000000e+00> : vector<17xf32>
    %207 = vector.multi_reduction <add>, %206, %cst_53 [1] : vector<17x17xf32> to vector<17xf32>
    %208 = vector.shape_cast %207 : vector<17xf32> to vector<17x1xf32>
    %209 = tpu.reciprocal %208 {approx = true} : vector<17x1xf32> -> vector<17x1xf32>
    %210 = vector.broadcast %209 : vector<17x1xf32> to vector<17x17xf32>
    %211 = arith.mulf %206, %210 : vector<17x17xf32>
    %212 = arith.truncf %211 : vector<17x17xf32> to vector<17x17xbf16>
    %cst_54 = arith.constant dense<0.000000e+00> : vector<17x8xf32>
    %213 = tpu.matmul %212, %200, %cst_54 {dimension_numbers = #tpu.dot_dimension_numbers<[1], [0], [0], [1], [0, 0, 1, 1], [], []>} : vector<17x17xbf16>, vector<17x8xbf16>, vector<17x8xf32> -> vector<17x8xf32>
    %214 = arith.truncf %213 : vector<17x8xf32> to vector<17x8xbf16>
    %215 = vector.extract_strided_slice %33 {offsets = [14, 0, 0], sizes = [1, 32, 8], strides = [1, 1, 1]} : vector<16x32x8xbf16> to vector<1x32x8xbf16>
    %216 = vector.shape_cast %215 : vector<1x32x8xbf16> to vector<32x8xbf16>
    %cst_55 = arith.constant dense<0.000000e+00> : vector<17x32xf32>
    %217 = tpu.matmul %214, %216, %cst_55 {dimension_numbers = #tpu.dot_dimension_numbers<[1], [1], [0], [0], [0, 0, 1, 0], [], []>} : vector<17x8xbf16>, vector<32x8xbf16>, vector<17x32xf32> -> vector<17x32xf32>
    %218 = arith.addf %197, %217 : vector<17x32xf32>
    %219 = vector.extract_strided_slice %154 {offsets = [0, 0], sizes = [17, 8], strides = [1, 1]} : vector<34x8xbf16> to vector<17x8xbf16>
    %220 = vector.extract_strided_slice %155 {offsets = [0, 0], sizes = [17, 8], strides = [1, 1]} : vector<34x8xbf16> to vector<17x8xbf16>
    %221 = vector.extract_strided_slice %156 {offsets = [0, 0], sizes = [17, 8], strides = [1, 1]} : vector<34x8xbf16> to vector<17x8xbf16>
    %cst_56 = arith.constant dense<0.000000e+00> : vector<17x17xf32>
    %222 = tpu.matmul %219, %220, %cst_56 {dimension_numbers = #tpu.dot_dimension_numbers<[1], [1], [0], [0], [0, 0, 1, 0], [], []>} : vector<17x8xbf16>, vector<17x8xbf16>, vector<17x17xf32> -> vector<17x17xf32>
    %cst_57 = arith.constant dense<0xFF800000> : vector<17xf32>
    %223 = vector.multi_reduction <maximumf>, %222, %cst_57 [1] : vector<17x17xf32> to vector<17xf32>
    %224 = vector.shape_cast %223 : vector<17xf32> to vector<17x1xf32>
    %225 = vector.broadcast %224 : vector<17x1xf32> to vector<17x17xf32>
    %226 = arith.subf %222, %225 : vector<17x17xf32>
    %227 = math.exp %226 : vector<17x17xf32>
    %cst_58 = arith.constant dense<0.000000e+00> : vector<17xf32>
    %228 = vector.multi_reduction <add>, %227, %cst_58 [1] : vector<17x17xf32> to vector<17xf32>
    %229 = vector.shape_cast %228 : vector<17xf32> to vector<17x1xf32>
    %230 = tpu.reciprocal %229 {approx = true} : vector<17x1xf32> -> vector<17x1xf32>
    %231 = vector.broadcast %230 : vector<17x1xf32> to vector<17x17xf32>
    %232 = arith.mulf %227, %231 : vector<17x17xf32>
    %233 = arith.truncf %232 : vector<17x17xf32> to vector<17x17xbf16>
    %cst_59 = arith.constant dense<0.000000e+00> : vector<17x8xf32>
    %234 = tpu.matmul %233, %221, %cst_59 {dimension_numbers = #tpu.dot_dimension_numbers<[1], [0], [0], [1], [0, 0, 1, 1], [], []>} : vector<17x17xbf16>, vector<17x8xbf16>, vector<17x8xf32> -> vector<17x8xf32>
    %235 = arith.truncf %234 : vector<17x8xf32> to vector<17x8xbf16>
    %236 = vector.extract_strided_slice %33 {offsets = [15, 0, 0], sizes = [1, 32, 8], strides = [1, 1, 1]} : vector<16x32x8xbf16> to vector<1x32x8xbf16>
    %237 = vector.shape_cast %236 : vector<1x32x8xbf16> to vector<32x8xbf16>
    %cst_60 = arith.constant dense<0.000000e+00> : vector<17x32xf32>
    %238 = tpu.matmul %235, %237, %cst_60 {dimension_numbers = #tpu.dot_dimension_numbers<[1], [1], [0], [0], [0, 0, 1, 0], [], []>} : vector<17x8xbf16>, vector<32x8xbf16>, vector<17x32xf32> -> vector<17x32xf32>
    %239 = arith.addf %218, %238 : vector<17x32xf32>
    %240 = vector.extract_strided_slice %91 {offsets = [17, 0], sizes = [17, 8], strides = [1, 1]} : vector<34x8xbf16> to vector<17x8xbf16>
    %241 = vector.extract_strided_slice %92 {offsets = [17, 0], sizes = [17, 8], strides = [1, 1]} : vector<34x8xbf16> to vector<17x8xbf16>
    %242 = vector.extract_strided_slice %93 {offsets = [17, 0], sizes = [17, 8], strides = [1, 1]} : vector<34x8xbf16> to vector<17x8xbf16>
    %cst_61 = arith.constant dense<0.000000e+00> : vector<17x17xf32>
    %243 = tpu.matmul %240, %241, %cst_61 {dimension_numbers = #tpu.dot_dimension_numbers<[1], [1], [0], [0], [0, 0, 1, 0], [], []>} : vector<17x8xbf16>, vector<17x8xbf16>, vector<17x17xf32> -> vector<17x17xf32>
    %cst_62 = arith.constant dense<0xFF800000> : vector<17xf32>
    %244 = vector.multi_reduction <maximumf>, %243, %cst_62 [1] : vector<17x17xf32> to vector<17xf32>
    %245 = vector.shape_cast %244 : vector<17xf32> to vector<17x1xf32>
    %246 = vector.broadcast %245 : vector<17x1xf32> to vector<17x17xf32>
    %247 = arith.subf %243, %246 : vector<17x17xf32>
    %248 = math.exp %247 : vector<17x17xf32>
    %cst_63 = arith.constant dense<0.000000e+00> : vector<17xf32>
    %249 = vector.multi_reduction <add>, %248, %cst_63 [1] : vector<17x17xf32> to vector<17xf32>
    %250 = vector.shape_cast %249 : vector<17xf32> to vector<17x1xf32>
    %251 = tpu.reciprocal %250 {approx = true} : vector<17x1xf32> -> vector<17x1xf32>
    %252 = vector.broadcast %251 : vector<17x1xf32> to vector<17x17xf32>
    %253 = arith.mulf %248, %252 : vector<17x17xf32>
    %254 = arith.truncf %253 : vector<17x17xf32> to vector<17x17xbf16>
    %cst_64 = arith.constant dense<0.000000e+00> : vector<17x8xf32>
    %255 = tpu.matmul %254, %242, %cst_64 {dimension_numbers = #tpu.dot_dimension_numbers<[1], [0], [0], [1], [0, 0, 1, 1], [], []>} : vector<17x17xbf16>, vector<17x8xbf16>, vector<17x8xf32> -> vector<17x8xf32>
    %256 = arith.truncf %255 : vector<17x8xf32> to vector<17x8xbf16>
    %257 = vector.extract_strided_slice %33 {offsets = [12, 0, 0], sizes = [1, 32, 8], strides = [1, 1, 1]} : vector<16x32x8xbf16> to vector<1x32x8xbf16>
    %258 = vector.shape_cast %257 : vector<1x32x8xbf16> to vector<32x8xbf16>
    %cst_65 = arith.constant dense<0.000000e+00> : vector<17x32xf32>
    %259 = tpu.matmul %256, %258, %cst_65 {dimension_numbers = #tpu.dot_dimension_numbers<[1], [1], [0], [0], [0, 0, 1, 0], [], []>} : vector<17x8xbf16>, vector<32x8xbf16>, vector<17x32xf32> -> vector<17x32xf32>
    %260 = vector.extract_strided_slice %112 {offsets = [17, 0], sizes = [17, 8], strides = [1, 1]} : vector<34x8xbf16> to vector<17x8xbf16>
    %261 = vector.extract_strided_slice %113 {offsets = [17, 0], sizes = [17, 8], strides = [1, 1]} : vector<34x8xbf16> to vector<17x8xbf16>
    %262 = vector.extract_strided_slice %114 {offsets = [17, 0], sizes = [17, 8], strides = [1, 1]} : vector<34x8xbf16> to vector<17x8xbf16>
    %cst_66 = arith.constant dense<0.000000e+00> : vector<17x17xf32>
    %263 = tpu.matmul %260, %261, %cst_66 {dimension_numbers = #tpu.dot_dimension_numbers<[1], [1], [0], [0], [0, 0, 1, 0], [], []>} : vector<17x8xbf16>, vector<17x8xbf16>, vector<17x17xf32> -> vector<17x17xf32>
    %cst_67 = arith.constant dense<0xFF800000> : vector<17xf32>
    %264 = vector.multi_reduction <maximumf>, %263, %cst_67 [1] : vector<17x17xf32> to vector<17xf32>
    %265 = vector.shape_cast %264 : vector<17xf32> to vector<17x1xf32>
    %266 = vector.broadcast %265 : vector<17x1xf32> to vector<17x17xf32>
    %267 = arith.subf %263, %266 : vector<17x17xf32>
    %268 = math.exp %267 : vector<17x17xf32>
    %cst_68 = arith.constant dense<0.000000e+00> : vector<17xf32>
    %269 = vector.multi_reduction <add>, %268, %cst_68 [1] : vector<17x17xf32> to vector<17xf32>
    %270 = vector.shape_cast %269 : vector<17xf32> to vector<17x1xf32>
    %271 = tpu.reciprocal %270 {approx = true} : vector<17x1xf32> -> vector<17x1xf32>
    %272 = vector.broadcast %271 : vector<17x1xf32> to vector<17x17xf32>
    %273 = arith.mulf %268, %272 : vector<17x17xf32>
    %274 = arith.truncf %273 : vector<17x17xf32> to vector<17x17xbf16>
    %cst_69 = arith.constant dense<0.000000e+00> : vector<17x8xf32>
    %275 = tpu.matmul %274, %262, %cst_69 {dimension_numbers = #tpu.dot_dimension_numbers<[1], [0], [0], [1], [0, 0, 1, 1], [], []>} : vector<17x17xbf16>, vector<17x8xbf16>, vector<17x8xf32> -> vector<17x8xf32>
    %276 = arith.truncf %275 : vector<17x8xf32> to vector<17x8xbf16>
    %277 = vector.extract_strided_slice %33 {offsets = [13, 0, 0], sizes = [1, 32, 8], strides = [1, 1, 1]} : vector<16x32x8xbf16> to vector<1x32x8xbf16>
    %278 = vector.shape_cast %277 : vector<1x32x8xbf16> to vector<32x8xbf16>
    %cst_70 = arith.constant dense<0.000000e+00> : vector<17x32xf32>
    %279 = tpu.matmul %276, %278, %cst_70 {dimension_numbers = #tpu.dot_dimension_numbers<[1], [1], [0], [0], [0, 0, 1, 0], [], []>} : vector<17x8xbf16>, vector<32x8xbf16>, vector<17x32xf32> -> vector<17x32xf32>
    %280 = arith.addf %259, %279 : vector<17x32xf32>
    %281 = vector.extract_strided_slice %133 {offsets = [17, 0], sizes = [17, 8], strides = [1, 1]} : vector<34x8xbf16> to vector<17x8xbf16>
    %282 = vector.extract_strided_slice %134 {offsets = [17, 0], sizes = [17, 8], strides = [1, 1]} : vector<34x8xbf16> to vector<17x8xbf16>
    %283 = vector.extract_strided_slice %135 {offsets = [17, 0], sizes = [17, 8], strides = [1, 1]} : vector<34x8xbf16> to vector<17x8xbf16>
    %cst_71 = arith.constant dense<0.000000e+00> : vector<17x17xf32>
    %284 = tpu.matmul %281, %282, %cst_71 {dimension_numbers = #tpu.dot_dimension_numbers<[1], [1], [0], [0], [0, 0, 1, 0], [], []>} : vector<17x8xbf16>, vector<17x8xbf16>, vector<17x17xf32> -> vector<17x17xf32>
    %cst_72 = arith.constant dense<0xFF800000> : vector<17xf32>
    %285 = vector.multi_reduction <maximumf>, %284, %cst_72 [1] : vector<17x17xf32> to vector<17xf32>
    %286 = vector.shape_cast %285 : vector<17xf32> to vector<17x1xf32>
    %287 = vector.broadcast %286 : vector<17x1xf32> to vector<17x17xf32>
    %288 = arith.subf %284, %287 : vector<17x17xf32>
    %289 = math.exp %288 : vector<17x17xf32>
    %cst_73 = arith.constant dense<0.000000e+00> : vector<17xf32>
    %290 = vector.multi_reduction <add>, %289, %cst_73 [1] : vector<17x17xf32> to vector<17xf32>
    %291 = vector.shape_cast %290 : vector<17xf32> to vector<17x1xf32>
    %292 = tpu.reciprocal %291 {approx = true} : vector<17x1xf32> -> vector<17x1xf32>
    %293 = vector.broadcast %292 : vector<17x1xf32> to vector<17x17xf32>
    %294 = arith.mulf %289, %293 : vector<17x17xf32>
    %295 = arith.truncf %294 : vector<17x17xf32> to vector<17x17xbf16>
    %cst_74 = arith.constant dense<0.000000e+00> : vector<17x8xf32>
    %296 = tpu.matmul %295, %283, %cst_74 {dimension_numbers = #tpu.dot_dimension_numbers<[1], [0], [0], [1], [0, 0, 1, 1], [], []>} : vector<17x17xbf16>, vector<17x8xbf16>, vector<17x8xf32> -> vector<17x8xf32>
    %297 = arith.truncf %296 : vector<17x8xf32> to vector<17x8xbf16>
    %298 = vector.extract_strided_slice %33 {offsets = [14, 0, 0], sizes = [1, 32, 8], strides = [1, 1, 1]} : vector<16x32x8xbf16> to vector<1x32x8xbf16>
    %299 = vector.shape_cast %298 : vector<1x32x8xbf16> to vector<32x8xbf16>
    %cst_75 = arith.constant dense<0.000000e+00> : vector<17x32xf32>
    %300 = tpu.matmul %297, %299, %cst_75 {dimension_numbers = #tpu.dot_dimension_numbers<[1], [1], [0], [0], [0, 0, 1, 0], [], []>} : vector<17x8xbf16>, vector<32x8xbf16>, vector<17x32xf32> -> vector<17x32xf32>
    %301 = arith.addf %280, %300 : vector<17x32xf32>
    %302 = vector.extract_strided_slice %154 {offsets = [17, 0], sizes = [17, 8], strides = [1, 1]} : vector<34x8xbf16> to vector<17x8xbf16>
    %303 = vector.extract_strided_slice %155 {offsets = [17, 0], sizes = [17, 8], strides = [1, 1]} : vector<34x8xbf16> to vector<17x8xbf16>
    %304 = vector.extract_strided_slice %156 {offsets = [17, 0], sizes = [17, 8], strides = [1, 1]} : vector<34x8xbf16> to vector<17x8xbf16>
    %cst_76 = arith.constant dense<0.000000e+00> : vector<17x17xf32>
    %305 = tpu.matmul %302, %303, %cst_76 {dimension_numbers = #tpu.dot_dimension_numbers<[1], [1], [0], [0], [0, 0, 1, 0], [], []>} : vector<17x8xbf16>, vector<17x8xbf16>, vector<17x17xf32> -> vector<17x17xf32>
    %cst_77 = arith.constant dense<0xFF800000> : vector<17xf32>
    %306 = vector.multi_reduction <maximumf>, %305, %cst_77 [1] : vector<17x17xf32> to vector<17xf32>
    %307 = vector.shape_cast %306 : vector<17xf32> to vector<17x1xf32>
    %308 = vector.broadcast %307 : vector<17x1xf32> to vector<17x17xf32>
    %309 = arith.subf %305, %308 : vector<17x17xf32>
    %310 = math.exp %309 : vector<17x17xf32>
    %cst_78 = arith.constant dense<0.000000e+00> : vector<17xf32>
    %311 = vector.multi_reduction <add>, %310, %cst_78 [1] : vector<17x17xf32> to vector<17xf32>
    %312 = vector.shape_cast %311 : vector<17xf32> to vector<17x1xf32>
    %313 = tpu.reciprocal %312 {approx = true} : vector<17x1xf32> -> vector<17x1xf32>
    %314 = vector.broadcast %313 : vector<17x1xf32> to vector<17x17xf32>
    %315 = arith.mulf %310, %314 : vector<17x17xf32>
    %316 = arith.truncf %315 : vector<17x17xf32> to vector<17x17xbf16>
    %cst_79 = arith.constant dense<0.000000e+00> : vector<17x8xf32>
    %317 = tpu.matmul %316, %304, %cst_79 {dimension_numbers = #tpu.dot_dimension_numbers<[1], [0], [0], [1], [0, 0, 1, 1], [], []>} : vector<17x17xbf16>, vector<17x8xbf16>, vector<17x8xf32> -> vector<17x8xf32>
    %318 = arith.truncf %317 : vector<17x8xf32> to vector<17x8xbf16>
    %319 = vector.extract_strided_slice %33 {offsets = [15, 0, 0], sizes = [1, 32, 8], strides = [1, 1, 1]} : vector<16x32x8xbf16> to vector<1x32x8xbf16>
    %320 = vector.shape_cast %319 : vector<1x32x8xbf16> to vector<32x8xbf16>
    %cst_80 = arith.constant dense<0.000000e+00> : vector<17x32xf32>
    %321 = tpu.matmul %318, %320, %cst_80 {dimension_numbers = #tpu.dot_dimension_numbers<[1], [1], [0], [0], [0, 0, 1, 0], [], []>} : vector<17x8xbf16>, vector<32x8xbf16>, vector<17x32xf32> -> vector<17x32xf32>
    %322 = arith.addf %301, %321 : vector<17x32xf32>
    %323 = tpu.concatenate %239, %322 in 0 : vector<17x32xf32>, vector<17x32xf32> -> vector<34x32xf32>
    %324 = arith.addf %30, %323 : vector<34x32xf32>
    %325 = vector.broadcast %47 : vector<1x32xf32> to vector<34x32xf32>
    %326 = arith.addf %324, %325 : vector<34x32xf32>
    %cst_81 = arith.constant dense<0.000000e+00> : vector<34xf32>
    %327 = vector.multi_reduction <add>, %326, %cst_81 [1] : vector<34x32xf32> to vector<34xf32>
    %328 = vector.shape_cast %327 : vector<34xf32> to vector<34x1xf32>
    %cst_82 = arith.constant 3.200000e+01 : f32
    %329 = vector.broadcast %cst_82 : f32 to vector<34x1xf32>
    %330 = arith.divf %328, %329 : vector<34x1xf32>
    %331 = vector.broadcast %330 : vector<34x1xf32> to vector<34x32xf32>
    %332 = arith.subf %326, %331 : vector<34x32xf32>
    %333 = arith.mulf %332, %332 : vector<34x32xf32>
    %cst_83 = arith.constant dense<0.000000e+00> : vector<34xf32>
    %334 = vector.multi_reduction <add>, %333, %cst_83 [1] : vector<34x32xf32> to vector<34xf32>
    %335 = vector.shape_cast %334 : vector<34xf32> to vector<34x1xf32>
    %cst_84 = arith.constant 3.200000e+01 : f32
    %336 = vector.broadcast %cst_84 : f32 to vector<34x1xf32>
    %337 = arith.divf %335, %336 : vector<34x1xf32>
    %338 = vector.broadcast %330 : vector<34x1xf32> to vector<34x32xf32>
    %339 = arith.subf %326, %338 : vector<34x32xf32>
    %cst_85 = arith.constant 9.99999974E-6 : f32
    %340 = vector.broadcast %cst_85 : f32 to vector<34x1xf32>
    %341 = arith.addf %337, %340 : vector<34x1xf32>
    %342 = math.rsqrt %341 : vector<34x1xf32>
    %343 = vector.broadcast %342 : vector<34x1xf32> to vector<34x32xf32>
    %344 = arith.mulf %339, %343 : vector<34x32xf32>
    %345 = vector.broadcast %45 : vector<1x32xf32> to vector<34x32xf32>
    %346 = arith.mulf %344, %345 : vector<34x32xf32>
    %347 = vector.broadcast %46 : vector<1x32xf32> to vector<34x32xf32>
    %348 = arith.addf %346, %347 : vector<34x32xf32>
    %349 = arith.truncf %348 : vector<34x32xf32> to vector<34x32xbf16>
    %350 = vector.extract_strided_slice %42 {offsets = [0, 0, 0], sizes = [1, 32, 64], strides = [1, 1, 1]} : vector<2x32x64xbf16> to vector<1x32x64xbf16>
    %351 = vector.shape_cast %350 : vector<1x32x64xbf16> to vector<32x64xbf16>
    %cst_86 = arith.constant dense<0.000000e+00> : vector<34x64xf32>
    %352 = tpu.matmul %349, %351, %cst_86 {dimension_numbers = #tpu.dot_dimension_numbers<[1], [0], [0], [1], [0, 0, 1, 1], [], []>} : vector<34x32xbf16>, vector<32x64xbf16>, vector<34x64xf32> -> vector<34x64xf32>
    %353 = vector.broadcast %49 : vector<1x64xf32> to vector<34x64xf32>
    %354 = arith.addf %352, %353 : vector<34x64xf32>
    %cst_87 = arith.constant 1.702000e+00 : f32
    %355 = vector.broadcast %cst_87 : f32 to vector<34x64xf32>
    %356 = arith.mulf %355, %354 : vector<34x64xf32>
    %357 = arith.negf %356 : vector<34x64xf32>
    %358 = math.exp %357 : vector<34x64xf32>
    %cst_88 = arith.constant 1.000000e+00 : f32
    %359 = vector.broadcast %cst_88 : f32 to vector<34x64xf32>
    %360 = arith.addf %359, %358 : vector<34x64xf32>
    %361 = arith.divf %359, %360 : vector<34x64xf32>
    %362 = arith.mulf %354, %361 : vector<34x64xf32>
    %363 = arith.truncf %362 : vector<34x64xf32> to vector<34x64xbf16>
    %364 = vector.extract_strided_slice %42 {offsets = [1, 0, 0], sizes = [1, 32, 64], strides = [1, 1, 1]} : vector<2x32x64xbf16> to vector<1x32x64xbf16>
    %365 = vector.shape_cast %364 : vector<1x32x64xbf16> to vector<32x64xbf16>
    %cst_89 = arith.constant dense<0.000000e+00> : vector<34x32xf32>
    %366 = tpu.matmul %363, %365, %cst_89 {dimension_numbers = #tpu.dot_dimension_numbers<[1], [1], [0], [0], [0, 0, 1, 0], [], []>} : vector<34x64xbf16>, vector<32x64xbf16>, vector<34x32xf32> -> vector<34x32xf32>
    %367 = vector.broadcast %48 : vector<1x32xf32> to vector<34x32xf32>
    %368 = arith.addf %366, %367 : vector<34x32xf32>
    %369 = arith.addf %326, %368 : vector<34x32xf32>
    %c1_i32 = arith.constant 1 : i32
    %370 = arith.index_cast %c1_i32 : i32 to index
    %c0_90 = arith.constant 0 : index
    %c0_91 = arith.constant 0 : index
    %c0_92 = arith.constant 0 : index
    %371 = vector.load %arg5[%370, %c0_90, %c0_91, %c0_92] : memref<2x16x32x8xbf16, #tpu.memory_space<vmem>>, vector<1x16x32x8xbf16>
    %372 = vector.shape_cast %371 : vector<1x16x32x8xbf16> to vector<16x32x8xbf16>
    %373 = arith.index_cast %c1_i32 : i32 to index
    %c0_93 = arith.constant 0 : index
    %c0_94 = arith.constant 0 : index
    %374 = vector.load %arg6[%373, %c0_93, %c0_94] : memref<2x12x8xf32, #tpu.memory_space<vmem>>, vector<1x12x8xf32>
    %375 = vector.shape_cast %374 : vector<1x12x8xf32> to vector<12x8xf32>
    %376 = arith.index_cast %c1_i32 : i32 to index
    %c0_95 = arith.constant 0 : index
    %c0_96 = arith.constant 0 : index
    %377 = vector.load %arg7[%376, %c0_95, %c0_96] : memref<2x8x64xf32, #tpu.memory_space<vmem>>, vector<1x8x64xf32>
    %378 = vector.shape_cast %377 : vector<1x8x64xf32> to vector<8x64xf32>
    %379 = arith.index_cast %c1_i32 : i32 to index
    %c0_97 = arith.constant 0 : index
    %c0_98 = arith.constant 0 : index
    %c0_99 = arith.constant 0 : index
    %380 = vector.load %arg8[%379, %c0_97, %c0_98, %c0_99] : memref<2x2x32x64xbf16, #tpu.memory_space<vmem>>, vector<1x2x32x64xbf16>
    %381 = vector.shape_cast %380 : vector<1x2x32x64xbf16> to vector<2x32x64xbf16>
    %382 = vector.extract_strided_slice %378 {offsets = [0, 0], sizes = [1, 32], strides = [1, 1]} : vector<8x64xf32> to vector<1x32xf32>
    %383 = vector.extract_strided_slice %378 {offsets = [1, 0], sizes = [1, 32], strides = [1, 1]} : vector<8x64xf32> to vector<1x32xf32>
    %384 = vector.extract_strided_slice %378 {offsets = [2, 0], sizes = [1, 32], strides = [1, 1]} : vector<8x64xf32> to vector<1x32xf32>
    %385 = vector.extract_strided_slice %378 {offsets = [3, 0], sizes = [1, 32], strides = [1, 1]} : vector<8x64xf32> to vector<1x32xf32>
    %386 = vector.extract_strided_slice %378 {offsets = [4, 0], sizes = [1, 32], strides = [1, 1]} : vector<8x64xf32> to vector<1x32xf32>
    %387 = vector.extract_strided_slice %378 {offsets = [5, 0], sizes = [1, 32], strides = [1, 1]} : vector<8x64xf32> to vector<1x32xf32>
    %388 = vector.extract_strided_slice %378 {offsets = [6, 0], sizes = [1, 64], strides = [1, 1]} : vector<8x64xf32> to vector<1x64xf32>
    %cst_100 = arith.constant dense<0.000000e+00> : vector<34xf32>
    %389 = vector.multi_reduction <add>, %369, %cst_100 [1] : vector<34x32xf32> to vector<34xf32>
    %390 = vector.shape_cast %389 : vector<34xf32> to vector<34x1xf32>
    %cst_101 = arith.constant 3.200000e+01 : f32
    %391 = vector.broadcast %cst_101 : f32 to vector<34x1xf32>
    %392 = arith.divf %390, %391 : vector<34x1xf32>
    %393 = vector.broadcast %392 : vector<34x1xf32> to vector<34x32xf32>
    %394 = arith.subf %369, %393 : vector<34x32xf32>
    %395 = arith.mulf %394, %394 : vector<34x32xf32>
    %cst_102 = arith.constant dense<0.000000e+00> : vector<34xf32>
    %396 = vector.multi_reduction <add>, %395, %cst_102 [1] : vector<34x32xf32> to vector<34xf32>
    %397 = vector.shape_cast %396 : vector<34xf32> to vector<34x1xf32>
    %cst_103 = arith.constant 3.200000e+01 : f32
    %398 = vector.broadcast %cst_103 : f32 to vector<34x1xf32>
    %399 = arith.divf %397, %398 : vector<34x1xf32>
    %400 = vector.broadcast %392 : vector<34x1xf32> to vector<34x32xf32>
    %401 = arith.subf %369, %400 : vector<34x32xf32>
    %cst_104 = arith.constant 9.99999974E-6 : f32
    %402 = vector.broadcast %cst_104 : f32 to vector<34x1xf32>
    %403 = arith.addf %399, %402 : vector<34x1xf32>
    %404 = math.rsqrt %403 : vector<34x1xf32>
    %405 = vector.broadcast %404 : vector<34x1xf32> to vector<34x32xf32>
    %406 = arith.mulf %401, %405 : vector<34x32xf32>
    %407 = vector.broadcast %382 : vector<1x32xf32> to vector<34x32xf32>
    %408 = arith.mulf %406, %407 : vector<34x32xf32>
    %409 = vector.broadcast %383 : vector<1x32xf32> to vector<34x32xf32>
    %410 = arith.addf %408, %409 : vector<34x32xf32>
    %411 = arith.truncf %410 : vector<34x32xf32> to vector<34x32xbf16>
    %412 = vector.extract_strided_slice %372 {offsets = [0, 0, 0], sizes = [1, 32, 8], strides = [1, 1, 1]} : vector<16x32x8xbf16> to vector<1x32x8xbf16>
    %413 = vector.shape_cast %412 : vector<1x32x8xbf16> to vector<32x8xbf16>
    %cst_105 = arith.constant dense<0.000000e+00> : vector<34x8xf32>
    %414 = tpu.matmul %411, %413, %cst_105 {dimension_numbers = #tpu.dot_dimension_numbers<[1], [0], [0], [1], [0, 0, 1, 1], [], []>} : vector<34x32xbf16>, vector<32x8xbf16>, vector<34x8xf32> -> vector<34x8xf32>
    %415 = vector.extract_strided_slice %375 {offsets = [0, 0], sizes = [1, 8], strides = [1, 1]} : vector<12x8xf32> to vector<1x8xf32>
    %416 = vector.broadcast %415 : vector<1x8xf32> to vector<34x8xf32>
    %417 = arith.addf %414, %416 : vector<34x8xf32>
    %418 = vector.extract_strided_slice %372 {offsets = [4, 0, 0], sizes = [1, 32, 8], strides = [1, 1, 1]} : vector<16x32x8xbf16> to vector<1x32x8xbf16>
    %419 = vector.shape_cast %418 : vector<1x32x8xbf16> to vector<32x8xbf16>
    %cst_106 = arith.constant dense<0.000000e+00> : vector<34x8xf32>
    %420 = tpu.matmul %411, %419, %cst_106 {dimension_numbers = #tpu.dot_dimension_numbers<[1], [0], [0], [1], [0, 0, 1, 1], [], []>} : vector<34x32xbf16>, vector<32x8xbf16>, vector<34x8xf32> -> vector<34x8xf32>
    %421 = vector.extract_strided_slice %375 {offsets = [4, 0], sizes = [1, 8], strides = [1, 1]} : vector<12x8xf32> to vector<1x8xf32>
    %422 = vector.broadcast %421 : vector<1x8xf32> to vector<34x8xf32>
    %423 = arith.addf %420, %422 : vector<34x8xf32>
    %424 = vector.extract_strided_slice %372 {offsets = [8, 0, 0], sizes = [1, 32, 8], strides = [1, 1, 1]} : vector<16x32x8xbf16> to vector<1x32x8xbf16>
    %425 = vector.shape_cast %424 : vector<1x32x8xbf16> to vector<32x8xbf16>
    %cst_107 = arith.constant dense<0.000000e+00> : vector<34x8xf32>
    %426 = tpu.matmul %411, %425, %cst_107 {dimension_numbers = #tpu.dot_dimension_numbers<[1], [0], [0], [1], [0, 0, 1, 1], [], []>} : vector<34x32xbf16>, vector<32x8xbf16>, vector<34x8xf32> -> vector<34x8xf32>
    %427 = vector.extract_strided_slice %375 {offsets = [8, 0], sizes = [1, 8], strides = [1, 1]} : vector<12x8xf32> to vector<1x8xf32>
    %428 = vector.broadcast %427 : vector<1x8xf32> to vector<34x8xf32>
    %429 = arith.addf %426, %428 : vector<34x8xf32>
    %430 = arith.truncf %417 : vector<34x8xf32> to vector<34x8xbf16>
    %431 = arith.truncf %423 : vector<34x8xf32> to vector<34x8xbf16>
    %432 = arith.truncf %429 : vector<34x8xf32> to vector<34x8xbf16>
    %433 = vector.extract_strided_slice %372 {offsets = [1, 0, 0], sizes = [1, 32, 8], strides = [1, 1, 1]} : vector<16x32x8xbf16> to vector<1x32x8xbf16>
    %434 = vector.shape_cast %433 : vector<1x32x8xbf16> to vector<32x8xbf16>
    %cst_108 = arith.constant dense<0.000000e+00> : vector<34x8xf32>
    %435 = tpu.matmul %411, %434, %cst_108 {dimension_numbers = #tpu.dot_dimension_numbers<[1], [0], [0], [1], [0, 0, 1, 1], [], []>} : vector<34x32xbf16>, vector<32x8xbf16>, vector<34x8xf32> -> vector<34x8xf32>
    %436 = vector.extract_strided_slice %375 {offsets = [1, 0], sizes = [1, 8], strides = [1, 1]} : vector<12x8xf32> to vector<1x8xf32>
    %437 = vector.broadcast %436 : vector<1x8xf32> to vector<34x8xf32>
    %438 = arith.addf %435, %437 : vector<34x8xf32>
    %439 = vector.extract_strided_slice %372 {offsets = [5, 0, 0], sizes = [1, 32, 8], strides = [1, 1, 1]} : vector<16x32x8xbf16> to vector<1x32x8xbf16>
    %440 = vector.shape_cast %439 : vector<1x32x8xbf16> to vector<32x8xbf16>
    %cst_109 = arith.constant dense<0.000000e+00> : vector<34x8xf32>
    %441 = tpu.matmul %411, %440, %cst_109 {dimension_numbers = #tpu.dot_dimension_numbers<[1], [0], [0], [1], [0, 0, 1, 1], [], []>} : vector<34x32xbf16>, vector<32x8xbf16>, vector<34x8xf32> -> vector<34x8xf32>
    %442 = vector.extract_strided_slice %375 {offsets = [5, 0], sizes = [1, 8], strides = [1, 1]} : vector<12x8xf32> to vector<1x8xf32>
    %443 = vector.broadcast %442 : vector<1x8xf32> to vector<34x8xf32>
    %444 = arith.addf %441, %443 : vector<34x8xf32>
    %445 = vector.extract_strided_slice %372 {offsets = [9, 0, 0], sizes = [1, 32, 8], strides = [1, 1, 1]} : vector<16x32x8xbf16> to vector<1x32x8xbf16>
    %446 = vector.shape_cast %445 : vector<1x32x8xbf16> to vector<32x8xbf16>
    %cst_110 = arith.constant dense<0.000000e+00> : vector<34x8xf32>
    %447 = tpu.matmul %411, %446, %cst_110 {dimension_numbers = #tpu.dot_dimension_numbers<[1], [0], [0], [1], [0, 0, 1, 1], [], []>} : vector<34x32xbf16>, vector<32x8xbf16>, vector<34x8xf32> -> vector<34x8xf32>
    %448 = vector.extract_strided_slice %375 {offsets = [9, 0], sizes = [1, 8], strides = [1, 1]} : vector<12x8xf32> to vector<1x8xf32>
    %449 = vector.broadcast %448 : vector<1x8xf32> to vector<34x8xf32>
    %450 = arith.addf %447, %449 : vector<34x8xf32>
    %451 = arith.truncf %438 : vector<34x8xf32> to vector<34x8xbf16>
    %452 = arith.truncf %444 : vector<34x8xf32> to vector<34x8xbf16>
    %453 = arith.truncf %450 : vector<34x8xf32> to vector<34x8xbf16>
    %454 = vector.extract_strided_slice %372 {offsets = [2, 0, 0], sizes = [1, 32, 8], strides = [1, 1, 1]} : vector<16x32x8xbf16> to vector<1x32x8xbf16>
    %455 = vector.shape_cast %454 : vector<1x32x8xbf16> to vector<32x8xbf16>
    %cst_111 = arith.constant dense<0.000000e+00> : vector<34x8xf32>
    %456 = tpu.matmul %411, %455, %cst_111 {dimension_numbers = #tpu.dot_dimension_numbers<[1], [0], [0], [1], [0, 0, 1, 1], [], []>} : vector<34x32xbf16>, vector<32x8xbf16>, vector<34x8xf32> -> vector<34x8xf32>
    %457 = vector.extract_strided_slice %375 {offsets = [2, 0], sizes = [1, 8], strides = [1, 1]} : vector<12x8xf32> to vector<1x8xf32>
    %458 = vector.broadcast %457 : vector<1x8xf32> to vector<34x8xf32>
    %459 = arith.addf %456, %458 : vector<34x8xf32>
    %460 = vector.extract_strided_slice %372 {offsets = [6, 0, 0], sizes = [1, 32, 8], strides = [1, 1, 1]} : vector<16x32x8xbf16> to vector<1x32x8xbf16>
    %461 = vector.shape_cast %460 : vector<1x32x8xbf16> to vector<32x8xbf16>
    %cst_112 = arith.constant dense<0.000000e+00> : vector<34x8xf32>
    %462 = tpu.matmul %411, %461, %cst_112 {dimension_numbers = #tpu.dot_dimension_numbers<[1], [0], [0], [1], [0, 0, 1, 1], [], []>} : vector<34x32xbf16>, vector<32x8xbf16>, vector<34x8xf32> -> vector<34x8xf32>
    %463 = vector.extract_strided_slice %375 {offsets = [6, 0], sizes = [1, 8], strides = [1, 1]} : vector<12x8xf32> to vector<1x8xf32>
    %464 = vector.broadcast %463 : vector<1x8xf32> to vector<34x8xf32>
    %465 = arith.addf %462, %464 : vector<34x8xf32>
    %466 = vector.extract_strided_slice %372 {offsets = [10, 0, 0], sizes = [1, 32, 8], strides = [1, 1, 1]} : vector<16x32x8xbf16> to vector<1x32x8xbf16>
    %467 = vector.shape_cast %466 : vector<1x32x8xbf16> to vector<32x8xbf16>
    %cst_113 = arith.constant dense<0.000000e+00> : vector<34x8xf32>
    %468 = tpu.matmul %411, %467, %cst_113 {dimension_numbers = #tpu.dot_dimension_numbers<[1], [0], [0], [1], [0, 0, 1, 1], [], []>} : vector<34x32xbf16>, vector<32x8xbf16>, vector<34x8xf32> -> vector<34x8xf32>
    %469 = vector.extract_strided_slice %375 {offsets = [10, 0], sizes = [1, 8], strides = [1, 1]} : vector<12x8xf32> to vector<1x8xf32>
    %470 = vector.broadcast %469 : vector<1x8xf32> to vector<34x8xf32>
    %471 = arith.addf %468, %470 : vector<34x8xf32>
    %472 = arith.truncf %459 : vector<34x8xf32> to vector<34x8xbf16>
    %473 = arith.truncf %465 : vector<34x8xf32> to vector<34x8xbf16>
    %474 = arith.truncf %471 : vector<34x8xf32> to vector<34x8xbf16>
    %475 = vector.extract_strided_slice %372 {offsets = [3, 0, 0], sizes = [1, 32, 8], strides = [1, 1, 1]} : vector<16x32x8xbf16> to vector<1x32x8xbf16>
    %476 = vector.shape_cast %475 : vector<1x32x8xbf16> to vector<32x8xbf16>
    %cst_114 = arith.constant dense<0.000000e+00> : vector<34x8xf32>
    %477 = tpu.matmul %411, %476, %cst_114 {dimension_numbers = #tpu.dot_dimension_numbers<[1], [0], [0], [1], [0, 0, 1, 1], [], []>} : vector<34x32xbf16>, vector<32x8xbf16>, vector<34x8xf32> -> vector<34x8xf32>
    %478 = vector.extract_strided_slice %375 {offsets = [3, 0], sizes = [1, 8], strides = [1, 1]} : vector<12x8xf32> to vector<1x8xf32>
    %479 = vector.broadcast %478 : vector<1x8xf32> to vector<34x8xf32>
    %480 = arith.addf %477, %479 : vector<34x8xf32>
    %481 = vector.extract_strided_slice %372 {offsets = [7, 0, 0], sizes = [1, 32, 8], strides = [1, 1, 1]} : vector<16x32x8xbf16> to vector<1x32x8xbf16>
    %482 = vector.shape_cast %481 : vector<1x32x8xbf16> to vector<32x8xbf16>
    %cst_115 = arith.constant dense<0.000000e+00> : vector<34x8xf32>
    %483 = tpu.matmul %411, %482, %cst_115 {dimension_numbers = #tpu.dot_dimension_numbers<[1], [0], [0], [1], [0, 0, 1, 1], [], []>} : vector<34x32xbf16>, vector<32x8xbf16>, vector<34x8xf32> -> vector<34x8xf32>
    %484 = vector.extract_strided_slice %375 {offsets = [7, 0], sizes = [1, 8], strides = [1, 1]} : vector<12x8xf32> to vector<1x8xf32>
    %485 = vector.broadcast %484 : vector<1x8xf32> to vector<34x8xf32>
    %486 = arith.addf %483, %485 : vector<34x8xf32>
    %487 = vector.extract_strided_slice %372 {offsets = [11, 0, 0], sizes = [1, 32, 8], strides = [1, 1, 1]} : vector<16x32x8xbf16> to vector<1x32x8xbf16>
    %488 = vector.shape_cast %487 : vector<1x32x8xbf16> to vector<32x8xbf16>
    %cst_116 = arith.constant dense<0.000000e+00> : vector<34x8xf32>
    %489 = tpu.matmul %411, %488, %cst_116 {dimension_numbers = #tpu.dot_dimension_numbers<[1], [0], [0], [1], [0, 0, 1, 1], [], []>} : vector<34x32xbf16>, vector<32x8xbf16>, vector<34x8xf32> -> vector<34x8xf32>
    %490 = vector.extract_strided_slice %375 {offsets = [11, 0], sizes = [1, 8], strides = [1, 1]} : vector<12x8xf32> to vector<1x8xf32>
    %491 = vector.broadcast %490 : vector<1x8xf32> to vector<34x8xf32>
    %492 = arith.addf %489, %491 : vector<34x8xf32>
    %493 = arith.truncf %480 : vector<34x8xf32> to vector<34x8xbf16>
    %494 = arith.truncf %486 : vector<34x8xf32> to vector<34x8xbf16>
    %495 = arith.truncf %492 : vector<34x8xf32> to vector<34x8xbf16>
    %496 = vector.extract_strided_slice %430 {offsets = [0, 0], sizes = [17, 8], strides = [1, 1]} : vector<34x8xbf16> to vector<17x8xbf16>
    %497 = vector.extract_strided_slice %431 {offsets = [0, 0], sizes = [17, 8], strides = [1, 1]} : vector<34x8xbf16> to vector<17x8xbf16>
    %498 = vector.extract_strided_slice %432 {offsets = [0, 0], sizes = [17, 8], strides = [1, 1]} : vector<34x8xbf16> to vector<17x8xbf16>
    %cst_117 = arith.constant dense<0.000000e+00> : vector<17x17xf32>
    %499 = tpu.matmul %496, %497, %cst_117 {dimension_numbers = #tpu.dot_dimension_numbers<[1], [1], [0], [0], [0, 0, 1, 0], [], []>} : vector<17x8xbf16>, vector<17x8xbf16>, vector<17x17xf32> -> vector<17x17xf32>
    %cst_118 = arith.constant dense<0xFF800000> : vector<17xf32>
    %500 = vector.multi_reduction <maximumf>, %499, %cst_118 [1] : vector<17x17xf32> to vector<17xf32>
    %501 = vector.shape_cast %500 : vector<17xf32> to vector<17x1xf32>
    %502 = vector.broadcast %501 : vector<17x1xf32> to vector<17x17xf32>
    %503 = arith.subf %499, %502 : vector<17x17xf32>
    %504 = math.exp %503 : vector<17x17xf32>
    %cst_119 = arith.constant dense<0.000000e+00> : vector<17xf32>
    %505 = vector.multi_reduction <add>, %504, %cst_119 [1] : vector<17x17xf32> to vector<17xf32>
    %506 = vector.shape_cast %505 : vector<17xf32> to vector<17x1xf32>
    %507 = tpu.reciprocal %506 {approx = true} : vector<17x1xf32> -> vector<17x1xf32>
    %508 = vector.broadcast %507 : vector<17x1xf32> to vector<17x17xf32>
    %509 = arith.mulf %504, %508 : vector<17x17xf32>
    %510 = arith.truncf %509 : vector<17x17xf32> to vector<17x17xbf16>
    %cst_120 = arith.constant dense<0.000000e+00> : vector<17x8xf32>
    %511 = tpu.matmul %510, %498, %cst_120 {dimension_numbers = #tpu.dot_dimension_numbers<[1], [0], [0], [1], [0, 0, 1, 1], [], []>} : vector<17x17xbf16>, vector<17x8xbf16>, vector<17x8xf32> -> vector<17x8xf32>
    %512 = arith.truncf %511 : vector<17x8xf32> to vector<17x8xbf16>
    %513 = vector.extract_strided_slice %372 {offsets = [12, 0, 0], sizes = [1, 32, 8], strides = [1, 1, 1]} : vector<16x32x8xbf16> to vector<1x32x8xbf16>
    %514 = vector.shape_cast %513 : vector<1x32x8xbf16> to vector<32x8xbf16>
    %cst_121 = arith.constant dense<0.000000e+00> : vector<17x32xf32>
    %515 = tpu.matmul %512, %514, %cst_121 {dimension_numbers = #tpu.dot_dimension_numbers<[1], [1], [0], [0], [0, 0, 1, 0], [], []>} : vector<17x8xbf16>, vector<32x8xbf16>, vector<17x32xf32> -> vector<17x32xf32>
    %516 = vector.extract_strided_slice %451 {offsets = [0, 0], sizes = [17, 8], strides = [1, 1]} : vector<34x8xbf16> to vector<17x8xbf16>
    %517 = vector.extract_strided_slice %452 {offsets = [0, 0], sizes = [17, 8], strides = [1, 1]} : vector<34x8xbf16> to vector<17x8xbf16>
    %518 = vector.extract_strided_slice %453 {offsets = [0, 0], sizes = [17, 8], strides = [1, 1]} : vector<34x8xbf16> to vector<17x8xbf16>
    %cst_122 = arith.constant dense<0.000000e+00> : vector<17x17xf32>
    %519 = tpu.matmul %516, %517, %cst_122 {dimension_numbers = #tpu.dot_dimension_numbers<[1], [1], [0], [0], [0, 0, 1, 0], [], []>} : vector<17x8xbf16>, vector<17x8xbf16>, vector<17x17xf32> -> vector<17x17xf32>
    %cst_123 = arith.constant dense<0xFF800000> : vector<17xf32>
    %520 = vector.multi_reduction <maximumf>, %519, %cst_123 [1] : vector<17x17xf32> to vector<17xf32>
    %521 = vector.shape_cast %520 : vector<17xf32> to vector<17x1xf32>
    %522 = vector.broadcast %521 : vector<17x1xf32> to vector<17x17xf32>
    %523 = arith.subf %519, %522 : vector<17x17xf32>
    %524 = math.exp %523 : vector<17x17xf32>
    %cst_124 = arith.constant dense<0.000000e+00> : vector<17xf32>
    %525 = vector.multi_reduction <add>, %524, %cst_124 [1] : vector<17x17xf32> to vector<17xf32>
    %526 = vector.shape_cast %525 : vector<17xf32> to vector<17x1xf32>
    %527 = tpu.reciprocal %526 {approx = true} : vector<17x1xf32> -> vector<17x1xf32>
    %528 = vector.broadcast %527 : vector<17x1xf32> to vector<17x17xf32>
    %529 = arith.mulf %524, %528 : vector<17x17xf32>
    %530 = arith.truncf %529 : vector<17x17xf32> to vector<17x17xbf16>
    %cst_125 = arith.constant dense<0.000000e+00> : vector<17x8xf32>
    %531 = tpu.matmul %530, %518, %cst_125 {dimension_numbers = #tpu.dot_dimension_numbers<[1], [0], [0], [1], [0, 0, 1, 1], [], []>} : vector<17x17xbf16>, vector<17x8xbf16>, vector<17x8xf32> -> vector<17x8xf32>
    %532 = arith.truncf %531 : vector<17x8xf32> to vector<17x8xbf16>
    %533 = vector.extract_strided_slice %372 {offsets = [13, 0, 0], sizes = [1, 32, 8], strides = [1, 1, 1]} : vector<16x32x8xbf16> to vector<1x32x8xbf16>
    %534 = vector.shape_cast %533 : vector<1x32x8xbf16> to vector<32x8xbf16>
    %cst_126 = arith.constant dense<0.000000e+00> : vector<17x32xf32>
    %535 = tpu.matmul %532, %534, %cst_126 {dimension_numbers = #tpu.dot_dimension_numbers<[1], [1], [0], [0], [0, 0, 1, 0], [], []>} : vector<17x8xbf16>, vector<32x8xbf16>, vector<17x32xf32> -> vector<17x32xf32>
    %536 = arith.addf %515, %535 : vector<17x32xf32>
    %537 = vector.extract_strided_slice %472 {offsets = [0, 0], sizes = [17, 8], strides = [1, 1]} : vector<34x8xbf16> to vector<17x8xbf16>
    %538 = vector.extract_strided_slice %473 {offsets = [0, 0], sizes = [17, 8], strides = [1, 1]} : vector<34x8xbf16> to vector<17x8xbf16>
    %539 = vector.extract_strided_slice %474 {offsets = [0, 0], sizes = [17, 8], strides = [1, 1]} : vector<34x8xbf16> to vector<17x8xbf16>
    %cst_127 = arith.constant dense<0.000000e+00> : vector<17x17xf32>
    %540 = tpu.matmul %537, %538, %cst_127 {dimension_numbers = #tpu.dot_dimension_numbers<[1], [1], [0], [0], [0, 0, 1, 0], [], []>} : vector<17x8xbf16>, vector<17x8xbf16>, vector<17x17xf32> -> vector<17x17xf32>
    %cst_128 = arith.constant dense<0xFF800000> : vector<17xf32>
    %541 = vector.multi_reduction <maximumf>, %540, %cst_128 [1] : vector<17x17xf32> to vector<17xf32>
    %542 = vector.shape_cast %541 : vector<17xf32> to vector<17x1xf32>
    %543 = vector.broadcast %542 : vector<17x1xf32> to vector<17x17xf32>
    %544 = arith.subf %540, %543 : vector<17x17xf32>
    %545 = math.exp %544 : vector<17x17xf32>
    %cst_129 = arith.constant dense<0.000000e+00> : vector<17xf32>
    %546 = vector.multi_reduction <add>, %545, %cst_129 [1] : vector<17x17xf32> to vector<17xf32>
    %547 = vector.shape_cast %546 : vector<17xf32> to vector<17x1xf32>
    %548 = tpu.reciprocal %547 {approx = true} : vector<17x1xf32> -> vector<17x1xf32>
    %549 = vector.broadcast %548 : vector<17x1xf32> to vector<17x17xf32>
    %550 = arith.mulf %545, %549 : vector<17x17xf32>
    %551 = arith.truncf %550 : vector<17x17xf32> to vector<17x17xbf16>
    %cst_130 = arith.constant dense<0.000000e+00> : vector<17x8xf32>
    %552 = tpu.matmul %551, %539, %cst_130 {dimension_numbers = #tpu.dot_dimension_numbers<[1], [0], [0], [1], [0, 0, 1, 1], [], []>} : vector<17x17xbf16>, vector<17x8xbf16>, vector<17x8xf32> -> vector<17x8xf32>
    %553 = arith.truncf %552 : vector<17x8xf32> to vector<17x8xbf16>
    %554 = vector.extract_strided_slice %372 {offsets = [14, 0, 0], sizes = [1, 32, 8], strides = [1, 1, 1]} : vector<16x32x8xbf16> to vector<1x32x8xbf16>
    %555 = vector.shape_cast %554 : vector<1x32x8xbf16> to vector<32x8xbf16>
    %cst_131 = arith.constant dense<0.000000e+00> : vector<17x32xf32>
    %556 = tpu.matmul %553, %555, %cst_131 {dimension_numbers = #tpu.dot_dimension_numbers<[1], [1], [0], [0], [0, 0, 1, 0], [], []>} : vector<17x8xbf16>, vector<32x8xbf16>, vector<17x32xf32> -> vector<17x32xf32>
    %557 = arith.addf %536, %556 : vector<17x32xf32>
    %558 = vector.extract_strided_slice %493 {offsets = [0, 0], sizes = [17, 8], strides = [1, 1]} : vector<34x8xbf16> to vector<17x8xbf16>
    %559 = vector.extract_strided_slice %494 {offsets = [0, 0], sizes = [17, 8], strides = [1, 1]} : vector<34x8xbf16> to vector<17x8xbf16>
    %560 = vector.extract_strided_slice %495 {offsets = [0, 0], sizes = [17, 8], strides = [1, 1]} : vector<34x8xbf16> to vector<17x8xbf16>
    %cst_132 = arith.constant dense<0.000000e+00> : vector<17x17xf32>
    %561 = tpu.matmul %558, %559, %cst_132 {dimension_numbers = #tpu.dot_dimension_numbers<[1], [1], [0], [0], [0, 0, 1, 0], [], []>} : vector<17x8xbf16>, vector<17x8xbf16>, vector<17x17xf32> -> vector<17x17xf32>
    %cst_133 = arith.constant dense<0xFF800000> : vector<17xf32>
    %562 = vector.multi_reduction <maximumf>, %561, %cst_133 [1] : vector<17x17xf32> to vector<17xf32>
    %563 = vector.shape_cast %562 : vector<17xf32> to vector<17x1xf32>
    %564 = vector.broadcast %563 : vector<17x1xf32> to vector<17x17xf32>
    %565 = arith.subf %561, %564 : vector<17x17xf32>
    %566 = math.exp %565 : vector<17x17xf32>
    %cst_134 = arith.constant dense<0.000000e+00> : vector<17xf32>
    %567 = vector.multi_reduction <add>, %566, %cst_134 [1] : vector<17x17xf32> to vector<17xf32>
    %568 = vector.shape_cast %567 : vector<17xf32> to vector<17x1xf32>
    %569 = tpu.reciprocal %568 {approx = true} : vector<17x1xf32> -> vector<17x1xf32>
    %570 = vector.broadcast %569 : vector<17x1xf32> to vector<17x17xf32>
    %571 = arith.mulf %566, %570 : vector<17x17xf32>
    %572 = arith.truncf %571 : vector<17x17xf32> to vector<17x17xbf16>
    %cst_135 = arith.constant dense<0.000000e+00> : vector<17x8xf32>
    %573 = tpu.matmul %572, %560, %cst_135 {dimension_numbers = #tpu.dot_dimension_numbers<[1], [0], [0], [1], [0, 0, 1, 1], [], []>} : vector<17x17xbf16>, vector<17x8xbf16>, vector<17x8xf32> -> vector<17x8xf32>
    %574 = arith.truncf %573 : vector<17x8xf32> to vector<17x8xbf16>
    %575 = vector.extract_strided_slice %372 {offsets = [15, 0, 0], sizes = [1, 32, 8], strides = [1, 1, 1]} : vector<16x32x8xbf16> to vector<1x32x8xbf16>
    %576 = vector.shape_cast %575 : vector<1x32x8xbf16> to vector<32x8xbf16>
    %cst_136 = arith.constant dense<0.000000e+00> : vector<17x32xf32>
    %577 = tpu.matmul %574, %576, %cst_136 {dimension_numbers = #tpu.dot_dimension_numbers<[1], [1], [0], [0], [0, 0, 1, 0], [], []>} : vector<17x8xbf16>, vector<32x8xbf16>, vector<17x32xf32> -> vector<17x32xf32>
    %578 = arith.addf %557, %577 : vector<17x32xf32>
    %579 = vector.extract_strided_slice %430 {offsets = [17, 0], sizes = [17, 8], strides = [1, 1]} : vector<34x8xbf16> to vector<17x8xbf16>
    %580 = vector.extract_strided_slice %431 {offsets = [17, 0], sizes = [17, 8], strides = [1, 1]} : vector<34x8xbf16> to vector<17x8xbf16>
    %581 = vector.extract_strided_slice %432 {offsets = [17, 0], sizes = [17, 8], strides = [1, 1]} : vector<34x8xbf16> to vector<17x8xbf16>
    %cst_137 = arith.constant dense<0.000000e+00> : vector<17x17xf32>
    %582 = tpu.matmul %579, %580, %cst_137 {dimension_numbers = #tpu.dot_dimension_numbers<[1], [1], [0], [0], [0, 0, 1, 0], [], []>} : vector<17x8xbf16>, vector<17x8xbf16>, vector<17x17xf32> -> vector<17x17xf32>
    %cst_138 = arith.constant dense<0xFF800000> : vector<17xf32>
    %583 = vector.multi_reduction <maximumf>, %582, %cst_138 [1] : vector<17x17xf32> to vector<17xf32>
    %584 = vector.shape_cast %583 : vector<17xf32> to vector<17x1xf32>
    %585 = vector.broadcast %584 : vector<17x1xf32> to vector<17x17xf32>
    %586 = arith.subf %582, %585 : vector<17x17xf32>
    %587 = math.exp %586 : vector<17x17xf32>
    %cst_139 = arith.constant dense<0.000000e+00> : vector<17xf32>
    %588 = vector.multi_reduction <add>, %587, %cst_139 [1] : vector<17x17xf32> to vector<17xf32>
    %589 = vector.shape_cast %588 : vector<17xf32> to vector<17x1xf32>
    %590 = tpu.reciprocal %589 {approx = true} : vector<17x1xf32> -> vector<17x1xf32>
    %591 = vector.broadcast %590 : vector<17x1xf32> to vector<17x17xf32>
    %592 = arith.mulf %587, %591 : vector<17x17xf32>
    %593 = arith.truncf %592 : vector<17x17xf32> to vector<17x17xbf16>
    %cst_140 = arith.constant dense<0.000000e+00> : vector<17x8xf32>
    %594 = tpu.matmul %593, %581, %cst_140 {dimension_numbers = #tpu.dot_dimension_numbers<[1], [0], [0], [1], [0, 0, 1, 1], [], []>} : vector<17x17xbf16>, vector<17x8xbf16>, vector<17x8xf32> -> vector<17x8xf32>
    %595 = arith.truncf %594 : vector<17x8xf32> to vector<17x8xbf16>
    %596 = vector.extract_strided_slice %372 {offsets = [12, 0, 0], sizes = [1, 32, 8], strides = [1, 1, 1]} : vector<16x32x8xbf16> to vector<1x32x8xbf16>
    %597 = vector.shape_cast %596 : vector<1x32x8xbf16> to vector<32x8xbf16>
    %cst_141 = arith.constant dense<0.000000e+00> : vector<17x32xf32>
    %598 = tpu.matmul %595, %597, %cst_141 {dimension_numbers = #tpu.dot_dimension_numbers<[1], [1], [0], [0], [0, 0, 1, 0], [], []>} : vector<17x8xbf16>, vector<32x8xbf16>, vector<17x32xf32> -> vector<17x32xf32>
    %599 = vector.extract_strided_slice %451 {offsets = [17, 0], sizes = [17, 8], strides = [1, 1]} : vector<34x8xbf16> to vector<17x8xbf16>
    %600 = vector.extract_strided_slice %452 {offsets = [17, 0], sizes = [17, 8], strides = [1, 1]} : vector<34x8xbf16> to vector<17x8xbf16>
    %601 = vector.extract_strided_slice %453 {offsets = [17, 0], sizes = [17, 8], strides = [1, 1]} : vector<34x8xbf16> to vector<17x8xbf16>
    %cst_142 = arith.constant dense<0.000000e+00> : vector<17x17xf32>
    %602 = tpu.matmul %599, %600, %cst_142 {dimension_numbers = #tpu.dot_dimension_numbers<[1], [1], [0], [0], [0, 0, 1, 0], [], []>} : vector<17x8xbf16>, vector<17x8xbf16>, vector<17x17xf32> -> vector<17x17xf32>
    %cst_143 = arith.constant dense<0xFF800000> : vector<17xf32>
    %603 = vector.multi_reduction <maximumf>, %602, %cst_143 [1] : vector<17x17xf32> to vector<17xf32>
    %604 = vector.shape_cast %603 : vector<17xf32> to vector<17x1xf32>
    %605 = vector.broadcast %604 : vector<17x1xf32> to vector<17x17xf32>
    %606 = arith.subf %602, %605 : vector<17x17xf32>
    %607 = math.exp %606 : vector<17x17xf32>
    %cst_144 = arith.constant dense<0.000000e+00> : vector<17xf32>
    %608 = vector.multi_reduction <add>, %607, %cst_144 [1] : vector<17x17xf32> to vector<17xf32>
    %609 = vector.shape_cast %608 : vector<17xf32> to vector<17x1xf32>
    %610 = tpu.reciprocal %609 {approx = true} : vector<17x1xf32> -> vector<17x1xf32>
    %611 = vector.broadcast %610 : vector<17x1xf32> to vector<17x17xf32>
    %612 = arith.mulf %607, %611 : vector<17x17xf32>
    %613 = arith.truncf %612 : vector<17x17xf32> to vector<17x17xbf16>
    %cst_145 = arith.constant dense<0.000000e+00> : vector<17x8xf32>
    %614 = tpu.matmul %613, %601, %cst_145 {dimension_numbers = #tpu.dot_dimension_numbers<[1], [0], [0], [1], [0, 0, 1, 1], [], []>} : vector<17x17xbf16>, vector<17x8xbf16>, vector<17x8xf32> -> vector<17x8xf32>
    %615 = arith.truncf %614 : vector<17x8xf32> to vector<17x8xbf16>
    %616 = vector.extract_strided_slice %372 {offsets = [13, 0, 0], sizes = [1, 32, 8], strides = [1, 1, 1]} : vector<16x32x8xbf16> to vector<1x32x8xbf16>
    %617 = vector.shape_cast %616 : vector<1x32x8xbf16> to vector<32x8xbf16>
    %cst_146 = arith.constant dense<0.000000e+00> : vector<17x32xf32>
    %618 = tpu.matmul %615, %617, %cst_146 {dimension_numbers = #tpu.dot_dimension_numbers<[1], [1], [0], [0], [0, 0, 1, 0], [], []>} : vector<17x8xbf16>, vector<32x8xbf16>, vector<17x32xf32> -> vector<17x32xf32>
    %619 = arith.addf %598, %618 : vector<17x32xf32>
    %620 = vector.extract_strided_slice %472 {offsets = [17, 0], sizes = [17, 8], strides = [1, 1]} : vector<34x8xbf16> to vector<17x8xbf16>
    %621 = vector.extract_strided_slice %473 {offsets = [17, 0], sizes = [17, 8], strides = [1, 1]} : vector<34x8xbf16> to vector<17x8xbf16>
    %622 = vector.extract_strided_slice %474 {offsets = [17, 0], sizes = [17, 8], strides = [1, 1]} : vector<34x8xbf16> to vector<17x8xbf16>
    %cst_147 = arith.constant dense<0.000000e+00> : vector<17x17xf32>
    %623 = tpu.matmul %620, %621, %cst_147 {dimension_numbers = #tpu.dot_dimension_numbers<[1], [1], [0], [0], [0, 0, 1, 0], [], []>} : vector<17x8xbf16>, vector<17x8xbf16>, vector<17x17xf32> -> vector<17x17xf32>
    %cst_148 = arith.constant dense<0xFF800000> : vector<17xf32>
    %624 = vector.multi_reduction <maximumf>, %623, %cst_148 [1] : vector<17x17xf32> to vector<17xf32>
    %625 = vector.shape_cast %624 : vector<17xf32> to vector<17x1xf32>
    %626 = vector.broadcast %625 : vector<17x1xf32> to vector<17x17xf32>
    %627 = arith.subf %623, %626 : vector<17x17xf32>
    %628 = math.exp %627 : vector<17x17xf32>
    %cst_149 = arith.constant dense<0.000000e+00> : vector<17xf32>
    %629 = vector.multi_reduction <add>, %628, %cst_149 [1] : vector<17x17xf32> to vector<17xf32>
    %630 = vector.shape_cast %629 : vector<17xf32> to vector<17x1xf32>
    %631 = tpu.reciprocal %630 {approx = true} : vector<17x1xf32> -> vector<17x1xf32>
    %632 = vector.broadcast %631 : vector<17x1xf32> to vector<17x17xf32>
    %633 = arith.mulf %628, %632 : vector<17x17xf32>
    %634 = arith.truncf %633 : vector<17x17xf32> to vector<17x17xbf16>
    %cst_150 = arith.constant dense<0.000000e+00> : vector<17x8xf32>
    %635 = tpu.matmul %634, %622, %cst_150 {dimension_numbers = #tpu.dot_dimension_numbers<[1], [0], [0], [1], [0, 0, 1, 1], [], []>} : vector<17x17xbf16>, vector<17x8xbf16>, vector<17x8xf32> -> vector<17x8xf32>
    %636 = arith.truncf %635 : vector<17x8xf32> to vector<17x8xbf16>
    %637 = vector.extract_strided_slice %372 {offsets = [14, 0, 0], sizes = [1, 32, 8], strides = [1, 1, 1]} : vector<16x32x8xbf16> to vector<1x32x8xbf16>
    %638 = vector.shape_cast %637 : vector<1x32x8xbf16> to vector<32x8xbf16>
    %cst_151 = arith.constant dense<0.000000e+00> : vector<17x32xf32>
    %639 = tpu.matmul %636, %638, %cst_151 {dimension_numbers = #tpu.dot_dimension_numbers<[1], [1], [0], [0], [0, 0, 1, 0], [], []>} : vector<17x8xbf16>, vector<32x8xbf16>, vector<17x32xf32> -> vector<17x32xf32>
    %640 = arith.addf %619, %639 : vector<17x32xf32>
    %641 = vector.extract_strided_slice %493 {offsets = [17, 0], sizes = [17, 8], strides = [1, 1]} : vector<34x8xbf16> to vector<17x8xbf16>
    %642 = vector.extract_strided_slice %494 {offsets = [17, 0], sizes = [17, 8], strides = [1, 1]} : vector<34x8xbf16> to vector<17x8xbf16>
    %643 = vector.extract_strided_slice %495 {offsets = [17, 0], sizes = [17, 8], strides = [1, 1]} : vector<34x8xbf16> to vector<17x8xbf16>
    %cst_152 = arith.constant dense<0.000000e+00> : vector<17x17xf32>
    %644 = tpu.matmul %641, %642, %cst_152 {dimension_numbers = #tpu.dot_dimension_numbers<[1], [1], [0], [0], [0, 0, 1, 0], [], []>} : vector<17x8xbf16>, vector<17x8xbf16>, vector<17x17xf32> -> vector<17x17xf32>
    %cst_153 = arith.constant dense<0xFF800000> : vector<17xf32>
    %645 = vector.multi_reduction <maximumf>, %644, %cst_153 [1] : vector<17x17xf32> to vector<17xf32>
    %646 = vector.shape_cast %645 : vector<17xf32> to vector<17x1xf32>
    %647 = vector.broadcast %646 : vector<17x1xf32> to vector<17x17xf32>
    %648 = arith.subf %644, %647 : vector<17x17xf32>
    %649 = math.exp %648 : vector<17x17xf32>
    %cst_154 = arith.constant dense<0.000000e+00> : vector<17xf32>
    %650 = vector.multi_reduction <add>, %649, %cst_154 [1] : vector<17x17xf32> to vector<17xf32>
    %651 = vector.shape_cast %650 : vector<17xf32> to vector<17x1xf32>
    %652 = tpu.reciprocal %651 {approx = true} : vector<17x1xf32> -> vector<17x1xf32>
    %653 = vector.broadcast %652 : vector<17x1xf32> to vector<17x17xf32>
    %654 = arith.mulf %649, %653 : vector<17x17xf32>
    %655 = arith.truncf %654 : vector<17x17xf32> to vector<17x17xbf16>
    %cst_155 = arith.constant dense<0.000000e+00> : vector<17x8xf32>
    %656 = tpu.matmul %655, %643, %cst_155 {dimension_numbers = #tpu.dot_dimension_numbers<[1], [0], [0], [1], [0, 0, 1, 1], [], []>} : vector<17x17xbf16>, vector<17x8xbf16>, vector<17x8xf32> -> vector<17x8xf32>
    %657 = arith.truncf %656 : vector<17x8xf32> to vector<17x8xbf16>
    %658 = vector.extract_strided_slice %372 {offsets = [15, 0, 0], sizes = [1, 32, 8], strides = [1, 1, 1]} : vector<16x32x8xbf16> to vector<1x32x8xbf16>
    %659 = vector.shape_cast %658 : vector<1x32x8xbf16> to vector<32x8xbf16>
    %cst_156 = arith.constant dense<0.000000e+00> : vector<17x32xf32>
    %660 = tpu.matmul %657, %659, %cst_156 {dimension_numbers = #tpu.dot_dimension_numbers<[1], [1], [0], [0], [0, 0, 1, 0], [], []>} : vector<17x8xbf16>, vector<32x8xbf16>, vector<17x32xf32> -> vector<17x32xf32>
    %661 = arith.addf %640, %660 : vector<17x32xf32>
    %662 = tpu.concatenate %578, %661 in 0 : vector<17x32xf32>, vector<17x32xf32> -> vector<34x32xf32>
    %663 = arith.addf %369, %662 : vector<34x32xf32>
    %664 = vector.broadcast %386 : vector<1x32xf32> to vector<34x32xf32>
    %665 = arith.addf %663, %664 : vector<34x32xf32>
    %cst_157 = arith.constant dense<0.000000e+00> : vector<34xf32>
    %666 = vector.multi_reduction <add>, %665, %cst_157 [1] : vector<34x32xf32> to vector<34xf32>
    %667 = vector.shape_cast %666 : vector<34xf32> to vector<34x1xf32>
    %cst_158 = arith.constant 3.200000e+01 : f32
    %668 = vector.broadcast %cst_158 : f32 to vector<34x1xf32>
    %669 = arith.divf %667, %668 : vector<34x1xf32>
    %670 = vector.broadcast %669 : vector<34x1xf32> to vector<34x32xf32>
    %671 = arith.subf %665, %670 : vector<34x32xf32>
    %672 = arith.mulf %671, %671 : vector<34x32xf32>
    %cst_159 = arith.constant dense<0.000000e+00> : vector<34xf32>
    %673 = vector.multi_reduction <add>, %672, %cst_159 [1] : vector<34x32xf32> to vector<34xf32>
    %674 = vector.shape_cast %673 : vector<34xf32> to vector<34x1xf32>
    %cst_160 = arith.constant 3.200000e+01 : f32
    %675 = vector.broadcast %cst_160 : f32 to vector<34x1xf32>
    %676 = arith.divf %674, %675 : vector<34x1xf32>
    %677 = vector.broadcast %669 : vector<34x1xf32> to vector<34x32xf32>
    %678 = arith.subf %665, %677 : vector<34x32xf32>
    %cst_161 = arith.constant 9.99999974E-6 : f32
    %679 = vector.broadcast %cst_161 : f32 to vector<34x1xf32>
    %680 = arith.addf %676, %679 : vector<34x1xf32>
    %681 = math.rsqrt %680 : vector<34x1xf32>
    %682 = vector.broadcast %681 : vector<34x1xf32> to vector<34x32xf32>
    %683 = arith.mulf %678, %682 : vector<34x32xf32>
    %684 = vector.broadcast %384 : vector<1x32xf32> to vector<34x32xf32>
    %685 = arith.mulf %683, %684 : vector<34x32xf32>
    %686 = vector.broadcast %385 : vector<1x32xf32> to vector<34x32xf32>
    %687 = arith.addf %685, %686 : vector<34x32xf32>
    %688 = arith.truncf %687 : vector<34x32xf32> to vector<34x32xbf16>
    %689 = vector.extract_strided_slice %381 {offsets = [0, 0, 0], sizes = [1, 32, 64], strides = [1, 1, 1]} : vector<2x32x64xbf16> to vector<1x32x64xbf16>
    %690 = vector.shape_cast %689 : vector<1x32x64xbf16> to vector<32x64xbf16>
    %cst_162 = arith.constant dense<0.000000e+00> : vector<34x64xf32>
    %691 = tpu.matmul %688, %690, %cst_162 {dimension_numbers = #tpu.dot_dimension_numbers<[1], [0], [0], [1], [0, 0, 1, 1], [], []>} : vector<34x32xbf16>, vector<32x64xbf16>, vector<34x64xf32> -> vector<34x64xf32>
    %692 = vector.broadcast %388 : vector<1x64xf32> to vector<34x64xf32>
    %693 = arith.addf %691, %692 : vector<34x64xf32>
    %cst_163 = arith.constant 1.702000e+00 : f32
    %694 = vector.broadcast %cst_163 : f32 to vector<34x64xf32>
    %695 = arith.mulf %694, %693 : vector<34x64xf32>
    %696 = arith.negf %695 : vector<34x64xf32>
    %697 = math.exp %696 : vector<34x64xf32>
    %cst_164 = arith.constant 1.000000e+00 : f32
    %698 = vector.broadcast %cst_164 : f32 to vector<34x64xf32>
    %699 = arith.addf %698, %697 : vector<34x64xf32>
    %700 = arith.divf %698, %699 : vector<34x64xf32>
    %701 = arith.mulf %693, %700 : vector<34x64xf32>
    %702 = arith.truncf %701 : vector<34x64xf32> to vector<34x64xbf16>
    %703 = vector.extract_strided_slice %381 {offsets = [1, 0, 0], sizes = [1, 32, 64], strides = [1, 1, 1]} : vector<2x32x64xbf16> to vector<1x32x64xbf16>
    %704 = vector.shape_cast %703 : vector<1x32x64xbf16> to vector<32x64xbf16>
    %cst_165 = arith.constant dense<0.000000e+00> : vector<34x32xf32>
    %705 = tpu.matmul %702, %704, %cst_165 {dimension_numbers = #tpu.dot_dimension_numbers<[1], [1], [0], [0], [0, 0, 1, 0], [], []>} : vector<34x64xbf16>, vector<32x64xbf16>, vector<34x32xf32> -> vector<34x32xf32>
    %706 = vector.broadcast %387 : vector<1x32xf32> to vector<34x32xf32>
    %707 = arith.addf %705, %706 : vector<34x32xf32>
    %708 = arith.addf %665, %707 : vector<34x32xf32>
    %c2_i32 = arith.constant 2 : i32
    %709 = vector.extract_strided_slice %708 {offsets = [0, 0], sizes = [1, 32], strides = [1, 1]} : vector<34x32xf32> to vector<1x32xf32>
    %710 = vector.extract_strided_slice %708 {offsets = [17, 0], sizes = [1, 32], strides = [1, 1]} : vector<34x32xf32> to vector<1x32xf32>
    %711 = tpu.concatenate %709, %710 in 0 : vector<1x32xf32>, vector<1x32xf32> -> vector<2x32xf32>
    %c2 = arith.constant 2 : index
    %c0_166 = arith.constant 0 : index
    %712 = vector.load %arg4[%c2, %c0_166] : memref<4x32xf32, #tpu.memory_space<vmem>>, vector<1x32xf32>
    %c3 = arith.constant 3 : index
    %c0_167 = arith.constant 0 : index
    %713 = vector.load %arg4[%c3, %c0_167] : memref<4x32xf32, #tpu.memory_space<vmem>>, vector<1x32xf32>
    %cst_168 = arith.constant dense<0.000000e+00> : vector<2xf32>
    %714 = vector.multi_reduction <add>, %711, %cst_168 [1] : vector<2x32xf32> to vector<2xf32>
    %715 = vector.shape_cast %714 : vector<2xf32> to vector<2x1xf32>
    %cst_169 = arith.constant 3.200000e+01 : f32
    %716 = vector.broadcast %cst_169 : f32 to vector<2x1xf32>
    %717 = arith.divf %715, %716 : vector<2x1xf32>
    %718 = vector.broadcast %717 : vector<2x1xf32> to vector<2x32xf32>
    %719 = arith.subf %711, %718 : vector<2x32xf32>
    %720 = arith.mulf %719, %719 : vector<2x32xf32>
    %cst_170 = arith.constant dense<0.000000e+00> : vector<2xf32>
    %721 = vector.multi_reduction <add>, %720, %cst_170 [1] : vector<2x32xf32> to vector<2xf32>
    %722 = vector.shape_cast %721 : vector<2xf32> to vector<2x1xf32>
    %cst_171 = arith.constant 3.200000e+01 : f32
    %723 = vector.broadcast %cst_171 : f32 to vector<2x1xf32>
    %724 = arith.divf %722, %723 : vector<2x1xf32>
    %725 = vector.broadcast %717 : vector<2x1xf32> to vector<2x32xf32>
    %726 = arith.subf %711, %725 : vector<2x32xf32>
    %cst_172 = arith.constant 9.99999974E-6 : f32
    %727 = vector.broadcast %cst_172 : f32 to vector<2x1xf32>
    %728 = arith.addf %724, %727 : vector<2x1xf32>
    %729 = math.rsqrt %728 : vector<2x1xf32>
    %730 = vector.broadcast %729 : vector<2x1xf32> to vector<2x32xf32>
    %731 = arith.mulf %726, %730 : vector<2x32xf32>
    %732 = vector.broadcast %712 : vector<1x32xf32> to vector<2x32xf32>
    %733 = arith.mulf %731, %732 : vector<2x32xf32>
    %734 = vector.broadcast %713 : vector<1x32xf32> to vector<2x32xf32>
    %735 = arith.addf %733, %734 : vector<2x32xf32>
    %736 = arith.truncf %735 : vector<2x32xf32> to vector<2x32xbf16>
    %c0_173 = arith.constant 0 : index
    %c0_174 = arith.constant 0 : index
    %737 = vector.load %arg9[%c0_173, %c0_174] : memref<32x24xbf16, #tpu.memory_space<vmem>>, vector<32x24xbf16>
    %cst_175 = arith.constant dense<0.000000e+00> : vector<2x24xf32>
    %738 = tpu.matmul %736, %737, %cst_175 {dimension_numbers = #tpu.dot_dimension_numbers<[1], [0], [0], [1], [0, 0, 1, 1], [], []>} : vector<2x32xbf16>, vector<32x24xbf16>, vector<2x24xf32> -> vector<2x24xf32>
    %c0_176 = arith.constant 0 : index
    %c0_177 = arith.constant 0 : index
    %c0_178 = arith.constant 0 : index
    %739 = vector.load %arg10[%c0_176, %c0_177, %c0_178] : memref<1x2x24xf32, #tpu.memory_space<vmem>>, vector<1x2x24xf32>
    %740 = vector.shape_cast %739 : vector<1x2x24xf32> to vector<2x24xf32>
    %741 = vector.shape_cast %738 : vector<2x24xf32> to vector<1x2x24xf32>
    tpu.vector_store %arg10[%c0_176, %c0_177, %c0_178], %741 {strides = array<i32>} : memref<1x2x24xf32, #tpu.memory_space<vmem>>, vector<1x2x24xf32>,
    return
  }
  func.func @transform_0(%arg0: i32) -> (i32, i32, i32) {
    %c0_i32 = arith.constant 0 : i32
    %c0_i32_0 = arith.constant 0 : i32
    %c0_i32_1 = arith.constant 0 : i32
    return %arg0, %c0_i32, %c0_i32_0 : i32, i32, i32
  }
  func.func @transform_1(%arg0: i32) -> (i32, i32) {
    %c0_i32 = arith.constant 0 : i32
    %c0_i32_0 = arith.constant 0 : i32
    %c0_i32_1 = arith.constant 0 : i32
    return %c0_i32, %c0_i32_0 : i32, i32
  }
  func.func @transform_2(%arg0: i32) -> (i32, i32) {
    %c0_i32 = arith.constant 0 : i32
    %c0_i32_0 = arith.constant 0 : i32
    %c0_i32_1 = arith.constant 0 : i32
    return %c0_i32, %c0_i32_0 : i32, i32
  }
  func.func @transform_3(%arg0: i32) -> (i32, i32) {
    %c0_i32 = arith.constant 0 : i32
    %c0_i32_0 = arith.constant 0 : i32
    %c0_i32_1 = arith.constant 0 : i32
    return %c0_i32, %c0_i32_0 : i32, i32
  }
  func.func @transform_4(%arg0: i32) -> (i32, i32, i32, i32) {
    %c0_i32 = arith.constant 0 : i32
    %c0_i32_0 = arith.constant 0 : i32
    %c0_i32_1 = arith.constant 0 : i32
    %c0_i32_2 = arith.constant 0 : i32
    %c0_i32_3 = arith.constant 0 : i32
    return %c0_i32, %c0_i32_0, %c0_i32_1, %c0_i32_2 : i32, i32, i32, i32
  }
  func.func @transform_5(%arg0: i32) -> (i32, i32, i32) {
    %c0_i32 = arith.constant 0 : i32
    %c0_i32_0 = arith.constant 0 : i32
    %c0_i32_1 = arith.constant 0 : i32
    %c0_i32_2 = arith.constant 0 : i32
    return %c0_i32, %c0_i32_0, %c0_i32_1 : i32, i32, i32
  }
  func.func @transform_6(%arg0: i32) -> (i32, i32, i32) {
    %c0_i32 = arith.constant 0 : i32
    %c0_i32_0 = arith.constant 0 : i32
    %c0_i32_1 = arith.constant 0 : i32
    %c0_i32_2 = arith.constant 0 : i32
    return %c0_i32, %c0_i32_0, %c0_i32_1 : i32, i32, i32
  }
  func.func @transform_7(%arg0: i32) -> (i32, i32, i32, i32) {
    %c0_i32 = arith.constant 0 : i32
    %c0_i32_0 = arith.constant 0 : i32
    %c0_i32_1 = arith.constant 0 : i32
    %c0_i32_2 = arith.constant 0 : i32
    %c0_i32_3 = arith.constant 0 : i32
    return %c0_i32, %c0_i32_0, %c0_i32_1, %c0_i32_2 : i32, i32, i32, i32
  }
  func.func @transform_8(%arg0: i32) -> (i32, i32) {
    %c0_i32 = arith.constant 0 : i32
    %c0_i32_0 = arith.constant 0 : i32
    %c0_i32_1 = arith.constant 0 : i32
    return %c0_i32, %c0_i32_0 : i32, i32
  }
  func.func @transform_9(%arg0: i32) -> (i32, i32, i32) {
    %c0_i32 = arith.constant 0 : i32
    %c0_i32_0 = arith.constant 0 : i32
    %c0_i32_1 = arith.constant 0 : i32
    return %arg0, %c0_i32, %c0_i32_0 : i32, i32, i32
  }
}

</mosaic_0001>

<llo_original>
// kernel: tpu_custom_call.1
$region0: #{tpu_custom_call.1}
  #allocation0 [shape = 'u32[]', space=smem, size = 0x4, offset = 0x4, fixed_abs, tag = 'smem constant byte address 0x4 - core index']
  #allocation1 [shape = 'u32[144,128]{1,0:T(1,128)}', space=vmem, size = 0x12000, scoped, tag = 'internal scratch']
  %s0 = inlined_call_operand.hbm [shape: f32[1,34,192], index: 0, kind: input, shape index: {}]
  %s1 = inlined_call_operand.hbm [shape: bf16[192,32], index: 1, kind: input, shape index: {}]
  %s2 = inlined_call_operand.hbm [shape: f32[34,32], index: 2, kind: input, shape index: {}]
  %s3 = inlined_call_operand.hbm [shape: f32[4,32], index: 3, kind: input, shape index: {}]
  %s4 = inlined_call_operand.hbm [shape: bf16[2,16,32,8], index: 4, kind: input, shape index: {}]
  %s5 = inlined_call_operand.hbm [shape: f32[2,12,8], index: 5, kind: input, shape index: {}]
  %s6 = inlined_call_operand.hbm [shape: f32[2,8,64], index: 6, kind: input, shape index: {}]
  %s7 = inlined_call_operand.hbm [shape: bf16[2,2,32,64], index: 7, kind: input, shape index: {}]
  %s8 = inlined_call_operand.hbm [shape: bf16[32,24], index: 8, kind: input, shape index: {}]
  %s9 = inlined_call_operand.hbm [shape: f32[1,2,24], index: 9, kind: output, shape index: {}]
  %s10 = sld [smem:[#allocation0]]
  $region82: #{tpu_custom_call.1} parent=0
    _
  %s12 = ssub.s32 1, %s10
  %s13 = scalar_select 0, %s12, %s10
  $region1: #{tpu_custom_call.1} parent=0
    #allocation2 [shape = 'u8[40960]{0}', space=vmem, size = 0xa000, scoped, tag = 'input window, operand 0, single buffered']
    #allocation3 [shape = 's32[1]{0}', space=sflag, size = 0x4, scoped, tag = 'scoped memory for tpu_custom_call.1']
    #allocation4 [shape = 's32[1]{0}', space=sflag, size = 0x4, scoped, tag = 'scoped memory for tpu_custom_call.1']
    #allocation5 [shape = 'u8[49152]{0}', space=vmem, size = 0xc000, scoped, tag = 'input window, operand 1, single buffered']
    #allocation6 [shape = 's32[1]{0}', space=sflag, size = 0x4, scoped, tag = 'scoped memory for tpu_custom_call.1']
    #allocation7 [shape = 'u8[20480]{0}', space=vmem, size = 0x5000, scoped, tag = 'input window, operand 2, single buffered']
    #allocation8 [shape = 'u8[2048]{0}', space=vmem, size = 0x800, scoped, tag = 'input window, operand 3, single buffered']
    #allocation9 [shape = 's32[1]{0}', space=sflag, size = 0x4, scoped, tag = 'scoped memory for tpu_custom_call.1']
    #allocation10 [shape = 'u8[262144]{0}', space=vmem, size = 0x40000, scoped, tag = 'input window, operand 4, single buffered']
    #allocation11 [shape = 'u8[16384]{0}', space=vmem, size = 0x4000, scoped, tag = 'input window, operand 5, single buffered']
    #allocation12 [shape = 's32[1]{0}', space=sflag, size = 0x4, scoped, tag = 'scoped memory for tpu_custom_call.1']
    #allocation13 [shape = 'u8[8192]{0}', space=vmem, size = 0x2000, scoped, tag = 'input window, operand 6, single buffered']
    #allocation14 [shape = 'u8[32768]{0}', space=vmem, size = 0x8000, scoped, tag = 'input window, operand 7, single buffered']
    #allocation15 [shape = 's32[1]{0}', space=sflag, size = 0x4, scoped, tag = 'scoped memory for tpu_custom_call.1']
    #allocation16 [shape = 'u8[8192]{0}', space=vmem, size = 0x2000, scoped, tag = 'input window, operand 8, single buffered']
    #allocation17 [shape = 'u8[1024]{0}', space=vmem, size = 0x400, scoped, tag = 'output window, operand 0, single buffered']
    %14 = vsyncpa [#allocation3], 0
    %15 = vsyncpa [#allocation6], 0
    %16 = vsyncpa [#allocation9], 0
    %17 = vsyncpa [#allocation12], 0
    %18 = vsyncpa [#allocation15], 0
    %19 = vsyncpa [#allocation4], 0
    // Predicated region
    $region2: #{tpu_custom_call.1} parent=1 // pred_check
      _
    $region3: #{tpu_custom_call.1} parent=1 // pred_check_branch
      %21 = sbr.rel (0) target = $region5
    $region4: #{tpu_custom_call.1} parent=1 // pred_region
      %s23 = ssub.s32 1280, 1280
      %24 = vsyncadd [#allocation3], %s23
      %s25 = sshll.u32 [#allocation2], 4
      %s26 = int_to_ptr.vmem [resolvable:$true] %s25
      %31 = dma.hbm_to_vmem [thread:$0]  %s0, 1280, %s26, [#allocation3], 256, 256, 16
    $region5: #{tpu_custom_call.1} parent=1 // pred_fallthru
      _
    // Predicated region
    $region6: #{tpu_custom_call.1} parent=1 // pred_check
      _
    $region7: #{tpu_custom_call.1} parent=1 // pred_check_branch
      %33 = sbr.rel (0) target = $region9
    $region8: #{tpu_custom_call.1} parent=1 // pred_region
      %s35 = ssub.s32 1536, 1536
      %36 = vsyncadd [#allocation6], %s35
      %s37 = sshll.u32 [#allocation5], 4
      %s38 = int_to_ptr.vmem [resolvable:$true] %s37
      %43 = dma.hbm_to_vmem [thread:$0]  %s1, 1536, %s38, [#allocation6], 64, 64, 4
    $region9: #{tpu_custom_call.1} parent=1 // pred_fallthru
      _
    // Predicated region
    $region10: #{tpu_custom_call.1} parent=1 // pred_check
      _
    $region11: #{tpu_custom_call.1} parent=1 // pred_check_branch
      %45 = sbr.rel (0) target = $region13
    $region12: #{tpu_custom_call.1} parent=1 // pred_region
      %s47 = ssub.s32 640, 640
      %48 = vsyncadd [#allocation6], %s47
      %s49 = sshll.u32 [#allocation7], 4
      %s50 = int_to_ptr.vmem [resolvable:$true] %s49
      %55 = dma.hbm_to_vmem [thread:$0]  %s2, 640, %s50, [#allocation6], 128, 128, 8
    $region13: #{tpu_custom_call.1} parent=1 // pred_fallthru
      _
    // Predicated region
    $region14: #{tpu_custom_call.1} parent=1 // pred_check
      _
    $region15: #{tpu_custom_call.1} parent=1 // pred_check_branch
      %57 = sbr.rel (0) target = $region17
    $region16: #{tpu_custom_call.1} parent=1 // pred_region
      %s59 = ssub.s32 64, 64
      %60 = vsyncadd [#allocation9], %s59
      %s62 = sshll.u32 [#allocation8], 4
      %s63 = int_to_ptr.vmem [resolvable:$true] %s62
      %65 = dma.hbm_to_vmem [thread:$0]  %s3, 64, %s63, [#allocation9]
    $region17: #{tpu_custom_call.1} parent=1 // pred_fallthru
      _
    // Predicated region
    $region18: #{tpu_custom_call.1} parent=1 // pred_check
      _
    $region19: #{tpu_custom_call.1} parent=1 // pred_check_branch
      %67 = sbr.rel (0) target = $region21
    $region20: #{tpu_custom_call.1} parent=1 // pred_region
      %s69 = ssub.s32 8192, 8192
      %70 = vsyncadd [#allocation9], %s69
      %s71 = sshll.u32 [#allocation10], 4
      %s72 = int_to_ptr.vmem [resolvable:$true] %s71
      %77 = dma.hbm_to_vmem [thread:$0]  %s4, 8192, %s72, [#allocation9], 64, 64, 4
    $region21: #{tpu_custom_call.1} parent=1 // pred_fallthru
      _
    // Predicated region
    $region22: #{tpu_custom_call.1} parent=1 // pred_check
      _
    $region23: #{tpu_custom_call.1} parent=1 // pred_check_branch
      %79 = sbr.rel (0) target = $region25
    $region24: #{tpu_custom_call.1} parent=1 // pred_region
      %s81 = ssub.s32 512, 512
      %82 = vsyncadd [#allocation12], %s81
      %s83 = sshll.u32 [#allocation11], 4
      %s84 = int_to_ptr.vmem [resolvable:$true] %s83
      %89 = dma.hbm_to_vmem [thread:$0]  %s5, 512, %s84, [#allocation12], 128, 128, 8
    $region25: #{tpu_custom_call.1} parent=1 // pred_fallthru
      _
    // Predicated region
    $region26: #{tpu_custom_call.1} parent=1 // pred_check
      _
    $region27: #{tpu_custom_call.1} parent=1 // pred_check_branch
      %91 = sbr.rel (0) target = $region29
    $region28: #{tpu_custom_call.1} parent=1 // pred_region
      %s93 = ssub.s32 256, 256
      %94 = vsyncadd [#allocation12], %s93
      %s95 = sshll.u32 [#allocation13], 4
      %s96 = int_to_ptr.vmem [resolvable:$true] %s95
      %101 = dma.hbm_to_vmem [thread:$0]  %s6, 256, %s96, [#allocation12], 128, 128, 8
    $region29: #{tpu_custom_call.1} parent=1 // pred_fallthru
      _
    // Predicated region
    $region30: #{tpu_custom_call.1} parent=1 // pred_check
      _
    $region31: #{tpu_custom_call.1} parent=1 // pred_check_branch
      %103 = sbr.rel (0) target = $region33
    $region32: #{tpu_custom_call.1} parent=1 // pred_region
      %s105 = ssub.s32 1024, 1024
      %106 = vsyncadd [#allocation15], %s105
      %s107 = sshll.u32 [#allocation14], 4
      %s108 = int_to_ptr.vmem [resolvable:$true] %s107
      %113 = dma.hbm_to_vmem [thread:$0]  %s7, 1024, %s108, [#allocation15], 64, 64, 4
    $region33: #{tpu_custom_call.1} parent=1 // pred_fallthru
      _
    // Predicated region
    $region34: #{tpu_custom_call.1} parent=1 // pred_check
      _
    $region35: #{tpu_custom_call.1} parent=1 // pred_check_branch
      %115 = sbr.rel (0) target = $region37
    $region36: #{tpu_custom_call.1} parent=1 // pred_region
      %s117 = ssub.s32 256, 256
      %118 = vsyncadd [#allocation15], %s117
      %s119 = sshll.u32 [#allocation16], 4
      %s120 = int_to_ptr.vmem [resolvable:$true] %s119
      %125 = dma.hbm_to_vmem [thread:$0]  %s8, 256, %s120, [#allocation15], 64, 64, 4
    $region37: #{tpu_custom_call.1} parent=1 // pred_fallthru
      _
    // Predicated region
    $region38: #{tpu_custom_call.1} parent=1 // pred_check
      _
    $region39: #{tpu_custom_call.1} parent=1 // pred_check_branch
      %127 = sbr.rel (0) target = $region41
    $region40: #{tpu_custom_call.1} parent=1 // pred_region
      %128 = dma.done [#allocation3], 1280
    $region41: #{tpu_custom_call.1} parent=1 // pred_fallthru
      _
    // Predicated region
    $region42: #{tpu_custom_call.1} parent=1 // pred_check
      _
    $region43: #{tpu_custom_call.1} parent=1 // pred_check_branch
      %130 = sbr.rel (0) target = $region45
    $region44: #{tpu_custom_call.1} parent=1 // pred_region
      %131 = dma.done [#allocation6], 1536
    $region45: #{tpu_custom_call.1} parent=1 // pred_fallthru
      _
    // Predicated region
    $region46: #{tpu_custom_call.1} parent=1 // pred_check
      _
    $region47: #{tpu_custom_call.1} parent=1 // pred_check_branch
      %133 = sbr.rel (0) target = $region49
    $region48: #{tpu_custom_call.1} parent=1 // pred_region
      %134 = dma.done [#allocation6], 640
    $region49: #{tpu_custom_call.1} parent=1 // pred_fallthru
      _
    // Predicated region
    $region50: #{tpu_custom_call.1} parent=1 // pred_check
      _
    $region51: #{tpu_custom_call.1} parent=1 // pred_check_branch
      %136 = sbr.rel (0) target = $region53
    $region52: #{tpu_custom_call.1} parent=1 // pred_region
      %137 = dma.done [#allocation9], 64
    $region53: #{tpu_custom_call.1} parent=1 // pred_fallthru
      _
    // Predicated region
    $region54: #{tpu_custom_call.1} parent=1 // pred_check
      _
    $region55: #{tpu_custom_call.1} parent=1 // pred_check_branch
      %139 = sbr.rel (0) target = $region57
    $region56: #{tpu_custom_call.1} parent=1 // pred_region
      %140 = dma.done [#allocation9], 8192
    $region57: #{tpu_custom_call.1} parent=1 // pred_fallthru
      _
    // Predicated region
    $region58: #{tpu_custom_call.1} parent=1 // pred_check
      _
    $region59: #{tpu_custom_call.1} parent=1 // pred_check_branch
      %142 = sbr.rel (0) target = $region61
    $region60: #{tpu_custom_call.1} parent=1 // pred_region
      %143 = dma.done [#allocation12], 512
    $region61: #{tpu_custom_call.1} parent=1 // pred_fallthru
      _
    // Predicated region
    $region62: #{tpu_custom_call.1} parent=1 // pred_check
      _
    $region63: #{tpu_custom_call.1} parent=1 // pred_check_branch
      %145 = sbr.rel (0) target = $region65
    $region64: #{tpu_custom_call.1} parent=1 // pred_region
      %146 = dma.done [#allocation12], 256
    $region65: #{tpu_custom_call.1} parent=1 // pred_fallthru
      _
    // Predicated region
    $region66: #{tpu_custom_call.1} parent=1 // pred_check
      _
    $region67: #{tpu_custom_call.1} parent=1 // pred_check_branch
      %148 = sbr.rel (0) target = $region69
    $region68: #{tpu_custom_call.1} parent=1 // pred_region
      %149 = dma.done [#allocation15], 1024
    $region69: #{tpu_custom_call.1} parent=1 // pred_fallthru
      _
    // Predicated region
    $region70: #{tpu_custom_call.1} parent=1 // pred_check
      _
    $region71: #{tpu_custom_call.1} parent=1 // pred_check_branch
      %151 = sbr.rel (0) target = $region73
    $region72: #{tpu_custom_call.1} parent=1 // pred_region
      %152 = dma.done [#allocation15], 256
    $region73: #{tpu_custom_call.1} parent=1 // pred_fallthru
      _
    %v154 = vld [vmem:[#allocation2] sm:$0xff]
    %v155 = vld [vmem:[#allocation2 + $0x8] sm:$0xff]
    %v156 = vld [vmem:[#allocation2 + $0x10] sm:$0xff]
    %v157 = vld [vmem:[#allocation2 + $0x18] sm:$0xff]
    %v158 = vld [vmem:[#allocation2 + $0x20] sm:$0xff]
    %v159 = vld [vmem:[#allocation2 + $0x28] sm:$0xff]
    %v160 = vld [vmem:[#allocation2 + $0x30] sm:$0xff]
    %v161 = vld [vmem:[#allocation2 + $0x38] sm:$0xff]
    %v162 = vld [vmem:[#allocation2 + $0x40] sm:$0x3]
    %v163 = vld [vmem:[#allocation2 + $0x48] sm:$0x3]
    %v164 = vpack.c.bf16 %v156, %v154
    %v165 = vpack.c.bf16 %v157, %v155
    %v166 = vpack.c.bf16 %v160, %v158
    %v167 = vpack.c.bf16 %v161, %v159
    %v168 = vpack.c.bf16 %v162, %v162
    %v169 = vpack.c.bf16 %v163, %v163
    %v170 = vld [vmem:[#allocation5] sm:$0xf]
    %v171 = vld [vmem:[#allocation5 + $0x4] sm:$0xf]
    %v172 = vld [vmem:[#allocation5 + $0x8] sm:$0xf]
    %v173 = vld [vmem:[#allocation5 + $0xc] sm:$0xf]
    %v174 = vld [vmem:[#allocation5 + $0x10] sm:$0xf]
    %v175 = vld [vmem:[#allocation5 + $0x14] sm:$0xf]
    %v176 = vld [vmem:[#allocation5 + $0x18] sm:$0xf]
    %v177 = vld [vmem:[#allocation5 + $0x1c] sm:$0xf]
    %v178 = vld [vmem:[#allocation5 + $0x20] sm:$0xf]
    %v179 = vld [vmem:[#allocation5 + $0x24] sm:$0xf]
    %v180 = vld [vmem:[#allocation5 + $0x28] sm:$0xf]
    %v181 = vld [vmem:[#allocation5 + $0x2c] sm:$0xf]
    %v182 = vld [vmem:[#allocation5 + $0x30] sm:$0xf]
    %v183 = vld [vmem:[#allocation5 + $0x34] sm:$0xf]
    %v184 = vld [vmem:[#allocation5 + $0x38] sm:$0xf]
    %v185 = vld [vmem:[#allocation5 + $0x3c] sm:$0xf]
    %v186 = vld [vmem:[#allocation5 + $0x40] sm:$0xf]
    %v187 = vld [vmem:[#allocation5 + $0x44] sm:$0xf]
    %v188 = vld [vmem:[#allocation5 + $0x48] sm:$0xf]
    %v189 = vld [vmem:[#allocation5 + $0x4c] sm:$0xf]
    %v190 = vld [vmem:[#allocation5 + $0x50] sm:$0xf]
    %v191 = vld [vmem:[#allocation5 + $0x54] sm:$0xf]
    %v192 = vld [vmem:[#allocation5 + $0x58] sm:$0xf]
    %v193 = vld [vmem:[#allocation5 + $0x5c] sm:$0xf]
    %v194 = vld [vmem:[#allocation7] sm:$0xff]
    %v195 = vld [vmem:[#allocation7 + $0x8] sm:$0xff]
    %v196 = vld [vmem:[#allocation7 + $0x10] sm:$0xff]
    %v197 = vld [vmem:[#allocation7 + $0x18] sm:$0xff]
    %v198 = vld [vmem:[#allocation7 + $0x20] sm:$0x3]
    %v223 = vunpack.c.l.b16 %v170
    %v224 = vunpack.c.l.b16 %v171
    %v225 = vunpack.c.l.b16 %v172
    %v226 = vunpack.c.l.b16 %v173
    %v227 = vunpack.c.l.b16 %v174
    %v228 = vunpack.c.l.b16 %v175
    %v229 = vunpack.c.l.b16 %v176
    %v230 = vunpack.c.l.b16 %v177
    %v231 = vunpack.c.l.b16 %v178
    %v232 = vunpack.c.l.b16 %v179
    %v233 = vunpack.c.l.b16 %v180
    %v234 = vunpack.c.l.b16 %v181
    %v235 = vunpack.c.l.b16 %v182
    %v236 = vunpack.c.l.b16 %v183
    %v237 = vunpack.c.l.b16 %v184
    %v238 = vunpack.c.l.b16 %v185
    %v239 = vunpack.c.l.b16 %v186
    %v240 = vunpack.c.l.b16 %v187
    %v241 = vunpack.c.l.b16 %v188
    %v242 = vunpack.c.l.b16 %v189
    %v243 = vunpack.c.l.b16 %v190
    %v244 = vunpack.c.l.b16 %v191
    %v245 = vunpack.c.l.b16 %v192
    %v246 = vunpack.c.l.b16 %v193
    %v247 = vpack.c.b16 %v224, %v223
    %v248 = vpack.c.b16 %v226, %v225
    %v249 = vpack.c.b16 %v228, %v227
    %v250 = vpack.c.b16 %v230, %v229
    %v251 = vpack.c.b16 %v232, %v231
    %v252 = vpack.c.b16 %v234, %v233
    %v253 = vpack.c.b16 %v236, %v235
    %v254 = vpack.c.b16 %v238, %v237
    %v255 = vpack.c.b16 %v240, %v239
    %v256 = vpack.c.b16 %v242, %v241
    %v257 = vpack.c.b16 %v244, %v243
    %v258 = vpack.c.b16 %v246, %v245
    %vm271 = vcmask 523264
    %v273 = vsel %vm271, %v165, 0
    %v276 = vsel %vm271, %v167, 0
    %v279 = vsel %vm271, %v169, 0
    %281 = vmatprep.subr.bf16.mxu0 0
    %282 = vmatpush1.bf16.msra.mxu0 %v247
    %283 = vmatprep.subr.bf16.mxu0 0
    %284 = vmatpush1.bf16.msra.mxu0 %v248
    %285 = vmatprep.subr.bf16.mxu0 0
    %286 = vmatpush1.bf16.msra.mxu0 %v249
    %287 = vmatprep.subr.bf16.mxu0 0
    %288 = vmatpush1.bf16.msra.mxu0 %v250
    %289 = vmatprep.subr.bf16.mxu0 0
    %290 = vmatpush1.bf16.msra.mxu0 %v251
    %291 = vmatprep.subr.bf16.mxu0 0
    %292 = vmatpush1.bf16.msra.mxu0 %v252
    %293 = vmatprep.subr.bf16.mxu0 0
    %294 = vmatpush1.bf16.msra.mxu0 %v253
    %295 = vmatprep.subr.bf16.mxu0 0
    %296 = vmatpush1.bf16.msra.mxu0 %v254
    %297 = vmatprep.subr.bf16.mxu0 0
    %298 = vmatpush1.bf16.msra.mxu0 %v255
    %299 = vmatprep.subr.bf16.mxu0 0
    %300 = vmatpush1.bf16.msra.mxu0 %v256
    %301 = vmatprep.subr.bf16.mxu0 0
    %302 = vmatpush1.bf16.msra.mxu0 %v257
    %303 = vmatprep.subr.bf16.mxu0 0
    %304 = vmatpush1.bf16.msra.mxu0 %v258
    %305 = vmatprep.subr.bf16.mxu0 0
    %306 = vmatpush1.bf16.msra.mxu0 0
    %307 = vmatprep.subr.bf16.mxu0 0
    %308 = vmatpush1.bf16.msra.mxu0 0
    %309 = vmatprep.subr.bf16.mxu0 0
    %310 = vmatpush1.bf16.msra.mxu0 0
    %311 = vmatprep.subr.bf16.mxu0 0
    %312 = vmatpush1.bf16.msra.mxu0 0
    %313 = vmatprep.mubr.bf16.mxu0 %v273
    %314 = vmatmul.mubr.bf16.gmra.mrb[0].mxu0 %v164
    %v315 = vpop.f32.mrb[0].mxu0
    %v316 = vadd.f32 %v194, %v315
    %v317 = vpop.f32.mrb[0].mxu0
    %v318 = vpop.f32.mrb[0].mxu0
    %v319 = vadd.f32 %v195, %v318
    %v320 = vpop.f32.mrb[0].mxu0
    %321 = vmatprep.mubr.bf16.mxu0 %v276
    %322 = vmatmul.mubr.bf16.gmra.mrb[0].mxu0 %v166
    %v323 = vpop.f32.mrb[0].mxu0
    %v324 = vadd.f32 %v196, %v323
    %v325 = vpop.f32.mrb[0].mxu0
    %v326 = vpop.f32.mrb[0].mxu0
    %v327 = vadd.f32 %v197, %v326
    %v328 = vpop.f32.mrb[0].mxu0
    %329 = vmatprep.mubr.bf16.mxu0 %v279
    %330 = vmatmul.mubr.bf16.gmra.mrb[0].mxu0 %v168
    %v331 = vpop.f32.mrb[0].mxu0
    %v332 = vadd.f32 %v198, %v331
    %v333 = vpop.f32.mrb[0].mxu0
    %v334 = vpop.f32.mrb[0].mxu0
    %v335 = vpop.f32.mrb[0].mxu0
    %336 = vdwg.mxu0
    %v337 = vld [vmem:[#allocation8] sm:$0x1]
    %v338 = vld [vmem:[#allocation8 + $0x1] sm:$0x1]
    %vm339 = vcmask 261120
    %v340 = vsel %vm339, %v316, 0.0
    %341 = vadd.xlane.f32.xlu0 %v340
    %v342 = vpop.xlane.xlu0 %341
    %v343 = vsel %vm339, %v319, 0.0
    %344 = vadd.xlane.f32.xlu0 %v343
    %v345 = vpop.xlane.xlu0 %344
    %v346 = vsel %vm339, %v324, 0.0
    %347 = vadd.xlane.f32.xlu0 %v346
    %v348 = vpop.xlane.xlu0 %347
    %v349 = vsel %vm339, %v327, 0.0
    %350 = vadd.xlane.f32.xlu0 %v349
    %v351 = vpop.xlane.xlu0 %350
    %vm352 = vcmask 254976
    %v353 = vsel %vm352, %v332, 0.0
    %354 = vadd.xlane.f32.xlu0 %v353
    %v355 = vpop.xlane.xlu0 %354
    %v356 = vrcp.pop 32.0
    %v357 = vmul.f32 %v342, %v356
    %v358 = vmul.f32 %v345, %v356
    %v359 = vmul.f32 %v348, %v356
    %v360 = vmul.f32 %v351, %v356
    %v361 = vmul.f32 %v355, %v356
    %v362 = vsub.f32 %v316, %v357
    %v363 = vsub.f32 %v319, %v358
    %v364 = vsub.f32 %v324, %v359
    %v365 = vsub.f32 %v327, %v360
    %v366 = vsub.f32 %v332, %v361
    %v367 = vmul.f32 %v362, %v362
    %v368 = vmul.f32 %v363, %v363
    %v369 = vmul.f32 %v364, %v364
    %v370 = vmul.f32 %v365, %v365
    %v371 = vmul.f32 %v366, %v366
    %v372 = vsel %vm339, %v367, 0.0
    %373 = vadd.xlane.f32.xlu0 %v372
    %v374 = vpop.xlane.xlu0 %373
    %v375 = vsel %vm339, %v368, 0.0
    %376 = vadd.xlane.f32.xlu0 %v375
    %v377 = vpop.xlane.xlu0 %376
    %v378 = vsel %vm339, %v369, 0.0
    %379 = vadd.xlane.f32.xlu0 %v378
    %v380 = vpop.xlane.xlu0 %379
    %v381 = vsel %vm339, %v370, 0.0
    %382 = vadd.xlane.f32.xlu0 %v381
    %v383 = vpop.xlane.xlu0 %382
    %v384 = vsel %vm352, %v371, 0.0
    %385 = vadd.xlane.f32.xlu0 %v384
    %v386 = vpop.xlane.xlu0 %385
    %v387 = vmul.f32 %v374, %v356
    %v388 = vmul.f32 %v377, %v356
    %v389 = vmul.f32 %v380, %v356
    %v390 = vmul.f32 %v383, %v356
    %v391 = vmul.f32 %v386, %v356
    %v392 = vadd.f32 %v387, 1e-05
    %v393 = vadd.f32 %v388, 1e-05
    %v394 = vadd.f32 %v389, 1e-05
    %v395 = vadd.f32 %v390, 1e-05
    %v396 = vadd.f32 %v391, 1e-05
    %v397 = vrsqrt.pop %v392
    %v398 = vrsqrt.pop %v393
    %v399 = vrsqrt.pop %v394
    %v400 = vrsqrt.pop %v395
    %v401 = vrsqrt.pop %v396
    %v402 = vmul.f32 %v362, %v397
    %v403 = vmul.f32 %v363, %v398
    %v404 = vmul.f32 %v364, %v399
    %v405 = vmul.f32 %v365, %v400
    %v406 = vmul.f32 %v366, %v401
    %v407 = vlaneseq
    %v408 = vshrl.u32 %v407, 7
    %v409 = vsub.s32 0, %v408
    %v410 = vrot.slane %v337, %v409
    %v411 = vmul.f32 %v402, %v410
    %v412 = vmul.f32 %v403, %v410
    %v413 = vmul.f32 %v404, %v410
    %v414 = vmul.f32 %v405, %v410
    %v415 = vmul.f32 %v406, %v410
    %v416 = vlaneseq
    %v417 = vshrl.u32 %v416, 7
    %v418 = vsub.s32 0, %v417
    %v419 = vrot.slane %v338, %v418
    %v420 = vadd.f32 %v411, %v419
    %v421 = vadd.f32 %v412, %v419
    %v422 = vadd.f32 %v413, %v419
    %v423 = vadd.f32 %v414, %v419
    %v424 = vadd.f32 %v415, %v419
    %v425 = vld [vmem:[#allocation10] sm:$0xf]
    %v426 = vld [vmem:[#allocation10 + $0x4] sm:$0xf]
    %v427 = vld [vmem:[#allocation10 + $0x8] sm:$0xf]
    %v428 = vld [vmem:[#allocation10 + $0xc] sm:$0xf]
    %v429 = vld [vmem:[#allocation10 + $0x10] sm:$0xf]
    %v430 = vld [vmem:[#allocation10 + $0x14] sm:$0xf]
    %v431 = vld [vmem:[#allocation10 + $0x18] sm:$0xf]
    %v432 = vld [vmem:[#allocation10 + $0x1c] sm:$0xf]
    %v433 = vld [vmem:[#allocation10 + $0x20] sm:$0xf]
    %v434 = vld [vmem:[#allocation10 + $0x24] sm:$0xf]
    %v435 = vld [vmem:[#allocation10 + $0x28] sm:$0xf]
    %v436 = vld [vmem:[#allocation10 + $0x2c] sm:$0xf]
    %v437 = vld [vmem:[#allocation10 + $0x30] sm:$0xf]
    %v438 = vld [vmem:[#allocation10 + $0x34] sm:$0xf]
    %v439 = vld [vmem:[#allocation10 + $0x38] sm:$0xf]
    %v440 = vld [vmem:[#allocation10 + $0x3c] sm:$0xf]
    %v441 = vld [vmem:[#allocation10 + $0x40] sm:$0xf]
    %v442 = vld [vmem:[#allocation10 + $0x44] sm:$0xf]
    %v443 = vld [vmem:[#allocation10 + $0x48] sm:$0xf]
    %v444 = vld [vmem:[#allocation10 + $0x4c] sm:$0xf]
    %v445 = vld [vmem:[#allocation10 + $0x50] sm:$0xf]
    %v446 = vld [vmem:[#allocation10 + $0x54] sm:$0xf]
    %v447 = vld [vmem:[#allocation10 + $0x58] sm:$0xf]
    %v448 = vld [vmem:[#allocation10 + $0x5c] sm:$0xf]
    %v449 = vld [vmem:[#allocation10 + $0x60] sm:$0xf]
    %v450 = vld [vmem:[#allocation10 + $0x64] sm:$0xf]
    %v451 = vld [vmem:[#allocation10 + $0x68] sm:$0xf]
    %v452 = vld [vmem:[#allocation10 + $0x6c] sm:$0xf]
    %v453 = vld [vmem:[#allocation10 + $0x70] sm:$0xf]
    %v454 = vld [vmem:[#allocation10 + $0x74] sm:$0xf]
    %v455 = vld [vmem:[#allocation10 + $0x78] sm:$0xf]
    %v456 = vld [vmem:[#allocation10 + $0x7c] sm:$0xf]
    %v457 = vld [vmem:[#allocation10 + $0x80] sm:$0xf]
    %v458 = vld [vmem:[#allocation10 + $0x84] sm:$0xf]
    %v459 = vld [vmem:[#allocation10 + $0x88] sm:$0xf]
    %v460 = vld [vmem:[#allocation10 + $0x8c] sm:$0xf]
    %v461 = vld [vmem:[#allocation10 + $0x90] sm:$0xf]
    %v462 = vld [vmem:[#allocation10 + $0x94] sm:$0xf]
    %v463 = vld [vmem:[#allocation10 + $0x98] sm:$0xf]
    %v464 = vld [vmem:[#allocation10 + $0x9c] sm:$0xf]
    %v465 = vld [vmem:[#allocation10 + $0xa0] sm:$0xf]
    %v466 = vld [vmem:[#allocation10 + $0xa4] sm:$0xf]
    %v467 = vld [vmem:[#allocation10 + $0xa8] sm:$0xf]
    %v468 = vld [vmem:[#allocation10 + $0xac] sm:$0xf]
    %v469 = vld [vmem:[#allocation10 + $0xb0] sm:$0xf]
    %v470 = vld [vmem:[#allocation10 + $0xb4] sm:$0xf]
    %v471 = vld [vmem:[#allocation10 + $0xb8] sm:$0xf]
    %v472 = vld [vmem:[#allocation10 + $0xbc] sm:$0xf]
    %v473 = vld [vmem:[#allocation10 + $0xc0] sm:$0xf]
    %v474 = vld [vmem:[#allocation10 + $0xc4] sm:$0xf]
    %v475 = vld [vmem:[#allocation10 + $0xc8] sm:$0xf]
    %v476 = vld [vmem:[#allocation10 + $0xcc] sm:$0xf]
    %v477 = vld [vmem:[#allocation10 + $0xd0] sm:$0xf]
    %v478 = vld [vmem:[#allocation10 + $0xd4] sm:$0xf]
    %v479 = vld [vmem:[#allocation10 + $0xd8] sm:$0xf]
    %v480 = vld [vmem:[#allocation10 + $0xdc] sm:$0xf]
    %v481 = vld [vmem:[#allocation10 + $0xe0] sm:$0xf]
    %v482 = vld [vmem:[#allocation10 + $0xe4] sm:$0xf]
    %v483 = vld [vmem:[#allocation10 + $0xe8] sm:$0xf]
    %v484 = vld [vmem:[#allocation10 + $0xec] sm:$0xf]
    %v485 = vld [vmem:[#allocation10 + $0xf0] sm:$0xf]
    %v486 = vld [vmem:[#allocation10 + $0xf4] sm:$0xf]
    %v487 = vld [vmem:[#allocation10 + $0xf8] sm:$0xf]
    %v488 = vld [vmem:[#allocation10 + $0xfc] sm:$0xf]
    %v489 = vld [vmem:[#allocation11] sm:$0xff]
    %v490 = vld [vmem:[#allocation11 + $0x8] sm:$0xf]
    %v491 = vld [vmem:[#allocation13] sm:$0xff]
    %v492 = vld [vmem:[#allocation14] sm:$0xf]
    %v493 = vld [vmem:[#allocation14 + $0x4] sm:$0xf]
    %v494 = vld [vmem:[#allocation14 + $0x8] sm:$0xf]
    %v495 = vld [vmem:[#allocation14 + $0xc] sm:$0xf]
    %v496 = vld [vmem:[#allocation14 + $0x10] sm:$0xf]
    %v497 = vld [vmem:[#allocation14 + $0x14] sm:$0xf]
    %v498 = vld [vmem:[#allocation14 + $0x18] sm:$0xf]
    %v499 = vld [vmem:[#allocation14 + $0x1c] sm:$0xf]
    %v500 = vsel %vm339, %v420, 0.0
    %501 = vadd.xlane.f32.xlu0 %v500
    %v502 = vpop.xlane.xlu0 %501
    %v503 = vsel %vm339, %v421, 0.0
    %504 = vadd.xlane.f32.xlu0 %v503
    %v505 = vpop.xlane.xlu0 %504
    %v506 = vsel %vm339, %v422, 0.0
    %507 = vadd.xlane.f32.xlu0 %v506
    %v508 = vpop.xlane.xlu0 %507
    %v509 = vsel %vm339, %v423, 0.0
    %510 = vadd.xlane.f32.xlu0 %v509
    %v511 = vpop.xlane.xlu0 %510
    %v512 = vsel %vm352, %v424, 0.0
    %513 = vadd.xlane.f32.xlu0 %v512
    %v514 = vpop.xlane.xlu0 %513
    %v515 = vmul.f32 %v502, %v356
    %v516 = vmul.f32 %v505, %v356
    %v517 = vmul.f32 %v508, %v356
    %v518 = vmul.f32 %v511, %v356
    %v519 = vmul.f32 %v514, %v356
    %v520 = vsub.f32 %v420, %v515
    %v521 = vsub.f32 %v421, %v516
    %v522 = vsub.f32 %v422, %v517
    %v523 = vsub.f32 %v423, %v518
    %v524 = vsub.f32 %v424, %v519
    %v525 = vmul.f32 %v520, %v520
    %v526 = vmul.f32 %v521, %v521
    %v527 = vmul.f32 %v522, %v522
    %v528 = vmul.f32 %v523, %v523
    %v529 = vmul.f32 %v524, %v524
    %v530 = vsel %vm339, %v525, 0.0
    %531 = vadd.xlane.f32.xlu0 %v530
    %v532 = vpop.xlane.xlu0 %531
    %v533 = vsel %vm339, %v526, 0.0
    %534 = vadd.xlane.f32.xlu0 %v533
    %v535 = vpop.xlane.xlu0 %534
    %v536 = vsel %vm339, %v527, 0.0
    %537 = vadd.xlane.f32.xlu0 %v536
    %v538 = vpop.xlane.xlu0 %537
    %v539 = vsel %vm339, %v528, 0.0
    %540 = vadd.xlane.f32.xlu0 %v539
    %v541 = vpop.xlane.xlu0 %540
    %v542 = vsel %vm352, %v529, 0.0
    %543 = vadd.xlane.f32.xlu0 %v542
    %v544 = vpop.xlane.xlu0 %543
    %v545 = vmul.f32 %v532, %v356
    %v546 = vmul.f32 %v535, %v356
    %v547 = vmul.f32 %v538, %v356
    %v548 = vmul.f32 %v541, %v356
    %v549 = vmul.f32 %v544, %v356
    %v550 = vadd.f32 %v545, 1e-05
    %v551 = vadd.f32 %v546, 1e-05
    %v552 = vadd.f32 %v547, 1e-05
    %v553 = vadd.f32 %v548, 1e-05
    %v554 = vadd.f32 %v549, 1e-05
    %v555 = vrsqrt.pop %v550
    %v556 = vrsqrt.pop %v551
    %v557 = vrsqrt.pop %v552
    %v558 = vrsqrt.pop %v553
    %v559 = vrsqrt.pop %v554
    %v560 = vmul.f32 %v520, %v555
    %v561 = vmul.f32 %v521, %v556
    %v562 = vmul.f32 %v522, %v557
    %v563 = vmul.f32 %v523, %v558
    %v564 = vmul.f32 %v524, %v559
    %v565 = vlaneseq
    %v566 = vshrl.u32 %v565, 7
    %v567 = vsub.s32 0, %v566
    %v568 = vrot.slane %v491, %v567
    %v569 = vmul.f32 %v560, %v568
    %v570 = vmul.f32 %v561, %v568
    %v571 = vmul.f32 %v562, %v568
    %v572 = vmul.f32 %v563, %v568
    %v573 = vmul.f32 %v564, %v568
    %v574 = vlaneseq
    %v575 = vshrl.u32 %v574, 7
    %v576 = vsub.s32 1, %v575
    %v577 = vrot.slane %v491, %v576
    %v578 = vadd.f32 %v569, %v577
    %v579 = vadd.f32 %v570, %v577
    %v580 = vadd.f32 %v571, %v577
    %v581 = vadd.f32 %v572, %v577
    %v582 = vadd.f32 %v573, %v577
    %v583 = vpack.c.bf16 %v579, %v578
    %v584 = vpack.c.bf16 %v581, %v580
    %v585 = vpack.c.bf16 %v582, %v582
    %v586 = vlaneseq
    %v587 = vshrl.u32 %v586, 7
    %v588 = vsub.s32 0, %v587
    %v589 = vrot.slane %v489, %v588
    %v594 = vunpack.c.l.b16 %v425
    %v595 = vunpack.c.l.b16 %v426
    %v596 = vunpack.c.l.b16 %v427
    %v597 = vunpack.c.l.b16 %v428
    %v598 = vpack.c.b16 %v595, %v594
    %v599 = vpack.c.b16 %v597, %v596
    %v603 = vsel %vm339, %v583, 0
    %v606 = vsel %vm339, %v584, 0
    %v609 = vsel %vm339, %v585, 0
    %611 = vmatprep.subr.bf16.mxu0 0
    %612 = vmatpush1.bf16.msra.mxu0 %v598
    %613 = vmatprep.subr.bf16.mxu0 0
    %614 = vmatpush1.bf16.msra.mxu0 %v599
    %615 = vmatprep.subr.bf16.mxu0 0
    %616 = vmatpush1.bf16.msra.mxu0 0
    %617 = vmatprep.subr.bf16.mxu0 0
    %618 = vmatpush1.bf16.msra.mxu0 0
    %619 = vmatprep.subr.bf16.mxu0 0
    %620 = vmatpush1.bf16.msra.mxu0 0
    %621 = vmatprep.subr.bf16.mxu0 0
    %622 = vmatpush1.bf16.msra.mxu0 0
    %623 = vmatprep.subr.bf16.mxu0 0
    %624 = vmatpush1.bf16.msra.mxu0 0
    %625 = vmatprep.subr.bf16.mxu0 0
    %626 = vmatpush1.bf16.msra.mxu0 0
    %627 = vmatprep.subr.bf16.mxu0 0
    %628 = vmatpush1.bf16.msra.mxu0 0
    %629 = vmatprep.subr.bf16.mxu0 0
    %630 = vmatpush1.bf16.msra.mxu0 0
    %631 = vmatprep.subr.bf16.mxu0 0
    %632 = vmatpush1.bf16.msra.mxu0 0
    %633 = vmatprep.subr.bf16.mxu0 0
    %634 = vmatpush1.bf16.msra.mxu0 0
    %635 = vmatprep.subr.bf16.mxu0 0
    %636 = vmatpush1.bf16.msra.mxu0 0
    %637 = vmatprep.subr.bf16.mxu0 0
    %638 = vmatpush1.bf16.msra.mxu0 0
    %639 = vmatprep.subr.bf16.mxu0 0
    %640 = vmatpush1.bf16.msra.mxu0 0
    %641 = vmatprep.subr.bf16.mxu0 0
    %642 = vmatpush1.bf16.msra.mxu0 0
    %643 = vmatprep.mubr.bf16.mxu0 0
    %644 = vmatmul.mubr.bf16.gmra.mrb[0].mxu0 %v603
    %v645 = vpop.f32.mrb[0].mxu0
    %v646 = vadd.f32 %v589, %v645
    %v647 = vpop.f32.mrb[0].mxu0
    %v648 = vpop.f32.mrb[0].mxu0
    %v649 = vadd.f32 %v589, %v648
    %v650 = vpop.f32.mrb[0].mxu0
    %651 = vmatprep.mubr.bf16.mxu0 0
    %652 = vmatmul.mubr.bf16.gmra.mrb[0].mxu0 %v606
    %v653 = vpop.f32.mrb[0].mxu0
    %v654 = vadd.f32 %v589, %v653
    %v655 = vpop.f32.mrb[0].mxu0
    %v656 = vpop.f32.mrb[0].mxu0
    %v657 = vadd.f32 %v589, %v656
    %v658 = vpop.f32.mrb[0].mxu0
    %659 = vmatprep.mubr.bf16.mxu0 0
    %660 = vmatmul.mubr.bf16.gmra.mrb[0].mxu0 %v609
    %v661 = vpop.f32.mrb[0].mxu0
    %v662 = vadd.f32 %v589, %v661
    %v663 = vpop.f32.mrb[0].mxu0
    %v664 = vpop.f32.mrb[0].mxu0
    %v665 = vpop.f32.mrb[0].mxu0
    %666 = vdwg.mxu0
    %v667 = vlaneseq
    %v668 = vshrl.u32 %v667, 7
    %v669 = vsub.s32 4, %v668
    %v670 = vrot.slane %v489, %v669
    %v675 = vunpack.c.l.b16 %v441
    %v676 = vunpack.c.l.b16 %v442
    %v677 = vunpack.c.l.b16 %v443
    %v678 = vunpack.c.l.b16 %v444
    %v679 = vpack.c.b16 %v676, %v675
    %v680 = vpack.c.b16 %v678, %v677
    %683 = vmatprep.subr.bf16.mxu0 0
    %684 = vmatpush1.bf16.msra.mxu0 %v679
    %685 = vmatprep.subr.bf16.mxu0 0
    %686 = vmatpush1.bf16.msra.mxu0 %v680
    %687 = vmatprep.subr.bf16.mxu0 0
    %688 = vmatpush1.bf16.msra.mxu0 0
    %689 = vmatprep.subr.bf16.mxu0 0
    %690 = vmatpush1.bf16.msra.mxu0 0
    %691 = vmatprep.subr.bf16.mxu0 0
    %692 = vmatpush1.bf16.msra.mxu0 0
    %693 = vmatprep.subr.bf16.mxu0 0
    %694 = vmatpush1.bf16.msra.mxu0 0
    %695 = vmatprep.subr.bf16.mxu0 0
    %696 = vmatpush1.bf16.msra.mxu0 0
    %697 = vmatprep.subr.bf16.mxu0 0
    %698 = vmatpush1.bf16.msra.mxu0 0
    %699 = vmatprep.subr.bf16.mxu0 0
    %700 = vmatpush1.bf16.msra.mxu0 0
    %701 = vmatprep.subr.bf16.mxu0 0
    %702 = vmatpush1.bf16.msra.mxu0 0
    %703 = vmatprep.subr.bf16.mxu0 0
    %704 = vmatpush1.bf16.msra.mxu0 0
    %705 = vmatprep.subr.bf16.mxu0 0
    %706 = vmatpush1.bf16.msra.mxu0 0
    %707 = vmatprep.subr.bf16.mxu0 0
    %708 = vmatpush1.bf16.msra.mxu0 0
    %709 = vmatprep.subr.bf16.mxu0 0
    %710 = vmatpush1.bf16.msra.mxu0 0
    %711 = vmatprep.subr.bf16.mxu0 0
    %712 = vmatpush1.bf16.msra.mxu0 0
    %713 = vmatprep.subr.bf16.mxu0 0
    %714 = vmatpush1.bf16.msra.mxu0 0
    %715 = vmatprep.mubr.bf16.mxu0 0
    %716 = vmatmul.mubr.bf16.gmra.mrb[0].mxu0 %v603
    %v717 = vpop.f32.mrb[0].mxu0
    %v718 = vadd.f32 %v670, %v717
    %v719 = vpop.f32.mrb[0].mxu0
    %v720 = vpop.f32.mrb[0].mxu0
    %v721 = vadd.f32 %v670, %v720
    %v722 = vpop.f32.mrb[0].mxu0
    %723 = vmatprep.mubr.bf16.mxu0 0
    %724 = vmatmul.mubr.bf16.gmra.mrb[0].mxu0 %v606
    %v725 = vpop.f32.mrb[0].mxu0
    %v726 = vadd.f32 %v670, %v725
    %v727 = vpop.f32.mrb[0].mxu0
    %v728 = vpop.f32.mrb[0].mxu0
    %v729 = vadd.f32 %v670, %v728
    %v730 = vpop.f32.mrb[0].mxu0
    %731 = vmatprep.mubr.bf16.mxu0 0
    %732 = vmatmul.mubr.bf16.gmra.mrb[0].mxu0 %v609
    %v733 = vpop.f32.mrb[0].mxu0
    %v734 = vadd.f32 %v670, %v733
    %v735 = vpop.f32.mrb[0].mxu0
    %v736 = vpop.f32.mrb[0].mxu0
    %v737 = vpop.f32.mrb[0].mxu0
    %738 = vdwg.mxu0
    %v739 = vlaneseq
    %v740 = vshrl.u32 %v739, 7
    %v741 = vsub.s32 0, %v740
    %v742 = vrot.slane %v490, %v741
    %v747 = vunpack.c.l.b16 %v457
    %v748 = vunpack.c.l.b16 %v458
    %v749 = vunpack.c.l.b16 %v459
    %v750 = vunpack.c.l.b16 %v460
    %v751 = vpack.c.b16 %v748, %v747
    %v752 = vpack.c.b16 %v750, %v749
    %755 = vmatprep.subr.bf16.mxu0 0
    %756 = vmatpush1.bf16.msra.mxu0 %v751
    %757 = vmatprep.subr.bf16.mxu0 0
    %758 = vmatpush1.bf16.msra.mxu0 %v752
    %759 = vmatprep.subr.bf16.mxu0 0
    %760 = vmatpush1.bf16.msra.mxu0 0
    %761 = vmatprep.subr.bf16.mxu0 0
    %762 = vmatpush1.bf16.msra.mxu0 0
    %763 = vmatprep.subr.bf16.mxu0 0
    %764 = vmatpush1.bf16.msra.mxu0 0
    %765 = vmatprep.subr.bf16.mxu0 0
    %766 = vmatpush1.bf16.msra.mxu0 0
    %767 = vmatprep.subr.bf16.mxu0 0
    %768 = vmatpush1.bf16.msra.mxu0 0
    %769 = vmatprep.subr.bf16.mxu0 0
    %770 = vmatpush1.bf16.msra.mxu0 0
    %771 = vmatprep.subr.bf16.mxu0 0
    %772 = vmatpush1.bf16.msra.mxu0 0
    %773 = vmatprep.subr.bf16.mxu0 0
    %774 = vmatpush1.bf16.msra.mxu0 0
    %775 = vmatprep.subr.bf16.mxu0 0
    %776 = vmatpush1.bf16.msra.mxu0 0
    %777 = vmatprep.subr.bf16.mxu0 0
    %778 = vmatpush1.bf16.msra.mxu0 0
    %779 = vmatprep.subr.bf16.mxu0 0
    %780 = vmatpush1.bf16.msra.mxu0 0
    %781 = vmatprep.subr.bf16.mxu0 0
    %782 = vmatpush1.bf16.msra.mxu0 0
    %783 = vmatprep.subr.bf16.mxu0 0
    %784 = vmatpush1.bf16.msra.mxu0 0
    %785 = vmatprep.subr.bf16.mxu0 0
    %786 = vmatpush1.bf16.msra.mxu0 0
    %787 = vmatprep.mubr.bf16.mxu0 0
    %788 = vmatmul.mubr.bf16.gmra.mrb[0].mxu0 %v603
    %v789 = vpop.f32.mrb[0].mxu0
    %v790 = vadd.f32 %v742, %v789
    %v791 = vpop.f32.mrb[0].mxu0
    %v792 = vpop.f32.mrb[0].mxu0
    %v793 = vadd.f32 %v742, %v792
    %v794 = vpop.f32.mrb[0].mxu0
    %795 = vmatprep.mubr.bf16.mxu0 0
    %796 = vmatmul.mubr.bf16.gmra.mrb[0].mxu0 %v606
    %v797 = vpop.f32.mrb[0].mxu0
    %v798 = vadd.f32 %v742, %v797
    %v799 = vpop.f32.mrb[0].mxu0
    %v800 = vpop.f32.mrb[0].mxu0
    %v801 = vadd.f32 %v742, %v800
    %v802 = vpop.f32.mrb[0].mxu0
    %803 = vmatprep.mubr.bf16.mxu0 0
    %804 = vmatmul.mubr.bf16.gmra.mrb[0].mxu0 %v609
    %v805 = vpop.f32.mrb[0].mxu0
    %v806 = vadd.f32 %v742, %v805
    %v807 = vpop.f32.mrb[0].mxu0
    %v808 = vpop.f32.mrb[0].mxu0
    %v809 = vpop.f32.mrb[0].mxu0
    %810 = vdwg.mxu0
    %v811 = vpack.c.bf16 %v649, %v646
    %v812 = vpack.c.bf16 %v657, %v654
    %v813 = vpack.c.bf16 %v662, %v662
    %v814 = vpack.c.bf16 %v721, %v718
    %v815 = vpack.c.bf16 %v729, %v726
    %v816 = vpack.c.bf16 %v734, %v734
    %v817 = vpack.c.bf16 %v793, %v790
    %v818 = vpack.c.bf16 %v801, %v798
    %v819 = vpack.c.bf16 %v806, %v806
    %v820 = vlaneseq
    %v821 = vshrl.u32 %v820, 7
    %v822 = vsub.s32 1, %v821
    %v823 = vrot.slane %v489, %v822
    %v828 = vunpack.c.l.b16 %v429
    %v829 = vunpack.c.l.b16 %v430
    %v830 = vunpack.c.l.b16 %v431
    %v831 = vunpack.c.l.b16 %v432
    %v832 = vpack.c.b16 %v829, %v828
    %v833 = vpack.c.b16 %v831, %v830
    %836 = vmatprep.subr.bf16.mxu0 0
    %837 = vmatpush1.bf16.msra.mxu0 %v832
    %838 = vmatprep.subr.bf16.mxu0 0
    %839 = vmatpush1.bf16.msra.mxu0 %v833
    %840 = vmatprep.subr.bf16.mxu0 0
    %841 = vmatpush1.bf16.msra.mxu0 0
    %842 = vmatprep.subr.bf16.mxu0 0
    %843 = vmatpush1.bf16.msra.mxu0 0
    %844 = vmatprep.subr.bf16.mxu0 0
    %845 = vmatpush1.bf16.msra.mxu0 0
    %846 = vmatprep.subr.bf16.mxu0 0
    %847 = vmatpush1.bf16.msra.mxu0 0
    %848 = vmatprep.subr.bf16.mxu0 0
    %849 = vmatpush1.bf16.msra.mxu0 0
    %850 = vmatprep.subr.bf16.mxu0 0
    %851 = vmatpush1.bf16.msra.mxu0 0
    %852 = vmatprep.subr.bf16.mxu0 0
    %853 = vmatpush1.bf16.msra.mxu0 0
    %854 = vmatprep.subr.bf16.mxu0 0
    %855 = vmatpush1.bf16.msra.mxu0 0
    %856 = vmatprep.subr.bf16.mxu0 0
    %857 = vmatpush1.bf16.msra.mxu0 0
    %858 = vmatprep.subr.bf16.mxu0 0
    %859 = vmatpush1.bf16.msra.mxu0 0
    %860 = vmatprep.subr.bf16.mxu0 0
    %861 = vmatpush1.bf16.msra.mxu0 0
    %862 = vmatprep.subr.bf16.mxu0 0
    %863 = vmatpush1.bf16.msra.mxu0 0
    %864 = vmatprep.subr.bf16.mxu0 0
    %865 = vmatpush1.bf16.msra.mxu0 0
    %866 = vmatprep.subr.bf16.mxu0 0
    %867 = vmatpush1.bf16.msra.mxu0 0
    %868 = vmatprep.mubr.bf16.mxu0 0
    %869 = vmatmul.mubr.bf16.gmra.mrb[0].mxu0 %v603
    %v870 = vpop.f32.mrb[0].mxu0
    %v871 = vadd.f32 %v823, %v870
    %v872 = vpop.f32.mrb[0].mxu0
    %v873 = vpop.f32.mrb[0].mxu0
    %v874 = vadd.f32 %v823, %v873
    %v875 = vpop.f32.mrb[0].mxu0
    %876 = vmatprep.mubr.bf16.mxu0 0
    %877 = vmatmul.mubr.bf16.gmra.mrb[0].mxu0 %v606
    %v878 = vpop.f32.mrb[0].mxu0
    %v879 = vadd.f32 %v823, %v878
    %v880 = vpop.f32.mrb[0].mxu0
    %v881 = vpop.f32.mrb[0].mxu0
    %v882 = vadd.f32 %v823, %v881
    %v883 = vpop.f32.mrb[0].mxu0
    %884 = vmatprep.mubr.bf16.mxu0 0
    %885 = vmatmul.mubr.bf16.gmra.mrb[0].mxu0 %v609
    %v886 = vpop.f32.mrb[0].mxu0
    %v887 = vadd.f32 %v823, %v886
    %v888 = vpop.f32.mrb[0].mxu0
    %v889 = vpop.f32.mrb[0].mxu0
    %v890 = vpop.f32.mrb[0].mxu0
    %891 = vdwg.mxu0
    %v892 = vlaneseq
    %v893 = vshrl.u32 %v892, 7
    %v894 = vsub.s32 5, %v893
    %v895 = vrot.slane %v489, %v894
    %v900 = vunpack.c.l.b16 %v445
    %v901 = vunpack.c.l.b16 %v446
    %v902 = vunpack.c.l.b16 %v447
    %v903 = vunpack.c.l.b16 %v448
    %v904 = vpack.c.b16 %v901, %v900
    %v905 = vpack.c.b16 %v903, %v902
    %908 = vmatprep.subr.bf16.mxu0 0
    %909 = vmatpush1.bf16.msra.mxu0 %v904
    %910 = vmatprep.subr.bf16.mxu0 0
    %911 = vmatpush1.bf16.msra.mxu0 %v905
    %912 = vmatprep.subr.bf16.mxu0 0
    %913 = vmatpush1.bf16.msra.mxu0 0
    %914 = vmatprep.subr.bf16.mxu0 0
    %915 = vmatpush1.bf16.msra.mxu0 0
    %916 = vmatprep.subr.bf16.mxu0 0
    %917 = vmatpush1.bf16.msra.mxu0 0
    %918 = vmatprep.subr.bf16.mxu0 0
    %919 = vmatpush1.bf16.msra.mxu0 0
    %920 = vmatprep.subr.bf16.mxu0 0
    %921 = vmatpush1.bf16.msra.mxu0 0
    %922 = vmatprep.subr.bf16.mxu0 0
    %923 = vmatpush1.bf16.msra.mxu0 0
    %924 = vmatprep.subr.bf16.mxu0 0
    %925 = vmatpush1.bf16.msra.mxu0 0
    %926 = vmatprep.subr.bf16.mxu0 0
    %927 = vmatpush1.bf16.msra.mxu0 0
    %928 = vmatprep.subr.bf16.mxu0 0
    %929 = vmatpush1.bf16.msra.mxu0 0
    %930 = vmatprep.subr.bf16.mxu0 0
    %931 = vmatpush1.bf16.msra.mxu0 0
    %932 = vmatprep.subr.bf16.mxu0 0
    %933 = vmatpush1.bf16.msra.mxu0 0
    %934 = vmatprep.subr.bf16.mxu0 0
    %935 = vmatpush1.bf16.msra.mxu0 0
    %936 = vmatprep.subr.bf16.mxu0 0
    %937 = vmatpush1.bf16.msra.mxu0 0
    %938 = vmatprep.subr.bf16.mxu0 0
    %939 = vmatpush1.bf16.msra.mxu0 0
    %940 = vmatprep.mubr.bf16.mxu0 0
    %941 = vmatmul.mubr.bf16.gmra.mrb[0].mxu0 %v603
    %v942 = vpop.f32.mrb[0].mxu0
    %v943 = vadd.f32 %v895, %v942
    %v944 = vpop.f32.mrb[0].mxu0
    %v945 = vpop.f32.mrb[0].mxu0
    %v946 = vadd.f32 %v895, %v945
    %v947 = vpop.f32.mrb[0].mxu0
    %948 = vmatprep.mubr.bf16.mxu0 0
    %949 = vmatmul.mubr.bf16.gmra.mrb[0].mxu0 %v606
    %v950 = vpop.f32.mrb[0].mxu0
    %v951 = vadd.f32 %v895, %v950
    %v952 = vpop.f32.mrb[0].mxu0
    %v953 = vpop.f32.mrb[0].mxu0
    %v954 = vadd.f32 %v895, %v953
    %v955 = vpop.f32.mrb[0].mxu0
    %956 = vmatprep.mubr.bf16.mxu0 0
    %957 = vmatmul.mubr.bf16.gmra.mrb[0].mxu0 %v609
    %v958 = vpop.f32.mrb[0].mxu0
    %v959 = vadd.f32 %v895, %v958
    %v960 = vpop.f32.mrb[0].mxu0
    %v961 = vpop.f32.mrb[0].mxu0
    %v962 = vpop.f32.mrb[0].mxu0
    %963 = vdwg.mxu0
    %v964 = vlaneseq
    %v965 = vshrl.u32 %v964, 7
    %v966 = vsub.s32 1, %v965
    %v967 = vrot.slane %v490, %v966
    %v972 = vunpack.c.l.b16 %v461
    %v973 = vunpack.c.l.b16 %v462
    %v974 = vunpack.c.l.b16 %v463
    %v975 = vunpack.c.l.b16 %v464
    %v976 = vpack.c.b16 %v973, %v972
    %v977 = vpack.c.b16 %v975, %v974
    %980 = vmatprep.subr.bf16.mxu0 0
    %981 = vmatpush1.bf16.msra.mxu0 %v976
    %982 = vmatprep.subr.bf16.mxu0 0
    %983 = vmatpush1.bf16.msra.mxu0 %v977
    %984 = vmatprep.subr.bf16.mxu0 0
    %985 = vmatpush1.bf16.msra.mxu0 0
    %986 = vmatprep.subr.bf16.mxu0 0
    %987 = vmatpush1.bf16.msra.mxu0 0
    %988 = vmatprep.subr.bf16.mxu0 0
    %989 = vmatpush1.bf16.msra.mxu0 0
    %990 = vmatprep.subr.bf16.mxu0 0
    %991 = vmatpush1.bf16.msra.mxu0 0
    %992 = vmatprep.subr.bf16.mxu0 0
    %993 = vmatpush1.bf16.msra.mxu0 0
    %994 = vmatprep.subr.bf16.mxu0 0
    %995 = vmatpush1.bf16.msra.mxu0 0
    %996 = vmatprep.subr.bf16.mxu0 0
    %997 = vmatpush1.bf16.msra.mxu0 0
    %998 = vmatprep.subr.bf16.mxu0 0
    %999 = vmatpush1.bf16.msra.mxu0 0
    %1000 = vmatprep.subr.bf16.mxu0 0
    %1001 = vmatpush1.bf16.msra.mxu0 0
    %1002 = vmatprep.subr.bf16.mxu0 0
    %1003 = vmatpush1.bf16.msra.mxu0 0
    %1004 = vmatprep.subr.bf16.mxu0 0
    %1005 = vmatpush1.bf16.msra.mxu0 0
    %1006 = vmatprep.subr.bf16.mxu0 0
    %1007 = vmatpush1.bf16.msra.mxu0 0
    %1008 = vmatprep.subr.bf16.mxu0 0
    %1009 = vmatpush1.bf16.msra.mxu0 0
    %1010 = vmatprep.subr.bf16.mxu0 0
    %1011 = vmatpush1.bf16.msra.mxu0 0
    %1012 = vmatprep.mubr.bf16.mxu0 0
    %1013 = vmatmul.mubr.bf16.gmra.mrb[0].mxu0 %v603
    %v1014 = vpop.f32.mrb[0].mxu0
    %v1015 = vadd.f32 %v967, %v1014
    %v1016 = vpop.f32.mrb[0].mxu0
    %v1017 = vpop.f32.mrb[0].mxu0
    %v1018 = vadd.f32 %v967, %v1017
    %v1019 = vpop.f32.mrb[0].mxu0
    %1020 = vmatprep.mubr.bf16.mxu0 0
    %1021 = vmatmul.mubr.bf16.gmra.mrb[0].mxu0 %v606
    %v1022 = vpop.f32.mrb[0].mxu0
    %v1023 = vadd.f32 %v967, %v1022
    %v1024 = vpop.f32.mrb[0].mxu0
    %v1025 = vpop.f32.mrb[0].mxu0
    %v1026 = vadd.f32 %v967, %v1025
    %v1027 = vpop.f32.mrb[0].mxu0
    %1028 = vmatprep.mubr.bf16.mxu0 0
    %1029 = vmatmul.mubr.bf16.gmra.mrb[0].mxu0 %v609
    %v1030 = vpop.f32.mrb[0].mxu0
    %v1031 = vadd.f32 %v967, %v1030
    %v1032 = vpop.f32.mrb[0].mxu0
    %v1033 = vpop.f32.mrb[0].mxu0
    %v1034 = vpop.f32.mrb[0].mxu0
    %1035 = vdwg.mxu0
    %v1036 = vpack.c.bf16 %v874, %v871
    %v1037 = vpack.c.bf16 %v882, %v879
    %v1038 = vpack.c.bf16 %v887, %v887
    %v1039 = vpack.c.bf16 %v946, %v943
    %v1040 = vpack.c.bf16 %v954, %v951
    %v1041 = vpack.c.bf16 %v959, %v959
    %v1042 = vpack.c.bf16 %v1018, %v1015
    %v1043 = vpack.c.bf16 %v1026, %v1023
    %v1044 = vpack.c.bf16 %v1031, %v1031
    %v1045 = vlaneseq
    %v1046 = vshrl.u32 %v1045, 7
    %v1047 = vsub.s32 2, %v1046
    %v1048 = vrot.slane %v489, %v1047
    %v1053 = vunpack.c.l.b16 %v433
    %v1054 = vunpack.c.l.b16 %v434
    %v1055 = vunpack.c.l.b16 %v435
    %v1056 = vunpack.c.l.b16 %v436
    %v1057 = vpack.c.b16 %v1054, %v1053
    %v1058 = vpack.c.b16 %v1056, %v1055
    %1061 = vmatprep.subr.bf16.mxu0 0
    %1062 = vmatpush1.bf16.msra.mxu0 %v1057
    %1063 = vmatprep.subr.bf16.mxu0 0
    %1064 = vmatpush1.bf16.msra.mxu0 %v1058
    %1065 = vmatprep.subr.bf16.mxu0 0
    %1066 = vmatpush1.bf16.msra.mxu0 0
    %1067 = vmatprep.subr.bf16.mxu0 0
    %1068 = vmatpush1.bf16.msra.mxu0 0
    %1069 = vmatprep.subr.bf16.mxu0 0
    %1070 = vmatpush1.bf16.msra.mxu0 0
    %1071 = vmatprep.subr.bf16.mxu0 0
    %1072 = vmatpush1.bf16.msra.mxu0 0
    %1073 = vmatprep.subr.bf16.mxu0 0
    %1074 = vmatpush1.bf16.msra.mxu0 0
    %1075 = vmatprep.subr.bf16.mxu0 0
    %1076 = vmatpush1.bf16.msra.mxu0 0
    %1077 = vmatprep.subr.bf16.mxu0 0
    %1078 = vmatpush1.bf16.msra.mxu0 0
    %1079 = vmatprep.subr.bf16.mxu0 0
    %1080 = vmatpush1.bf16.msra.mxu0 0
    %1081 = vmatprep.subr.bf16.mxu0 0
    %1082 = vmatpush1.bf16.msra.mxu0 0
    %1083 = vmatprep.subr.bf16.mxu0 0
    %1084 = vmatpush1.bf16.msra.mxu0 0
    %1085 = vmatprep.subr.bf16.mxu0 0
    %1086 = vmatpush1.bf16.msra.mxu0 0
    %1087 = vmatprep.subr.bf16.mxu0 0
    %1088 = vmatpush1.bf16.msra.mxu0 0
    %1089 = vmatprep.subr.bf16.mxu0 0
    %1090 = vmatpush1.bf16.msra.mxu0 0
    %1091 = vmatprep.subr.bf16.mxu0 0
    %1092 = vmatpush1.bf16.msra.mxu0 0
    %1093 = vmatprep.mubr.bf16.mxu0 0
    %1094 = vmatmul.mubr.bf16.gmra.mrb[0].mxu0 %v603
    %v1095 = vpop.f32.mrb[0].mxu0
    %v1096 = vadd.f32 %v1048, %v1095
    %v1097 = vpop.f32.mrb[0].mxu0
    %v1098 = vpop.f32.mrb[0].mxu0
    %v1099 = vadd.f32 %v1048, %v1098
    %v1100 = vpop.f32.mrb[0].mxu0
    %1101 = vmatprep.mubr.bf16.mxu0 0
    %1102 = vmatmul.mubr.bf16.gmra.mrb[0].mxu0 %v606
    %v1103 = vpop.f32.mrb[0].mxu0
    %v1104 = vadd.f32 %v1048, %v1103
    %v1105 = vpop.f32.mrb[0].mxu0
    %v1106 = vpop.f32.mrb[0].mxu0
    %v1107 = vadd.f32 %v1048, %v1106
    %v1108 = vpop.f32.mrb[0].mxu0
    %1109 = vmatprep.mubr.bf16.mxu0 0
    %1110 = vmatmul.mubr.bf16.gmra.mrb[0].mxu0 %v609
    %v1111 = vpop.f32.mrb[0].mxu0
    %v1112 = vadd.f32 %v1048, %v1111
    %v1113 = vpop.f32.mrb[0].mxu0
    %v1114 = vpop.f32.mrb[0].mxu0
    %v1115 = vpop.f32.mrb[0].mxu0
    %1116 = vdwg.mxu0
    %v1117 = vlaneseq
    %v1118 = vshrl.u32 %v1117, 7
    %v1119 = vsub.s32 6, %v1118
    %v1120 = vrot.slane %v489, %v1119
    %v1125 = vunpack.c.l.b16 %v449
    %v1126 = vunpack.c.l.b16 %v450
    %v1127 = vunpack.c.l.b16 %v451
    %v1128 = vunpack.c.l.b16 %v452
    %v1129 = vpack.c.b16 %v1126, %v1125
    %v1130 = vpack.c.b16 %v1128, %v1127
    %1133 = vmatprep.subr.bf16.mxu0 0
    %1134 = vmatpush1.bf16.msra.mxu0 %v1129
    %1135 = vmatprep.subr.bf16.mxu0 0
    %1136 = vmatpush1.bf16.msra.mxu0 %v1130
    %1137 = vmatprep.subr.bf16.mxu0 0
    %1138 = vmatpush1.bf16.msra.mxu0 0
    %1139 = vmatprep.subr.bf16.mxu0 0
    %1140 = vmatpush1.bf16.msra.mxu0 0
    %1141 = vmatprep.subr.bf16.mxu0 0
    %1142 = vmatpush1.bf16.msra.mxu0 0
    %1143 = vmatprep.subr.bf16.mxu0 0
    %1144 = vmatpush1.bf16.msra.mxu0 0
    %1145 = vmatprep.subr.bf16.mxu0 0
    %1146 = vmatpush1.bf16.msra.mxu0 0
    %1147 = vmatprep.subr.bf16.mxu0 0
    %1148 = vmatpush1.bf16.msra.mxu0 0
    %1149 = vmatprep.subr.bf16.mxu0 0
    %1150 = vmatpush1.bf16.msra.mxu0 0
    %1151 = vmatprep.subr.bf16.mxu0 0
    %1152 = vmatpush1.bf16.msra.mxu0 0
    %1153 = vmatprep.subr.bf16.mxu0 0
    %1154 = vmatpush1.bf16.msra.mxu0 0
    %1155 = vmatprep.subr.bf16.mxu0 0
    %1156 = vmatpush1.bf16.msra.mxu0 0
    %1157 = vmatprep.subr.bf16.mxu0 0
    %1158 = vmatpush1.bf16.msra.mxu0 0
    %1159 = vmatprep.subr.bf16.mxu0 0
    %1160 = vmatpush1.bf16.msra.mxu0 0
    %1161 = vmatprep.subr.bf16.mxu0 0
    %1162 = vmatpush1.bf16.msra.mxu0 0
    %1163 = vmatprep.subr.bf16.mxu0 0
    %1164 = vmatpush1.bf16.msra.mxu0 0
    %1165 = vmatprep.mubr.bf16.mxu0 0
    %1166 = vmatmul.mubr.bf16.gmra.mrb[0].mxu0 %v603
    %v1167 = vpop.f32.mrb[0].mxu0
    %v1168 = vadd.f32 %v1120, %v1167
    %v1169 = vpop.f32.mrb[0].mxu0
    %v1170 = vpop.f32.mrb[0].mxu0
    %v1171 = vadd.f32 %v1120, %v1170
    %v1172 = vpop.f32.mrb[0].mxu0
    %1173 = vmatprep.mubr.bf16.mxu0 0
    %1174 = vmatmul.mubr.bf16.gmra.mrb[0].mxu0 %v606
    %v1175 = vpop.f32.mrb[0].mxu0
    %v1176 = vadd.f32 %v1120, %v1175
    %v1177 = vpop.f32.mrb[0].mxu0
    %v1178 = vpop.f32.mrb[0].mxu0
    %v1179 = vadd.f32 %v1120, %v1178
    %v1180 = vpop.f32.mrb[0].mxu0
    %1181 = vmatprep.mubr.bf16.mxu0 0
    %1182 = vmatmul.mubr.bf16.gmra.mrb[0].mxu0 %v609
    %v1183 = vpop.f32.mrb[0].mxu0
    %v1184 = vadd.f32 %v1120, %v1183
    %v1185 = vpop.f32.mrb[0].mxu0
    %v1186 = vpop.f32.mrb[0].mxu0
    %v1187 = vpop.f32.mrb[0].mxu0
    %1188 = vdwg.mxu0
    %v1189 = vlaneseq
    %v1190 = vshrl.u32 %v1189, 7
    %v1191 = vsub.s32 2, %v1190
    %v1192 = vrot.slane %v490, %v1191
    %v1197 = vunpack.c.l.b16 %v465
    %v1198 = vunpack.c.l.b16 %v466
    %v1199 = vunpack.c.l.b16 %v467
    %v1200 = vunpack.c.l.b16 %v468
    %v1201 = vpack.c.b16 %v1198, %v1197
    %v1202 = vpack.c.b16 %v1200, %v1199
    %1205 = vmatprep.subr.bf16.mxu0 0
    %1206 = vmatpush1.bf16.msra.mxu0 %v1201
    %1207 = vmatprep.subr.bf16.mxu0 0
    %1208 = vmatpush1.bf16.msra.mxu0 %v1202
    %1209 = vmatprep.subr.bf16.mxu0 0
    %1210 = vmatpush1.bf16.msra.mxu0 0
    %1211 = vmatprep.subr.bf16.mxu0 0
    %1212 = vmatpush1.bf16.msra.mxu0 0
    %1213 = vmatprep.subr.bf16.mxu0 0
    %1214 = vmatpush1.bf16.msra.mxu0 0
    %1215 = vmatprep.subr.bf16.mxu0 0
    %1216 = vmatpush1.bf16.msra.mxu0 0
    %1217 = vmatprep.subr.bf16.mxu0 0
    %1218 = vmatpush1.bf16.msra.mxu0 0
    %1219 = vmatprep.subr.bf16.mxu0 0
    %1220 = vmatpush1.bf16.msra.mxu0 0
    %1221 = vmatprep.subr.bf16.mxu0 0
    %1222 = vmatpush1.bf16.msra.mxu0 0
    %1223 = vmatprep.subr.bf16.mxu0 0
    %1224 = vmatpush1.bf16.msra.mxu0 0
    %1225 = vmatprep.subr.bf16.mxu0 0
    %1226 = vmatpush1.bf16.msra.mxu0 0
    %1227 = vmatprep.subr.bf16.mxu0 0
    %1228 = vmatpush1.bf16.msra.mxu0 0
    %1229 = vmatprep.subr.bf16.mxu0 0
    %1230 = vmatpush1.bf16.msra.mxu0 0
    %1231 = vmatprep.subr.bf16.mxu0 0
    %1232 = vmatpush1.bf16.msra.mxu0 0
    %1233 = vmatprep.subr.bf16.mxu0 0
    %1234 = vmatpush1.bf16.msra.mxu0 0
    %1235 = vmatprep.subr.bf16.mxu0 0
    %1236 = vmatpush1.bf16.msra.mxu0 0
    %1237 = vmatprep.mubr.bf16.mxu0 0
    %1238 = vmatmul.mubr.bf16.gmra.mrb[0].mxu0 %v603
    %v1239 = vpop.f32.mrb[0].mxu0
    %v1240 = vadd.f32 %v1192, %v1239
    %v1241 = vpop.f32.mrb[0].mxu0
    %v1242 = vpop.f32.mrb[0].mxu0
    %v1243 = vadd.f32 %v1192, %v1242
    %v1244 = vpop.f32.mrb[0].mxu0
    %1245 = vmatprep.mubr.bf16.mxu0 0
    %1246 = vmatmul.mubr.bf16.gmra.mrb[0].mxu0 %v606
    %v1247 = vpop.f32.mrb[0].mxu0
    %v1248 = vadd.f32 %v1192, %v1247
    %v1249 = vpop.f32.mrb[0].mxu0
    %v1250 = vpop.f32.mrb[0].mxu0
    %v1251 = vadd.f32 %v1192, %v1250
    %v1252 = vpop.f32.mrb[0].mxu0
    %1253 = vmatprep.mubr.bf16.mxu0 0
    %1254 = vmatmul.mubr.bf16.gmra.mrb[0].mxu0 %v609
    %v1255 = vpop.f32.mrb[0].mxu0
    %v1256 = vadd.f32 %v1192, %v1255
    %v1257 = vpop.f32.mrb[0].mxu0
    %v1258 = vpop.f32.mrb[0].mxu0
    %v1259 = vpop.f32.mrb[0].mxu0
    %1260 = vdwg.mxu0
    %v1261 = vpack.c.bf16 %v1099, %v1096
    %v1262 = vpack.c.bf16 %v1107, %v1104
    %v1263 = vpack.c.bf16 %v1112, %v1112
    %v1264 = vpack.c.bf16 %v1171, %v1168
    %v1265 = vpack.c.bf16 %v1179, %v1176
    %v1266 = vpack.c.bf16 %v1184, %v1184
    %v1267 = vpack.c.bf16 %v1243, %v1240
    %v1268 = vpack.c.bf16 %v1251, %v1248
    %v1269 = vpack.c.bf16 %v1256, %v1256
    %v1270 = vlaneseq
    %v1271 = vshrl.u32 %v1270, 7
    %v1272 = vsub.s32 3, %v1271
    %v1273 = vrot.slane %v489, %v1272
    %v1278 = vunpack.c.l.b16 %v437
    %v1279 = vunpack.c.l.b16 %v438
    %v1280 = vunpack.c.l.b16 %v439
    %v1281 = vunpack.c.l.b16 %v440
    %v1282 = vpack.c.b16 %v1279, %v1278
    %v1283 = vpack.c.b16 %v1281, %v1280
    %1286 = vmatprep.subr.bf16.mxu0 0
    %1287 = vmatpush1.bf16.msra.mxu0 %v1282
    %1288 = vmatprep.subr.bf16.mxu0 0
    %1289 = vmatpush1.bf16.msra.mxu0 %v1283
    %1290 = vmatprep.subr.bf16.mxu0 0
    %1291 = vmatpush1.bf16.msra.mxu0 0
    %1292 = vmatprep.subr.bf16.mxu0 0
    %1293 = vmatpush1.bf16.msra.mxu0 0
    %1294 = vmatprep.subr.bf16.mxu0 0
    %1295 = vmatpush1.bf16.msra.mxu0 0
    %1296 = vmatprep.subr.bf16.mxu0 0
    %1297 = vmatpush1.bf16.msra.mxu0 0
    %1298 = vmatprep.subr.bf16.mxu0 0
    %1299 = vmatpush1.bf16.msra.mxu0 0
    %1300 = vmatprep.subr.bf16.mxu0 0
    %1301 = vmatpush1.bf16.msra.mxu0 0
    %1302 = vmatprep.subr.bf16.mxu0 0
    %1303 = vmatpush1.bf16.msra.mxu0 0
    %1304 = vmatprep.subr.bf16.mxu0 0
    %1305 = vmatpush1.bf16.msra.mxu0 0
    %1306 = vmatprep.subr.bf16.mxu0 0
    %1307 = vmatpush1.bf16.msra.mxu0 0
    %1308 = vmatprep.subr.bf16.mxu0 0
    %1309 = vmatpush1.bf16.msra.mxu0 0
    %1310 = vmatprep.subr.bf16.mxu0 0
    %1311 = vmatpush1.bf16.msra.mxu0 0
    %1312 = vmatprep.subr.bf16.mxu0 0
    %1313 = vmatpush1.bf16.msra.mxu0 0
    %1314 = vmatprep.subr.bf16.mxu0 0
    %1315 = vmatpush1.bf16.msra.mxu0 0
    %1316 = vmatprep.subr.bf16.mxu0 0
    %1317 = vmatpush1.bf16.msra.mxu0 0
    %1318 = vmatprep.mubr.bf16.mxu0 0
    %1319 = vmatmul.mubr.bf16.gmra.mrb[0].mxu0 %v603
    %v1320 = vpop.f32.mrb[0].mxu0
    %v1321 = vadd.f32 %v1273, %v1320
    %v1322 = vpop.f32.mrb[0].mxu0
    %v1323 = vpop.f32.mrb[0].mxu0
    %v1324 = vadd.f32 %v1273, %v1323
    %v1325 = vpop.f32.mrb[0].mxu0
    %1326 = vmatprep.mubr.bf16.mxu0 0
    %1327 = vmatmul.mubr.bf16.gmra.mrb[0].mxu0 %v606
    %v1328 = vpop.f32.mrb[0].mxu0
    %v1329 = vadd.f32 %v1273, %v1328
    %v1330 = vpop.f32.mrb[0].mxu0
    %v1331 = vpop.f32.mrb[0].mxu0
    %v1332 = vadd.f32 %v1273, %v1331
    %v1333 = vpop.f32.mrb[0].mxu0
    %1334 = vmatprep.mubr.bf16.mxu0 0
    %1335 = vmatmul.mubr.bf16.gmra.mrb[0].mxu0 %v609
    %v1336 = vpop.f32.mrb[0].mxu0
    %v1337 = vadd.f32 %v1273, %v1336
    %v1338 = vpop.f32.mrb[0].mxu0
    %v1339 = vpop.f32.mrb[0].mxu0
    %v1340 = vpop.f32.mrb[0].mxu0
    %1341 = vdwg.mxu0
    %v1342 = vlaneseq
    %v1343 = vshrl.u32 %v1342, 7
    %v1344 = vsub.s32 7, %v1343
    %v1345 = vrot.slane %v489, %v1344
    %v1350 = vunpack.c.l.b16 %v453
    %v1351 = vunpack.c.l.b16 %v454
    %v1352 = vunpack.c.l.b16 %v455
    %v1353 = vunpack.c.l.b16 %v456
    %v1354 = vpack.c.b16 %v1351, %v1350
    %v1355 = vpack.c.b16 %v1353, %v1352
    %1358 = vmatprep.subr.bf16.mxu0 0
    %1359 = vmatpush1.bf16.msra.mxu0 %v1354
    %1360 = vmatprep.subr.bf16.mxu0 0
    %1361 = vmatpush1.bf16.msra.mxu0 %v1355
    %1362 = vmatprep.subr.bf16.mxu0 0
    %1363 = vmatpush1.bf16.msra.mxu0 0
    %1364 = vmatprep.subr.bf16.mxu0 0
    %1365 = vmatpush1.bf16.msra.mxu0 0
    %1366 = vmatprep.subr.bf16.mxu0 0
    %1367 = vmatpush1.bf16.msra.mxu0 0
    %1368 = vmatprep.subr.bf16.mxu0 0
    %1369 = vmatpush1.bf16.msra.mxu0 0
    %1370 = vmatprep.subr.bf16.mxu0 0
    %1371 = vmatpush1.bf16.msra.mxu0 0
    %1372 = vmatprep.subr.bf16.mxu0 0
    %1373 = vmatpush1.bf16.msra.mxu0 0
    %1374 = vmatprep.subr.bf16.mxu0 0
    %1375 = vmatpush1.bf16.msra.mxu0 0
    %1376 = vmatprep.subr.bf16.mxu0 0
    %1377 = vmatpush1.bf16.msra.mxu0 0
    %1378 = vmatprep.subr.bf16.mxu0 0
    %1379 = vmatpush1.bf16.msra.mxu0 0
    %1380 = vmatprep.subr.bf16.mxu0 0
    %1381 = vmatpush1.bf16.msra.mxu0 0
    %1382 = vmatprep.subr.bf16.mxu0 0
    %1383 = vmatpush1.bf16.msra.mxu0 0
    %1384 = vmatprep.subr.bf16.mxu0 0
    %1385 = vmatpush1.bf16.msra.mxu0 0
    %1386 = vmatprep.subr.bf16.mxu0 0
    %1387 = vmatpush1.bf16.msra.mxu0 0
    %1388 = vmatprep.subr.bf16.mxu0 0
    %1389 = vmatpush1.bf16.msra.mxu0 0
    %1390 = vmatprep.mubr.bf16.mxu0 0
    %1391 = vmatmul.mubr.bf16.gmra.mrb[0].mxu0 %v603
    %v1392 = vpop.f32.mrb[0].mxu0
    %v1393 = vadd.f32 %v1345, %v1392
    %v1394 = vpop.f32.mrb[0].mxu0
    %v1395 = vpop.f32.mrb[0].mxu0
    %v1396 = vadd.f32 %v1345, %v1395
    %v1397 = vpop.f32.mrb[0].mxu0
    %1398 = vmatprep.mubr.bf16.mxu0 0
    %1399 = vmatmul.mubr.bf16.gmra.mrb[0].mxu0 %v606
    %v1400 = vpop.f32.mrb[0].mxu0
    %v1401 = vadd.f32 %v1345, %v1400
    %v1402 = vpop.f32.mrb[0].mxu0
    %v1403 = vpop.f32.mrb[0].mxu0
    %v1404 = vadd.f32 %v1345, %v1403
    %v1405 = vpop.f32.mrb[0].mxu0
    %1406 = vmatprep.mubr.bf16.mxu0 0
    %1407 = vmatmul.mubr.bf16.gmra.mrb[0].mxu0 %v609
    %v1408 = vpop.f32.mrb[0].mxu0
    %v1409 = vadd.f32 %v1345, %v1408
    %v1410 = vpop.f32.mrb[0].mxu0
    %v1411 = vpop.f32.mrb[0].mxu0
    %v1412 = vpop.f32.mrb[0].mxu0
    %1413 = vdwg.mxu0
    %v1414 = vlaneseq
    %v1415 = vshrl.u32 %v1414, 7
    %v1416 = vsub.s32 3, %v1415
    %v1417 = vrot.slane %v490, %v1416
    %v1422 = vunpack.c.l.b16 %v469
    %v1423 = vunpack.c.l.b16 %v470
    %v1424 = vunpack.c.l.b16 %v471
    %v1425 = vunpack.c.l.b16 %v472
    %v1426 = vpack.c.b16 %v1423, %v1422
    %v1427 = vpack.c.b16 %v1425, %v1424
    %1430 = vmatprep.subr.bf16.mxu0 0
    %1431 = vmatpush1.bf16.msra.mxu0 %v1426
    %1432 = vmatprep.subr.bf16.mxu0 0
    %1433 = vmatpush1.bf16.msra.mxu0 %v1427
    %1434 = vmatprep.subr.bf16.mxu0 0
    %1435 = vmatpush1.bf16.msra.mxu0 0
    %1436 = vmatprep.subr.bf16.mxu0 0
    %1437 = vmatpush1.bf16.msra.mxu0 0
    %1438 = vmatprep.subr.bf16.mxu0 0
    %1439 = vmatpush1.bf16.msra.mxu0 0
    %1440 = vmatprep.subr.bf16.mxu0 0
    %1441 = vmatpush1.bf16.msra.mxu0 0
    %1442 = vmatprep.subr.bf16.mxu0 0
    %1443 = vmatpush1.bf16.msra.mxu0 0
    %1444 = vmatprep.subr.bf16.mxu0 0
    %1445 = vmatpush1.bf16.msra.mxu0 0
    %1446 = vmatprep.subr.bf16.mxu0 0
    %1447 = vmatpush1.bf16.msra.mxu0 0
    %1448 = vmatprep.subr.bf16.mxu0 0
    %1449 = vmatpush1.bf16.msra.mxu0 0
    %1450 = vmatprep.subr.bf16.mxu0 0
    %1451 = vmatpush1.bf16.msra.mxu0 0
    %1452 = vmatprep.subr.bf16.mxu0 0
    %1453 = vmatpush1.bf16.msra.mxu0 0
    %1454 = vmatprep.subr.bf16.mxu0 0
    %1455 = vmatpush1.bf16.msra.mxu0 0
    %1456 = vmatprep.subr.bf16.mxu0 0
    %1457 = vmatpush1.bf16.msra.mxu0 0
    %1458 = vmatprep.subr.bf16.mxu0 0
    %1459 = vmatpush1.bf16.msra.mxu0 0
    %1460 = vmatprep.subr.bf16.mxu0 0
    %1461 = vmatpush1.bf16.msra.mxu0 0
    %1462 = vmatprep.mubr.bf16.mxu0 0
    %1463 = vmatmul.mubr.bf16.gmra.mrb[0].mxu0 %v603
    %v1464 = vpop.f32.mrb[0].mxu0
    %v1465 = vadd.f32 %v1417, %v1464
    %v1466 = vpop.f32.mrb[0].mxu0
    %v1467 = vpop.f32.mrb[0].mxu0
    %v1468 = vadd.f32 %v1417, %v1467
    %v1469 = vpop.f32.mrb[0].mxu0
    %1470 = vmatprep.mubr.bf16.mxu0 0
    %1471 = vmatmul.mubr.bf16.gmra.mrb[0].mxu0 %v606
    %v1472 = vpop.f32.mrb[0].mxu0
    %v1473 = vadd.f32 %v1417, %v1472
    %v1474 = vpop.f32.mrb[0].mxu0
    %v1475 = vpop.f32.mrb[0].mxu0
    %v1476 = vadd.f32 %v1417, %v1475
    %v1477 = vpop.f32.mrb[0].mxu0
    %1478 = vmatprep.mubr.bf16.mxu0 0
    %1479 = vmatmul.mubr.bf16.gmra.mrb[0].mxu0 %v609
    %v1480 = vpop.f32.mrb[0].mxu0
    %v1481 = vadd.f32 %v1417, %v1480
    %v1482 = vpop.f32.mrb[0].mxu0
    %v1483 = vpop.f32.mrb[0].mxu0
    %v1484 = vpop.f32.mrb[0].mxu0
    %1485 = vdwg.mxu0
    %v1486 = vpack.c.bf16 %v1324, %v1321
    %v1487 = vpack.c.bf16 %v1332, %v1329
    %v1488 = vpack.c.bf16 %v1337, %v1337
    %v1489 = vpack.c.bf16 %v1396, %v1393
    %v1490 = vpack.c.bf16 %v1404, %v1401
    %v1491 = vpack.c.bf16 %v1409, %v1409
    %v1492 = vpack.c.bf16 %v1468, %v1465
    %v1493 = vpack.c.bf16 %v1476, %v1473
    %v1494 = vpack.c.bf16 %v1481, %v1481
    %vm1495 = vcmask 64512
    %v1497 = vsel %vm1495, %v811, 0
    %v1500 = vsel %vm1495, %v812, 0
    %v1503 = vsel %vm1495, %v814, 0
    %v1506 = vsel %vm1495, %v815, 0
    %1508 = vmatprep.subr.bf16.mxu0 0
    %1509 = vmatpush1.bf16.xpose.msra.mxu0 %v1503
    %1510 = vmatprep.subr.bf16.mxu0 0
    %1511 = vmatpush1.bf16.xpose.msra.mxu0 %v1506
    %1512 = vmatprep.subr.bf16.mxu0 0
    %1513 = vmatpush1.bf16.xpose.msra.mxu0 0
    %1514 = vmatprep.subr.bf16.mxu0 0
    %1515 = vmatpush1.bf16.xpose.msra.mxu0 0
    %1516 = vmatprep.subr.bf16.mxu0 0
    %1517 = vmatpush1.bf16.xpose.msra.mxu0 0
    %1518 = vmatprep.subr.bf16.mxu0 0
    %1519 = vmatpush1.bf16.xpose.msra.mxu0 0
    %1520 = vmatprep.subr.bf16.mxu0 0
    %1521 = vmatpush1.bf16.xpose.msra.mxu0 0
    %1522 = vmatprep.subr.bf16.mxu0 0
    %1523 = vmatpush1.bf16.xpose.msra.mxu0 0
    %1524 = vmatprep.subr.bf16.mxu0 0
    %1525 = vmatpush1.bf16.xpose.msra.mxu0 0
    %1526 = vmatprep.subr.bf16.mxu0 0
    %1527 = vmatpush1.bf16.xpose.msra.mxu0 0
    %1528 = vmatprep.subr.bf16.mxu0 0
    %1529 = vmatpush1.bf16.xpose.msra.mxu0 0
    %1530 = vmatprep.subr.bf16.mxu0 0
    %1531 = vmatpush1.bf16.xpose.msra.mxu0 0
    %1532 = vmatprep.subr.bf16.mxu0 0
    %1533 = vmatpush1.bf16.xpose.msra.mxu0 0
    %1534 = vmatprep.subr.bf16.mxu0 0
    %1535 = vmatpush1.bf16.xpose.msra.mxu0 0
    %1536 = vmatprep.subr.bf16.mxu0 0
    %1537 = vmatpush1.bf16.xpose.msra.mxu0 0
    %1538 = vmatprep.subr.bf16.mxu0 0
    %1539 = vmatpush1.bf16.xpose.msra.mxu0 0
    %1540 = vmatprep.mubr.bf16.mxu0 0
    %1541 = vmatmul.mubr.bf16.gmra.mrb[0].mxu0 %v1497
    %v1542 = vpop.f32.mrb[0].mxu0
    %v1543 = vadd.f32 0.0, %v1542
    %v1544 = vpop.f32.mrb[0].mxu0
    %v1545 = vpop.f32.mrb[0].mxu0
    %v1546 = vadd.f32 0.0, %v1545
    %v1547 = vpop.f32.mrb[0].mxu0
    %1548 = vmatprep.mubr.bf16.mxu0 0
    %1549 = vmatmul.mubr.bf16.gmra.mrb[0].mxu0 %v1500
    %v1550 = vpop.f32.mrb[0].mxu0
    %v1551 = vadd.f32 0.0, %v1550
    %v1552 = vpop.f32.mrb[0].mxu0
    %v1553 = vpop.f32.mrb[0].mxu0
    %v1554 = vpop.f32.mrb[0].mxu0
    %1555 = vdwg.mxu0
    %vm1556 = vcmask 138240
    %v1557 = vsel %vm1556, %v1543, -inf
    %1558 = vmax.xlane.f32.xlu0 %v1557
    %v1559 = vpop.xlane.xlu0 %1558
    %v1560 = vsel %vm1556, %v1546, -inf
    %1561 = vmax.xlane.f32.xlu0 %v1560
    %v1562 = vpop.xlane.xlu0 %1561
    %vm1563 = vcmask 131072
    %v1564 = vsel %vm1563, %v1551, -inf
    %1565 = vmax.xlane.f32.xlu0 %v1564
    %v1566 = vpop.xlane.xlu0 %1565
    %v1567 = vsub.f32 %v1543, %v1559
    %v1568 = vsub.f32 %v1546, %v1562
    %v1569 = vsub.f32 %v1551, %v1566
    %v1570 = vmul.f32 %v1567, 1.442695
    %v1571 = vpow.pop %v1570
    %v1572 = vmul.f32 %v1568, 1.442695
    %v1573 = vpow.pop %v1572
    %v1574 = vmul.f32 %v1569, 1.442695
    %v1575 = vpow.pop %v1574
    %v1576 = vsel %vm1556, %v1571, 0.0
    %1577 = vadd.xlane.f32.xlu0 %v1576
    %v1578 = vpop.xlane.xlu0 %1577
    %v1579 = vsel %vm1556, %v1573, 0.0
    %1580 = vadd.xlane.f32.xlu0 %v1579
    %v1581 = vpop.xlane.xlu0 %1580
    %v1582 = vsel %vm1563, %v1575, 0.0
    %1583 = vadd.xlane.f32.xlu0 %v1582
    %v1584 = vpop.xlane.xlu0 %1583
    %v1585 = vrcp.pop %v1578
    %v1586 = vrcp.pop %v1581
    %v1587 = vrcp.pop %v1584
    %v1588 = vmul.f32 %v1571, %v1585
    %v1589 = vmul.f32 %v1573, %v1586
    %v1590 = vmul.f32 %v1575, %v1587
    %v1591 = vpack.c.bf16 %v1589, %v1588
    %v1592 = vpack.c.bf16 %v1590, %v1590
    %v1594 = vsel %vm1556, %v1591, 0
    %v1597 = vsel %vm1556, %v1592, 0
    %vm1599 = vcmask 1040384
    %v1600 = vsel 0, 4294967295, 65535
    %v1601 = vsel %vm1599, %v1600, 0
    %v1603 = vand.u32 %v818, %v1601
    %1605 = vmatprep.subr.bf16.mxu0 0
    %1606 = vmatpush1.bf16.msra.mxu0 %v817
    %1607 = vmatprep.subr.bf16.mxu0 0
    %1608 = vmatpush1.bf16.msra.mxu0 %v1603
    %1609 = vmatprep.subr.bf16.mxu0 0
    %1610 = vmatpush1.bf16.msra.mxu0 0
    %1611 = vmatprep.subr.bf16.mxu0 0
    %1612 = vmatpush1.bf16.msra.mxu0 0
    %1613 = vmatprep.subr.bf16.mxu0 0
    %1614 = vmatpush1.bf16.msra.mxu0 0
    %1615 = vmatprep.subr.bf16.mxu0 0
    %1616 = vmatpush1.bf16.msra.mxu0 0
    %1617 = vmatprep.subr.bf16.mxu0 0
    %1618 = vmatpush1.bf16.msra.mxu0 0
    %1619 = vmatprep.subr.bf16.mxu0 0
    %1620 = vmatpush1.bf16.msra.mxu0 0
    %1621 = vmatprep.subr.bf16.mxu0 0
    %1622 = vmatpush1.bf16.msra.mxu0 0
    %1623 = vmatprep.subr.bf16.mxu0 0
    %1624 = vmatpush1.bf16.msra.mxu0 0
    %1625 = vmatprep.subr.bf16.mxu0 0
    %1626 = vmatpush1.bf16.msra.mxu0 0
    %1627 = vmatprep.subr.bf16.mxu0 0
    %1628 = vmatpush1.bf16.msra.mxu0 0
    %1629 = vmatprep.subr.bf16.mxu0 0
    %1630 = vmatpush1.bf16.msra.mxu0 0
    %1631 = vmatprep.subr.bf16.mxu0 0
    %1632 = vmatpush1.bf16.msra.mxu0 0
    %1633 = vmatprep.subr.bf16.mxu0 0
    %1634 = vmatpush1.bf16.msra.mxu0 0
    %1635 = vmatprep.subr.bf16.mxu0 0
    %1636 = vmatpush1.bf16.msra.mxu0 0
    %1637 = vmatprep.mubr.bf16.mxu0 0
    %1638 = vmatmul.mubr.bf16.gmra.mrb[0].mxu0 %v1594
    %v1639 = vpop.f32.mrb[0].mxu0
    %v1640 = vadd.f32 0.0, %v1639
    %v1641 = vpop.f32.mrb[0].mxu0
    %v1642 = vpop.f32.mrb[0].mxu0
    %v1643 = vadd.f32 0.0, %v1642
    %v1644 = vpop.f32.mrb[0].mxu0
    %1645 = vmatprep.mubr.bf16.mxu0 0
    %1646 = vmatmul.mubr.bf16.gmra.mrb[0].mxu0 %v1597
    %v1647 = vpop.f32.mrb[0].mxu0
    %v1648 = vadd.f32 0.0, %v1647
    %v1649 = vpop.f32.mrb[0].mxu0
    %v1650 = vpop.f32.mrb[0].mxu0
    %v1651 = vpop.f32.mrb[0].mxu0
    %1652 = vdwg.mxu0
    %v1653 = vpack.c.bf16 %v1643, %v1640
    %v1654 = vpack.c.bf16 %v1648, %v1648
    %v1656 = vsel %vm1495, %v1036, 0
    %v1659 = vsel %vm1495, %v1037, 0
    %v1662 = vsel %vm1495, %v1039, 0
    %v1665 = vsel %vm1495, %v1040, 0
    %1667 = vmatprep.subr.bf16.mxu0 0
    %1668 = vmatpush1.bf16.xpose.msra.mxu0 %v1662
    %1669 = vmatprep.subr.bf16.mxu0 0
    %1670 = vmatpush1.bf16.xpose.msra.mxu0 %v1665
    %1671 = vmatprep.subr.bf16.mxu0 0
    %1672 = vmatpush1.bf16.xpose.msra.mxu0 0
    %1673 = vmatprep.subr.bf16.mxu0 0
    %1674 = vmatpush1.bf16.xpose.msra.mxu0 0
    %1675 = vmatprep.subr.bf16.mxu0 0
    %1676 = vmatpush1.bf16.xpose.msra.mxu0 0
    %1677 = vmatprep.subr.bf16.mxu0 0
    %1678 = vmatpush1.bf16.xpose.msra.mxu0 0
    %1679 = vmatprep.subr.bf16.mxu0 0
    %1680 = vmatpush1.bf16.xpose.msra.mxu0 0
    %1681 = vmatprep.subr.bf16.mxu0 0
    %1682 = vmatpush1.bf16.xpose.msra.mxu0 0
    %1683 = vmatprep.subr.bf16.mxu0 0
    %1684 = vmatpush1.bf16.xpose.msra.mxu0 0
    %1685 = vmatprep.subr.bf16.mxu0 0
    %1686 = vmatpush1.bf16.xpose.msra.mxu0 0
    %1687 = vmatprep.subr.bf16.mxu0 0
    %1688 = vmatpush1.bf16.xpose.msra.mxu0 0
    %1689 = vmatprep.subr.bf16.mxu0 0
    %1690 = vmatpush1.bf16.xpose.msra.mxu0 0
    %1691 = vmatprep.subr.bf16.mxu0 0
    %1692 = vmatpush1.bf16.xpose.msra.mxu0 0
    %1693 = vmatprep.subr.bf16.mxu0 0
    %1694 = vmatpush1.bf16.xpose.msra.mxu0 0
    %1695 = vmatprep.subr.bf16.mxu0 0
    %1696 = vmatpush1.bf16.xpose.msra.mxu0 0
    %1697 = vmatprep.subr.bf16.mxu0 0
    %1698 = vmatpush1.bf16.xpose.msra.mxu0 0
    %1699 = vmatprep.mubr.bf16.mxu0 0
    %1700 = vmatmul.mubr.bf16.gmra.mrb[0].mxu0 %v1656
    %v1701 = vpop.f32.mrb[0].mxu0
    %v1702 = vadd.f32 0.0, %v1701
    %v1703 = vpop.f32.mrb[0].mxu0
    %v1704 = vpop.f32.mrb[0].mxu0
    %v1705 = vadd.f32 0.0, %v1704
    %v1706 = vpop.f32.mrb[0].mxu0
    %1707 = vmatprep.mubr.bf16.mxu0 0
    %1708 = vmatmul.mubr.bf16.gmra.mrb[0].mxu0 %v1659
    %v1709 = vpop.f32.mrb[0].mxu0
    %v1710 = vadd.f32 0.0, %v1709
    %v1711 = vpop.f32.mrb[0].mxu0
    %v1712 = vpop.f32.mrb[0].mxu0
    %v1713 = vpop.f32.mrb[0].mxu0
    %1714 = vdwg.mxu0
    %v1715 = vsel %vm1556, %v1702, -inf
    %1716 = vmax.xlane.f32.xlu0 %v1715
    %v1717 = vpop.xlane.xlu0 %1716
    %v1718 = vsel %vm1556, %v1705, -inf
    %1719 = vmax.xlane.f32.xlu0 %v1718
    %v1720 = vpop.xlane.xlu0 %1719
    %v1721 = vsel %vm1563, %v1710, -inf
    %1722 = vmax.xlane.f32.xlu0 %v1721
    %v1723 = vpop.xlane.xlu0 %1722
    %v1724 = vsub.f32 %v1702, %v1717
    %v1725 = vsub.f32 %v1705, %v1720
    %v1726 = vsub.f32 %v1710, %v1723
    %v1727 = vmul.f32 %v1724, 1.442695
    %v1728 = vpow.pop %v1727
    %v1729 = vmul.f32 %v1725, 1.442695
    %v1730 = vpow.pop %v1729
    %v1731 = vmul.f32 %v1726, 1.442695
    %v1732 = vpow.pop %v1731
    %v1733 = vsel %vm1556, %v1728, 0.0
    %1734 = vadd.xlane.f32.xlu0 %v1733
    %v1735 = vpop.xlane.xlu0 %1734
    %v1736 = vsel %vm1556, %v1730, 0.0
    %1737 = vadd.xlane.f32.xlu0 %v1736
    %v1738 = vpop.xlane.xlu0 %1737
    %v1739 = vsel %vm1563, %v1732, 0.0
    %1740 = vadd.xlane.f32.xlu0 %v1739
    %v1741 = vpop.xlane.xlu0 %1740
    %v1742 = vrcp.pop %v1735
    %v1743 = vrcp.pop %v1738
    %v1744 = vrcp.pop %v1741
    %v1745 = vmul.f32 %v1728, %v1742
    %v1746 = vmul.f32 %v1730, %v1743
    %v1747 = vmul.f32 %v1732, %v1744
    %v1748 = vpack.c.bf16 %v1746, %v1745
    %v1749 = vpack.c.bf16 %v1747, %v1747
    %v1751 = vsel %vm1556, %v1748, 0
    %v1754 = vsel %vm1556, %v1749, 0
    %v1757 = vand.u32 %v1043, %v1601
    %1759 = vmatprep.subr.bf16.mxu0 0
    %1760 = vmatpush1.bf16.msra.mxu0 %v1042
    %1761 = vmatprep.subr.bf16.mxu0 0
    %1762 = vmatpush1.bf16.msra.mxu0 %v1757
    %1763 = vmatprep.subr.bf16.mxu0 0
    %1764 = vmatpush1.bf16.msra.mxu0 0
    %1765 = vmatprep.subr.bf16.mxu0 0
    %1766 = vmatpush1.bf16.msra.mxu0 0
    %1767 = vmatprep.subr.bf16.mxu0 0
    %1768 = vmatpush1.bf16.msra.mxu0 0
    %1769 = vmatprep.subr.bf16.mxu0 0
    %1770 = vmatpush1.bf16.msra.mxu0 0
    %1771 = vmatprep.subr.bf16.mxu0 0
    %1772 = vmatpush1.bf16.msra.mxu0 0
    %1773 = vmatprep.subr.bf16.mxu0 0
    %1774 = vmatpush1.bf16.msra.mxu0 0
    %1775 = vmatprep.subr.bf16.mxu0 0
    %1776 = vmatpush1.bf16.msra.mxu0 0
    %1777 = vmatprep.subr.bf16.mxu0 0
    %1778 = vmatpush1.bf16.msra.mxu0 0
    %1779 = vmatprep.subr.bf16.mxu0 0
    %1780 = vmatpush1.bf16.msra.mxu0 0
    %1781 = vmatprep.subr.bf16.mxu0 0
    %1782 = vmatpush1.bf16.msra.mxu0 0
    %1783 = vmatprep.subr.bf16.mxu0 0
    %1784 = vmatpush1.bf16.msra.mxu0 0
    %1785 = vmatprep.subr.bf16.mxu0 0
    %1786 = vmatpush1.bf16.msra.mxu0 0
    %1787 = vmatprep.subr.bf16.mxu0 0
    %1788 = vmatpush1.bf16.msra.mxu0 0
    %1789 = vmatprep.subr.bf16.mxu0 0
    %1790 = vmatpush1.bf16.msra.mxu0 0
    %1791 = vmatprep.mubr.bf16.mxu0 0
    %1792 = vmatmul.mubr.bf16.gmra.mrb[0].mxu0 %v1751
    %v1793 = vpop.f32.mrb[0].mxu0
    %v1794 = vadd.f32 0.0, %v1793
    %v1795 = vpop.f32.mrb[0].mxu0
    %v1796 = vpop.f32.mrb[0].mxu0
    %v1797 = vadd.f32 0.0, %v1796
    %v1798 = vpop.f32.mrb[0].mxu0
    %1799 = vmatprep.mubr.bf16.mxu0 0
    %1800 = vmatmul.mubr.bf16.gmra.mrb[0].mxu0 %v1754
    %v1801 = vpop.f32.mrb[0].mxu0
    %v1802 = vadd.f32 0.0, %v1801
    %v1803 = vpop.f32.mrb[0].mxu0
    %v1804 = vpop.f32.mrb[0].mxu0
    %v1805 = vpop.f32.mrb[0].mxu0
    %1806 = vdwg.mxu0
    %v1807 = vpack.c.bf16 %v1797, %v1794
    %v1808 = vpack.c.bf16 %v1802, %v1802
    %v1813 = vunpack.c.l.b16 %v477
    %v1814 = vunpack.c.l.b16 %v478
    %v1815 = vunpack.c.l.b16 %v479
    %v1816 = vunpack.c.l.b16 %v480
    %v1817 = vpack.c.b16 %v1814, %v1813
    %v1818 = vpack.c.b16 %v1816, %v1815
    %v1820 = vsel %vm1495, %v1807, 0
    %v1823 = vsel %vm1495, %v1808, 0
    %v1826 = vsel %vm1495, %v1817, 0
    %v1829 = vsel %vm1495, %v1818, 0
    %1831 = vmatprep.subr.bf16.mxu0 0
    %1832 = vmatpush1.bf16.xpose.msra.mxu0 %v1826
    %1833 = vmatprep.subr.bf16.mxu0 0
    %1834 = vmatpush1.bf16.xpose.msra.mxu0 %v1829
    %1835 = vmatprep.subr.bf16.mxu0 0
    %1836 = vmatpush1.bf16.xpose.msra.mxu0 0
    %1837 = vmatprep.subr.bf16.mxu0 0
    %1838 = vmatpush1.bf16.xpose.msra.mxu0 0
    %1839 = vmatprep.subr.bf16.mxu0 0
    %1840 = vmatpush1.bf16.xpose.msra.mxu0 0
    %1841 = vmatprep.subr.bf16.mxu0 0
    %1842 = vmatpush1.bf16.xpose.msra.mxu0 0
    %1843 = vmatprep.subr.bf16.mxu0 0
    %1844 = vmatpush1.bf16.xpose.msra.mxu0 0
    %1845 = vmatprep.subr.bf16.mxu0 0
    %1846 = vmatpush1.bf16.xpose.msra.mxu0 0
    %1847 = vmatprep.subr.bf16.mxu0 0
    %1848 = vmatpush1.bf16.xpose.msra.mxu0 0
    %1849 = vmatprep.subr.bf16.mxu0 0
    %1850 = vmatpush1.bf16.xpose.msra.mxu0 0
    %1851 = vmatprep.subr.bf16.mxu0 0
    %1852 = vmatpush1.bf16.xpose.msra.mxu0 0
    %1853 = vmatprep.subr.bf16.mxu0 0
    %1854 = vmatpush1.bf16.xpose.msra.mxu0 0
    %1855 = vmatprep.subr.bf16.mxu0 0
    %1856 = vmatpush1.bf16.xpose.msra.mxu0 0
    %1857 = vmatprep.subr.bf16.mxu0 0
    %1858 = vmatpush1.bf16.xpose.msra.mxu0 0
    %1859 = vmatprep.subr.bf16.mxu0 0
    %1860 = vmatpush1.bf16.xpose.msra.mxu0 0
    %1861 = vmatprep.subr.bf16.mxu0 0
    %1862 = vmatpush1.bf16.xpose.msra.mxu0 0
    %1863 = vmatprep.mubr.bf16.mxu0 0
    %1864 = vmatmul.mubr.bf16.gmra.mrb[0].mxu0 %v1820
    %v1865 = vpop.f32.mrb[0].mxu0
    %v1866 = vadd.f32 0.0, %v1865
    %v1867 = vpop.f32.mrb[0].mxu0
    %v1868 = vpop.f32.mrb[0].mxu0
    %v1869 = vadd.f32 0.0, %v1868
    %v1870 = vpop.f32.mrb[0].mxu0
    %1871 = vmatprep.mubr.bf16.mxu0 0
    %1872 = vmatmul.mubr.bf16.gmra.mrb[0].mxu0 %v1823
    %v1873 = vpop.f32.mrb[0].mxu0
    %v1874 = vadd.f32 0.0, %v1873
    %v1875 = vpop.f32.mrb[0].mxu0
    %v1876 = vpop.f32.mrb[0].mxu0
    %v1877 = vpop.f32.mrb[0].mxu0
    %1878 = vdwg.mxu0
    %v1883 = vunpack.c.l.b16 %v473
    %v1884 = vunpack.c.l.b16 %v474
    %v1885 = vunpack.c.l.b16 %v475
    %v1886 = vunpack.c.l.b16 %v476
    %v1887 = vpack.c.b16 %v1884, %v1883
    %v1888 = vpack.c.b16 %v1886, %v1885
    %v1890 = vsel %vm1495, %v1653, 0
    %v1893 = vsel %vm1495, %v1654, 0
    %v1896 = vsel %vm1495, %v1887, 0
    %v1899 = vsel %vm1495, %v1888, 0
    %1901 = vmatprep.subr.bf16.mxu0 0
    %1902 = vmatpush1.bf16.xpose.msra.mxu0 %v1896
    %1903 = vmatprep.subr.bf16.mxu0 0
    %1904 = vmatpush1.bf16.xpose.msra.mxu0 %v1899
    %1905 = vmatprep.subr.bf16.mxu0 0
    %1906 = vmatpush1.bf16.xpose.msra.mxu0 0
    %1907 = vmatprep.subr.bf16.mxu0 0
    %1908 = vmatpush1.bf16.xpose.msra.mxu0 0
    %1909 = vmatprep.subr.bf16.mxu0 0
    %1910 = vmatpush1.bf16.xpose.msra.mxu0 0
    %1911 = vmatprep.subr.bf16.mxu0 0
    %1912 = vmatpush1.bf16.xpose.msra.mxu0 0
    %1913 = vmatprep.subr.bf16.mxu0 0
    %1914 = vmatpush1.bf16.xpose.msra.mxu0 0
    %1915 = vmatprep.subr.bf16.mxu0 0
    %1916 = vmatpush1.bf16.xpose.msra.mxu0 0
    %1917 = vmatprep.subr.bf16.mxu0 0
    %1918 = vmatpush1.bf16.xpose.msra.mxu0 0
    %1919 = vmatprep.subr.bf16.mxu0 0
    %1920 = vmatpush1.bf16.xpose.msra.mxu0 0
    %1921 = vmatprep.subr.bf16.mxu0 0
    %1922 = vmatpush1.bf16.xpose.msra.mxu0 0
    %1923 = vmatprep.subr.bf16.mxu0 0
    %1924 = vmatpush1.bf16.xpose.msra.mxu0 0
    %1925 = vmatprep.subr.bf16.mxu0 0
    %1926 = vmatpush1.bf16.xpose.msra.mxu0 0
    %1927 = vmatprep.subr.bf16.mxu0 0
    %1928 = vmatpush1.bf16.xpose.msra.mxu0 0
    %1929 = vmatprep.subr.bf16.mxu0 0
    %1930 = vmatpush1.bf16.xpose.msra.mxu0 0
    %1931 = vmatprep.subr.bf16.mxu0 0
    %1932 = vmatpush1.bf16.xpose.msra.mxu0 0
    %1933 = vmatprep.mubr.bf16.mxu0 0
    %1934 = vmatmul.mubr.bf16.gmra.mrb[0].mxu0 %v1890
    %v1935 = vpop.f32.mrb[0].mxu0
    %v1936 = vadd.f32 %v1866, %v1935
    %v1937 = vpop.f32.mrb[0].mxu0
    %v1938 = vpop.f32.mrb[0].mxu0
    %v1939 = vadd.f32 %v1869, %v1938
    %v1940 = vpop.f32.mrb[0].mxu0
    %1941 = vmatprep.mubr.bf16.mxu0 0
    %1942 = vmatmul.mubr.bf16.gmra.mrb[0].mxu0 %v1893
    %v1943 = vpop.f32.mrb[0].mxu0
    %v1944 = vadd.f32 %v1874, %v1943
    %v1945 = vpop.f32.mrb[0].mxu0
    %v1946 = vpop.f32.mrb[0].mxu0
    %v1947 = vpop.f32.mrb[0].mxu0
    %1948 = vdwg.mxu0
    %v1950 = vsel %vm1495, %v1261, 0
    %v1953 = vsel %vm1495, %v1262, 0
    %v1956 = vsel %vm1495, %v1264, 0
    %v1959 = vsel %vm1495, %v1265, 0
    %1961 = vmatprep.subr.bf16.mxu0 0
    %1962 = vmatpush1.bf16.xpose.msra.mxu0 %v1956
    %1963 = vmatprep.subr.bf16.mxu0 0
    %1964 = vmatpush1.bf16.xpose.msra.mxu0 %v1959
    %1965 = vmatprep.subr.bf16.mxu0 0
    %1966 = vmatpush1.bf16.xpose.msra.mxu0 0
    %1967 = vmatprep.subr.bf16.mxu0 0
    %1968 = vmatpush1.bf16.xpose.msra.mxu0 0
    %1969 = vmatprep.subr.bf16.mxu0 0
    %1970 = vmatpush1.bf16.xpose.msra.mxu0 0
    %1971 = vmatprep.subr.bf16.mxu0 0
    %1972 = vmatpush1.bf16.xpose.msra.mxu0 0
    %1973 = vmatprep.subr.bf16.mxu0 0
    %1974 = vmatpush1.bf16.xpose.msra.mxu0 0
    %1975 = vmatprep.subr.bf16.mxu0 0
    %1976 = vmatpush1.bf16.xpose.msra.mxu0 0
    %1977 = vmatprep.subr.bf16.mxu0 0
    %1978 = vmatpush1.bf16.xpose.msra.mxu0 0
    %1979 = vmatprep.subr.bf16.mxu0 0
    %1980 = vmatpush1.bf16.xpose.msra.mxu0 0
    %1981 = vmatprep.subr.bf16.mxu0 0
    %1982 = vmatpush1.bf16.xpose.msra.mxu0 0
    %1983 = vmatprep.subr.bf16.mxu0 0
    %1984 = vmatpush1.bf16.xpose.msra.mxu0 0
    %1985 = vmatprep.subr.bf16.mxu0 0
    %1986 = vmatpush1.bf16.xpose.msra.mxu0 0
    %1987 = vmatprep.subr.bf16.mxu0 0
    %1988 = vmatpush1.bf16.xpose.msra.mxu0 0
    %1989 = vmatprep.subr.bf16.mxu0 0
    %1990 = vmatpush1.bf16.xpose.msra.mxu0 0
    %1991 = vmatprep.subr.bf16.mxu0 0
    %1992 = vmatpush1.bf16.xpose.msra.mxu0 0
    %1993 = vmatprep.mubr.bf16.mxu0 0
    %1994 = vmatmul.mubr.bf16.gmra.mrb[0].mxu0 %v1950
    %v1995 = vpop.f32.mrb[0].mxu0
    %v1996 = vadd.f32 0.0, %v1995
    %v1997 = vpop.f32.mrb[0].mxu0
    %v1998 = vpop.f32.mrb[0].mxu0
    %v1999 = vadd.f32 0.0, %v1998
    %v2000 = vpop.f32.mrb[0].mxu0
    %2001 = vmatprep.mubr.bf16.mxu0 0
    %2002 = vmatmul.mubr.bf16.gmra.mrb[0].mxu0 %v1953
    %v2003 = vpop.f32.mrb[0].mxu0
    %v2004 = vadd.f32 0.0, %v2003
    %v2005 = vpop.f32.mrb[0].mxu0
    %v2006 = vpop.f32.mrb[0].mxu0
    %v2007 = vpop.f32.mrb[0].mxu0
    %2008 = vdwg.mxu0
    %v2009 = vsel %vm1556, %v1996, -inf
    %2010 = vmax.xlane.f32.xlu0 %v2009
    %v2011 = vpop.xlane.xlu0 %2010
    %v2012 = vsel %vm1556, %v1999, -inf
    %2013 = vmax.xlane.f32.xlu0 %v2012
    %v2014 = vpop.xlane.xlu0 %2013
    %v2015 = vsel %vm1563, %v2004, -inf
    %2016 = vmax.xlane.f32.xlu0 %v2015
    %v2017 = vpop.xlane.xlu0 %2016
    %v2018 = vsub.f32 %v1996, %v2011
    %v2019 = vsub.f32 %v1999, %v2014
    %v2020 = vsub.f32 %v2004, %v2017
    %v2021 = vmul.f32 %v2018, 1.442695
    %v2022 = vpow.pop %v2021
    %v2023 = vmul.f32 %v2019, 1.442695
    %v2024 = vpow.pop %v2023
    %v2025 = vmul.f32 %v2020, 1.442695
    %v2026 = vpow.pop %v2025
    %v2027 = vsel %vm1556, %v2022, 0.0
    %2028 = vadd.xlane.f32.xlu0 %v2027
    %v2029 = vpop.xlane.xlu0 %2028
    %v2030 = vsel %vm1556, %v2024, 0.0
    %2031 = vadd.xlane.f32.xlu0 %v2030
    %v2032 = vpop.xlane.xlu0 %2031
    %v2033 = vsel %vm1563, %v2026, 0.0
    %2034 = vadd.xlane.f32.xlu0 %v2033
    %v2035 = vpop.xlane.xlu0 %2034
    %v2036 = vrcp.pop %v2029
    %v2037 = vrcp.pop %v2032
    %v2038 = vrcp.pop %v2035
    %v2039 = vmul.f32 %v2022, %v2036
    %v2040 = vmul.f32 %v2024, %v2037
    %v2041 = vmul.f32 %v2026, %v2038
    %v2042 = vpack.c.bf16 %v2040, %v2039
    %v2043 = vpack.c.bf16 %v2041, %v2041
    %v2045 = vsel %vm1556, %v2042, 0
    %v2048 = vsel %vm1556, %v2043, 0
    %v2051 = vand.u32 %v1268, %v1601
    %2053 = vmatprep.subr.bf16.mxu0 0
    %2054 = vmatpush1.bf16.msra.mxu0 %v1267
    %2055 = vmatprep.subr.bf16.mxu0 0
    %2056 = vmatpush1.bf16.msra.mxu0 %v2051
    %2057 = vmatprep.subr.bf16.mxu0 0
    %2058 = vmatpush1.bf16.msra.mxu0 0
    %2059 = vmatprep.subr.bf16.mxu0 0
    %2060 = vmatpush1.bf16.msra.mxu0 0
    %2061 = vmatprep.subr.bf16.mxu0 0
    %2062 = vmatpush1.bf16.msra.mxu0 0
    %2063 = vmatprep.subr.bf16.mxu0 0
    %2064 = vmatpush1.bf16.msra.mxu0 0
    %2065 = vmatprep.subr.bf16.mxu0 0
    %2066 = vmatpush1.bf16.msra.mxu0 0
    %2067 = vmatprep.subr.bf16.mxu0 0
    %2068 = vmatpush1.bf16.msra.mxu0 0
    %2069 = vmatprep.subr.bf16.mxu0 0
    %2070 = vmatpush1.bf16.msra.mxu0 0
    %2071 = vmatprep.subr.bf16.mxu0 0
    %2072 = vmatpush1.bf16.msra.mxu0 0
    %2073 = vmatprep.subr.bf16.mxu0 0
    %2074 = vmatpush1.bf16.msra.mxu0 0
    %2075 = vmatprep.subr.bf16.mxu0 0
    %2076 = vmatpush1.bf16.msra.mxu0 0
    %2077 = vmatprep.subr.bf16.mxu0 0
    %2078 = vmatpush1.bf16.msra.mxu0 0
    %2079 = vmatprep.subr.bf16.mxu0 0
    %2080 = vmatpush1.bf16.msra.mxu0 0
    %2081 = vmatprep.subr.bf16.mxu0 0
    %2082 = vmatpush1.bf16.msra.mxu0 0
    %2083 = vmatprep.subr.bf16.mxu0 0
    %2084 = vmatpush1.bf16.msra.mxu0 0
    %2085 = vmatprep.mubr.bf16.mxu0 0
    %2086 = vmatmul.mubr.bf16.gmra.mrb[0].mxu0 %v2045
    %v2087 = vpop.f32.mrb[0].mxu0
    %v2088 = vadd.f32 0.0, %v2087
    %v2089 = vpop.f32.mrb[0].mxu0
    %v2090 = vpop.f32.mrb[0].mxu0
    %v2091 = vadd.f32 0.0, %v2090
    %v2092 = vpop.f32.mrb[0].mxu0
    %2093 = vmatprep.mubr.bf16.mxu0 0
    %2094 = vmatmul.mubr.bf16.gmra.mrb[0].mxu0 %v2048
    %v2095 = vpop.f32.mrb[0].mxu0
    %v2096 = vadd.f32 0.0, %v2095
    %v2097 = vpop.f32.mrb[0].mxu0
    %v2098 = vpop.f32.mrb[0].mxu0
    %v2099 = vpop.f32.mrb[0].mxu0
    %2100 = vdwg.mxu0
    %v2101 = vpack.c.bf16 %v2091, %v2088
    %v2102 = vpack.c.bf16 %v2096, %v2096
    %v2107 = vunpack.c.l.b16 %v481
    %v2108 = vunpack.c.l.b16 %v482
    %v2109 = vunpack.c.l.b16 %v483
    %v2110 = vunpack.c.l.b16 %v484
    %v2111 = vpack.c.b16 %v2108, %v2107
    %v2112 = vpack.c.b16 %v2110, %v2109
    %v2114 = vsel %vm1495, %v2101, 0
    %v2117 = vsel %vm1495, %v2102, 0
    %v2120 = vsel %vm1495, %v2111, 0
    %v2123 = vsel %vm1495, %v2112, 0
    %2125 = vmatprep.subr.bf16.mxu0 0
    %2126 = vmatpush1.bf16.xpose.msra.mxu0 %v2120
    %2127 = vmatprep.subr.bf16.mxu0 0
    %2128 = vmatpush1.bf16.xpose.msra.mxu0 %v2123
    %2129 = vmatprep.subr.bf16.mxu0 0
    %2130 = vmatpush1.bf16.xpose.msra.mxu0 0
    %2131 = vmatprep.subr.bf16.mxu0 0
    %2132 = vmatpush1.bf16.xpose.msra.mxu0 0
    %2133 = vmatprep.subr.bf16.mxu0 0
    %2134 = vmatpush1.bf16.xpose.msra.mxu0 0
    %2135 = vmatprep.subr.bf16.mxu0 0
    %2136 = vmatpush1.bf16.xpose.msra.mxu0 0
    %2137 = vmatprep.subr.bf16.mxu0 0
    %2138 = vmatpush1.bf16.xpose.msra.mxu0 0
    %2139 = vmatprep.subr.bf16.mxu0 0
    %2140 = vmatpush1.bf16.xpose.msra.mxu0 0
    %2141 = vmatprep.subr.bf16.mxu0 0
    %2142 = vmatpush1.bf16.xpose.msra.mxu0 0
    %2143 = vmatprep.subr.bf16.mxu0 0
    %2144 = vmatpush1.bf16.xpose.msra.mxu0 0
    %2145 = vmatprep.subr.bf16.mxu0 0
    %2146 = vmatpush1.bf16.xpose.msra.mxu0 0
    %2147 = vmatprep.subr.bf16.mxu0 0
    %2148 = vmatpush1.bf16.xpose.msra.mxu0 0
    %2149 = vmatprep.subr.bf16.mxu0 0
    %2150 = vmatpush1.bf16.xpose.msra.mxu0 0
    %2151 = vmatprep.subr.bf16.mxu0 0
    %2152 = vmatpush1.bf16.xpose.msra.mxu0 0
    %2153 = vmatprep.subr.bf16.mxu0 0
    %2154 = vmatpush1.bf16.xpose.msra.mxu0 0
    %2155 = vmatprep.subr.bf16.mxu0 0
    %2156 = vmatpush1.bf16.xpose.msra.mxu0 0
    %2157 = vmatprep.mubr.bf16.mxu0 0
    %2158 = vmatmul.mubr.bf16.gmra.mrb[0].mxu0 %v2114
    %v2159 = vpop.f32.mrb[0].mxu0
    %v2160 = vadd.f32 0.0, %v2159
    %v2161 = vpop.f32.mrb[0].mxu0
    %v2162 = vpop.f32.mrb[0].mxu0
    %v2163 = vadd.f32 0.0, %v2162
    %v2164 = vpop.f32.mrb[0].mxu0
    %2165 = vmatprep.mubr.bf16.mxu0 0
    %2166 = vmatmul.mubr.bf16.gmra.mrb[0].mxu0 %v2117
    %v2167 = vpop.f32.mrb[0].mxu0
    %v2168 = vadd.f32 0.0, %v2167
    %v2169 = vpop.f32.mrb[0].mxu0
    %v2170 = vpop.f32.mrb[0].mxu0
    %v2171 = vpop.f32.mrb[0].mxu0
    %2172 = vdwg.mxu0
    %v2173 = vadd.f32 %v1936, %v2160
    %v2174 = vadd.f32 %v1939, %v2163
    %v2175 = vadd.f32 %v1944, %v2168
    %v2177 = vsel %vm1495, %v1486, 0
    %v2180 = vsel %vm1495, %v1487, 0
    %v2183 = vsel %vm1495, %v1489, 0
    %v2186 = vsel %vm1495, %v1490, 0
    %2188 = vmatprep.subr.bf16.mxu0 0
    %2189 = vmatpush1.bf16.xpose.msra.mxu0 %v2183
    %2190 = vmatprep.subr.bf16.mxu0 0
    %2191 = vmatpush1.bf16.xpose.msra.mxu0 %v2186
    %2192 = vmatprep.subr.bf16.mxu0 0
    %2193 = vmatpush1.bf16.xpose.msra.mxu0 0
    %2194 = vmatprep.subr.bf16.mxu0 0
    %2195 = vmatpush1.bf16.xpose.msra.mxu0 0
    %2196 = vmatprep.subr.bf16.mxu0 0
    %2197 = vmatpush1.bf16.xpose.msra.mxu0 0
    %2198 = vmatprep.subr.bf16.mxu0 0
    %2199 = vmatpush1.bf16.xpose.msra.mxu0 0
    %2200 = vmatprep.subr.bf16.mxu0 0
    %2201 = vmatpush1.bf16.xpose.msra.mxu0 0
    %2202 = vmatprep.subr.bf16.mxu0 0
    %2203 = vmatpush1.bf16.xpose.msra.mxu0 0
    %2204 = vmatprep.subr.bf16.mxu0 0
    %2205 = vmatpush1.bf16.xpose.msra.mxu0 0
    %2206 = vmatprep.subr.bf16.mxu0 0
    %2207 = vmatpush1.bf16.xpose.msra.mxu0 0
    %2208 = vmatprep.subr.bf16.mxu0 0
    %2209 = vmatpush1.bf16.xpose.msra.mxu0 0
    %2210 = vmatprep.subr.bf16.mxu0 0
    %2211 = vmatpush1.bf16.xpose.msra.mxu0 0
    %2212 = vmatprep.subr.bf16.mxu0 0
    %2213 = vmatpush1.bf16.xpose.msra.mxu0 0
    %2214 = vmatprep.subr.bf16.mxu0 0
    %2215 = vmatpush1.bf16.xpose.msra.mxu0 0
    %2216 = vmatprep.subr.bf16.mxu0 0
    %2217 = vmatpush1.bf16.xpose.msra.mxu0 0
    %2218 = vmatprep.subr.bf16.mxu0 0
    %2219 = vmatpush1.bf16.xpose.msra.mxu0 0
    %2220 = vmatprep.mubr.bf16.mxu0 0
    %2221 = vmatmul.mubr.bf16.gmra.mrb[0].mxu0 %v2177
    %v2222 = vpop.f32.mrb[0].mxu0
    %v2223 = vadd.f32 0.0, %v2222
    %v2224 = vpop.f32.mrb[0].mxu0
    %v2225 = vpop.f32.mrb[0].mxu0
    %v2226 = vadd.f32 0.0, %v2225
    %v2227 = vpop.f32.mrb[0].mxu0
    %2228 = vmatprep.mubr.bf16.mxu0 0
    %2229 = vmatmul.mubr.bf16.gmra.mrb[0].mxu0 %v2180
    %v2230 = vpop.f32.mrb[0].mxu0
    %v2231 = vadd.f32 0.0, %v2230
    %v2232 = vpop.f32.mrb[0].mxu0
    %v2233 = vpop.f32.mrb[0].mxu0
    %v2234 = vpop.f32.mrb[0].mxu0
    %2235 = vdwg.mxu0
    %v2236 = vsel %vm1556, %v2223, -inf
    %2237 = vmax.xlane.f32.xlu0 %v2236
    %v2238 = vpop.xlane.xlu0 %2237
    %v2239 = vsel %vm1556, %v2226, -inf
    %2240 = vmax.xlane.f32.xlu0 %v2239
    %v2241 = vpop.xlane.xlu0 %2240
    %v2242 = vsel %vm1563, %v2231, -inf
    %2243 = vmax.xlane.f32.xlu0 %v2242
    %v2244 = vpop.xlane.xlu0 %2243
    %v2245 = vsub.f32 %v2223, %v2238
    %v2246 = vsub.f32 %v2226, %v2241
    %v2247 = vsub.f32 %v2231, %v2244
    %v2248 = vmul.f32 %v2245, 1.442695
    %v2249 = vpow.pop %v2248
    %v2250 = vmul.f32 %v2246, 1.442695
    %v2251 = vpow.pop %v2250
    %v2252 = vmul.f32 %v2247, 1.442695
    %v2253 = vpow.pop %v2252
    %v2254 = vsel %vm1556, %v2249, 0.0
    %2255 = vadd.xlane.f32.xlu0 %v2254
    %v2256 = vpop.xlane.xlu0 %2255
    %v2257 = vsel %vm1556, %v2251, 0.0
    %2258 = vadd.xlane.f32.xlu0 %v2257
    %v2259 = vpop.xlane.xlu0 %2258
    %v2260 = vsel %vm1563, %v2253, 0.0
    %2261 = vadd.xlane.f32.xlu0 %v2260
    %v2262 = vpop.xlane.xlu0 %2261
    %v2263 = vrcp.pop %v2256
    %v2264 = vrcp.pop %v2259
    %v2265 = vrcp.pop %v2262
    %v2266 = vmul.f32 %v2249, %v2263
    %v2267 = vmul.f32 %v2251, %v2264
    %v2268 = vmul.f32 %v2253, %v2265
    %v2269 = vpack.c.bf16 %v2267, %v2266
    %v2270 = vpack.c.bf16 %v2268, %v2268
    %v2272 = vsel %vm1556, %v2269, 0
    %v2275 = vsel %vm1556, %v2270, 0
    %v2278 = vand.u32 %v1493, %v1601
    %2280 = vmatprep.subr.bf16.mxu0 0
    %2281 = vmatpush1.bf16.msra.mxu0 %v1492
    %2282 = vmatprep.subr.bf16.mxu0 0
    %2283 = vmatpush1.bf16.msra.mxu0 %v2278
    %2284 = vmatprep.subr.bf16.mxu0 0
    %2285 = vmatpush1.bf16.msra.mxu0 0
    %2286 = vmatprep.subr.bf16.mxu0 0
    %2287 = vmatpush1.bf16.msra.mxu0 0
    %2288 = vmatprep.subr.bf16.mxu0 0
    %2289 = vmatpush1.bf16.msra.mxu0 0
    %2290 = vmatprep.subr.bf16.mxu0 0
    %2291 = vmatpush1.bf16.msra.mxu0 0
    %2292 = vmatprep.subr.bf16.mxu0 0
    %2293 = vmatpush1.bf16.msra.mxu0 0
    %2294 = vmatprep.subr.bf16.mxu0 0
    %2295 = vmatpush1.bf16.msra.mxu0 0
    %2296 = vmatprep.subr.bf16.mxu0 0
    %2297 = vmatpush1.bf16.msra.mxu0 0
    %2298 = vmatprep.subr.bf16.mxu0 0
    %2299 = vmatpush1.bf16.msra.mxu0 0
    %2300 = vmatprep.subr.bf16.mxu0 0
    %2301 = vmatpush1.bf16.msra.mxu0 0
    %2302 = vmatprep.subr.bf16.mxu0 0
    %2303 = vmatpush1.bf16.msra.mxu0 0
    %2304 = vmatprep.subr.bf16.mxu0 0
    %2305 = vmatpush1.bf16.msra.mxu0 0
    %2306 = vmatprep.subr.bf16.mxu0 0
    %2307 = vmatpush1.bf16.msra.mxu0 0
    %2308 = vmatprep.subr.bf16.mxu0 0
    %2309 = vmatpush1.bf16.msra.mxu0 0
    %2310 = vmatprep.subr.bf16.mxu0 0
    %2311 = vmatpush1.bf16.msra.mxu0 0
    %2312 = vmatprep.mubr.bf16.mxu0 0
    %2313 = vmatmul.mubr.bf16.gmra.mrb[0].mxu0 %v2272
    %v2314 = vpop.f32.mrb[0].mxu0
    %v2315 = vadd.f32 0.0, %v2314
    %v2316 = vpop.f32.mrb[0].mxu0
    %v2317 = vpop.f32.mrb[0].mxu0
    %v2318 = vadd.f32 0.0, %v2317
    %v2319 = vpop.f32.mrb[0].mxu0
    %2320 = vmatprep.mubr.bf16.mxu0 0
    %2321 = vmatmul.mubr.bf16.gmra.mrb[0].mxu0 %v2275
    %v2322 = vpop.f32.mrb[0].mxu0
    %v2323 = vadd.f32 0.0, %v2322
    %v2324 = vpop.f32.mrb[0].mxu0
    %v2325 = vpop.f32.mrb[0].mxu0
    %v2326 = vpop.f32.mrb[0].mxu0
    %2327 = vdwg.mxu0
    %v2328 = vpack.c.bf16 %v2318, %v2315
    %v2329 = vpack.c.bf16 %v2323, %v2323
    %v2334 = vunpack.c.l.b16 %v485
    %v2335 = vunpack.c.l.b16 %v486
    %v2336 = vunpack.c.l.b16 %v487
    %v2337 = vunpack.c.l.b16 %v488
    %v2338 = vpack.c.b16 %v2335, %v2334
    %v2339 = vpack.c.b16 %v2337, %v2336
    %v2341 = vsel %vm1495, %v2328, 0
    %v2344 = vsel %vm1495, %v2329, 0
    %v2347 = vsel %vm1495, %v2338, 0
    %v2350 = vsel %vm1495, %v2339, 0
    %2352 = vmatprep.subr.bf16.mxu0 0
    %2353 = vmatpush1.bf16.xpose.msra.mxu0 %v2347
    %2354 = vmatprep.subr.bf16.mxu0 0
    %2355 = vmatpush1.bf16.xpose.msra.mxu0 %v2350
    %2356 = vmatprep.subr.bf16.mxu0 0
    %2357 = vmatpush1.bf16.xpose.msra.mxu0 0
    %2358 = vmatprep.subr.bf16.mxu0 0
    %2359 = vmatpush1.bf16.xpose.msra.mxu0 0
    %2360 = vmatprep.subr.bf16.mxu0 0
    %2361 = vmatpush1.bf16.xpose.msra.mxu0 0
    %2362 = vmatprep.subr.bf16.mxu0 0
    %2363 = vmatpush1.bf16.xpose.msra.mxu0 0
    %2364 = vmatprep.subr.bf16.mxu0 0
    %2365 = vmatpush1.bf16.xpose.msra.mxu0 0
    %2366 = vmatprep.subr.bf16.mxu0 0
    %2367 = vmatpush1.bf16.xpose.msra.mxu0 0
    %2368 = vmatprep.subr.bf16.mxu0 0
    %2369 = vmatpush1.bf16.xpose.msra.mxu0 0
    %2370 = vmatprep.subr.bf16.mxu0 0
    %2371 = vmatpush1.bf16.xpose.msra.mxu0 0
    %2372 = vmatprep.subr.bf16.mxu0 0
    %2373 = vmatpush1.bf16.xpose.msra.mxu0 0
    %2374 = vmatprep.subr.bf16.mxu0 0
    %2375 = vmatpush1.bf16.xpose.msra.mxu0 0
    %2376 = vmatprep.subr.bf16.mxu0 0
    %2377 = vmatpush1.bf16.xpose.msra.mxu0 0
    %2378 = vmatprep.subr.bf16.mxu0 0
    %2379 = vmatpush1.bf16.xpose.msra.mxu0 0
    %2380 = vmatprep.subr.bf16.mxu0 0
    %2381 = vmatpush1.bf16.xpose.msra.mxu0 0
    %2382 = vmatprep.subr.bf16.mxu0 0
    %2383 = vmatpush1.bf16.xpose.msra.mxu0 0
    %2384 = vmatprep.mubr.bf16.mxu0 0
    %2385 = vmatmul.mubr.bf16.gmra.mrb[0].mxu0 %v2341
    %v2386 = vpop.f32.mrb[0].mxu0
    %v2387 = vadd.f32 0.0, %v2386
    %v2388 = vpop.f32.mrb[0].mxu0
    %v2389 = vpop.f32.mrb[0].mxu0
    %v2390 = vadd.f32 0.0, %v2389
    %v2391 = vpop.f32.mrb[0].mxu0
    %2392 = vmatprep.mubr.bf16.mxu0 0
    %2393 = vmatmul.mubr.bf16.gmra.mrb[0].mxu0 %v2344
    %v2394 = vpop.f32.mrb[0].mxu0
    %v2395 = vadd.f32 0.0, %v2394
    %v2396 = vpop.f32.mrb[0].mxu0
    %v2397 = vpop.f32.mrb[0].mxu0
    %v2398 = vpop.f32.mrb[0].mxu0
    %2399 = vdwg.mxu0
    %v2400 = vadd.f32 %v2173, %v2387
    %v2401 = vadd.f32 %v2174, %v2390
    %v2402 = vadd.f32 %v2175, %v2395
    %vm2403 = vsmask.f32 7424
    %v2404 = vshrl.u32 %v812, 16
    %v2406 = vshll.u32 %v812, 16
    %v2408 = vrot.slane %v2406, 1
    %v2409 = vor.u32 %v2404, %v2408
    %v2411 = vshll.u32 %v813, 16
    %v2413 = vrot.slane %v2411, 1
    %v2414 = vsel %vm2403, %v2409, %v2413
    %v2415 = vshrl.u32 %v813, 16
    %v2417 = vshrl.u32 %v815, 16
    %v2419 = vshll.u32 %v815, 16
    %v2421 = vrot.slane %v2419, 1
    %v2422 = vor.u32 %v2417, %v2421
    %v2424 = vshll.u32 %v816, 16
    %v2426 = vrot.slane %v2424, 1
    %v2427 = vsel %vm2403, %v2422, %v2426
    %v2428 = vshrl.u32 %v816, 16
    %v2431 = vsel %vm1495, %v2414, 0
    %v2434 = vsel %vm1495, %v2415, 0
    %v2437 = vsel %vm1495, %v2427, 0
    %v2440 = vsel %vm1495, %v2428, 0
    %2442 = vmatprep.subr.bf16.mxu0 0
    %2443 = vmatpush1.bf16.xpose.msra.mxu0 %v2437
    %2444 = vmatprep.subr.bf16.mxu0 0
    %2445 = vmatpush1.bf16.xpose.msra.mxu0 %v2440
    %2446 = vmatprep.subr.bf16.mxu0 0
    %2447 = vmatpush1.bf16.xpose.msra.mxu0 0
    %2448 = vmatprep.subr.bf16.mxu0 0
    %2449 = vmatpush1.bf16.xpose.msra.mxu0 0
    %2450 = vmatprep.subr.bf16.mxu0 0
    %2451 = vmatpush1.bf16.xpose.msra.mxu0 0
    %2452 = vmatprep.subr.bf16.mxu0 0
    %2453 = vmatpush1.bf16.xpose.msra.mxu0 0
    %2454 = vmatprep.subr.bf16.mxu0 0
    %2455 = vmatpush1.bf16.xpose.msra.mxu0 0
    %2456 = vmatprep.subr.bf16.mxu0 0
    %2457 = vmatpush1.bf16.xpose.msra.mxu0 0
    %2458 = vmatprep.subr.bf16.mxu0 0
    %2459 = vmatpush1.bf16.xpose.msra.mxu0 0
    %2460 = vmatprep.subr.bf16.mxu0 0
    %2461 = vmatpush1.bf16.xpose.msra.mxu0 0
    %2462 = vmatprep.subr.bf16.mxu0 0
    %2463 = vmatpush1.bf16.xpose.msra.mxu0 0
    %2464 = vmatprep.subr.bf16.mxu0 0
    %2465 = vmatpush1.bf16.xpose.msra.mxu0 0
    %2466 = vmatprep.subr.bf16.mxu0 0
    %2467 = vmatpush1.bf16.xpose.msra.mxu0 0
    %2468 = vmatprep.subr.bf16.mxu0 0
    %2469 = vmatpush1.bf16.xpose.msra.mxu0 0
    %2470 = vmatprep.subr.bf16.mxu0 0
    %2471 = vmatpush1.bf16.xpose.msra.mxu0 0
    %2472 = vmatprep.subr.bf16.mxu0 0
    %2473 = vmatpush1.bf16.xpose.msra.mxu0 0
    %2474 = vmatprep.mubr.bf16.mxu0 0
    %2475 = vmatmul.mubr.bf16.gmra.mrb[0].mxu0 %v2431
    %v2476 = vpop.f32.mrb[0].mxu0
    %v2477 = vadd.f32 0.0, %v2476
    %v2478 = vpop.f32.mrb[0].mxu0
    %v2479 = vpop.f32.mrb[0].mxu0
    %v2480 = vadd.f32 0.0, %v2479
    %v2481 = vpop.f32.mrb[0].mxu0
    %2482 = vmatprep.mubr.bf16.mxu0 0
    %2483 = vmatmul.mubr.bf16.gmra.mrb[0].mxu0 %v2434
    %v2484 = vpop.f32.mrb[0].mxu0
    %v2485 = vadd.f32 0.0, %v2484
    %v2486 = vpop.f32.mrb[0].mxu0
    %v2487 = vpop.f32.mrb[0].mxu0
    %v2488 = vpop.f32.mrb[0].mxu0
    %2489 = vdwg.mxu0
    %v2490 = vsel %vm1556, %v2477, -inf
    %2491 = vmax.xlane.f32.xlu0 %v2490
    %v2492 = vpop.xlane.xlu0 %2491
    %v2493 = vsel %vm1556, %v2480, -inf
    %2494 = vmax.xlane.f32.xlu0 %v2493
    %v2495 = vpop.xlane.xlu0 %2494
    %v2496 = vsel %vm1563, %v2485, -inf
    %2497 = vmax.xlane.f32.xlu0 %v2496
    %v2498 = vpop.xlane.xlu0 %2497
    %v2499 = vsub.f32 %v2477, %v2492
    %v2500 = vsub.f32 %v2480, %v2495
    %v2501 = vsub.f32 %v2485, %v2498
    %v2502 = vmul.f32 %v2499, 1.442695
    %v2503 = vpow.pop %v2502
    %v2504 = vmul.f32 %v2500, 1.442695
    %v2505 = vpow.pop %v2504
    %v2506 = vmul.f32 %v2501, 1.442695
    %v2507 = vpow.pop %v2506
    %v2508 = vsel %vm1556, %v2503, 0.0
    %2509 = vadd.xlane.f32.xlu0 %v2508
    %v2510 = vpop.xlane.xlu0 %2509
    %v2511 = vsel %vm1556, %v2505, 0.0
    %2512 = vadd.xlane.f32.xlu0 %v2511
    %v2513 = vpop.xlane.xlu0 %2512
    %v2514 = vsel %vm1563, %v2507, 0.0
    %2515 = vadd.xlane.f32.xlu0 %v2514
    %v2516 = vpop.xlane.xlu0 %2515
    %v2517 = vrcp.pop %v2510
    %v2518 = vrcp.pop %v2513
    %v2519 = vrcp.pop %v2516
    %v2520 = vmul.f32 %v2503, %v2517
    %v2521 = vmul.f32 %v2505, %v2518
    %v2522 = vmul.f32 %v2507, %v2519
    %v2523 = vpack.c.bf16 %v2521, %v2520
    %v2524 = vpack.c.bf16 %v2522, %v2522
    %v2525 = vshrl.u32 %v818, 16
    %v2527 = vshll.u32 %v818, 16
    %v2529 = vrot.slane %v2527, 1
    %v2530 = vor.u32 %v2525, %v2529
    %v2532 = vshll.u32 %v819, 16
    %v2534 = vrot.slane %v2532, 1
    %v2535 = vsel %vm2403, %v2530, %v2534
    %v2536 = vshrl.u32 %v819, 16
    %v2540 = vsel %vm1556, %v2523, 0
    %v2543 = vsel %vm1556, %v2524, 0
    %v2546 = vand.u32 %v2536, %v1601
    %2548 = vmatprep.subr.bf16.mxu0 0
    %2549 = vmatpush1.bf16.msra.mxu0 %v2535
    %2550 = vmatprep.subr.bf16.mxu0 0
    %2551 = vmatpush1.bf16.msra.mxu0 %v2546
    %2552 = vmatprep.subr.bf16.mxu0 0
    %2553 = vmatpush1.bf16.msra.mxu0 0
    %2554 = vmatprep.subr.bf16.mxu0 0
    %2555 = vmatpush1.bf16.msra.mxu0 0
    %2556 = vmatprep.subr.bf16.mxu0 0
    %2557 = vmatpush1.bf16.msra.mxu0 0
    %2558 = vmatprep.subr.bf16.mxu0 0
    %2559 = vmatpush1.bf16.msra.mxu0 0
    %2560 = vmatprep.subr.bf16.mxu0 0
    %2561 = vmatpush1.bf16.msra.mxu0 0
    %2562 = vmatprep.subr.bf16.mxu0 0
    %2563 = vmatpush1.bf16.msra.mxu0 0
    %2564 = vmatprep.subr.bf16.mxu0 0
    %2565 = vmatpush1.bf16.msra.mxu0 0
    %2566 = vmatprep.subr.bf16.mxu0 0
    %2567 = vmatpush1.bf16.msra.mxu0 0
    %2568 = vmatprep.subr.bf16.mxu0 0
    %2569 = vmatpush1.bf16.msra.mxu0 0
    %2570 = vmatprep.subr.bf16.mxu0 0
    %2571 = vmatpush1.bf16.msra.mxu0 0
    %2572 = vmatprep.subr.bf16.mxu0 0
    %2573 = vmatpush1.bf16.msra.mxu0 0
    %2574 = vmatprep.subr.bf16.mxu0 0
    %2575 = vmatpush1.bf16.msra.mxu0 0
    %2576 = vmatprep.subr.bf16.mxu0 0
    %2577 = vmatpush1.bf16.msra.mxu0 0
    %2578 = vmatprep.subr.bf16.mxu0 0
    %2579 = vmatpush1.bf16.msra.mxu0 0
    %2580 = vmatprep.mubr.bf16.mxu0 0
    %2581 = vmatmul.mubr.bf16.gmra.mrb[0].mxu0 %v2540
    %v2582 = vpop.f32.mrb[0].mxu0
    %v2583 = vadd.f32 0.0, %v2582
    %v2584 = vpop.f32.mrb[0].mxu0
    %v2585 = vpop.f32.mrb[0].mxu0
    %v2586 = vadd.f32 0.0, %v2585
    %v2587 = vpop.f32.mrb[0].mxu0
    %2588 = vmatprep.mubr.bf16.mxu0 0
    %2589 = vmatmul.mubr.bf16.gmra.mrb[0].mxu0 %v2543
    %v2590 = vpop.f32.mrb[0].mxu0
    %v2591 = vadd.f32 0.0, %v2590
    %v2592 = vpop.f32.mrb[0].mxu0
    %v2593 = vpop.f32.mrb[0].mxu0
    %v2594 = vpop.f32.mrb[0].mxu0
    %2595 = vdwg.mxu0
    %v2596 = vpack.c.bf16 %v2586, %v2583
    %v2597 = vpack.c.bf16 %v2591, %v2591
    %v2598 = vshrl.u32 %v1037, 16
    %v2600 = vshll.u32 %v1037, 16
    %v2602 = vrot.slane %v2600, 1
    %v2603 = vor.u32 %v2598, %v2602
    %v2605 = vshll.u32 %v1038, 16
    %v2607 = vrot.slane %v2605, 1
    %v2608 = vsel %vm2403, %v2603, %v2607
    %v2609 = vshrl.u32 %v1038, 16
    %v2611 = vshrl.u32 %v1040, 16
    %v2613 = vshll.u32 %v1040, 16
    %v2615 = vrot.slane %v2613, 1
    %v2616 = vor.u32 %v2611, %v2615
    %v2618 = vshll.u32 %v1041, 16
    %v2620 = vrot.slane %v2618, 1
    %v2621 = vsel %vm2403, %v2616, %v2620
    %v2622 = vshrl.u32 %v1041, 16
    %v2625 = vsel %vm1495, %v2608, 0
    %v2628 = vsel %vm1495, %v2609, 0
    %v2631 = vsel %vm1495, %v2621, 0
    %v2634 = vsel %vm1495, %v2622, 0
    %2636 = vmatprep.subr.bf16.mxu0 0
    %2637 = vmatpush1.bf16.xpose.msra.mxu0 %v2631
    %2638 = vmatprep.subr.bf16.mxu0 0
    %2639 = vmatpush1.bf16.xpose.msra.mxu0 %v2634
    %2640 = vmatprep.subr.bf16.mxu0 0
    %2641 = vmatpush1.bf16.xpose.msra.mxu0 0
    %2642 = vmatprep.subr.bf16.mxu0 0
    %2643 = vmatpush1.bf16.xpose.msra.mxu0 0
    %2644 = vmatprep.subr.bf16.mxu0 0
    %2645 = vmatpush1.bf16.xpose.msra.mxu0 0
    %2646 = vmatprep.subr.bf16.mxu0 0
    %2647 = vmatpush1.bf16.xpose.msra.mxu0 0
    %2648 = vmatprep.subr.bf16.mxu0 0
    %2649 = vmatpush1.bf16.xpose.msra.mxu0 0
    %2650 = vmatprep.subr.bf16.mxu0 0
    %2651 = vmatpush1.bf16.xpose.msra.mxu0 0
    %2652 = vmatprep.subr.bf16.mxu0 0
    %2653 = vmatpush1.bf16.xpose.msra.mxu0 0
    %2654 = vmatprep.subr.bf16.mxu0 0
    %2655 = vmatpush1.bf16.xpose.msra.mxu0 0
    %2656 = vmatprep.subr.bf16.mxu0 0
    %2657 = vmatpush1.bf16.xpose.msra.mxu0 0
    %2658 = vmatprep.subr.bf16.mxu0 0
    %2659 = vmatpush1.bf16.xpose.msra.mxu0 0
    %2660 = vmatprep.subr.bf16.mxu0 0
    %2661 = vmatpush1.bf16.xpose.msra.mxu0 0
    %2662 = vmatprep.subr.bf16.mxu0 0
    %2663 = vmatpush1.bf16.xpose.msra.mxu0 0
    %2664 = vmatprep.subr.bf16.mxu0 0
    %2665 = vmatpush1.bf16.xpose.msra.mxu0 0
    %2666 = vmatprep.subr.bf16.mxu0 0
    %2667 = vmatpush1.bf16.xpose.msra.mxu0 0
    %2668 = vmatprep.mubr.bf16.mxu0 0
    %2669 = vmatmul.mubr.bf16.gmra.mrb[0].mxu0 %v2625
    %v2670 = vpop.f32.mrb[0].mxu0
    %v2671 = vadd.f32 0.0, %v2670
    %v2672 = vpop.f32.mrb[0].mxu0
    %v2673 = vpop.f32.mrb[0].mxu0
    %v2674 = vadd.f32 0.0, %v2673
    %v2675 = vpop.f32.mrb[0].mxu0
    %2676 = vmatprep.mubr.bf16.mxu0 0
    %2677 = vmatmul.mubr.bf16.gmra.mrb[0].mxu0 %v2628
    %v2678 = vpop.f32.mrb[0].mxu0
    %v2679 = vadd.f32 0.0, %v2678
    %v2680 = vpop.f32.mrb[0].mxu0
    %v2681 = vpop.f32.mrb[0].mxu0
    %v2682 = vpop.f32.mrb[0].mxu0
    %2683 = vdwg.mxu0
    %v2684 = vsel %vm1556, %v2671, -inf
    %2685 = vmax.xlane.f32.xlu0 %v2684
    %v2686 = vpop.xlane.xlu0 %2685
    %v2687 = vsel %vm1556, %v2674, -inf
    %2688 = vmax.xlane.f32.xlu0 %v2687
    %v2689 = vpop.xlane.xlu0 %2688
    %v2690 = vsel %vm1563, %v2679, -inf
    %2691 = vmax.xlane.f32.xlu0 %v2690
    %v2692 = vpop.xlane.xlu0 %2691
    %v2693 = vsub.f32 %v2671, %v2686
    %v2694 = vsub.f32 %v2674, %v2689
    %v2695 = vsub.f32 %v2679, %v2692
    %v2696 = vmul.f32 %v2693, 1.442695
    %v2697 = vpow.pop %v2696
    %v2698 = vmul.f32 %v2694, 1.442695
    %v2699 = vpow.pop %v2698
    %v2700 = vmul.f32 %v2695, 1.442695
    %v2701 = vpow.pop %v2700
    %v2702 = vsel %vm1556, %v2697, 0.0
    %2703 = vadd.xlane.f32.xlu0 %v2702
    %v2704 = vpop.xlane.xlu0 %2703
    %v2705 = vsel %vm1556, %v2699, 0.0
    %2706 = vadd.xlane.f32.xlu0 %v2705
    %v2707 = vpop.xlane.xlu0 %2706
    %v2708 = vsel %vm1563, %v2701, 0.0
    %2709 = vadd.xlane.f32.xlu0 %v2708
    %v2710 = vpop.xlane.xlu0 %2709
    %v2711 = vrcp.pop %v2704
    %v2712 = vrcp.pop %v2707
    %v2713 = vrcp.pop %v2710
    %v2714 = vmul.f32 %v2697, %v2711
    %v2715 = vmul.f32 %v2699, %v2712
    %v2716 = vmul.f32 %v2701, %v2713
    %v2717 = vpack.c.bf16 %v2715, %v2714
    %v2718 = vpack.c.bf16 %v2716, %v2716
    %v2719 = vshrl.u32 %v1043, 16
    %v2721 = vshll.u32 %v1043, 16
    %v2723 = vrot.slane %v2721, 1
    %v2724 = vor.u32 %v2719, %v2723
    %v2726 = vshll.u32 %v1044, 16
    %v2728 = vrot.slane %v2726, 1
    %v2729 = vsel %vm2403, %v2724, %v2728
    %v2730 = vshrl.u32 %v1044, 16
    %v2734 = vsel %vm1556, %v2717, 0
    %v2737 = vsel %vm1556, %v2718, 0
    %v2740 = vand.u32 %v2730, %v1601
    %2742 = vmatprep.subr.bf16.mxu0 0
    %2743 = vmatpush1.bf16.msra.mxu0 %v2729
    %2744 = vmatprep.subr.bf16.mxu0 0
    %2745 = vmatpush1.bf16.msra.mxu0 %v2740
    %2746 = vmatprep.subr.bf16.mxu0 0
    %2747 = vmatpush1.bf16.msra.mxu0 0
    %2748 = vmatprep.subr.bf16.mxu0 0
    %2749 = vmatpush1.bf16.msra.mxu0 0
    %2750 = vmatprep.subr.bf16.mxu0 0
    %2751 = vmatpush1.bf16.msra.mxu0 0
    %2752 = vmatprep.subr.bf16.mxu0 0
    %2753 = vmatpush1.bf16.msra.mxu0 0
    %2754 = vmatprep.subr.bf16.mxu0 0
    %2755 = vmatpush1.bf16.msra.mxu0 0
    %2756 = vmatprep.subr.bf16.mxu0 0
    %2757 = vmatpush1.bf16.msra.mxu0 0
    %2758 = vmatprep.subr.bf16.mxu0 0
    %2759 = vmatpush1.bf16.msra.mxu0 0
    %2760 = vmatprep.subr.bf16.mxu0 0
    %2761 = vmatpush1.bf16.msra.mxu0 0
    %2762 = vmatprep.subr.bf16.mxu0 0
    %2763 = vmatpush1.bf16.msra.mxu0 0
    %2764 = vmatprep.subr.bf16.mxu0 0
    %2765 = vmatpush1.bf16.msra.mxu0 0
    %2766 = vmatprep.subr.bf16.mxu0 0
    %2767 = vmatpush1.bf16.msra.mxu0 0
    %2768 = vmatprep.subr.bf16.mxu0 0
    %2769 = vmatpush1.bf16.msra.mxu0 0
    %2770 = vmatprep.subr.bf16.mxu0 0
    %2771 = vmatpush1.bf16.msra.mxu0 0
    %2772 = vmatprep.subr.bf16.mxu0 0
    %2773 = vmatpush1.bf16.msra.mxu0 0
    %2774 = vmatprep.mubr.bf16.mxu0 0
    %2775 = vmatmul.mubr.bf16.gmra.mrb[0].mxu0 %v2734
    %v2776 = vpop.f32.mrb[0].mxu0
    %v2777 = vadd.f32 0.0, %v2776
    %v2778 = vpop.f32.mrb[0].mxu0
    %v2779 = vpop.f32.mrb[0].mxu0
    %v2780 = vadd.f32 0.0, %v2779
    %v2781 = vpop.f32.mrb[0].mxu0
    %2782 = vmatprep.mubr.bf16.mxu0 0
    %2783 = vmatmul.mubr.bf16.gmra.mrb[0].mxu0 %v2737
    %v2784 = vpop.f32.mrb[0].mxu0
    %v2785 = vadd.f32 0.0, %v2784
    %v2786 = vpop.f32.mrb[0].mxu0
    %v2787 = vpop.f32.mrb[0].mxu0
    %v2788 = vpop.f32.mrb[0].mxu0
    %2789 = vdwg.mxu0
    %v2790 = vpack.c.bf16 %v2780, %v2777
    %v2791 = vpack.c.bf16 %v2785, %v2785
    %v2793 = vsel %vm1495, %v2790, 0
    %v2796 = vsel %vm1495, %v2791, 0
    %2798 = vmatprep.subr.bf16.mxu0 0
    %2799 = vmatpush1.bf16.xpose.msra.mxu0 %v1826
    %2800 = vmatprep.subr.bf16.mxu0 0
    %2801 = vmatpush1.bf16.xpose.msra.mxu0 %v1829
    %2802 = vmatprep.subr.bf16.mxu0 0
    %2803 = vmatpush1.bf16.xpose.msra.mxu0 0
    %2804 = vmatprep.subr.bf16.mxu0 0
    %2805 = vmatpush1.bf16.xpose.msra.mxu0 0
    %2806 = vmatprep.subr.bf16.mxu0 0
    %2807 = vmatpush1.bf16.xpose.msra.mxu0 0
    %2808 = vmatprep.subr.bf16.mxu0 0
    %2809 = vmatpush1.bf16.xpose.msra.mxu0 0
    %2810 = vmatprep.subr.bf16.mxu0 0
    %2811 = vmatpush1.bf16.xpose.msra.mxu0 0
    %2812 = vmatprep.subr.bf16.mxu0 0
    %2813 = vmatpush1.bf16.xpose.msra.mxu0 0
    %2814 = vmatprep.subr.bf16.mxu0 0
    %2815 = vmatpush1.bf16.xpose.msra.mxu0 0
    %2816 = vmatprep.subr.bf16.mxu0 0
    %2817 = vmatpush1.bf16.xpose.msra.mxu0 0
    %2818 = vmatprep.subr.bf16.mxu0 0
    %2819 = vmatpush1.bf16.xpose.msra.mxu0 0
    %2820 = vmatprep.subr.bf16.mxu0 0
    %2821 = vmatpush1.bf16.xpose.msra.mxu0 0
    %2822 = vmatprep.subr.bf16.mxu0 0
    %2823 = vmatpush1.bf16.xpose.msra.mxu0 0
    %2824 = vmatprep.subr.bf16.mxu0 0
    %2825 = vmatpush1.bf16.xpose.msra.mxu0 0
    %2826 = vmatprep.subr.bf16.mxu0 0
    %2827 = vmatpush1.bf16.xpose.msra.mxu0 0
    %2828 = vmatprep.subr.bf16.mxu0 0
    %2829 = vmatpush1.bf16.xpose.msra.mxu0 0
    %2830 = vmatprep.mubr.bf16.mxu0 0
    %2831 = vmatmul.mubr.bf16.gmra.mrb[0].mxu0 %v2793
    %v2832 = vpop.f32.mrb[0].mxu0
    %v2833 = vadd.f32 0.0, %v2832
    %v2834 = vpop.f32.mrb[0].mxu0
    %v2835 = vpop.f32.mrb[0].mxu0
    %v2836 = vadd.f32 0.0, %v2835
    %v2837 = vpop.f32.mrb[0].mxu0
    %2838 = vmatprep.mubr.bf16.mxu0 0
    %2839 = vmatmul.mubr.bf16.gmra.mrb[0].mxu0 %v2796
    %v2840 = vpop.f32.mrb[0].mxu0
    %v2841 = vadd.f32 0.0, %v2840
    %v2842 = vpop.f32.mrb[0].mxu0
    %v2843 = vpop.f32.mrb[0].mxu0
    %v2844 = vpop.f32.mrb[0].mxu0
    %2845 = vdwg.mxu0
    %v2847 = vsel %vm1495, %v2596, 0
    %v2850 = vsel %vm1495, %v2597, 0
    %2852 = vmatprep.subr.bf16.mxu0 0
    %2853 = vmatpush1.bf16.xpose.msra.mxu0 %v1896
    %2854 = vmatprep.subr.bf16.mxu0 0
    %2855 = vmatpush1.bf16.xpose.msra.mxu0 %v1899
    %2856 = vmatprep.subr.bf16.mxu0 0
    %2857 = vmatpush1.bf16.xpose.msra.mxu0 0
    %2858 = vmatprep.subr.bf16.mxu0 0
    %2859 = vmatpush1.bf16.xpose.msra.mxu0 0
    %2860 = vmatprep.subr.bf16.mxu0 0
    %2861 = vmatpush1.bf16.xpose.msra.mxu0 0
    %2862 = vmatprep.subr.bf16.mxu0 0
    %2863 = vmatpush1.bf16.xpose.msra.mxu0 0
    %2864 = vmatprep.subr.bf16.mxu0 0
    %2865 = vmatpush1.bf16.xpose.msra.mxu0 0
    %2866 = vmatprep.subr.bf16.mxu0 0
    %2867 = vmatpush1.bf16.xpose.msra.mxu0 0
    %2868 = vmatprep.subr.bf16.mxu0 0
    %2869 = vmatpush1.bf16.xpose.msra.mxu0 0
    %2870 = vmatprep.subr.bf16.mxu0 0
    %2871 = vmatpush1.bf16.xpose.msra.mxu0 0
    %2872 = vmatprep.subr.bf16.mxu0 0
    %2873 = vmatpush1.bf16.xpose.msra.mxu0 0
    %2874 = vmatprep.subr.bf16.mxu0 0
    %2875 = vmatpush1.bf16.xpose.msra.mxu0 0
    %2876 = vmatprep.subr.bf16.mxu0 0
    %2877 = vmatpush1.bf16.xpose.msra.mxu0 0
    %2878 = vmatprep.subr.bf16.mxu0 0
    %2879 = vmatpush1.bf16.xpose.msra.mxu0 0
    %2880 = vmatprep.subr.bf16.mxu0 0
    %2881 = vmatpush1.bf16.xpose.msra.mxu0 0
    %2882 = vmatprep.subr.bf16.mxu0 0
    %2883 = vmatpush1.bf16.xpose.msra.mxu0 0
    %2884 = vmatprep.mubr.bf16.mxu0 0
    %2885 = vmatmul.mubr.bf16.gmra.mrb[0].mxu0 %v2847
    %v2886 = vpop.f32.mrb[0].mxu0
    %v2887 = vadd.f32 %v2833, %v2886
    %v2888 = vpop.f32.mrb[0].mxu0
    %v2889 = vpop.f32.mrb[0].mxu0
    %v2890 = vadd.f32 %v2836, %v2889
    %v2891 = vpop.f32.mrb[0].mxu0
    %2892 = vmatprep.mubr.bf16.mxu0 0
    %2893 = vmatmul.mubr.bf16.gmra.mrb[0].mxu0 %v2850
    %v2894 = vpop.f32.mrb[0].mxu0
    %v2895 = vadd.f32 %v2841, %v2894
    %v2896 = vpop.f32.mrb[0].mxu0
    %v2897 = vpop.f32.mrb[0].mxu0
    %v2898 = vpop.f32.mrb[0].mxu0
    %2899 = vdwg.mxu0
    %v2900 = vshrl.u32 %v1262, 16
    %v2902 = vshll.u32 %v1262, 16
    %v2904 = vrot.slane %v2902, 1
    %v2905 = vor.u32 %v2900, %v2904
    %v2907 = vshll.u32 %v1263, 16
    %v2909 = vrot.slane %v2907, 1
    %v2910 = vsel %vm2403, %v2905, %v2909
    %v2911 = vshrl.u32 %v1263, 16
    %v2913 = vshrl.u32 %v1265, 16
    %v2915 = vshll.u32 %v1265, 16
    %v2917 = vrot.slane %v2915, 1
    %v2918 = vor.u32 %v2913, %v2917
    %v2920 = vshll.u32 %v1266, 16
    %v2922 = vrot.slane %v2920, 1
    %v2923 = vsel %vm2403, %v2918, %v2922
    %v2924 = vshrl.u32 %v1266, 16
    %v2927 = vsel %vm1495, %v2910, 0
    %v2930 = vsel %vm1495, %v2911, 0
    %v2933 = vsel %vm1495, %v2923, 0
    %v2936 = vsel %vm1495, %v2924, 0
    %2938 = vmatprep.subr.bf16.mxu0 0
    %2939 = vmatpush1.bf16.xpose.msra.mxu0 %v2933
    %2940 = vmatprep.subr.bf16.mxu0 0
    %2941 = vmatpush1.bf16.xpose.msra.mxu0 %v2936
    %2942 = vmatprep.subr.bf16.mxu0 0
    %2943 = vmatpush1.bf16.xpose.msra.mxu0 0
    %2944 = vmatprep.subr.bf16.mxu0 0
    %2945 = vmatpush1.bf16.xpose.msra.mxu0 0
    %2946 = vmatprep.subr.bf16.mxu0 0
    %2947 = vmatpush1.bf16.xpose.msra.mxu0 0
    %2948 = vmatprep.subr.bf16.mxu0 0
    %2949 = vmatpush1.bf16.xpose.msra.mxu0 0
    %2950 = vmatprep.subr.bf16.mxu0 0
    %2951 = vmatpush1.bf16.xpose.msra.mxu0 0
    %2952 = vmatprep.subr.bf16.mxu0 0
    %2953 = vmatpush1.bf16.xpose.msra.mxu0 0
    %2954 = vmatprep.subr.bf16.mxu0 0
    %2955 = vmatpush1.bf16.xpose.msra.mxu0 0
    %2956 = vmatprep.subr.bf16.mxu0 0
    %2957 = vmatpush1.bf16.xpose.msra.mxu0 0
    %2958 = vmatprep.subr.bf16.mxu0 0
    %2959 = vmatpush1.bf16.xpose.msra.mxu0 0
    %2960 = vmatprep.subr.bf16.mxu0 0
    %2961 = vmatpush1.bf16.xpose.msra.mxu0 0
    %2962 = vmatprep.subr.bf16.mxu0 0
    %2963 = vmatpush1.bf16.xpose.msra.mxu0 0
    %2964 = vmatprep.subr.bf16.mxu0 0
    %2965 = vmatpush1.bf16.xpose.msra.mxu0 0
    %2966 = vmatprep.subr.bf16.mxu0 0
    %2967 = vmatpush1.bf16.xpose.msra.mxu0 0
    %2968 = vmatprep.subr.bf16.mxu0 0
    %2969 = vmatpush1.bf16.xpose.msra.mxu0 0
    %2970 = vmatprep.mubr.bf16.mxu0 0
    %2971 = vmatmul.mubr.bf16.gmra.mrb[0].mxu0 %v2927
    %v2972 = vpop.f32.mrb[0].mxu0
    %v2973 = vadd.f32 0.0, %v2972
    %v2974 = vpop.f32.mrb[0].mxu0
    %v2975 = vpop.f32.mrb[0].mxu0
    %v2976 = vadd.f32 0.0, %v2975
    %v2977 = vpop.f32.mrb[0].mxu0
    %2978 = vmatprep.mubr.bf16.mxu0 0
    %2979 = vmatmul.mubr.bf16.gmra.mrb[0].mxu0 %v2930
    %v2980 = vpop.f32.mrb[0].mxu0
    %v2981 = vadd.f32 0.0, %v2980
    %v2982 = vpop.f32.mrb[0].mxu0
    %v2983 = vpop.f32.mrb[0].mxu0
    %v2984 = vpop.f32.mrb[0].mxu0
    %2985 = vdwg.mxu0
    %v2986 = vsel %vm1556, %v2973, -inf
    %2987 = vmax.xlane.f32.xlu0 %v2986
    %v2988 = vpop.xlane.xlu0 %2987
    %v2989 = vsel %vm1556, %v2976, -inf
    %2990 = vmax.xlane.f32.xlu0 %v2989
    %v2991 = vpop.xlane.xlu0 %2990
    %v2992 = vsel %vm1563, %v2981, -inf
    %2993 = vmax.xlane.f32.xlu0 %v2992
    %v2994 = vpop.xlane.xlu0 %2993
    %v2995 = vsub.f32 %v2973, %v2988
    %v2996 = vsub.f32 %v2976, %v2991
    %v2997 = vsub.f32 %v2981, %v2994
    %v2998 = vmul.f32 %v2995, 1.442695
    %v2999 = vpow.pop %v2998
    %v3000 = vmul.f32 %v2996, 1.442695
    %v3001 = vpow.pop %v3000
    %v3002 = vmul.f32 %v2997, 1.442695
    %v3003 = vpow.pop %v3002
    %v3004 = vsel %vm1556, %v2999, 0.0
    %3005 = vadd.xlane.f32.xlu0 %v3004
    %v3006 = vpop.xlane.xlu0 %3005
    %v3007 = vsel %vm1556, %v3001, 0.0
    %3008 = vadd.xlane.f32.xlu0 %v3007
    %v3009 = vpop.xlane.xlu0 %3008
    %v3010 = vsel %vm1563, %v3003, 0.0
    %3011 = vadd.xlane.f32.xlu0 %v3010
    %v3012 = vpop.xlane.xlu0 %3011
    %v3013 = vrcp.pop %v3006
    %v3014 = vrcp.pop %v3009
    %v3015 = vrcp.pop %v3012
    %v3016 = vmul.f32 %v2999, %v3013
    %v3017 = vmul.f32 %v3001, %v3014
    %v3018 = vmul.f32 %v3003, %v3015
    %v3019 = vpack.c.bf16 %v3017, %v3016
    %v3020 = vpack.c.bf16 %v3018, %v3018
    %v3021 = vshrl.u32 %v1268, 16
    %v3023 = vshll.u32 %v1268, 16
    %v3025 = vrot.slane %v3023, 1
    %v3026 = vor.u32 %v3021, %v3025
    %v3028 = vshll.u32 %v1269, 16
    %v3030 = vrot.slane %v3028, 1
    %v3031 = vsel %vm2403, %v3026, %v3030
    %v3032 = vshrl.u32 %v1269, 16
    %v3036 = vsel %vm1556, %v3019, 0
    %v3039 = vsel %vm1556, %v3020, 0
    %v3042 = vand.u32 %v3032, %v1601
    %3044 = vmatprep.subr.bf16.mxu0 0
    %3045 = vmatpush1.bf16.msra.mxu0 %v3031
    %3046 = vmatprep.subr.bf16.mxu0 0
    %3047 = vmatpush1.bf16.msra.mxu0 %v3042
    %3048 = vmatprep.subr.bf16.mxu0 0
    %3049 = vmatpush1.bf16.msra.mxu0 0
    %3050 = vmatprep.subr.bf16.mxu0 0
    %3051 = vmatpush1.bf16.msra.mxu0 0
    %3052 = vmatprep.subr.bf16.mxu0 0
    %3053 = vmatpush1.bf16.msra.mxu0 0
    %3054 = vmatprep.subr.bf16.mxu0 0
    %3055 = vmatpush1.bf16.msra.mxu0 0
    %3056 = vmatprep.subr.bf16.mxu0 0
    %3057 = vmatpush1.bf16.msra.mxu0 0
    %3058 = vmatprep.subr.bf16.mxu0 0
    %3059 = vmatpush1.bf16.msra.mxu0 0
    %3060 = vmatprep.subr.bf16.mxu0 0
    %3061 = vmatpush1.bf16.msra.mxu0 0
    %3062 = vmatprep.subr.bf16.mxu0 0
    %3063 = vmatpush1.bf16.msra.mxu0 0
    %3064 = vmatprep.subr.bf16.mxu0 0
    %3065 = vmatpush1.bf16.msra.mxu0 0
    %3066 = vmatprep.subr.bf16.mxu0 0
    %3067 = vmatpush1.bf16.msra.mxu0 0
    %3068 = vmatprep.subr.bf16.mxu0 0
    %3069 = vmatpush1.bf16.msra.mxu0 0
    %3070 = vmatprep.subr.bf16.mxu0 0
    %3071 = vmatpush1.bf16.msra.mxu0 0
    %3072 = vmatprep.subr.bf16.mxu0 0
    %3073 = vmatpush1.bf16.msra.mxu0 0
    %3074 = vmatprep.subr.bf16.mxu0 0
    %3075 = vmatpush1.bf16.msra.mxu0 0
    %3076 = vmatprep.mubr.bf16.mxu0 0
    %3077 = vmatmul.mubr.bf16.gmra.mrb[0].mxu0 %v3036
    %v3078 = vpop.f32.mrb[0].mxu0
    %v3079 = vadd.f32 0.0, %v3078
    %v3080 = vpop.f32.mrb[0].mxu0
    %v3081 = vpop.f32.mrb[0].mxu0
    %v3082 = vadd.f32 0.0, %v3081
    %v3083 = vpop.f32.mrb[0].mxu0
    %3084 = vmatprep.mubr.bf16.mxu0 0
    %3085 = vmatmul.mubr.bf16.gmra.mrb[0].mxu0 %v3039
    %v3086 = vpop.f32.mrb[0].mxu0
    %v3087 = vadd.f32 0.0, %v3086
    %v3088 = vpop.f32.mrb[0].mxu0
    %v3089 = vpop.f32.mrb[0].mxu0
    %v3090 = vpop.f32.mrb[0].mxu0
    %3091 = vdwg.mxu0
    %v3092 = vpack.c.bf16 %v3082, %v3079
    %v3093 = vpack.c.bf16 %v3087, %v3087
    %v3095 = vsel %vm1495, %v3092, 0
    %v3098 = vsel %vm1495, %v3093, 0
    %3100 = vmatprep.subr.bf16.mxu0 0
    %3101 = vmatpush1.bf16.xpose.msra.mxu0 %v2120
    %3102 = vmatprep.subr.bf16.mxu0 0
    %3103 = vmatpush1.bf16.xpose.msra.mxu0 %v2123
    %3104 = vmatprep.subr.bf16.mxu0 0
    %3105 = vmatpush1.bf16.xpose.msra.mxu0 0
    %3106 = vmatprep.subr.bf16.mxu0 0
    %3107 = vmatpush1.bf16.xpose.msra.mxu0 0
    %3108 = vmatprep.subr.bf16.mxu0 0
    %3109 = vmatpush1.bf16.xpose.msra.mxu0 0
    %3110 = vmatprep.subr.bf16.mxu0 0
    %3111 = vmatpush1.bf16.xpose.msra.mxu0 0
    %3112 = vmatprep.subr.bf16.mxu0 0
    %3113 = vmatpush1.bf16.xpose.msra.mxu0 0
    %3114 = vmatprep.subr.bf16.mxu0 0
    %3115 = vmatpush1.bf16.xpose.msra.mxu0 0
    %3116 = vmatprep.subr.bf16.mxu0 0
    %3117 = vmatpush1.bf16.xpose.msra.mxu0 0
    %3118 = vmatprep.subr.bf16.mxu0 0
    %3119 = vmatpush1.bf16.xpose.msra.mxu0 0
    %3120 = vmatprep.subr.bf16.mxu0 0
    %3121 = vmatpush1.bf16.xpose.msra.mxu0 0
    %3122 = vmatprep.subr.bf16.mxu0 0
    %3123 = vmatpush1.bf16.xpose.msra.mxu0 0
    %3124 = vmatprep.subr.bf16.mxu0 0
    %3125 = vmatpush1.bf16.xpose.msra.mxu0 0
    %3126 = vmatprep.subr.bf16.mxu0 0
    %3127 = vmatpush1.bf16.xpose.msra.mxu0 0
    %3128 = vmatprep.subr.bf16.mxu0 0
    %3129 = vmatpush1.bf16.xpose.msra.mxu0 0
    %3130 = vmatprep.subr.bf16.mxu0 0
    %3131 = vmatpush1.bf16.xpose.msra.mxu0 0
    %3132 = vmatprep.mubr.bf16.mxu0 0
    %3133 = vmatmul.mubr.bf16.gmra.mrb[0].mxu0 %v3095
    %v3134 = vpop.f32.mrb[0].mxu0
    %v3135 = vadd.f32 0.0, %v3134
    %v3136 = vpop.f32.mrb[0].mxu0
    %v3137 = vpop.f32.mrb[0].mxu0
    %v3138 = vadd.f32 0.0, %v3137
    %v3139 = vpop.f32.mrb[0].mxu0
    %3140 = vmatprep.mubr.bf16.mxu0 0
    %3141 = vmatmul.mubr.bf16.gmra.mrb[0].mxu0 %v3098
    %v3142 = vpop.f32.mrb[0].mxu0
    %v3143 = vadd.f32 0.0, %v3142
    %v3144 = vpop.f32.mrb[0].mxu0
    %v3145 = vpop.f32.mrb[0].mxu0
    %v3146 = vpop.f32.mrb[0].mxu0
    %3147 = vdwg.mxu0
    %v3148 = vadd.f32 %v2887, %v3135
    %v3149 = vadd.f32 %v2890, %v3138
    %v3150 = vadd.f32 %v2895, %v3143
    %v3151 = vshrl.u32 %v1487, 16
    %v3153 = vshll.u32 %v1487, 16
    %v3155 = vrot.slane %v3153, 1
    %v3156 = vor.u32 %v3151, %v3155
    %v3158 = vshll.u32 %v1488, 16
    %v3160 = vrot.slane %v3158, 1
    %v3161 = vsel %vm2403, %v3156, %v3160
    %v3162 = vshrl.u32 %v1488, 16
    %v3164 = vshrl.u32 %v1490, 16
    %v3166 = vshll.u32 %v1490, 16
    %v3168 = vrot.slane %v3166, 1
    %v3169 = vor.u32 %v3164, %v3168
    %v3171 = vshll.u32 %v1491, 16
    %v3173 = vrot.slane %v3171, 1
    %v3174 = vsel %vm2403, %v3169, %v3173
    %v3175 = vshrl.u32 %v1491, 16
    %v3178 = vsel %vm1495, %v3161, 0
    %v3181 = vsel %vm1495, %v3162, 0
    %v3184 = vsel %vm1495, %v3174, 0
    %v3187 = vsel %vm1495, %v3175, 0
    %3189 = vmatprep.subr.bf16.mxu0 0
    %3190 = vmatpush1.bf16.xpose.msra.mxu0 %v3184
    %3191 = vmatprep.subr.bf16.mxu0 0
    %3192 = vmatpush1.bf16.xpose.msra.mxu0 %v3187
    %3193 = vmatprep.subr.bf16.mxu0 0
    %3194 = vmatpush1.bf16.xpose.msra.mxu0 0
    %3195 = vmatprep.subr.bf16.mxu0 0
    %3196 = vmatpush1.bf16.xpose.msra.mxu0 0
    %3197 = vmatprep.subr.bf16.mxu0 0
    %3198 = vmatpush1.bf16.xpose.msra.mxu0 0
    %3199 = vmatprep.subr.bf16.mxu0 0
    %3200 = vmatpush1.bf16.xpose.msra.mxu0 0
    %3201 = vmatprep.subr.bf16.mxu0 0
    %3202 = vmatpush1.bf16.xpose.msra.mxu0 0
    %3203 = vmatprep.subr.bf16.mxu0 0
    %3204 = vmatpush1.bf16.xpose.msra.mxu0 0
    %3205 = vmatprep.subr.bf16.mxu0 0
    %3206 = vmatpush1.bf16.xpose.msra.mxu0 0
    %3207 = vmatprep.subr.bf16.mxu0 0
    %3208 = vmatpush1.bf16.xpose.msra.mxu0 0
    %3209 = vmatprep.subr.bf16.mxu0 0
    %3210 = vmatpush1.bf16.xpose.msra.mxu0 0
    %3211 = vmatprep.subr.bf16.mxu0 0
    %3212 = vmatpush1.bf16.xpose.msra.mxu0 0
    %3213 = vmatprep.subr.bf16.mxu0 0
    %3214 = vmatpush1.bf16.xpose.msra.mxu0 0
    %3215 = vmatprep.subr.bf16.mxu0 0
    %3216 = vmatpush1.bf16.xpose.msra.mxu0 0
    %3217 = vmatprep.subr.bf16.mxu0 0
    %3218 = vmatpush1.bf16.xpose.msra.mxu0 0
    %3219 = vmatprep.subr.bf16.mxu0 0
    %3220 = vmatpush1.bf16.xpose.msra.mxu0 0
    %3221 = vmatprep.mubr.bf16.mxu0 0
    %3222 = vmatmul.mubr.bf16.gmra.mrb[0].mxu0 %v3178
    %v3223 = vpop.f32.mrb[0].mxu0
    %v3224 = vadd.f32 0.0, %v3223
    %v3225 = vpop.f32.mrb[0].mxu0
    %v3226 = vpop.f32.mrb[0].mxu0
    %v3227 = vadd.f32 0.0, %v3226
    %v3228 = vpop.f32.mrb[0].mxu0
    %3229 = vmatprep.mubr.bf16.mxu0 0
    %3230 = vmatmul.mubr.bf16.gmra.mrb[0].mxu0 %v3181
    %v3231 = vpop.f32.mrb[0].mxu0
    %v3232 = vadd.f32 0.0, %v3231
    %v3233 = vpop.f32.mrb[0].mxu0
    %v3234 = vpop.f32.mrb[0].mxu0
    %v3235 = vpop.f32.mrb[0].mxu0
    %3236 = vdwg.mxu0
    %v3237 = vsel %vm1556, %v3224, -inf
    %3238 = vmax.xlane.f32.xlu0 %v3237
    %v3239 = vpop.xlane.xlu0 %3238
    %v3240 = vsel %vm1556, %v3227, -inf
    %3241 = vmax.xlane.f32.xlu0 %v3240
    %v3242 = vpop.xlane.xlu0 %3241
    %v3243 = vsel %vm1563, %v3232, -inf
    %3244 = vmax.xlane.f32.xlu0 %v3243
    %v3245 = vpop.xlane.xlu0 %3244
    %v3246 = vsub.f32 %v3224, %v3239
    %v3247 = vsub.f32 %v3227, %v3242
    %v3248 = vsub.f32 %v3232, %v3245
    %v3249 = vmul.f32 %v3246, 1.442695
    %v3250 = vpow.pop %v3249
    %v3251 = vmul.f32 %v3247, 1.442695
    %v3252 = vpow.pop %v3251
    %v3253 = vmul.f32 %v3248, 1.442695
    %v3254 = vpow.pop %v3253
    %v3255 = vsel %vm1556, %v3250, 0.0
    %3256 = vadd.xlane.f32.xlu0 %v3255
    %v3257 = vpop.xlane.xlu0 %3256
    %v3258 = vsel %vm1556, %v3252, 0.0
    %3259 = vadd.xlane.f32.xlu0 %v3258
    %v3260 = vpop.xlane.xlu0 %3259
    %v3261 = vsel %vm1563, %v3254, 0.0
    %3262 = vadd.xlane.f32.xlu0 %v3261
    %v3263 = vpop.xlane.xlu0 %3262
    %v3264 = vrcp.pop %v3257
    %v3265 = vrcp.pop %v3260
    %v3266 = vrcp.pop %v3263
    %v3267 = vmul.f32 %v3250, %v3264
    %v3268 = vmul.f32 %v3252, %v3265
    %v3269 = vmul.f32 %v3254, %v3266
    %v3270 = vpack.c.bf16 %v3268, %v3267
    %v3271 = vpack.c.bf16 %v3269, %v3269
    %v3272 = vshrl.u32 %v1493, 16
    %v3274 = vshll.u32 %v1493, 16
    %v3276 = vrot.slane %v3274, 1
    %v3277 = vor.u32 %v3272, %v3276
    %v3279 = vshll.u32 %v1494, 16
    %v3281 = vrot.slane %v3279, 1
    %v3282 = vsel %vm2403, %v3277, %v3281
    %v3283 = vshrl.u32 %v1494, 16
    %v3287 = vsel %vm1556, %v3270, 0
    %v3290 = vsel %vm1556, %v3271, 0
    %v3293 = vand.u32 %v3283, %v1601
    %3295 = vmatprep.subr.bf16.mxu0 0
    %3296 = vmatpush1.bf16.msra.mxu0 %v3282
    %3297 = vmatprep.subr.bf16.mxu0 0
    %3298 = vmatpush1.bf16.msra.mxu0 %v3293
    %3299 = vmatprep.subr.bf16.mxu0 0
    %3300 = vmatpush1.bf16.msra.mxu0 0
    %3301 = vmatprep.subr.bf16.mxu0 0
    %3302 = vmatpush1.bf16.msra.mxu0 0
    %3303 = vmatprep.subr.bf16.mxu0 0
    %3304 = vmatpush1.bf16.msra.mxu0 0
    %3305 = vmatprep.subr.bf16.mxu0 0
    %3306 = vmatpush1.bf16.msra.mxu0 0
    %3307 = vmatprep.subr.bf16.mxu0 0
    %3308 = vmatpush1.bf16.msra.mxu0 0
    %3309 = vmatprep.subr.bf16.mxu0 0
    %3310 = vmatpush1.bf16.msra.mxu0 0
    %3311 = vmatprep.subr.bf16.mxu0 0
    %3312 = vmatpush1.bf16.msra.mxu0 0
    %3313 = vmatprep.subr.bf16.mxu0 0
    %3314 = vmatpush1.bf16.msra.mxu0 0
    %3315 = vmatprep.subr.bf16.mxu0 0
    %3316 = vmatpush1.bf16.msra.mxu0 0
    %3317 = vmatprep.subr.bf16.mxu0 0
    %3318 = vmatpush1.bf16.msra.mxu0 0
    %3319 = vmatprep.subr.bf16.mxu0 0
    %3320 = vmatpush1.bf16.msra.mxu0 0
    %3321 = vmatprep.subr.bf16.mxu0 0
    %3322 = vmatpush1.bf16.msra.mxu0 0
    %3323 = vmatprep.subr.bf16.mxu0 0
    %3324 = vmatpush1.bf16.msra.mxu0 0
    %3325 = vmatprep.subr.bf16.mxu0 0
    %3326 = vmatpush1.bf16.msra.mxu0 0
    %3327 = vmatprep.mubr.bf16.mxu0 0
    %3328 = vmatmul.mubr.bf16.gmra.mrb[0].mxu0 %v3287
    %v3329 = vpop.f32.mrb[0].mxu0
    %v3330 = vadd.f32 0.0, %v3329
    %v3331 = vpop.f32.mrb[0].mxu0
    %v3332 = vpop.f32.mrb[0].mxu0
    %v3333 = vadd.f32 0.0, %v3332
    %v3334 = vpop.f32.mrb[0].mxu0
    %3335 = vmatprep.mubr.bf16.mxu0 0
    %3336 = vmatmul.mubr.bf16.gmra.mrb[0].mxu0 %v3290
    %v3337 = vpop.f32.mrb[0].mxu0
    %v3338 = vadd.f32 0.0, %v3337
    %v3339 = vpop.f32.mrb[0].mxu0
    %v3340 = vpop.f32.mrb[0].mxu0
    %v3341 = vpop.f32.mrb[0].mxu0
    %3342 = vdwg.mxu0
    %v3343 = vpack.c.bf16 %v3333, %v3330
    %v3344 = vpack.c.bf16 %v3338, %v3338
    %v3346 = vsel %vm1495, %v3343, 0
    %v3349 = vsel %vm1495, %v3344, 0
    %3351 = vmatprep.subr.bf16.mxu0 0
    %3352 = vmatpush1.bf16.xpose.msra.mxu0 %v2347
    %3353 = vmatprep.subr.bf16.mxu0 0
    %3354 = vmatpush1.bf16.xpose.msra.mxu0 %v2350
    %3355 = vmatprep.subr.bf16.mxu0 0
    %3356 = vmatpush1.bf16.xpose.msra.mxu0 0
    %3357 = vmatprep.subr.bf16.mxu0 0
    %3358 = vmatpush1.bf16.xpose.msra.mxu0 0
    %3359 = vmatprep.subr.bf16.mxu0 0
    %3360 = vmatpush1.bf16.xpose.msra.mxu0 0
    %3361 = vmatprep.subr.bf16.mxu0 0
    %3362 = vmatpush1.bf16.xpose.msra.mxu0 0
    %3363 = vmatprep.subr.bf16.mxu0 0
    %3364 = vmatpush1.bf16.xpose.msra.mxu0 0
    %3365 = vmatprep.subr.bf16.mxu0 0
    %3366 = vmatpush1.bf16.xpose.msra.mxu0 0
    %3367 = vmatprep.subr.bf16.mxu0 0
    %3368 = vmatpush1.bf16.xpose.msra.mxu0 0
    %3369 = vmatprep.subr.bf16.mxu0 0
    %3370 = vmatpush1.bf16.xpose.msra.mxu0 0
    %3371 = vmatprep.subr.bf16.mxu0 0
    %3372 = vmatpush1.bf16.xpose.msra.mxu0 0
    %3373 = vmatprep.subr.bf16.mxu0 0
    %3374 = vmatpush1.bf16.xpose.msra.mxu0 0
    %3375 = vmatprep.subr.bf16.mxu0 0
    %3376 = vmatpush1.bf16.xpose.msra.mxu0 0
    %3377 = vmatprep.subr.bf16.mxu0 0
    %3378 = vmatpush1.bf16.xpose.msra.mxu0 0
    %3379 = vmatprep.subr.bf16.mxu0 0
    %3380 = vmatpush1.bf16.xpose.msra.mxu0 0
    %3381 = vmatprep.subr.bf16.mxu0 0
    %3382 = vmatpush1.bf16.xpose.msra.mxu0 0
    %3383 = vmatprep.mubr.bf16.mxu0 0
    %3384 = vmatmul.mubr.bf16.gmra.mrb[0].mxu0 %v3346
    %v3385 = vpop.f32.mrb[0].mxu0
    %v3386 = vadd.f32 0.0, %v3385
    %v3387 = vpop.f32.mrb[0].mxu0
    %v3388 = vpop.f32.mrb[0].mxu0
    %v3389 = vadd.f32 0.0, %v3388
    %v3390 = vpop.f32.mrb[0].mxu0
    %3391 = vmatprep.mubr.bf16.mxu0 0
    %3392 = vmatmul.mubr.bf16.gmra.mrb[0].mxu0 %v3349
    %v3393 = vpop.f32.mrb[0].mxu0
    %v3394 = vadd.f32 0.0, %v3393
    %v3395 = vpop.f32.mrb[0].mxu0
    %v3396 = vpop.f32.mrb[0].mxu0
    %v3397 = vpop.f32.mrb[0].mxu0
    %3398 = vdwg.mxu0
    %v3399 = vadd.f32 %v3148, %v3386
    %v3400 = vadd.f32 %v3149, %v3389
    %v3401 = vadd.f32 %v3150, %v3394
    %v3405 = vrot.slane %v3399, 7
    %v3406 = vrot.slane %v3400, 7
    %v3407 = vsel %vm1599, %v3405, %v3406
    %v3408 = vrot.slane %v3401, 7
    %v3409 = vsel %vm1599, %v3406, %v3408
    %v3413 = vsel %vm1599, %v2402, %v3405
    %v3414 = vadd.f32 %v420, %v2400
    %v3415 = vadd.f32 %v421, %v2401
    %v3416 = vadd.f32 %v422, %v3413
    %v3417 = vadd.f32 %v423, %v3407
    %v3418 = vadd.f32 %v424, %v3409
    %v3419 = vlaneseq
    %v3420 = vshrl.u32 %v3419, 7
    %v3421 = vsub.s32 4, %v3420
    %v3422 = vrot.slane %v491, %v3421
    %v3423 = vadd.f32 %v3414, %v3422
    %v3424 = vadd.f32 %v3415, %v3422
    %v3425 = vadd.f32 %v3416, %v3422
    %v3426 = vadd.f32 %v3417, %v3422
    %v3427 = vadd.f32 %v3418, %v3422
    %v3428 = vsel %vm339, %v3423, 0.0
    %3429 = vadd.xlane.f32.xlu0 %v3428
    %v3430 = vpop.xlane.xlu0 %3429
    %v3431 = vsel %vm339, %v3424, 0.0
    %3432 = vadd.xlane.f32.xlu0 %v3431
    %v3433 = vpop.xlane.xlu0 %3432
    %v3434 = vsel %vm339, %v3425, 0.0
    %3435 = vadd.xlane.f32.xlu0 %v3434
    %v3436 = vpop.xlane.xlu0 %3435
    %v3437 = vsel %vm339, %v3426, 0.0
    %3438 = vadd.xlane.f32.xlu0 %v3437
    %v3439 = vpop.xlane.xlu0 %3438
    %v3440 = vsel %vm352, %v3427, 0.0
    %3441 = vadd.xlane.f32.xlu0 %v3440
    %v3442 = vpop.xlane.xlu0 %3441
    %v3443 = vmul.f32 %v3430, %v356
    %v3444 = vmul.f32 %v3433, %v356
    %v3445 = vmul.f32 %v3436, %v356
    %v3446 = vmul.f32 %v3439, %v356
    %v3447 = vmul.f32 %v3442, %v356
    %v3448 = vsub.f32 %v3423, %v3443
    %v3449 = vsub.f32 %v3424, %v3444
    %v3450 = vsub.f32 %v3425, %v3445
    %v3451 = vsub.f32 %v3426, %v3446
    %v3452 = vsub.f32 %v3427, %v3447
    %v3453 = vmul.f32 %v3448, %v3448
    %v3454 = vmul.f32 %v3449, %v3449
    %v3455 = vmul.f32 %v3450, %v3450
    %v3456 = vmul.f32 %v3451, %v3451
    %v3457 = vmul.f32 %v3452, %v3452
    %v3458 = vsel %vm339, %v3453, 0.0
    %3459 = vadd.xlane.f32.xlu0 %v3458
    %v3460 = vpop.xlane.xlu0 %3459
    %v3461 = vsel %vm339, %v3454, 0.0
    %3462 = vadd.xlane.f32.xlu0 %v3461
    %v3463 = vpop.xlane.xlu0 %3462
    %v3464 = vsel %vm339, %v3455, 0.0
    %3465 = vadd.xlane.f32.xlu0 %v3464
    %v3466 = vpop.xlane.xlu0 %3465
    %v3467 = vsel %vm339, %v3456, 0.0
    %3468 = vadd.xlane.f32.xlu0 %v3467
    %v3469 = vpop.xlane.xlu0 %3468
    %v3470 = vsel %vm352, %v3457, 0.0
    %3471 = vadd.xlane.f32.xlu0 %v3470
    %v3472 = vpop.xlane.xlu0 %3471
    %v3473 = vmul.f32 %v3460, %v356
    %v3474 = vmul.f32 %v3463, %v356
    %v3475 = vmul.f32 %v3466, %v356
    %v3476 = vmul.f32 %v3469, %v356
    %v3477 = vmul.f32 %v3472, %v356
    %v3478 = vadd.f32 %v3473, 1e-05
    %v3479 = vadd.f32 %v3474, 1e-05
    %v3480 = vadd.f32 %v3475, 1e-05
    %v3481 = vadd.f32 %v3476, 1e-05
    %v3482 = vadd.f32 %v3477, 1e-05
    %v3483 = vrsqrt.pop %v3478
    %v3484 = vrsqrt.pop %v3479
    %v3485 = vrsqrt.pop %v3480
    %v3486 = vrsqrt.pop %v3481
    %v3487 = vrsqrt.pop %v3482
    %v3488 = vmul.f32 %v3448, %v3483
    %v3489 = vmul.f32 %v3449, %v3484
    %v3490 = vmul.f32 %v3450, %v3485
    %v3491 = vmul.f32 %v3451, %v3486
    %v3492 = vmul.f32 %v3452, %v3487
    %v3493 = vlaneseq
    %v3494 = vshrl.u32 %v3493, 7
    %v3495 = vsub.s32 2, %v3494
    %v3496 = vrot.slane %v491, %v3495
    %v3497 = vmul.f32 %v3488, %v3496
    %v3498 = vmul.f32 %v3489, %v3496
    %v3499 = vmul.f32 %v3490, %v3496
    %v3500 = vmul.f32 %v3491, %v3496
    %v3501 = vmul.f32 %v3492, %v3496
    %v3502 = vlaneseq
    %v3503 = vshrl.u32 %v3502, 7
    %v3504 = vsub.s32 3, %v3503
    %v3505 = vrot.slane %v491, %v3504
    %v3506 = vadd.f32 %v3497, %v3505
    %v3507 = vadd.f32 %v3498, %v3505
    %v3508 = vadd.f32 %v3499, %v3505
    %v3509 = vadd.f32 %v3500, %v3505
    %v3510 = vadd.f32 %v3501, %v3505
    %v3511 = vpack.c.bf16 %v3507, %v3506
    %v3512 = vpack.c.bf16 %v3509, %v3508
    %v3513 = vpack.c.bf16 %v3510, %v3510
    %v3514 = vlaneseq
    %v3515 = vshrl.u32 %v3514, 7
    %v3516 = vsub.s32 6, %v3515
    %v3517 = vrot.slane %v491, %v3516
    %v3522 = vunpack.c.l.b16 %v492
    %v3523 = vunpack.c.l.b16 %v493
    %v3524 = vunpack.c.l.b16 %v494
    %v3525 = vunpack.c.l.b16 %v495
    %v3526 = vpack.c.b16 %v3523, %v3522
    %v3527 = vpack.c.b16 %v3525, %v3524
    %v3531 = vsel %vm339, %v3511, 0
    %v3534 = vsel %vm339, %v3512, 0
    %v3537 = vsel %vm339, %v3513, 0
    %3539 = vmatprep.subr.bf16.mxu0 0
    %3540 = vmatpush1.bf16.msra.mxu0 %v3526
    %3541 = vmatprep.subr.bf16.mxu0 0
    %3542 = vmatpush1.bf16.msra.mxu0 %v3527
    %3543 = vmatprep.subr.bf16.mxu0 0
    %3544 = vmatpush1.bf16.msra.mxu0 0
    %3545 = vmatprep.subr.bf16.mxu0 0
    %3546 = vmatpush1.bf16.msra.mxu0 0
    %3547 = vmatprep.subr.bf16.mxu0 0
    %3548 = vmatpush1.bf16.msra.mxu0 0
    %3549 = vmatprep.subr.bf16.mxu0 0
    %3550 = vmatpush1.bf16.msra.mxu0 0
    %3551 = vmatprep.subr.bf16.mxu0 0
    %3552 = vmatpush1.bf16.msra.mxu0 0
    %3553 = vmatprep.subr.bf16.mxu0 0
    %3554 = vmatpush1.bf16.msra.mxu0 0
    %3555 = vmatprep.subr.bf16.mxu0 0
    %3556 = vmatpush1.bf16.msra.mxu0 0
    %3557 = vmatprep.subr.bf16.mxu0 0
    %3558 = vmatpush1.bf16.msra.mxu0 0
    %3559 = vmatprep.subr.bf16.mxu0 0
    %3560 = vmatpush1.bf16.msra.mxu0 0
    %3561 = vmatprep.subr.bf16.mxu0 0
    %3562 = vmatpush1.bf16.msra.mxu0 0
    %3563 = vmatprep.subr.bf16.mxu0 0
    %3564 = vmatpush1.bf16.msra.mxu0 0
    %3565 = vmatprep.subr.bf16.mxu0 0
    %3566 = vmatpush1.bf16.msra.mxu0 0
    %3567 = vmatprep.subr.bf16.mxu0 0
    %3568 = vmatpush1.bf16.msra.mxu0 0
    %3569 = vmatprep.subr.bf16.mxu0 0
    %3570 = vmatpush1.bf16.msra.mxu0 0
    %3571 = vmatprep.mubr.bf16.mxu0 0
    %3572 = vmatmul.mubr.bf16.gmra.mrb[0].mxu0 %v3531
    %v3573 = vpop.f32.mrb[0].mxu0
    %v3574 = vadd.f32 %v3517, %v3573
    %v3575 = vpop.f32.mrb[0].mxu0
    %v3576 = vpop.f32.mrb[0].mxu0
    %v3577 = vadd.f32 %v3517, %v3576
    %v3578 = vpop.f32.mrb[0].mxu0
    %3579 = vmatprep.mubr.bf16.mxu0 0
    %3580 = vmatmul.mubr.bf16.gmra.mrb[0].mxu0 %v3534
    %v3581 = vpop.f32.mrb[0].mxu0
    %v3582 = vadd.f32 %v3517, %v3581
    %v3583 = vpop.f32.mrb[0].mxu0
    %v3584 = vpop.f32.mrb[0].mxu0
    %v3585 = vadd.f32 %v3517, %v3584
    %v3586 = vpop.f32.mrb[0].mxu0
    %3587 = vmatprep.mubr.bf16.mxu0 0
    %3588 = vmatmul.mubr.bf16.gmra.mrb[0].mxu0 %v3537
    %v3589 = vpop.f32.mrb[0].mxu0
    %v3590 = vadd.f32 %v3517, %v3589
    %v3591 = vpop.f32.mrb[0].mxu0
    %v3592 = vpop.f32.mrb[0].mxu0
    %v3593 = vpop.f32.mrb[0].mxu0
    %3594 = vdwg.mxu0
    %v3595 = vmul.f32 %v3574, 1.702
    %v3596 = vmul.f32 %v3577, 1.702
    %v3597 = vmul.f32 %v3582, 1.702
    %v3598 = vmul.f32 %v3585, 1.702
    %v3599 = vmul.f32 %v3590, 1.702
    %v3600 = vxor.u32 %v3595, 2147483648
    %v3601 = vxor.u32 %v3596, 2147483648
    %v3602 = vxor.u32 %v3597, 2147483648
    %v3603 = vxor.u32 %v3598, 2147483648
    %v3604 = vxor.u32 %v3599, 2147483648
    %v3605 = vmul.f32 %v3600, 1.442695
    %v3606 = vpow.pop %v3605
    %v3607 = vmul.f32 %v3601, 1.442695
    %v3608 = vpow.pop %v3607
    %v3609 = vmul.f32 %v3602, 1.442695
    %v3610 = vpow.pop %v3609
    %v3611 = vmul.f32 %v3603, 1.442695
    %v3612 = vpow.pop %v3611
    %v3613 = vmul.f32 %v3604, 1.442695
    %v3614 = vpow.pop %v3613
    %v3615 = vadd.f32 %v3606, 1.0
    %v3616 = vadd.f32 %v3608, 1.0
    %v3617 = vadd.f32 %v3610, 1.0
    %v3618 = vadd.f32 %v3612, 1.0
    %v3619 = vadd.f32 %v3614, 1.0
    %v3620 = vrcp.pop %v3615
    %v3621 = vmul.f32 1.0, %v3620
    %v3622 = vrcp.pop %v3616
    %v3623 = vmul.f32 1.0, %v3622
    %v3624 = vrcp.pop %v3617
    %v3625 = vmul.f32 1.0, %v3624
    %v3626 = vrcp.pop %v3618
    %v3627 = vmul.f32 1.0, %v3626
    %v3628 = vrcp.pop %v3619
    %v3629 = vmul.f32 1.0, %v3628
    %v3630 = vmul.f32 %v3574, %v3621
    %v3631 = vmul.f32 %v3577, %v3623
    %v3632 = vmul.f32 %v3582, %v3625
    %v3633 = vmul.f32 %v3585, %v3627
    %v3634 = vmul.f32 %v3590, %v3629
    %v3635 = vpack.c.bf16 %v3631, %v3630
    %v3636 = vpack.c.bf16 %v3633, %v3632
    %v3637 = vpack.c.bf16 %v3634, %v3634
    %v3638 = vlaneseq
    %v3639 = vshrl.u32 %v3638, 7
    %v3640 = vsub.s32 5, %v3639
    %v3641 = vrot.slane %v491, %v3640
    %v3646 = vunpack.c.l.b16 %v496
    %v3647 = vunpack.c.l.b16 %v497
    %v3648 = vunpack.c.l.b16 %v498
    %v3649 = vunpack.c.l.b16 %v499
    %v3650 = vpack.c.b16 %v3647, %v3646
    %v3651 = vpack.c.b16 %v3649, %v3648
    %v3653 = vsel %vm271, %v3635, 0
    %v3656 = vsel %vm271, %v3636, 0
    %v3659 = vsel %vm271, %v3637, 0
    %v3662 = vsel %vm271, %v3650, 0
    %v3665 = vsel %vm271, %v3651, 0
    %3667 = vmatprep.subr.bf16.mxu0 0
    %3668 = vmatpush1.bf16.xpose.msra.mxu0 %v3662
    %3669 = vmatprep.subr.bf16.mxu0 0
    %3670 = vmatpush1.bf16.xpose.msra.mxu0 %v3665
    %3671 = vmatprep.subr.bf16.mxu0 0
    %3672 = vmatpush1.bf16.xpose.msra.mxu0 0
    %3673 = vmatprep.subr.bf16.mxu0 0
    %3674 = vmatpush1.bf16.xpose.msra.mxu0 0
    %3675 = vmatprep.subr.bf16.mxu0 0
    %3676 = vmatpush1.bf16.xpose.msra.mxu0 0
    %3677 = vmatprep.subr.bf16.mxu0 0
    %3678 = vmatpush1.bf16.xpose.msra.mxu0 0
    %3679 = vmatprep.subr.bf16.mxu0 0
    %3680 = vmatpush1.bf16.xpose.msra.mxu0 0
    %3681 = vmatprep.subr.bf16.mxu0 0
    %3682 = vmatpush1.bf16.xpose.msra.mxu0 0
    %3683 = vmatprep.subr.bf16.mxu0 0
    %3684 = vmatpush1.bf16.xpose.msra.mxu0 0
    %3685 = vmatprep.subr.bf16.mxu0 0
    %3686 = vmatpush1.bf16.xpose.msra.mxu0 0
    %3687 = vmatprep.subr.bf16.mxu0 0
    %3688 = vmatpush1.bf16.xpose.msra.mxu0 0
    %3689 = vmatprep.subr.bf16.mxu0 0
    %3690 = vmatpush1.bf16.xpose.msra.mxu0 0
    %3691 = vmatprep.subr.bf16.mxu0 0
    %3692 = vmatpush1.bf16.xpose.msra.mxu0 0
    %3693 = vmatprep.subr.bf16.mxu0 0
    %3694 = vmatpush1.bf16.xpose.msra.mxu0 0
    %3695 = vmatprep.subr.bf16.mxu0 0
    %3696 = vmatpush1.bf16.xpose.msra.mxu0 0
    %3697 = vmatprep.subr.bf16.mxu0 0
    %3698 = vmatpush1.bf16.xpose.msra.mxu0 0
    %3699 = vmatprep.mubr.bf16.mxu0 0
    %3700 = vmatmul.mubr.bf16.gmra.mrb[0].mxu0 %v3653
    %v3701 = vpop.f32.mrb[0].mxu0
    %v3702 = vadd.f32 %v3641, %v3701
    %v3703 = vpop.f32.mrb[0].mxu0
    %v3704 = vpop.f32.mrb[0].mxu0
    %v3705 = vadd.f32 %v3641, %v3704
    %v3706 = vpop.f32.mrb[0].mxu0
    %3707 = vmatprep.mubr.bf16.mxu0 0
    %3708 = vmatmul.mubr.bf16.gmra.mrb[0].mxu0 %v3656
    %v3709 = vpop.f32.mrb[0].mxu0
    %v3710 = vadd.f32 %v3641, %v3709
    %v3711 = vpop.f32.mrb[0].mxu0
    %v3712 = vpop.f32.mrb[0].mxu0
    %v3713 = vadd.f32 %v3641, %v3712
    %v3714 = vpop.f32.mrb[0].mxu0
    %3715 = vmatprep.mubr.bf16.mxu0 0
    %3716 = vmatmul.mubr.bf16.gmra.mrb[0].mxu0 %v3659
    %v3717 = vpop.f32.mrb[0].mxu0
    %v3718 = vadd.f32 %v3641, %v3717
    %v3719 = vpop.f32.mrb[0].mxu0
    %v3720 = vpop.f32.mrb[0].mxu0
    %v3721 = vpop.f32.mrb[0].mxu0
    %3722 = vdwg.mxu0
    %v3723 = vadd.f32 %v3423, %v3702
    %v3724 = vadd.f32 %v3424, %v3705
    %v3725 = vadd.f32 %v3425, %v3710
    %v3726 = vadd.f32 %v3426, %v3713
    %v3727 = vadd.f32 %v3427, %v3718
    %s3728 = scalar_lea.vmem [#allocation10], 256
    %v3729 = vld [vmem:[%s3728] sm:$0xf]
    %v3730 = vld [vmem:[%s3728 + $0x4] sm:$0xf]
    %v3731 = vld [vmem:[%s3728 + $0x8] sm:$0xf]
    %v3732 = vld [vmem:[%s3728 + $0xc] sm:$0xf]
    %v3733 = vld [vmem:[%s3728 + $0x10] sm:$0xf]
    %v3734 = vld [vmem:[%s3728 + $0x14] sm:$0xf]
    %v3735 = vld [vmem:[%s3728 + $0x18] sm:$0xf]
    %v3736 = vld [vmem:[%s3728 + $0x1c] sm:$0xf]
    %v3737 = vld [vmem:[%s3728 + $0x20] sm:$0xf]
    %v3738 = vld [vmem:[%s3728 + $0x24] sm:$0xf]
    %v3739 = vld [vmem:[%s3728 + $0x28] sm:$0xf]
    %v3740 = vld [vmem:[%s3728 + $0x2c] sm:$0xf]
    %v3741 = vld [vmem:[%s3728 + $0x30] sm:$0xf]
    %v3742 = vld [vmem:[%s3728 + $0x34] sm:$0xf]
    %v3743 = vld [vmem:[%s3728 + $0x38] sm:$0xf]
    %v3744 = vld [vmem:[%s3728 + $0x3c] sm:$0xf]
    %v3745 = vld [vmem:[%s3728 + $0x40] sm:$0xf]
    %v3746 = vld [vmem:[%s3728 + $0x44] sm:$0xf]
    %v3747 = vld [vmem:[%s3728 + $0x48] sm:$0xf]
    %v3748 = vld [vmem:[%s3728 + $0x4c] sm:$0xf]
    %v3749 = vld [vmem:[%s3728 + $0x50] sm:$0xf]
    %v3750 = vld [vmem:[%s3728 + $0x54] sm:$0xf]
    %v3751 = vld [vmem:[%s3728 + $0x58] sm:$0xf]
    %v3752 = vld [vmem:[%s3728 + $0x5c] sm:$0xf]
    %v3753 = vld [vmem:[%s3728 + $0x60] sm:$0xf]
    %v3754 = vld [vmem:[%s3728 + $0x64] sm:$0xf]
    %v3755 = vld [vmem:[%s3728 + $0x68] sm:$0xf]
    %v3756 = vld [vmem:[%s3728 + $0x6c] sm:$0xf]
    %v3757 = vld [vmem:[%s3728 + $0x70] sm:$0xf]
    %v3758 = vld [vmem:[%s3728 + $0x74] sm:$0xf]
    %v3759 = vld [vmem:[%s3728 + $0x78] sm:$0xf]
    %v3760 = vld [vmem:[%s3728 + $0x7c] sm:$0xf]
    %v3761 = vld [vmem:[%s3728 + $0x80] sm:$0xf]
    %v3762 = vld [vmem:[%s3728 + $0x84] sm:$0xf]
    %v3763 = vld [vmem:[%s3728 + $0x88] sm:$0xf]
    %v3764 = vld [vmem:[%s3728 + $0x8c] sm:$0xf]
    %v3765 = vld [vmem:[%s3728 + $0x90] sm:$0xf]
    %v3766 = vld [vmem:[%s3728 + $0x94] sm:$0xf]
    %v3767 = vld [vmem:[%s3728 + $0x98] sm:$0xf]
    %v3768 = vld [vmem:[%s3728 + $0x9c] sm:$0xf]
    %v3769 = vld [vmem:[%s3728 + $0xa0] sm:$0xf]
    %v3770 = vld [vmem:[%s3728 + $0xa4] sm:$0xf]
    %v3771 = vld [vmem:[%s3728 + $0xa8] sm:$0xf]
    %v3772 = vld [vmem:[%s3728 + $0xac] sm:$0xf]
    %v3773 = vld [vmem:[%s3728 + $0xb0] sm:$0xf]
    %v3774 = vld [vmem:[%s3728 + $0xb4] sm:$0xf]
    %v3775 = vld [vmem:[%s3728 + $0xb8] sm:$0xf]
    %v3776 = vld [vmem:[%s3728 + $0xbc] sm:$0xf]
    %v3777 = vld [vmem:[%s3728 + $0xc0] sm:$0xf]
    %v3778 = vld [vmem:[%s3728 + $0xc4] sm:$0xf]
    %v3779 = vld [vmem:[%s3728 + $0xc8] sm:$0xf]
    %v3780 = vld [vmem:[%s3728 + $0xcc] sm:$0xf]
    %v3781 = vld [vmem:[%s3728 + $0xd0] sm:$0xf]
    %v3782 = vld [vmem:[%s3728 + $0xd4] sm:$0xf]
    %v3783 = vld [vmem:[%s3728 + $0xd8] sm:$0xf]
    %v3784 = vld [vmem:[%s3728 + $0xdc] sm:$0xf]
    %v3785 = vld [vmem:[%s3728 + $0xe0] sm:$0xf]
    %v3786 = vld [vmem:[%s3728 + $0xe4] sm:$0xf]
    %v3787 = vld [vmem:[%s3728 + $0xe8] sm:$0xf]
    %v3788 = vld [vmem:[%s3728 + $0xec] sm:$0xf]
    %v3789 = vld [vmem:[%s3728 + $0xf0] sm:$0xf]
    %v3790 = vld [vmem:[%s3728 + $0xf4] sm:$0xf]
    %v3791 = vld [vmem:[%s3728 + $0xf8] sm:$0xf]
    %v3792 = vld [vmem:[%s3728 + $0xfc] sm:$0xf]
    %s3793 = scalar_lea.vmem [#allocation11], 16
    %v3794 = vld [vmem:[%s3793] sm:$0xff]
    %v3795 = vld [vmem:[%s3793 + $0x8] sm:$0xf]
    %s3796 = scalar_lea.vmem [#allocation13], 8
    %v3797 = vld [vmem:[%s3796] sm:$0xff]
    %s3798 = scalar_lea.vmem [#allocation14], 32
    %v3799 = vld [vmem:[%s3798] sm:$0xf]
    %v3800 = vld [vmem:[%s3798 + $0x4] sm:$0xf]
    %v3801 = vld [vmem:[%s3798 + $0x8] sm:$0xf]
    %v3802 = vld [vmem:[%s3798 + $0xc] sm:$0xf]
    %v3803 = vld [vmem:[%s3798 + $0x10] sm:$0xf]
    %v3804 = vld [vmem:[%s3798 + $0x14] sm:$0xf]
    %v3805 = vld [vmem:[%s3798 + $0x18] sm:$0xf]
    %v3806 = vld [vmem:[%s3798 + $0x1c] sm:$0xf]
    %v3807 = vsel %vm339, %v3723, 0.0
    %3808 = vadd.xlane.f32.xlu0 %v3807
    %v3809 = vpop.xlane.xlu0 %3808
    %v3810 = vsel %vm339, %v3724, 0.0
    %3811 = vadd.xlane.f32.xlu0 %v3810
    %v3812 = vpop.xlane.xlu0 %3811
    %v3813 = vsel %vm339, %v3725, 0.0
    %3814 = vadd.xlane.f32.xlu0 %v3813
    %v3815 = vpop.xlane.xlu0 %3814
    %v3816 = vsel %vm339, %v3726, 0.0
    %3817 = vadd.xlane.f32.xlu0 %v3816
    %v3818 = vpop.xlane.xlu0 %3817
    %v3819 = vsel %vm352, %v3727, 0.0
    %3820 = vadd.xlane.f32.xlu0 %v3819
    %v3821 = vpop.xlane.xlu0 %3820
    %v3822 = vmul.f32 %v3809, %v356
    %v3823 = vmul.f32 %v3812, %v356
    %v3824 = vmul.f32 %v3815, %v356
    %v3825 = vmul.f32 %v3818, %v356
    %v3826 = vmul.f32 %v3821, %v356
    %v3827 = vsub.f32 %v3723, %v3822
    %v3828 = vsub.f32 %v3724, %v3823
    %v3829 = vsub.f32 %v3725, %v3824
    %v3830 = vsub.f32 %v3726, %v3825
    %v3831 = vsub.f32 %v3727, %v3826
    %v3832 = vmul.f32 %v3827, %v3827
    %v3833 = vmul.f32 %v3828, %v3828
    %v3834 = vmul.f32 %v3829, %v3829
    %v3835 = vmul.f32 %v3830, %v3830
    %v3836 = vmul.f32 %v3831, %v3831
    %v3837 = vsel %vm339, %v3832, 0.0
    %3838 = vadd.xlane.f32.xlu0 %v3837
    %v3839 = vpop.xlane.xlu0 %3838
    %v3840 = vsel %vm339, %v3833, 0.0
    %3841 = vadd.xlane.f32.xlu0 %v3840
    %v3842 = vpop.xlane.xlu0 %3841
    %v3843 = vsel %vm339, %v3834, 0.0
    %3844 = vadd.xlane.f32.xlu0 %v3843
    %v3845 = vpop.xlane.xlu0 %3844
    %v3846 = vsel %vm339, %v3835, 0.0
    %3847 = vadd.xlane.f32.xlu0 %v3846
    %v3848 = vpop.xlane.xlu0 %3847
    %v3849 = vsel %vm352, %v3836, 0.0
    %3850 = vadd.xlane.f32.xlu0 %v3849
    %v3851 = vpop.xlane.xlu0 %3850
    %v3852 = vmul.f32 %v3839, %v356
    %v3853 = vmul.f32 %v3842, %v356
    %v3854 = vmul.f32 %v3845, %v356
    %v3855 = vmul.f32 %v3848, %v356
    %v3856 = vmul.f32 %v3851, %v356
    %v3857 = vadd.f32 %v3852, 1e-05
    %v3858 = vadd.f32 %v3853, 1e-05
    %v3859 = vadd.f32 %v3854, 1e-05
    %v3860 = vadd.f32 %v3855, 1e-05
    %v3861 = vadd.f32 %v3856, 1e-05
    %v3862 = vrsqrt.pop %v3857
    %v3863 = vrsqrt.pop %v3858
    %v3864 = vrsqrt.pop %v3859
    %v3865 = vrsqrt.pop %v3860
    %v3866 = vrsqrt.pop %v3861
    %v3867 = vmul.f32 %v3827, %v3862
    %v3868 = vmul.f32 %v3828, %v3863
    %v3869 = vmul.f32 %v3829, %v3864
    %v3870 = vmul.f32 %v3830, %v3865
    %v3871 = vmul.f32 %v3831, %v3866
    %v3872 = vlaneseq
    %v3873 = vshrl.u32 %v3872, 7
    %v3874 = vsub.s32 0, %v3873
    %v3875 = vrot.slane %v3797, %v3874
    %v3876 = vmul.f32 %v3867, %v3875
    %v3877 = vmul.f32 %v3868, %v3875
    %v3878 = vmul.f32 %v3869, %v3875
    %v3879 = vmul.f32 %v3870, %v3875
    %v3880 = vmul.f32 %v3871, %v3875
    %v3881 = vlaneseq
    %v3882 = vshrl.u32 %v3881, 7
    %v3883 = vsub.s32 1, %v3882
    %v3884 = vrot.slane %v3797, %v3883
    %v3885 = vadd.f32 %v3876, %v3884
    %v3886 = vadd.f32 %v3877, %v3884
    %v3887 = vadd.f32 %v3878, %v3884
    %v3888 = vadd.f32 %v3879, %v3884
    %v3889 = vadd.f32 %v3880, %v3884
    %v3890 = vpack.c.bf16 %v3886, %v3885
    %v3891 = vpack.c.bf16 %v3888, %v3887
    %v3892 = vpack.c.bf16 %v3889, %v3889
    %v3893 = vlaneseq
    %v3894 = vshrl.u32 %v3893, 7
    %v3895 = vsub.s32 0, %v3894
    %v3896 = vrot.slane %v3794, %v3895
    %v3901 = vunpack.c.l.b16 %v3729
    %v3902 = vunpack.c.l.b16 %v3730
    %v3903 = vunpack.c.l.b16 %v3731
    %v3904 = vunpack.c.l.b16 %v3732
    %v3905 = vpack.c.b16 %v3902, %v3901
    %v3906 = vpack.c.b16 %v3904, %v3903
    %v3910 = vsel %vm339, %v3890, 0
    %v3913 = vsel %vm339, %v3891, 0
    %v3916 = vsel %vm339, %v3892, 0
    %3918 = vmatprep.subr.bf16.mxu0 0
    %3919 = vmatpush1.bf16.msra.mxu0 %v3905
    %3920 = vmatprep.subr.bf16.mxu0 0
    %3921 = vmatpush1.bf16.msra.mxu0 %v3906
    %3922 = vmatprep.subr.bf16.mxu0 0
    %3923 = vmatpush1.bf16.msra.mxu0 0
    %3924 = vmatprep.subr.bf16.mxu0 0
    %3925 = vmatpush1.bf16.msra.mxu0 0
    %3926 = vmatprep.subr.bf16.mxu0 0
    %3927 = vmatpush1.bf16.msra.mxu0 0
    %3928 = vmatprep.subr.bf16.mxu0 0
    %3929 = vmatpush1.bf16.msra.mxu0 0
    %3930 = vmatprep.subr.bf16.mxu0 0
    %3931 = vmatpush1.bf16.msra.mxu0 0
    %3932 = vmatprep.subr.bf16.mxu0 0
    %3933 = vmatpush1.bf16.msra.mxu0 0
    %3934 = vmatprep.subr.bf16.mxu0 0
    %3935 = vmatpush1.bf16.msra.mxu0 0
    %3936 = vmatprep.subr.bf16.mxu0 0
    %3937 = vmatpush1.bf16.msra.mxu0 0
    %3938 = vmatprep.subr.bf16.mxu0 0
    %3939 = vmatpush1.bf16.msra.mxu0 0
    %3940 = vmatprep.subr.bf16.mxu0 0
    %3941 = vmatpush1.bf16.msra.mxu0 0
    %3942 = vmatprep.subr.bf16.mxu0 0
    %3943 = vmatpush1.bf16.msra.mxu0 0
    %3944 = vmatprep.subr.bf16.mxu0 0
    %3945 = vmatpush1.bf16.msra.mxu0 0
    %3946 = vmatprep.subr.bf16.mxu0 0
    %3947 = vmatpush1.bf16.msra.mxu0 0
    %3948 = vmatprep.subr.bf16.mxu0 0
    %3949 = vmatpush1.bf16.msra.mxu0 0
    %3950 = vmatprep.mubr.bf16.mxu0 0
    %3951 = vmatmul.mubr.bf16.gmra.mrb[0].mxu0 %v3910
    %v3952 = vpop.f32.mrb[0].mxu0
    %v3953 = vadd.f32 %v3896, %v3952
    %v3954 = vpop.f32.mrb[0].mxu0
    %v3955 = vpop.f32.mrb[0].mxu0
    %v3956 = vadd.f32 %v3896, %v3955
    %v3957 = vpop.f32.mrb[0].mxu0
    %3958 = vmatprep.mubr.bf16.mxu0 0
    %3959 = vmatmul.mubr.bf16.gmra.mrb[0].mxu0 %v3913
    %v3960 = vpop.f32.mrb[0].mxu0
    %v3961 = vadd.f32 %v3896, %v3960
    %v3962 = vpop.f32.mrb[0].mxu0
    %v3963 = vpop.f32.mrb[0].mxu0
    %v3964 = vadd.f32 %v3896, %v3963
    %v3965 = vpop.f32.mrb[0].mxu0
    %3966 = vmatprep.mubr.bf16.mxu0 0
    %3967 = vmatmul.mubr.bf16.gmra.mrb[0].mxu0 %v3916
    %v3968 = vpop.f32.mrb[0].mxu0
    %v3969 = vadd.f32 %v3896, %v3968
    %v3970 = vpop.f32.mrb[0].mxu0
    %v3971 = vpop.f32.mrb[0].mxu0
    %v3972 = vpop.f32.mrb[0].mxu0
    %3973 = vdwg.mxu0
    %v3974 = vlaneseq
    %v3975 = vshrl.u32 %v3974, 7
    %v3976 = vsub.s32 4, %v3975
    %v3977 = vrot.slane %v3794, %v3976
    %v3982 = vunpack.c.l.b16 %v3745
    %v3983 = vunpack.c.l.b16 %v3746
    %v3984 = vunpack.c.l.b16 %v3747
    %v3985 = vunpack.c.l.b16 %v3748
    %v3986 = vpack.c.b16 %v3983, %v3982
    %v3987 = vpack.c.b16 %v3985, %v3984
    %3990 = vmatprep.subr.bf16.mxu0 0
    %3991 = vmatpush1.bf16.msra.mxu0 %v3986
    %3992 = vmatprep.subr.bf16.mxu0 0
    %3993 = vmatpush1.bf16.msra.mxu0 %v3987
    %3994 = vmatprep.subr.bf16.mxu0 0
    %3995 = vmatpush1.bf16.msra.mxu0 0
    %3996 = vmatprep.subr.bf16.mxu0 0
    %3997 = vmatpush1.bf16.msra.mxu0 0
    %3998 = vmatprep.subr.bf16.mxu0 0
    %3999 = vmatpush1.bf16.msra.mxu0 0
    %4000 = vmatprep.subr.bf16.mxu0 0
    %4001 = vmatpush1.bf16.msra.mxu0 0
    %4002 = vmatprep.subr.bf16.mxu0 0
    %4003 = vmatpush1.bf16.msra.mxu0 0
    %4004 = vmatprep.subr.bf16.mxu0 0
    %4005 = vmatpush1.bf16.msra.mxu0 0
    %4006 = vmatprep.subr.bf16.mxu0 0
    %4007 = vmatpush1.bf16.msra.mxu0 0
    %4008 = vmatprep.subr.bf16.mxu0 0
    %4009 = vmatpush1.bf16.msra.mxu0 0
    %4010 = vmatprep.subr.bf16.mxu0 0
    %4011 = vmatpush1.bf16.msra.mxu0 0
    %4012 = vmatprep.subr.bf16.mxu0 0
    %4013 = vmatpush1.bf16.msra.mxu0 0
    %4014 = vmatprep.subr.bf16.mxu0 0
    %4015 = vmatpush1.bf16.msra.mxu0 0
    %4016 = vmatprep.subr.bf16.mxu0 0
    %4017 = vmatpush1.bf16.msra.mxu0 0
    %4018 = vmatprep.subr.bf16.mxu0 0
    %4019 = vmatpush1.bf16.msra.mxu0 0
    %4020 = vmatprep.subr.bf16.mxu0 0
    %4021 = vmatpush1.bf16.msra.mxu0 0
    %4022 = vmatprep.mubr.bf16.mxu0 0
    %4023 = vmatmul.mubr.bf16.gmra.mrb[0].mxu0 %v3910
    %v4024 = vpop.f32.mrb[0].mxu0
    %v4025 = vadd.f32 %v3977, %v4024
    %v4026 = vpop.f32.mrb[0].mxu0
    %v4027 = vpop.f32.mrb[0].mxu0
    %v4028 = vadd.f32 %v3977, %v4027
    %v4029 = vpop.f32.mrb[0].mxu0
    %4030 = vmatprep.mubr.bf16.mxu0 0
    %4031 = vmatmul.mubr.bf16.gmra.mrb[0].mxu0 %v3913
    %v4032 = vpop.f32.mrb[0].mxu0
    %v4033 = vadd.f32 %v3977, %v4032
    %v4034 = vpop.f32.mrb[0].mxu0
    %v4035 = vpop.f32.mrb[0].mxu0
    %v4036 = vadd.f32 %v3977, %v4035
    %v4037 = vpop.f32.mrb[0].mxu0
    %4038 = vmatprep.mubr.bf16.mxu0 0
    %4039 = vmatmul.mubr.bf16.gmra.mrb[0].mxu0 %v3916
    %v4040 = vpop.f32.mrb[0].mxu0
    %v4041 = vadd.f32 %v3977, %v4040
    %v4042 = vpop.f32.mrb[0].mxu0
    %v4043 = vpop.f32.mrb[0].mxu0
    %v4044 = vpop.f32.mrb[0].mxu0
    %4045 = vdwg.mxu0
    %v4046 = vlaneseq
    %v4047 = vshrl.u32 %v4046, 7
    %v4048 = vsub.s32 0, %v4047
    %v4049 = vrot.slane %v3795, %v4048
    %v4054 = vunpack.c.l.b16 %v3761
    %v4055 = vunpack.c.l.b16 %v3762
    %v4056 = vunpack.c.l.b16 %v3763
    %v4057 = vunpack.c.l.b16 %v3764
    %v4058 = vpack.c.b16 %v4055, %v4054
    %v4059 = vpack.c.b16 %v4057, %v4056
    %4062 = vmatprep.subr.bf16.mxu0 0
    %4063 = vmatpush1.bf16.msra.mxu0 %v4058
    %4064 = vmatprep.subr.bf16.mxu0 0
    %4065 = vmatpush1.bf16.msra.mxu0 %v4059
    %4066 = vmatprep.subr.bf16.mxu0 0
    %4067 = vmatpush1.bf16.msra.mxu0 0
    %4068 = vmatprep.subr.bf16.mxu0 0
    %4069 = vmatpush1.bf16.msra.mxu0 0
    %4070 = vmatprep.subr.bf16.mxu0 0
    %4071 = vmatpush1.bf16.msra.mxu0 0
    %4072 = vmatprep.subr.bf16.mxu0 0
    %4073 = vmatpush1.bf16.msra.mxu0 0
    %4074 = vmatprep.subr.bf16.mxu0 0
    %4075 = vmatpush1.bf16.msra.mxu0 0
    %4076 = vmatprep.subr.bf16.mxu0 0
    %4077 = vmatpush1.bf16.msra.mxu0 0
    %4078 = vmatprep.subr.bf16.mxu0 0
    %4079 = vmatpush1.bf16.msra.mxu0 0
    %4080 = vmatprep.subr.bf16.mxu0 0
    %4081 = vmatpush1.bf16.msra.mxu0 0
    %4082 = vmatprep.subr.bf16.mxu0 0
    %4083 = vmatpush1.bf16.msra.mxu0 0
    %4084 = vmatprep.subr.bf16.mxu0 0
    %4085 = vmatpush1.bf16.msra.mxu0 0
    %4086 = vmatprep.subr.bf16.mxu0 0
    %4087 = vmatpush1.bf16.msra.mxu0 0
    %4088 = vmatprep.subr.bf16.mxu0 0
    %4089 = vmatpush1.bf16.msra.mxu0 0
    %4090 = vmatprep.subr.bf16.mxu0 0
    %4091 = vmatpush1.bf16.msra.mxu0 0
    %4092 = vmatprep.subr.bf16.mxu0 0
    %4093 = vmatpush1.bf16.msra.mxu0 0
    %4094 = vmatprep.mubr.bf16.mxu0 0
    %4095 = vmatmul.mubr.bf16.gmra.mrb[0].mxu0 %v3910
    %v4096 = vpop.f32.mrb[0].mxu0
    %v4097 = vadd.f32 %v4049, %v4096
    %v4098 = vpop.f32.mrb[0].mxu0
    %v4099 = vpop.f32.mrb[0].mxu0
    %v4100 = vadd.f32 %v4049, %v4099
    %v4101 = vpop.f32.mrb[0].mxu0
    %4102 = vmatprep.mubr.bf16.mxu0 0
    %4103 = vmatmul.mubr.bf16.gmra.mrb[0].mxu0 %v3913
    %v4104 = vpop.f32.mrb[0].mxu0
    %v4105 = vadd.f32 %v4049, %v4104
    %v4106 = vpop.f32.mrb[0].mxu0
    %v4107 = vpop.f32.mrb[0].mxu0
    %v4108 = vadd.f32 %v4049, %v4107
    %v4109 = vpop.f32.mrb[0].mxu0
    %4110 = vmatprep.mubr.bf16.mxu0 0
    %4111 = vmatmul.mubr.bf16.gmra.mrb[0].mxu0 %v3916
    %v4112 = vpop.f32.mrb[0].mxu0
    %v4113 = vadd.f32 %v4049, %v4112
    %v4114 = vpop.f32.mrb[0].mxu0
    %v4115 = vpop.f32.mrb[0].mxu0
    %v4116 = vpop.f32.mrb[0].mxu0
    %4117 = vdwg.mxu0
    %v4118 = vpack.c.bf16 %v3956, %v3953
    %v4119 = vpack.c.bf16 %v3964, %v3961
    %v4120 = vpack.c.bf16 %v3969, %v3969
    %v4121 = vpack.c.bf16 %v4028, %v4025
    %v4122 = vpack.c.bf16 %v4036, %v4033
    %v4123 = vpack.c.bf16 %v4041, %v4041
    %v4124 = vpack.c.bf16 %v4100, %v4097
    %v4125 = vpack.c.bf16 %v4108, %v4105
    %v4126 = vpack.c.bf16 %v4113, %v4113
    %v4127 = vlaneseq
    %v4128 = vshrl.u32 %v4127, 7
    %v4129 = vsub.s32 1, %v4128
    %v4130 = vrot.slane %v3794, %v4129
    %v4135 = vunpack.c.l.b16 %v3733
    %v4136 = vunpack.c.l.b16 %v3734
    %v4137 = vunpack.c.l.b16 %v3735
    %v4138 = vunpack.c.l.b16 %v3736
    %v4139 = vpack.c.b16 %v4136, %v4135
    %v4140 = vpack.c.b16 %v4138, %v4137
    %4143 = vmatprep.subr.bf16.mxu0 0
    %4144 = vmatpush1.bf16.msra.mxu0 %v4139
    %4145 = vmatprep.subr.bf16.mxu0 0
    %4146 = vmatpush1.bf16.msra.mxu0 %v4140
    %4147 = vmatprep.subr.bf16.mxu0 0
    %4148 = vmatpush1.bf16.msra.mxu0 0
    %4149 = vmatprep.subr.bf16.mxu0 0
    %4150 = vmatpush1.bf16.msra.mxu0 0
    %4151 = vmatprep.subr.bf16.mxu0 0
    %4152 = vmatpush1.bf16.msra.mxu0 0
    %4153 = vmatprep.subr.bf16.mxu0 0
    %4154 = vmatpush1.bf16.msra.mxu0 0
    %4155 = vmatprep.subr.bf16.mxu0 0
    %4156 = vmatpush1.bf16.msra.mxu0 0
    %4157 = vmatprep.subr.bf16.mxu0 0
    %4158 = vmatpush1.bf16.msra.mxu0 0
    %4159 = vmatprep.subr.bf16.mxu0 0
    %4160 = vmatpush1.bf16.msra.mxu0 0
    %4161 = vmatprep.subr.bf16.mxu0 0
    %4162 = vmatpush1.bf16.msra.mxu0 0
    %4163 = vmatprep.subr.bf16.mxu0 0
    %4164 = vmatpush1.bf16.msra.mxu0 0
    %4165 = vmatprep.subr.bf16.mxu0 0
    %4166 = vmatpush1.bf16.msra.mxu0 0
    %4167 = vmatprep.subr.bf16.mxu0 0
    %4168 = vmatpush1.bf16.msra.mxu0 0
    %4169 = vmatprep.subr.bf16.mxu0 0
    %4170 = vmatpush1.bf16.msra.mxu0 0
    %4171 = vmatprep.subr.bf16.mxu0 0
    %4172 = vmatpush1.bf16.msra.mxu0 0
    %4173 = vmatprep.subr.bf16.mxu0 0
    %4174 = vmatpush1.bf16.msra.mxu0 0
    %4175 = vmatprep.mubr.bf16.mxu0 0
    %4176 = vmatmul.mubr.bf16.gmra.mrb[0].mxu0 %v3910
    %v4177 = vpop.f32.mrb[0].mxu0
    %v4178 = vadd.f32 %v4130, %v4177
    %v4179 = vpop.f32.mrb[0].mxu0
    %v4180 = vpop.f32.mrb[0].mxu0
    %v4181 = vadd.f32 %v4130, %v4180
    %v4182 = vpop.f32.mrb[0].mxu0
    %4183 = vmatprep.mubr.bf16.mxu0 0
    %4184 = vmatmul.mubr.bf16.gmra.mrb[0].mxu0 %v3913
    %v4185 = vpop.f32.mrb[0].mxu0
    %v4186 = vadd.f32 %v4130, %v4185
    %v4187 = vpop.f32.mrb[0].mxu0
    %v4188 = vpop.f32.mrb[0].mxu0
    %v4189 = vadd.f32 %v4130, %v4188
    %v4190 = vpop.f32.mrb[0].mxu0
    %4191 = vmatprep.mubr.bf16.mxu0 0
    %4192 = vmatmul.mubr.bf16.gmra.mrb[0].mxu0 %v3916
    %v4193 = vpop.f32.mrb[0].mxu0
    %v4194 = vadd.f32 %v4130, %v4193
    %v4195 = vpop.f32.mrb[0].mxu0
    %v4196 = vpop.f32.mrb[0].mxu0
    %v4197 = vpop.f32.mrb[0].mxu0
    %4198 = vdwg.mxu0
    %v4199 = vlaneseq
    %v4200 = vshrl.u32 %v4199, 7
    %v4201 = vsub.s32 5, %v4200
    %v4202 = vrot.slane %v3794, %v4201
    %v4207 = vunpack.c.l.b16 %v3749
    %v4208 = vunpack.c.l.b16 %v3750
    %v4209 = vunpack.c.l.b16 %v3751
    %v4210 = vunpack.c.l.b16 %v3752
    %v4211 = vpack.c.b16 %v4208, %v4207
    %v4212 = vpack.c.b16 %v4210, %v4209
    %4215 = vmatprep.subr.bf16.mxu0 0
    %4216 = vmatpush1.bf16.msra.mxu0 %v4211
    %4217 = vmatprep.subr.bf16.mxu0 0
    %4218 = vmatpush1.bf16.msra.mxu0 %v4212
    %4219 = vmatprep.subr.bf16.mxu0 0
    %4220 = vmatpush1.bf16.msra.mxu0 0
    %4221 = vmatprep.subr.bf16.mxu0 0
    %4222 = vmatpush1.bf16.msra.mxu0 0
    %4223 = vmatprep.subr.bf16.mxu0 0
    %4224 = vmatpush1.bf16.msra.mxu0 0
    %4225 = vmatprep.subr.bf16.mxu0 0
    %4226 = vmatpush1.bf16.msra.mxu0 0
    %4227 = vmatprep.subr.bf16.mxu0 0
    %4228 = vmatpush1.bf16.msra.mxu0 0
    %4229 = vmatprep.subr.bf16.mxu0 0
    %4230 = vmatpush1.bf16.msra.mxu0 0
    %4231 = vmatprep.subr.bf16.mxu0 0
    %4232 = vmatpush1.bf16.msra.mxu0 0
    %4233 = vmatprep.subr.bf16.mxu0 0
    %4234 = vmatpush1.bf16.msra.mxu0 0
    %4235 = vmatprep.subr.bf16.mxu0 0
    %4236 = vmatpush1.bf16.msra.mxu0 0
    %4237 = vmatprep.subr.bf16.mxu0 0
    %4238 = vmatpush1.bf16.msra.mxu0 0
    %4239 = vmatprep.subr.bf16.mxu0 0
    %4240 = vmatpush1.bf16.msra.mxu0 0
    %4241 = vmatprep.subr.bf16.mxu0 0
    %4242 = vmatpush1.bf16.msra.mxu0 0
    %4243 = vmatprep.subr.bf16.mxu0 0
    %4244 = vmatpush1.bf16.msra.mxu0 0
    %4245 = vmatprep.subr.bf16.mxu0 0
    %4246 = vmatpush1.bf16.msra.mxu0 0
    %4247 = vmatprep.mubr.bf16.mxu0 0
    %4248 = vmatmul.mubr.bf16.gmra.mrb[0].mxu0 %v3910
    %v4249 = vpop.f32.mrb[0].mxu0
    %v4250 = vadd.f32 %v4202, %v4249
    %v4251 = vpop.f32.mrb[0].mxu0
    %v4252 = vpop.f32.mrb[0].mxu0
    %v4253 = vadd.f32 %v4202, %v4252
    %v4254 = vpop.f32.mrb[0].mxu0
    %4255 = vmatprep.mubr.bf16.mxu0 0
    %4256 = vmatmul.mubr.bf16.gmra.mrb[0].mxu0 %v3913
    %v4257 = vpop.f32.mrb[0].mxu0
    %v4258 = vadd.f32 %v4202, %v4257
    %v4259 = vpop.f32.mrb[0].mxu0
    %v4260 = vpop.f32.mrb[0].mxu0
    %v4261 = vadd.f32 %v4202, %v4260
    %v4262 = vpop.f32.mrb[0].mxu0
    %4263 = vmatprep.mubr.bf16.mxu0 0
    %4264 = vmatmul.mubr.bf16.gmra.mrb[0].mxu0 %v3916
    %v4265 = vpop.f32.mrb[0].mxu0
    %v4266 = vadd.f32 %v4202, %v4265
    %v4267 = vpop.f32.mrb[0].mxu0
    %v4268 = vpop.f32.mrb[0].mxu0
    %v4269 = vpop.f32.mrb[0].mxu0
    %4270 = vdwg.mxu0
    %v4271 = vlaneseq
    %v4272 = vshrl.u32 %v4271, 7
    %v4273 = vsub.s32 1, %v4272
    %v4274 = vrot.slane %v3795, %v4273
    %v4279 = vunpack.c.l.b16 %v3765
    %v4280 = vunpack.c.l.b16 %v3766
    %v4281 = vunpack.c.l.b16 %v3767
    %v4282 = vunpack.c.l.b16 %v3768
    %v4283 = vpack.c.b16 %v4280, %v4279
    %v4284 = vpack.c.b16 %v4282, %v4281
    %4287 = vmatprep.subr.bf16.mxu0 0
    %4288 = vmatpush1.bf16.msra.mxu0 %v4283
    %4289 = vmatprep.subr.bf16.mxu0 0
    %4290 = vmatpush1.bf16.msra.mxu0 %v4284
    %4291 = vmatprep.subr.bf16.mxu0 0
    %4292 = vmatpush1.bf16.msra.mxu0 0
    %4293 = vmatprep.subr.bf16.mxu0 0
    %4294 = vmatpush1.bf16.msra.mxu0 0
    %4295 = vmatprep.subr.bf16.mxu0 0
    %4296 = vmatpush1.bf16.msra.mxu0 0
    %4297 = vmatprep.subr.bf16.mxu0 0
    %4298 = vmatpush1.bf16.msra.mxu0 0
    %4299 = vmatprep.subr.bf16.mxu0 0
    %4300 = vmatpush1.bf16.msra.mxu0 0
    %4301 = vmatprep.subr.bf16.mxu0 0
    %4302 = vmatpush1.bf16.msra.mxu0 0
    %4303 = vmatprep.subr.bf16.mxu0 0
    %4304 = vmatpush1.bf16.msra.mxu0 0
    %4305 = vmatprep.subr.bf16.mxu0 0
    %4306 = vmatpush1.bf16.msra.mxu0 0
    %4307 = vmatprep.subr.bf16.mxu0 0
    %4308 = vmatpush1.bf16.msra.mxu0 0
    %4309 = vmatprep.subr.bf16.mxu0 0
    %4310 = vmatpush1.bf16.msra.mxu0 0
    %4311 = vmatprep.subr.bf16.mxu0 0
    %4312 = vmatpush1.bf16.msra.mxu0 0
    %4313 = vmatprep.subr.bf16.mxu0 0
    %4314 = vmatpush1.bf16.msra.mxu0 0
    %4315 = vmatprep.subr.bf16.mxu0 0
    %4316 = vmatpush1.bf16.msra.mxu0 0
    %4317 = vmatprep.subr.bf16.mxu0 0
    %4318 = vmatpush1.bf16.msra.mxu0 0
    %4319 = vmatprep.mubr.bf16.mxu0 0
    %4320 = vmatmul.mubr.bf16.gmra.mrb[0].mxu0 %v3910
    %v4321 = vpop.f32.mrb[0].mxu0
    %v4322 = vadd.f32 %v4274, %v4321
    %v4323 = vpop.f32.mrb[0].mxu0
    %v4324 = vpop.f32.mrb[0].mxu0
    %v4325 = vadd.f32 %v4274, %v4324
    %v4326 = vpop.f32.mrb[0].mxu0
    %4327 = vmatprep.mubr.bf16.mxu0 0
    %4328 = vmatmul.mubr.bf16.gmra.mrb[0].mxu0 %v3913
    %v4329 = vpop.f32.mrb[0].mxu0
    %v4330 = vadd.f32 %v4274, %v4329
    %v4331 = vpop.f32.mrb[0].mxu0
    %v4332 = vpop.f32.mrb[0].mxu0
    %v4333 = vadd.f32 %v4274, %v4332
    %v4334 = vpop.f32.mrb[0].mxu0
    %4335 = vmatprep.mubr.bf16.mxu0 0
    %4336 = vmatmul.mubr.bf16.gmra.mrb[0].mxu0 %v3916
    %v4337 = vpop.f32.mrb[0].mxu0
    %v4338 = vadd.f32 %v4274, %v4337
    %v4339 = vpop.f32.mrb[0].mxu0
    %v4340 = vpop.f32.mrb[0].mxu0
    %v4341 = vpop.f32.mrb[0].mxu0
    %4342 = vdwg.mxu0
    %v4343 = vpack.c.bf16 %v4181, %v4178
    %v4344 = vpack.c.bf16 %v4189, %v4186
    %v4345 = vpack.c.bf16 %v4194, %v4194
    %v4346 = vpack.c.bf16 %v4253, %v4250
    %v4347 = vpack.c.bf16 %v4261, %v4258
    %v4348 = vpack.c.bf16 %v4266, %v4266
    %v4349 = vpack.c.bf16 %v4325, %v4322
    %v4350 = vpack.c.bf16 %v4333, %v4330
    %v4351 = vpack.c.bf16 %v4338, %v4338
    %v4352 = vlaneseq
    %v4353 = vshrl.u32 %v4352, 7
    %v4354 = vsub.s32 2, %v4353
    %v4355 = vrot.slane %v3794, %v4354
    %v4360 = vunpack.c.l.b16 %v3737
    %v4361 = vunpack.c.l.b16 %v3738
    %v4362 = vunpack.c.l.b16 %v3739
    %v4363 = vunpack.c.l.b16 %v3740
    %v4364 = vpack.c.b16 %v4361, %v4360
    %v4365 = vpack.c.b16 %v4363, %v4362
    %4368 = vmatprep.subr.bf16.mxu0 0
    %4369 = vmatpush1.bf16.msra.mxu0 %v4364
    %4370 = vmatprep.subr.bf16.mxu0 0
    %4371 = vmatpush1.bf16.msra.mxu0 %v4365
    %4372 = vmatprep.subr.bf16.mxu0 0
    %4373 = vmatpush1.bf16.msra.mxu0 0
    %4374 = vmatprep.subr.bf16.mxu0 0
    %4375 = vmatpush1.bf16.msra.mxu0 0
    %4376 = vmatprep.subr.bf16.mxu0 0
    %4377 = vmatpush1.bf16.msra.mxu0 0
    %4378 = vmatprep.subr.bf16.mxu0 0
    %4379 = vmatpush1.bf16.msra.mxu0 0
    %4380 = vmatprep.subr.bf16.mxu0 0
    %4381 = vmatpush1.bf16.msra.mxu0 0
    %4382 = vmatprep.subr.bf16.mxu0 0
    %4383 = vmatpush1.bf16.msra.mxu0 0
    %4384 = vmatprep.subr.bf16.mxu0 0
    %4385 = vmatpush1.bf16.msra.mxu0 0
    %4386 = vmatprep.subr.bf16.mxu0 0
    %4387 = vmatpush1.bf16.msra.mxu0 0
    %4388 = vmatprep.subr.bf16.mxu0 0
    %4389 = vmatpush1.bf16.msra.mxu0 0
    %4390 = vmatprep.subr.bf16.mxu0 0
    %4391 = vmatpush1.bf16.msra.mxu0 0
    %4392 = vmatprep.subr.bf16.mxu0 0
    %4393 = vmatpush1.bf16.msra.mxu0 0
    %4394 = vmatprep.subr.bf16.mxu0 0
    %4395 = vmatpush1.bf16.msra.mxu0 0
    %4396 = vmatprep.subr.bf16.mxu0 0
    %4397 = vmatpush1.bf16.msra.mxu0 0
    %4398 = vmatprep.subr.bf16.mxu0 0
    %4399 = vmatpush1.bf16.msra.mxu0 0
    %4400 = vmatprep.mubr.bf16.mxu0 0
    %4401 = vmatmul.mubr.bf16.gmra.mrb[0].mxu0 %v3910
    %v4402 = vpop.f32.mrb[0].mxu0
    %v4403 = vadd.f32 %v4355, %v4402
    %v4404 = vpop.f32.mrb[0].mxu0
    %v4405 = vpop.f32.mrb[0].mxu0
    %v4406 = vadd.f32 %v4355, %v4405
    %v4407 = vpop.f32.mrb[0].mxu0
    %4408 = vmatprep.mubr.bf16.mxu0 0
    %4409 = vmatmul.mubr.bf16.gmra.mrb[0].mxu0 %v3913
    %v4410 = vpop.f32.mrb[0].mxu0
    %v4411 = vadd.f32 %v4355, %v4410
    %v4412 = vpop.f32.mrb[0].mxu0
    %v4413 = vpop.f32.mrb[0].mxu0
    %v4414 = vadd.f32 %v4355, %v4413
    %v4415 = vpop.f32.mrb[0].mxu0
    %4416 = vmatprep.mubr.bf16.mxu0 0
    %4417 = vmatmul.mubr.bf16.gmra.mrb[0].mxu0 %v3916
    %v4418 = vpop.f32.mrb[0].mxu0
    %v4419 = vadd.f32 %v4355, %v4418
    %v4420 = vpop.f32.mrb[0].mxu0
    %v4421 = vpop.f32.mrb[0].mxu0
    %v4422 = vpop.f32.mrb[0].mxu0
    %4423 = vdwg.mxu0
    %v4424 = vlaneseq
    %v4425 = vshrl.u32 %v4424, 7
    %v4426 = vsub.s32 6, %v4425
    %v4427 = vrot.slane %v3794, %v4426
    %v4432 = vunpack.c.l.b16 %v3753
    %v4433 = vunpack.c.l.b16 %v3754
    %v4434 = vunpack.c.l.b16 %v3755
    %v4435 = vunpack.c.l.b16 %v3756
    %v4436 = vpack.c.b16 %v4433, %v4432
    %v4437 = vpack.c.b16 %v4435, %v4434
    %4440 = vmatprep.subr.bf16.mxu0 0
    %4441 = vmatpush1.bf16.msra.mxu0 %v4436
    %4442 = vmatprep.subr.bf16.mxu0 0
    %4443 = vmatpush1.bf16.msra.mxu0 %v4437
    %4444 = vmatprep.subr.bf16.mxu0 0
    %4445 = vmatpush1.bf16.msra.mxu0 0
    %4446 = vmatprep.subr.bf16.mxu0 0
    %4447 = vmatpush1.bf16.msra.mxu0 0
    %4448 = vmatprep.subr.bf16.mxu0 0
    %4449 = vmatpush1.bf16.msra.mxu0 0
    %4450 = vmatprep.subr.bf16.mxu0 0
    %4451 = vmatpush1.bf16.msra.mxu0 0
    %4452 = vmatprep.subr.bf16.mxu0 0
    %4453 = vmatpush1.bf16.msra.mxu0 0
    %4454 = vmatprep.subr.bf16.mxu0 0
    %4455 = vmatpush1.bf16.msra.mxu0 0
    %4456 = vmatprep.subr.bf16.mxu0 0
    %4457 = vmatpush1.bf16.msra.mxu0 0
    %4458 = vmatprep.subr.bf16.mxu0 0
    %4459 = vmatpush1.bf16.msra.mxu0 0
    %4460 = vmatprep.subr.bf16.mxu0 0
    %4461 = vmatpush1.bf16.msra.mxu0 0
    %4462 = vmatprep.subr.bf16.mxu0 0
    %4463 = vmatpush1.bf16.msra.mxu0 0
    %4464 = vmatprep.subr.bf16.mxu0 0
    %4465 = vmatpush1.bf16.msra.mxu0 0
    %4466 = vmatprep.subr.bf16.mxu0 0
    %4467 = vmatpush1.bf16.msra.mxu0 0
    %4468 = vmatprep.subr.bf16.mxu0 0
    %4469 = vmatpush1.bf16.msra.mxu0 0
    %4470 = vmatprep.subr.bf16.mxu0 0
    %4471 = vmatpush1.bf16.msra.mxu0 0
    %4472 = vmatprep.mubr.bf16.mxu0 0
    %4473 = vmatmul.mubr.bf16.gmra.mrb[0].mxu0 %v3910
    %v4474 = vpop.f32.mrb[0].mxu0
    %v4475 = vadd.f32 %v4427, %v4474
    %v4476 = vpop.f32.mrb[0].mxu0
    %v4477 = vpop.f32.mrb[0].mxu0
    %v4478 = vadd.f32 %v4427, %v4477
    %v4479 = vpop.f32.mrb[0].mxu0
    %4480 = vmatprep.mubr.bf16.mxu0 0
    %4481 = vmatmul.mubr.bf16.gmra.mrb[0].mxu0 %v3913
    %v4482 = vpop.f32.mrb[0].mxu0
    %v4483 = vadd.f32 %v4427, %v4482
    %v4484 = vpop.f32.mrb[0].mxu0
    %v4485 = vpop.f32.mrb[0].mxu0
    %v4486 = vadd.f32 %v4427, %v4485
    %v4487 = vpop.f32.mrb[0].mxu0
    %4488 = vmatprep.mubr.bf16.mxu0 0
    %4489 = vmatmul.mubr.bf16.gmra.mrb[0].mxu0 %v3916
    %v4490 = vpop.f32.mrb[0].mxu0
    %v4491 = vadd.f32 %v4427, %v4490
    %v4492 = vpop.f32.mrb[0].mxu0
    %v4493 = vpop.f32.mrb[0].mxu0
    %v4494 = vpop.f32.mrb[0].mxu0
    %4495 = vdwg.mxu0
    %v4496 = vlaneseq
    %v4497 = vshrl.u32 %v4496, 7
    %v4498 = vsub.s32 2, %v4497
    %v4499 = vrot.slane %v3795, %v4498
    %v4504 = vunpack.c.l.b16 %v3769
    %v4505 = vunpack.c.l.b16 %v3770
    %v4506 = vunpack.c.l.b16 %v3771
    %v4507 = vunpack.c.l.b16 %v3772
    %v4508 = vpack.c.b16 %v4505, %v4504
    %v4509 = vpack.c.b16 %v4507, %v4506
    %4512 = vmatprep.subr.bf16.mxu0 0
    %4513 = vmatpush1.bf16.msra.mxu0 %v4508
    %4514 = vmatprep.subr.bf16.mxu0 0
    %4515 = vmatpush1.bf16.msra.mxu0 %v4509
    %4516 = vmatprep.subr.bf16.mxu0 0
    %4517 = vmatpush1.bf16.msra.mxu0 0
    %4518 = vmatprep.subr.bf16.mxu0 0
    %4519 = vmatpush1.bf16.msra.mxu0 0
    %4520 = vmatprep.subr.bf16.mxu0 0
    %4521 = vmatpush1.bf16.msra.mxu0 0
    %4522 = vmatprep.subr.bf16.mxu0 0
    %4523 = vmatpush1.bf16.msra.mxu0 0
    %4524 = vmatprep.subr.bf16.mxu0 0
    %4525 = vmatpush1.bf16.msra.mxu0 0
    %4526 = vmatprep.subr.bf16.mxu0 0
    %4527 = vmatpush1.bf16.msra.mxu0 0
    %4528 = vmatprep.subr.bf16.mxu0 0
    %4529 = vmatpush1.bf16.msra.mxu0 0
    %4530 = vmatprep.subr.bf16.mxu0 0
    %4531 = vmatpush1.bf16.msra.mxu0 0
    %4532 = vmatprep.subr.bf16.mxu0 0
    %4533 = vmatpush1.bf16.msra.mxu0 0
    %4534 = vmatprep.subr.bf16.mxu0 0
    %4535 = vmatpush1.bf16.msra.mxu0 0
    %4536 = vmatprep.subr.bf16.mxu0 0
    %4537 = vmatpush1.bf16.msra.mxu0 0
    %4538 = vmatprep.subr.bf16.mxu0 0
    %4539 = vmatpush1.bf16.msra.mxu0 0
    %4540 = vmatprep.subr.bf16.mxu0 0
    %4541 = vmatpush1.bf16.msra.mxu0 0
    %4542 = vmatprep.subr.bf16.mxu0 0
    %4543 = vmatpush1.bf16.msra.mxu0 0
    %4544 = vmatprep.mubr.bf16.mxu0 0
    %4545 = vmatmul.mubr.bf16.gmra.mrb[0].mxu0 %v3910
    %v4546 = vpop.f32.mrb[0].mxu0
    %v4547 = vadd.f32 %v4499, %v4546
    %v4548 = vpop.f32.mrb[0].mxu0
    %v4549 = vpop.f32.mrb[0].mxu0
    %v4550 = vadd.f32 %v4499, %v4549
    %v4551 = vpop.f32.mrb[0].mxu0
    %4552 = vmatprep.mubr.bf16.mxu0 0
    %4553 = vmatmul.mubr.bf16.gmra.mrb[0].mxu0 %v3913
    %v4554 = vpop.f32.mrb[0].mxu0
    %v4555 = vadd.f32 %v4499, %v4554
    %v4556 = vpop.f32.mrb[0].mxu0
    %v4557 = vpop.f32.mrb[0].mxu0
    %v4558 = vadd.f32 %v4499, %v4557
    %v4559 = vpop.f32.mrb[0].mxu0
    %4560 = vmatprep.mubr.bf16.mxu0 0
    %4561 = vmatmul.mubr.bf16.gmra.mrb[0].mxu0 %v3916
    %v4562 = vpop.f32.mrb[0].mxu0
    %v4563 = vadd.f32 %v4499, %v4562
    %v4564 = vpop.f32.mrb[0].mxu0
    %v4565 = vpop.f32.mrb[0].mxu0
    %v4566 = vpop.f32.mrb[0].mxu0
    %4567 = vdwg.mxu0
    %v4568 = vpack.c.bf16 %v4406, %v4403
    %v4569 = vpack.c.bf16 %v4414, %v4411
    %v4570 = vpack.c.bf16 %v4419, %v4419
    %v4571 = vpack.c.bf16 %v4478, %v4475
    %v4572 = vpack.c.bf16 %v4486, %v4483
    %v4573 = vpack.c.bf16 %v4491, %v4491
    %v4574 = vpack.c.bf16 %v4550, %v4547
    %v4575 = vpack.c.bf16 %v4558, %v4555
    %v4576 = vpack.c.bf16 %v4563, %v4563
    %v4577 = vlaneseq
    %v4578 = vshrl.u32 %v4577, 7
    %v4579 = vsub.s32 3, %v4578
    %v4580 = vrot.slane %v3794, %v4579
    %v4585 = vunpack.c.l.b16 %v3741
    %v4586 = vunpack.c.l.b16 %v3742
    %v4587 = vunpack.c.l.b16 %v3743
    %v4588 = vunpack.c.l.b16 %v3744
    %v4589 = vpack.c.b16 %v4586, %v4585
    %v4590 = vpack.c.b16 %v4588, %v4587
    %4593 = vmatprep.subr.bf16.mxu0 0
    %4594 = vmatpush1.bf16.msra.mxu0 %v4589
    %4595 = vmatprep.subr.bf16.mxu0 0
    %4596 = vmatpush1.bf16.msra.mxu0 %v4590
    %4597 = vmatprep.subr.bf16.mxu0 0
    %4598 = vmatpush1.bf16.msra.mxu0 0
    %4599 = vmatprep.subr.bf16.mxu0 0
    %4600 = vmatpush1.bf16.msra.mxu0 0
    %4601 = vmatprep.subr.bf16.mxu0 0
    %4602 = vmatpush1.bf16.msra.mxu0 0
    %4603 = vmatprep.subr.bf16.mxu0 0
    %4604 = vmatpush1.bf16.msra.mxu0 0
    %4605 = vmatprep.subr.bf16.mxu0 0
    %4606 = vmatpush1.bf16.msra.mxu0 0
    %4607 = vmatprep.subr.bf16.mxu0 0
    %4608 = vmatpush1.bf16.msra.mxu0 0
    %4609 = vmatprep.subr.bf16.mxu0 0
    %4610 = vmatpush1.bf16.msra.mxu0 0
    %4611 = vmatprep.subr.bf16.mxu0 0
    %4612 = vmatpush1.bf16.msra.mxu0 0
    %4613 = vmatprep.subr.bf16.mxu0 0
    %4614 = vmatpush1.bf16.msra.mxu0 0
    %4615 = vmatprep.subr.bf16.mxu0 0
    %4616 = vmatpush1.bf16.msra.mxu0 0
    %4617 = vmatprep.subr.bf16.mxu0 0
    %4618 = vmatpush1.bf16.msra.mxu0 0
    %4619 = vmatprep.subr.bf16.mxu0 0
    %4620 = vmatpush1.bf16.msra.mxu0 0
    %4621 = vmatprep.subr.bf16.mxu0 0
    %4622 = vmatpush1.bf16.msra.mxu0 0
    %4623 = vmatprep.subr.bf16.mxu0 0
    %4624 = vmatpush1.bf16.msra.mxu0 0
    %4625 = vmatprep.mubr.bf16.mxu0 0
    %4626 = vmatmul.mubr.bf16.gmra.mrb[0].mxu0 %v3910
    %v4627 = vpop.f32.mrb[0].mxu0
    %v4628 = vadd.f32 %v4580, %v4627
    %v4629 = vpop.f32.mrb[0].mxu0
    %v4630 = vpop.f32.mrb[0].mxu0
    %v4631 = vadd.f32 %v4580, %v4630
    %v4632 = vpop.f32.mrb[0].mxu0
    %4633 = vmatprep.mubr.bf16.mxu0 0
    %4634 = vmatmul.mubr.bf16.gmra.mrb[0].mxu0 %v3913
    %v4635 = vpop.f32.mrb[0].mxu0
    %v4636 = vadd.f32 %v4580, %v4635
    %v4637 = vpop.f32.mrb[0].mxu0
    %v4638 = vpop.f32.mrb[0].mxu0
    %v4639 = vadd.f32 %v4580, %v4638
    %v4640 = vpop.f32.mrb[0].mxu0
    %4641 = vmatprep.mubr.bf16.mxu0 0
    %4642 = vmatmul.mubr.bf16.gmra.mrb[0].mxu0 %v3916
    %v4643 = vpop.f32.mrb[0].mxu0
    %v4644 = vadd.f32 %v4580, %v4643
    %v4645 = vpop.f32.mrb[0].mxu0
    %v4646 = vpop.f32.mrb[0].mxu0
    %v4647 = vpop.f32.mrb[0].mxu0
    %4648 = vdwg.mxu0
    %v4649 = vlaneseq
    %v4650 = vshrl.u32 %v4649, 7
    %v4651 = vsub.s32 7, %v4650
    %v4652 = vrot.slane %v3794, %v4651
    %v4657 = vunpack.c.l.b16 %v3757
    %v4658 = vunpack.c.l.b16 %v3758
    %v4659 = vunpack.c.l.b16 %v3759
    %v4660 = vunpack.c.l.b16 %v3760
    %v4661 = vpack.c.b16 %v4658, %v4657
    %v4662 = vpack.c.b16 %v4660, %v4659
    %4665 = vmatprep.subr.bf16.mxu0 0
    %4666 = vmatpush1.bf16.msra.mxu0 %v4661
    %4667 = vmatprep.subr.bf16.mxu0 0
    %4668 = vmatpush1.bf16.msra.mxu0 %v4662
    %4669 = vmatprep.subr.bf16.mxu0 0
    %4670 = vmatpush1.bf16.msra.mxu0 0
    %4671 = vmatprep.subr.bf16.mxu0 0
    %4672 = vmatpush1.bf16.msra.mxu0 0
    %4673 = vmatprep.subr.bf16.mxu0 0
    %4674 = vmatpush1.bf16.msra.mxu0 0
    %4675 = vmatprep.subr.bf16.mxu0 0
    %4676 = vmatpush1.bf16.msra.mxu0 0
    %4677 = vmatprep.subr.bf16.mxu0 0
    %4678 = vmatpush1.bf16.msra.mxu0 0
    %4679 = vmatprep.subr.bf16.mxu0 0
    %4680 = vmatpush1.bf16.msra.mxu0 0
    %4681 = vmatprep.subr.bf16.mxu0 0
    %4682 = vmatpush1.bf16.msra.mxu0 0
    %4683 = vmatprep.subr.bf16.mxu0 0
    %4684 = vmatpush1.bf16.msra.mxu0 0
    %4685 = vmatprep.subr.bf16.mxu0 0
    %4686 = vmatpush1.bf16.msra.mxu0 0
    %4687 = vmatprep.subr.bf16.mxu0 0
    %4688 = vmatpush1.bf16.msra.mxu0 0
    %4689 = vmatprep.subr.bf16.mxu0 0
    %4690 = vmatpush1.bf16.msra.mxu0 0
    %4691 = vmatprep.subr.bf16.mxu0 0
    %4692 = vmatpush1.bf16.msra.mxu0 0
    %4693 = vmatprep.subr.bf16.mxu0 0
    %4694 = vmatpush1.bf16.msra.mxu0 0
    %4695 = vmatprep.subr.bf16.mxu0 0
    %4696 = vmatpush1.bf16.msra.mxu0 0
    %4697 = vmatprep.mubr.bf16.mxu0 0
    %4698 = vmatmul.mubr.bf16.gmra.mrb[0].mxu0 %v3910
    %v4699 = vpop.f32.mrb[0].mxu0
    %v4700 = vadd.f32 %v4652, %v4699
    %v4701 = vpop.f32.mrb[0].mxu0
    %v4702 = vpop.f32.mrb[0].mxu0
    %v4703 = vadd.f32 %v4652, %v4702
    %v4704 = vpop.f32.mrb[0].mxu0
    %4705 = vmatprep.mubr.bf16.mxu0 0
    %4706 = vmatmul.mubr.bf16.gmra.mrb[0].mxu0 %v3913
    %v4707 = vpop.f32.mrb[0].mxu0
    %v4708 = vadd.f32 %v4652, %v4707
    %v4709 = vpop.f32.mrb[0].mxu0
    %v4710 = vpop.f32.mrb[0].mxu0
    %v4711 = vadd.f32 %v4652, %v4710
    %v4712 = vpop.f32.mrb[0].mxu0
    %4713 = vmatprep.mubr.bf16.mxu0 0
    %4714 = vmatmul.mubr.bf16.gmra.mrb[0].mxu0 %v3916
    %v4715 = vpop.f32.mrb[0].mxu0
    %v4716 = vadd.f32 %v4652, %v4715
    %v4717 = vpop.f32.mrb[0].mxu0
    %v4718 = vpop.f32.mrb[0].mxu0
    %v4719 = vpop.f32.mrb[0].mxu0
    %4720 = vdwg.mxu0
    %v4721 = vlaneseq
    %v4722 = vshrl.u32 %v4721, 7
    %v4723 = vsub.s32 3, %v4722
    %v4724 = vrot.slane %v3795, %v4723
    %v4729 = vunpack.c.l.b16 %v3773
    %v4730 = vunpack.c.l.b16 %v3774
    %v4731 = vunpack.c.l.b16 %v3775
    %v4732 = vunpack.c.l.b16 %v3776
    %v4733 = vpack.c.b16 %v4730, %v4729
    %v4734 = vpack.c.b16 %v4732, %v4731
    %4737 = vmatprep.subr.bf16.mxu0 0
    %4738 = vmatpush1.bf16.msra.mxu0 %v4733
    %4739 = vmatprep.subr.bf16.mxu0 0
    %4740 = vmatpush1.bf16.msra.mxu0 %v4734
    %4741 = vmatprep.subr.bf16.mxu0 0
    %4742 = vmatpush1.bf16.msra.mxu0 0
    %4743 = vmatprep.subr.bf16.mxu0 0
    %4744 = vmatpush1.bf16.msra.mxu0 0
    %4745 = vmatprep.subr.bf16.mxu0 0
    %4746 = vmatpush1.bf16.msra.mxu0 0
    %4747 = vmatprep.subr.bf16.mxu0 0
    %4748 = vmatpush1.bf16.msra.mxu0 0
    %4749 = vmatprep.subr.bf16.mxu0 0
    %4750 = vmatpush1.bf16.msra.mxu0 0
    %4751 = vmatprep.subr.bf16.mxu0 0
    %4752 = vmatpush1.bf16.msra.mxu0 0
    %4753 = vmatprep.subr.bf16.mxu0 0
    %4754 = vmatpush1.bf16.msra.mxu0 0
    %4755 = vmatprep.subr.bf16.mxu0 0
    %4756 = vmatpush1.bf16.msra.mxu0 0
    %4757 = vmatprep.subr.bf16.mxu0 0
    %4758 = vmatpush1.bf16.msra.mxu0 0
    %4759 = vmatprep.subr.bf16.mxu0 0
    %4760 = vmatpush1.bf16.msra.mxu0 0
    %4761 = vmatprep.subr.bf16.mxu0 0
    %4762 = vmatpush1.bf16.msra.mxu0 0
    %4763 = vmatprep.subr.bf16.mxu0 0
    %4764 = vmatpush1.bf16.msra.mxu0 0
    %4765 = vmatprep.subr.bf16.mxu0 0
    %4766 = vmatpush1.bf16.msra.mxu0 0
    %4767 = vmatprep.subr.bf16.mxu0 0
    %4768 = vmatpush1.bf16.msra.mxu0 0
    %4769 = vmatprep.mubr.bf16.mxu0 0
    %4770 = vmatmul.mubr.bf16.gmra.mrb[0].mxu0 %v3910
    %v4771 = vpop.f32.mrb[0].mxu0
    %v4772 = vadd.f32 %v4724, %v4771
    %v4773 = vpop.f32.mrb[0].mxu0
    %v4774 = vpop.f32.mrb[0].mxu0
    %v4775 = vadd.f32 %v4724, %v4774
    %v4776 = vpop.f32.mrb[0].mxu0
    %4777 = vmatprep.mubr.bf16.mxu0 0
    %4778 = vmatmul.mubr.bf16.gmra.mrb[0].mxu0 %v3913
    %v4779 = vpop.f32.mrb[0].mxu0
    %v4780 = vadd.f32 %v4724, %v4779
    %v4781 = vpop.f32.mrb[0].mxu0
    %v4782 = vpop.f32.mrb[0].mxu0
    %v4783 = vadd.f32 %v4724, %v4782
    %v4784 = vpop.f32.mrb[0].mxu0
    %4785 = vmatprep.mubr.bf16.mxu0 0
    %4786 = vmatmul.mubr.bf16.gmra.mrb[0].mxu0 %v3916
    %v4787 = vpop.f32.mrb[0].mxu0
    %v4788 = vadd.f32 %v4724, %v4787
    %v4789 = vpop.f32.mrb[0].mxu0
    %v4790 = vpop.f32.mrb[0].mxu0
    %v4791 = vpop.f32.mrb[0].mxu0
    %4792 = vdwg.mxu0
    %v4793 = vpack.c.bf16 %v4631, %v4628
    %v4794 = vpack.c.bf16 %v4639, %v4636
    %v4795 = vpack.c.bf16 %v4644, %v4644
    %v4796 = vpack.c.bf16 %v4703, %v4700
    %v4797 = vpack.c.bf16 %v4711, %v4708
    %v4798 = vpack.c.bf16 %v4716, %v4716
    %v4799 = vpack.c.bf16 %v4775, %v4772
    %v4800 = vpack.c.bf16 %v4783, %v4780
    %v4801 = vpack.c.bf16 %v4788, %v4788
    %v4803 = vsel %vm1495, %v4118, 0
    %v4806 = vsel %vm1495, %v4119, 0
    %v4809 = vsel %vm1495, %v4121, 0
    %v4812 = vsel %vm1495, %v4122, 0
    %4814 = vmatprep.subr.bf16.mxu0 0
    %4815 = vmatpush1.bf16.xpose.msra.mxu0 %v4809
    %4816 = vmatprep.subr.bf16.mxu0 0
    %4817 = vmatpush1.bf16.xpose.msra.mxu0 %v4812
    %4818 = vmatprep.subr.bf16.mxu0 0
    %4819 = vmatpush1.bf16.xpose.msra.mxu0 0
    %4820 = vmatprep.subr.bf16.mxu0 0
    %4821 = vmatpush1.bf16.xpose.msra.mxu0 0
    %4822 = vmatprep.subr.bf16.mxu0 0
    %4823 = vmatpush1.bf16.xpose.msra.mxu0 0
    %4824 = vmatprep.subr.bf16.mxu0 0
    %4825 = vmatpush1.bf16.xpose.msra.mxu0 0
    %4826 = vmatprep.subr.bf16.mxu0 0
    %4827 = vmatpush1.bf16.xpose.msra.mxu0 0
    %4828 = vmatprep.subr.bf16.mxu0 0
    %4829 = vmatpush1.bf16.xpose.msra.mxu0 0
    %4830 = vmatprep.subr.bf16.mxu0 0
    %4831 = vmatpush1.bf16.xpose.msra.mxu0 0
    %4832 = vmatprep.subr.bf16.mxu0 0
    %4833 = vmatpush1.bf16.xpose.msra.mxu0 0
    %4834 = vmatprep.subr.bf16.mxu0 0
    %4835 = vmatpush1.bf16.xpose.msra.mxu0 0
    %4836 = vmatprep.subr.bf16.mxu0 0
    %4837 = vmatpush1.bf16.xpose.msra.mxu0 0
    %4838 = vmatprep.subr.bf16.mxu0 0
    %4839 = vmatpush1.bf16.xpose.msra.mxu0 0
    %4840 = vmatprep.subr.bf16.mxu0 0
    %4841 = vmatpush1.bf16.xpose.msra.mxu0 0
    %4842 = vmatprep.subr.bf16.mxu0 0
    %4843 = vmatpush1.bf16.xpose.msra.mxu0 0
    %4844 = vmatprep.subr.bf16.mxu0 0
    %4845 = vmatpush1.bf16.xpose.msra.mxu0 0
    %4846 = vmatprep.mubr.bf16.mxu0 0
    %4847 = vmatmul.mubr.bf16.gmra.mrb[0].mxu0 %v4803
    %v4848 = vpop.f32.mrb[0].mxu0
    %v4849 = vadd.f32 0.0, %v4848
    %v4850 = vpop.f32.mrb[0].mxu0
    %v4851 = vpop.f32.mrb[0].mxu0
    %v4852 = vadd.f32 0.0, %v4851
    %v4853 = vpop.f32.mrb[0].mxu0
    %4854 = vmatprep.mubr.bf16.mxu0 0
    %4855 = vmatmul.mubr.bf16.gmra.mrb[0].mxu0 %v4806
    %v4856 = vpop.f32.mrb[0].mxu0
    %v4857 = vadd.f32 0.0, %v4856
    %v4858 = vpop.f32.mrb[0].mxu0
    %v4859 = vpop.f32.mrb[0].mxu0
    %v4860 = vpop.f32.mrb[0].mxu0
    %4861 = vdwg.mxu0
    %v4862 = vsel %vm1556, %v4849, -inf
    %4863 = vmax.xlane.f32.xlu0 %v4862
    %v4864 = vpop.xlane.xlu0 %4863
    %v4865 = vsel %vm1556, %v4852, -inf
    %4866 = vmax.xlane.f32.xlu0 %v4865
    %v4867 = vpop.xlane.xlu0 %4866
    %v4868 = vsel %vm1563, %v4857, -inf
    %4869 = vmax.xlane.f32.xlu0 %v4868
    %v4870 = vpop.xlane.xlu0 %4869
    %v4871 = vsub.f32 %v4849, %v4864
    %v4872 = vsub.f32 %v4852, %v4867
    %v4873 = vsub.f32 %v4857, %v4870
    %v4874 = vmul.f32 %v4871, 1.442695
    %v4875 = vpow.pop %v4874
    %v4876 = vmul.f32 %v4872, 1.442695
    %v4877 = vpow.pop %v4876
    %v4878 = vmul.f32 %v4873, 1.442695
    %v4879 = vpow.pop %v4878
    %v4880 = vsel %vm1556, %v4875, 0.0
    %4881 = vadd.xlane.f32.xlu0 %v4880
    %v4882 = vpop.xlane.xlu0 %4881
    %v4883 = vsel %vm1556, %v4877, 0.0
    %4884 = vadd.xlane.f32.xlu0 %v4883
    %v4885 = vpop.xlane.xlu0 %4884
    %v4886 = vsel %vm1563, %v4879, 0.0
    %4887 = vadd.xlane.f32.xlu0 %v4886
    %v4888 = vpop.xlane.xlu0 %4887
    %v4889 = vrcp.pop %v4882
    %v4890 = vrcp.pop %v4885
    %v4891 = vrcp.pop %v4888
    %v4892 = vmul.f32 %v4875, %v4889
    %v4893 = vmul.f32 %v4877, %v4890
    %v4894 = vmul.f32 %v4879, %v4891
    %v4895 = vpack.c.bf16 %v4893, %v4892
    %v4896 = vpack.c.bf16 %v4894, %v4894
    %v4898 = vsel %vm1556, %v4895, 0
    %v4901 = vsel %vm1556, %v4896, 0
    %v4904 = vand.u32 %v4125, %v1601
    %4906 = vmatprep.subr.bf16.mxu0 0
    %4907 = vmatpush1.bf16.msra.mxu0 %v4124
    %4908 = vmatprep.subr.bf16.mxu0 0
    %4909 = vmatpush1.bf16.msra.mxu0 %v4904
    %4910 = vmatprep.subr.bf16.mxu0 0
    %4911 = vmatpush1.bf16.msra.mxu0 0
    %4912 = vmatprep.subr.bf16.mxu0 0
    %4913 = vmatpush1.bf16.msra.mxu0 0
    %4914 = vmatprep.subr.bf16.mxu0 0
    %4915 = vmatpush1.bf16.msra.mxu0 0
    %4916 = vmatprep.subr.bf16.mxu0 0
    %4917 = vmatpush1.bf16.msra.mxu0 0
    %4918 = vmatprep.subr.bf16.mxu0 0
    %4919 = vmatpush1.bf16.msra.mxu0 0
    %4920 = vmatprep.subr.bf16.mxu0 0
    %4921 = vmatpush1.bf16.msra.mxu0 0
    %4922 = vmatprep.subr.bf16.mxu0 0
    %4923 = vmatpush1.bf16.msra.mxu0 0
    %4924 = vmatprep.subr.bf16.mxu0 0
    %4925 = vmatpush1.bf16.msra.mxu0 0
    %4926 = vmatprep.subr.bf16.mxu0 0
    %4927 = vmatpush1.bf16.msra.mxu0 0
    %4928 = vmatprep.subr.bf16.mxu0 0
    %4929 = vmatpush1.bf16.msra.mxu0 0
    %4930 = vmatprep.subr.bf16.mxu0 0
    %4931 = vmatpush1.bf16.msra.mxu0 0
    %4932 = vmatprep.subr.bf16.mxu0 0
    %4933 = vmatpush1.bf16.msra.mxu0 0
    %4934 = vmatprep.subr.bf16.mxu0 0
    %4935 = vmatpush1.bf16.msra.mxu0 0
    %4936 = vmatprep.subr.bf16.mxu0 0
    %4937 = vmatpush1.bf16.msra.mxu0 0
    %4938 = vmatprep.mubr.bf16.mxu0 0
    %4939 = vmatmul.mubr.bf16.gmra.mrb[0].mxu0 %v4898
    %v4940 = vpop.f32.mrb[0].mxu0
    %v4941 = vadd.f32 0.0, %v4940
    %v4942 = vpop.f32.mrb[0].mxu0
    %v4943 = vpop.f32.mrb[0].mxu0
    %v4944 = vadd.f32 0.0, %v4943
    %v4945 = vpop.f32.mrb[0].mxu0
    %4946 = vmatprep.mubr.bf16.mxu0 0
    %4947 = vmatmul.mubr.bf16.gmra.mrb[0].mxu0 %v4901
    %v4948 = vpop.f32.mrb[0].mxu0
    %v4949 = vadd.f32 0.0, %v4948
    %v4950 = vpop.f32.mrb[0].mxu0
    %v4951 = vpop.f32.mrb[0].mxu0
    %v4952 = vpop.f32.mrb[0].mxu0
    %4953 = vdwg.mxu0
    %v4954 = vpack.c.bf16 %v4944, %v4941
    %v4955 = vpack.c.bf16 %v4949, %v4949
    %v4957 = vsel %vm1495, %v4343, 0
    %v4960 = vsel %vm1495, %v4344, 0
    %v4963 = vsel %vm1495, %v4346, 0
    %v4966 = vsel %vm1495, %v4347, 0
    %4968 = vmatprep.subr.bf16.mxu0 0
    %4969 = vmatpush1.bf16.xpose.msra.mxu0 %v4963
    %4970 = vmatprep.subr.bf16.mxu0 0
    %4971 = vmatpush1.bf16.xpose.msra.mxu0 %v4966
    %4972 = vmatprep.subr.bf16.mxu0 0
    %4973 = vmatpush1.bf16.xpose.msra.mxu0 0
    %4974 = vmatprep.subr.bf16.mxu0 0
    %4975 = vmatpush1.bf16.xpose.msra.mxu0 0
    %4976 = vmatprep.subr.bf16.mxu0 0
    %4977 = vmatpush1.bf16.xpose.msra.mxu0 0
    %4978 = vmatprep.subr.bf16.mxu0 0
    %4979 = vmatpush1.bf16.xpose.msra.mxu0 0
    %4980 = vmatprep.subr.bf16.mxu0 0
    %4981 = vmatpush1.bf16.xpose.msra.mxu0 0
    %4982 = vmatprep.subr.bf16.mxu0 0
    %4983 = vmatpush1.bf16.xpose.msra.mxu0 0
    %4984 = vmatprep.subr.bf16.mxu0 0
    %4985 = vmatpush1.bf16.xpose.msra.mxu0 0
    %4986 = vmatprep.subr.bf16.mxu0 0
    %4987 = vmatpush1.bf16.xpose.msra.mxu0 0
    %4988 = vmatprep.subr.bf16.mxu0 0
    %4989 = vmatpush1.bf16.xpose.msra.mxu0 0
    %4990 = vmatprep.subr.bf16.mxu0 0
    %4991 = vmatpush1.bf16.xpose.msra.mxu0 0
    %4992 = vmatprep.subr.bf16.mxu0 0
    %4993 = vmatpush1.bf16.xpose.msra.mxu0 0
    %4994 = vmatprep.subr.bf16.mxu0 0
    %4995 = vmatpush1.bf16.xpose.msra.mxu0 0
    %4996 = vmatprep.subr.bf16.mxu0 0
    %4997 = vmatpush1.bf16.xpose.msra.mxu0 0
    %4998 = vmatprep.subr.bf16.mxu0 0
    %4999 = vmatpush1.bf16.xpose.msra.mxu0 0
    %5000 = vmatprep.mubr.bf16.mxu0 0
    %5001 = vmatmul.mubr.bf16.gmra.mrb[0].mxu0 %v4957
    %v5002 = vpop.f32.mrb[0].mxu0
    %v5003 = vadd.f32 0.0, %v5002
    %v5004 = vpop.f32.mrb[0].mxu0
    %v5005 = vpop.f32.mrb[0].mxu0
    %v5006 = vadd.f32 0.0, %v5005
    %v5007 = vpop.f32.mrb[0].mxu0
    %5008 = vmatprep.mubr.bf16.mxu0 0
    %5009 = vmatmul.mubr.bf16.gmra.mrb[0].mxu0 %v4960
    %v5010 = vpop.f32.mrb[0].mxu0
    %v5011 = vadd.f32 0.0, %v5010
    %v5012 = vpop.f32.mrb[0].mxu0
    %v5013 = vpop.f32.mrb[0].mxu0
    %v5014 = vpop.f32.mrb[0].mxu0
    %5015 = vdwg.mxu0
    %v5016 = vsel %vm1556, %v5003, -inf
    %5017 = vmax.xlane.f32.xlu0 %v5016
    %v5018 = vpop.xlane.xlu0 %5017
    %v5019 = vsel %vm1556, %v5006, -inf
    %5020 = vmax.xlane.f32.xlu0 %v5019
    %v5021 = vpop.xlane.xlu0 %5020
    %v5022 = vsel %vm1563, %v5011, -inf
    %5023 = vmax.xlane.f32.xlu0 %v5022
    %v5024 = vpop.xlane.xlu0 %5023
    %v5025 = vsub.f32 %v5003, %v5018
    %v5026 = vsub.f32 %v5006, %v5021
    %v5027 = vsub.f32 %v5011, %v5024
    %v5028 = vmul.f32 %v5025, 1.442695
    %v5029 = vpow.pop %v5028
    %v5030 = vmul.f32 %v5026, 1.442695
    %v5031 = vpow.pop %v5030
    %v5032 = vmul.f32 %v5027, 1.442695
    %v5033 = vpow.pop %v5032
    %v5034 = vsel %vm1556, %v5029, 0.0
    %5035 = vadd.xlane.f32.xlu0 %v5034
    %v5036 = vpop.xlane.xlu0 %5035
    %v5037 = vsel %vm1556, %v5031, 0.0
    %5038 = vadd.xlane.f32.xlu0 %v5037
    %v5039 = vpop.xlane.xlu0 %5038
    %v5040 = vsel %vm1563, %v5033, 0.0
    %5041 = vadd.xlane.f32.xlu0 %v5040
    %v5042 = vpop.xlane.xlu0 %5041
    %v5043 = vrcp.pop %v5036
    %v5044 = vrcp.pop %v5039
    %v5045 = vrcp.pop %v5042
    %v5046 = vmul.f32 %v5029, %v5043
    %v5047 = vmul.f32 %v5031, %v5044
    %v5048 = vmul.f32 %v5033, %v5045
    %v5049 = vpack.c.bf16 %v5047, %v5046
    %v5050 = vpack.c.bf16 %v5048, %v5048
    %v5052 = vsel %vm1556, %v5049, 0
    %v5055 = vsel %vm1556, %v5050, 0
    %v5058 = vand.u32 %v4350, %v1601
    %5060 = vmatprep.subr.bf16.mxu0 0
    %5061 = vmatpush1.bf16.msra.mxu0 %v4349
    %5062 = vmatprep.subr.bf16.mxu0 0
    %5063 = vmatpush1.bf16.msra.mxu0 %v5058
    %5064 = vmatprep.subr.bf16.mxu0 0
    %5065 = vmatpush1.bf16.msra.mxu0 0
    %5066 = vmatprep.subr.bf16.mxu0 0
    %5067 = vmatpush1.bf16.msra.mxu0 0
    %5068 = vmatprep.subr.bf16.mxu0 0
    %5069 = vmatpush1.bf16.msra.mxu0 0
    %5070 = vmatprep.subr.bf16.mxu0 0
    %5071 = vmatpush1.bf16.msra.mxu0 0
    %5072 = vmatprep.subr.bf16.mxu0 0
    %5073 = vmatpush1.bf16.msra.mxu0 0
    %5074 = vmatprep.subr.bf16.mxu0 0
    %5075 = vmatpush1.bf16.msra.mxu0 0
    %5076 = vmatprep.subr.bf16.mxu0 0
    %5077 = vmatpush1.bf16.msra.mxu0 0
    %5078 = vmatprep.subr.bf16.mxu0 0
    %5079 = vmatpush1.bf16.msra.mxu0 0
    %5080 = vmatprep.subr.bf16.mxu0 0
    %5081 = vmatpush1.bf16.msra.mxu0 0
    %5082 = vmatprep.subr.bf16.mxu0 0
    %5083 = vmatpush1.bf16.msra.mxu0 0
    %5084 = vmatprep.subr.bf16.mxu0 0
    %5085 = vmatpush1.bf16.msra.mxu0 0
    %5086 = vmatprep.subr.bf16.mxu0 0
    %5087 = vmatpush1.bf16.msra.mxu0 0
    %5088 = vmatprep.subr.bf16.mxu0 0
    %5089 = vmatpush1.bf16.msra.mxu0 0
    %5090 = vmatprep.subr.bf16.mxu0 0
    %5091 = vmatpush1.bf16.msra.mxu0 0
    %5092 = vmatprep.mubr.bf16.mxu0 0
    %5093 = vmatmul.mubr.bf16.gmra.mrb[0].mxu0 %v5052
    %v5094 = vpop.f32.mrb[0].mxu0
    %v5095 = vadd.f32 0.0, %v5094
    %v5096 = vpop.f32.mrb[0].mxu0
    %v5097 = vpop.f32.mrb[0].mxu0
    %v5098 = vadd.f32 0.0, %v5097
    %v5099 = vpop.f32.mrb[0].mxu0
    %5100 = vmatprep.mubr.bf16.mxu0 0
    %5101 = vmatmul.mubr.bf16.gmra.mrb[0].mxu0 %v5055
    %v5102 = vpop.f32.mrb[0].mxu0
    %v5103 = vadd.f32 0.0, %v5102
    %v5104 = vpop.f32.mrb[0].mxu0
    %v5105 = vpop.f32.mrb[0].mxu0
    %v5106 = vpop.f32.mrb[0].mxu0
    %5107 = vdwg.mxu0
    %v5108 = vpack.c.bf16 %v5098, %v5095
    %v5109 = vpack.c.bf16 %v5103, %v5103
    %v5114 = vunpack.c.l.b16 %v3781
    %v5115 = vunpack.c.l.b16 %v3782
    %v5116 = vunpack.c.l.b16 %v3783
    %v5117 = vunpack.c.l.b16 %v3784
    %v5118 = vpack.c.b16 %v5115, %v5114
    %v5119 = vpack.c.b16 %v5117, %v5116
    %v5121 = vsel %vm1495, %v5108, 0
    %v5124 = vsel %vm1495, %v5109, 0
    %v5127 = vsel %vm1495, %v5118, 0
    %v5130 = vsel %vm1495, %v5119, 0
    %5132 = vmatprep.subr.bf16.mxu0 0
    %5133 = vmatpush1.bf16.xpose.msra.mxu0 %v5127
    %5134 = vmatprep.subr.bf16.mxu0 0
    %5135 = vmatpush1.bf16.xpose.msra.mxu0 %v5130
    %5136 = vmatprep.subr.bf16.mxu0 0
    %5137 = vmatpush1.bf16.xpose.msra.mxu0 0
    %5138 = vmatprep.subr.bf16.mxu0 0
    %5139 = vmatpush1.bf16.xpose.msra.mxu0 0
    %5140 = vmatprep.subr.bf16.mxu0 0
    %5141 = vmatpush1.bf16.xpose.msra.mxu0 0
    %5142 = vmatprep.subr.bf16.mxu0 0
    %5143 = vmatpush1.bf16.xpose.msra.mxu0 0
    %5144 = vmatprep.subr.bf16.mxu0 0
    %5145 = vmatpush1.bf16.xpose.msra.mxu0 0
    %5146 = vmatprep.subr.bf16.mxu0 0
    %5147 = vmatpush1.bf16.xpose.msra.mxu0 0
    %5148 = vmatprep.subr.bf16.mxu0 0
    %5149 = vmatpush1.bf16.xpose.msra.mxu0 0
    %5150 = vmatprep.subr.bf16.mxu0 0
    %5151 = vmatpush1.bf16.xpose.msra.mxu0 0
    %5152 = vmatprep.subr.bf16.mxu0 0
    %5153 = vmatpush1.bf16.xpose.msra.mxu0 0
    %5154 = vmatprep.subr.bf16.mxu0 0
    %5155 = vmatpush1.bf16.xpose.msra.mxu0 0
    %5156 = vmatprep.subr.bf16.mxu0 0
    %5157 = vmatpush1.bf16.xpose.msra.mxu0 0
    %5158 = vmatprep.subr.bf16.mxu0 0
    %5159 = vmatpush1.bf16.xpose.msra.mxu0 0
    %5160 = vmatprep.subr.bf16.mxu0 0
    %5161 = vmatpush1.bf16.xpose.msra.mxu0 0
    %5162 = vmatprep.subr.bf16.mxu0 0
    %5163 = vmatpush1.bf16.xpose.msra.mxu0 0
    %5164 = vmatprep.mubr.bf16.mxu0 0
    %5165 = vmatmul.mubr.bf16.gmra.mrb[0].mxu0 %v5121
    %v5166 = vpop.f32.mrb[0].mxu0
    %v5167 = vadd.f32 0.0, %v5166
    %v5168 = vpop.f32.mrb[0].mxu0
    %v5169 = vpop.f32.mrb[0].mxu0
    %v5170 = vadd.f32 0.0, %v5169
    %v5171 = vpop.f32.mrb[0].mxu0
    %5172 = vmatprep.mubr.bf16.mxu0 0
    %5173 = vmatmul.mubr.bf16.gmra.mrb[0].mxu0 %v5124
    %v5174 = vpop.f32.mrb[0].mxu0
    %v5175 = vadd.f32 0.0, %v5174
    %v5176 = vpop.f32.mrb[0].mxu0
    %v5177 = vpop.f32.mrb[0].mxu0
    %v5178 = vpop.f32.mrb[0].mxu0
    %5179 = vdwg.mxu0
    %v5184 = vunpack.c.l.b16 %v3777
    %v5185 = vunpack.c.l.b16 %v3778
    %v5186 = vunpack.c.l.b16 %v3779
    %v5187 = vunpack.c.l.b16 %v3780
    %v5188 = vpack.c.b16 %v5185, %v5184
    %v5189 = vpack.c.b16 %v5187, %v5186
    %v5191 = vsel %vm1495, %v4954, 0
    %v5194 = vsel %vm1495, %v4955, 0
    %v5197 = vsel %vm1495, %v5188, 0
    %v5200 = vsel %vm1495, %v5189, 0
    %5202 = vmatprep.subr.bf16.mxu0 0
    %5203 = vmatpush1.bf16.xpose.msra.mxu0 %v5197
    %5204 = vmatprep.subr.bf16.mxu0 0
    %5205 = vmatpush1.bf16.xpose.msra.mxu0 %v5200
    %5206 = vmatprep.subr.bf16.mxu0 0
    %5207 = vmatpush1.bf16.xpose.msra.mxu0 0
    %5208 = vmatprep.subr.bf16.mxu0 0
    %5209 = vmatpush1.bf16.xpose.msra.mxu0 0
    %5210 = vmatprep.subr.bf16.mxu0 0
    %5211 = vmatpush1.bf16.xpose.msra.mxu0 0
    %5212 = vmatprep.subr.bf16.mxu0 0
    %5213 = vmatpush1.bf16.xpose.msra.mxu0 0
    %5214 = vmatprep.subr.bf16.mxu0 0
    %5215 = vmatpush1.bf16.xpose.msra.mxu0 0
    %5216 = vmatprep.subr.bf16.mxu0 0
    %5217 = vmatpush1.bf16.xpose.msra.mxu0 0
    %5218 = vmatprep.subr.bf16.mxu0 0
    %5219 = vmatpush1.bf16.xpose.msra.mxu0 0
    %5220 = vmatprep.subr.bf16.mxu0 0
    %5221 = vmatpush1.bf16.xpose.msra.mxu0 0
    %5222 = vmatprep.subr.bf16.mxu0 0
    %5223 = vmatpush1.bf16.xpose.msra.mxu0 0
    %5224 = vmatprep.subr.bf16.mxu0 0
    %5225 = vmatpush1.bf16.xpose.msra.mxu0 0
    %5226 = vmatprep.subr.bf16.mxu0 0
    %5227 = vmatpush1.bf16.xpose.msra.mxu0 0
    %5228 = vmatprep.subr.bf16.mxu0 0
    %5229 = vmatpush1.bf16.xpose.msra.mxu0 0
    %5230 = vmatprep.subr.bf16.mxu0 0
    %5231 = vmatpush1.bf16.xpose.msra.mxu0 0
    %5232 = vmatprep.subr.bf16.mxu0 0
    %5233 = vmatpush1.bf16.xpose.msra.mxu0 0
    %5234 = vmatprep.mubr.bf16.mxu0 0
    %5235 = vmatmul.mubr.bf16.gmra.mrb[0].mxu0 %v5191
    %v5236 = vpop.f32.mrb[0].mxu0
    %v5237 = vadd.f32 %v5167, %v5236
    %v5238 = vpop.f32.mrb[0].mxu0
    %v5239 = vpop.f32.mrb[0].mxu0
    %v5240 = vadd.f32 %v5170, %v5239
    %v5241 = vpop.f32.mrb[0].mxu0
    %5242 = vmatprep.mubr.bf16.mxu0 0
    %5243 = vmatmul.mubr.bf16.gmra.mrb[0].mxu0 %v5194
    %v5244 = vpop.f32.mrb[0].mxu0
    %v5245 = vadd.f32 %v5175, %v5244
    %v5246 = vpop.f32.mrb[0].mxu0
    %v5247 = vpop.f32.mrb[0].mxu0
    %v5248 = vpop.f32.mrb[0].mxu0
    %5249 = vdwg.mxu0
    %v5251 = vsel %vm1495, %v4568, 0
    %v5254 = vsel %vm1495, %v4569, 0
    %v5257 = vsel %vm1495, %v4571, 0
    %v5260 = vsel %vm1495, %v4572, 0
    %5262 = vmatprep.subr.bf16.mxu0 0
    %5263 = vmatpush1.bf16.xpose.msra.mxu0 %v5257
    %5264 = vmatprep.subr.bf16.mxu0 0
    %5265 = vmatpush1.bf16.xpose.msra.mxu0 %v5260
    %5266 = vmatprep.subr.bf16.mxu0 0
    %5267 = vmatpush1.bf16.xpose.msra.mxu0 0
    %5268 = vmatprep.subr.bf16.mxu0 0
    %5269 = vmatpush1.bf16.xpose.msra.mxu0 0
    %5270 = vmatprep.subr.bf16.mxu0 0
    %5271 = vmatpush1.bf16.xpose.msra.mxu0 0
    %5272 = vmatprep.subr.bf16.mxu0 0
    %5273 = vmatpush1.bf16.xpose.msra.mxu0 0
    %5274 = vmatprep.subr.bf16.mxu0 0
    %5275 = vmatpush1.bf16.xpose.msra.mxu0 0
    %5276 = vmatprep.subr.bf16.mxu0 0
    %5277 = vmatpush1.bf16.xpose.msra.mxu0 0
    %5278 = vmatprep.subr.bf16.mxu0 0
    %5279 = vmatpush1.bf16.xpose.msra.mxu0 0
    %5280 = vmatprep.subr.bf16.mxu0 0
    %5281 = vmatpush1.bf16.xpose.msra.mxu0 0
    %5282 = vmatprep.subr.bf16.mxu0 0
    %5283 = vmatpush1.bf16.xpose.msra.mxu0 0
    %5284 = vmatprep.subr.bf16.mxu0 0
    %5285 = vmatpush1.bf16.xpose.msra.mxu0 0
    %5286 = vmatprep.subr.bf16.mxu0 0
    %5287 = vmatpush1.bf16.xpose.msra.mxu0 0
    %5288 = vmatprep.subr.bf16.mxu0 0
    %5289 = vmatpush1.bf16.xpose.msra.mxu0 0
    %5290 = vmatprep.subr.bf16.mxu0 0
    %5291 = vmatpush1.bf16.xpose.msra.mxu0 0
    %5292 = vmatprep.subr.bf16.mxu0 0
    %5293 = vmatpush1.bf16.xpose.msra.mxu0 0
    %5294 = vmatprep.mubr.bf16.mxu0 0
    %5295 = vmatmul.mubr.bf16.gmra.mrb[0].mxu0 %v5251
    %v5296 = vpop.f32.mrb[0].mxu0
    %v5297 = vadd.f32 0.0, %v5296
    %v5298 = vpop.f32.mrb[0].mxu0
    %v5299 = vpop.f32.mrb[0].mxu0
    %v5300 = vadd.f32 0.0, %v5299
    %v5301 = vpop.f32.mrb[0].mxu0
    %5302 = vmatprep.mubr.bf16.mxu0 0
    %5303 = vmatmul.mubr.bf16.gmra.mrb[0].mxu0 %v5254
    %v5304 = vpop.f32.mrb[0].mxu0
    %v5305 = vadd.f32 0.0, %v5304
    %v5306 = vpop.f32.mrb[0].mxu0
    %v5307 = vpop.f32.mrb[0].mxu0
    %v5308 = vpop.f32.mrb[0].mxu0
    %5309 = vdwg.mxu0
    %v5310 = vsel %vm1556, %v5297, -inf
    %5311 = vmax.xlane.f32.xlu0 %v5310
    %v5312 = vpop.xlane.xlu0 %5311
    %v5313 = vsel %vm1556, %v5300, -inf
    %5314 = vmax.xlane.f32.xlu0 %v5313
    %v5315 = vpop.xlane.xlu0 %5314
    %v5316 = vsel %vm1563, %v5305, -inf
    %5317 = vmax.xlane.f32.xlu0 %v5316
    %v5318 = vpop.xlane.xlu0 %5317
    %v5319 = vsub.f32 %v5297, %v5312
    %v5320 = vsub.f32 %v5300, %v5315
    %v5321 = vsub.f32 %v5305, %v5318
    %v5322 = vmul.f32 %v5319, 1.442695
    %v5323 = vpow.pop %v5322
    %v5324 = vmul.f32 %v5320, 1.442695
    %v5325 = vpow.pop %v5324
    %v5326 = vmul.f32 %v5321, 1.442695
    %v5327 = vpow.pop %v5326
    %v5328 = vsel %vm1556, %v5323, 0.0
    %5329 = vadd.xlane.f32.xlu0 %v5328
    %v5330 = vpop.xlane.xlu0 %5329
    %v5331 = vsel %vm1556, %v5325, 0.0
    %5332 = vadd.xlane.f32.xlu0 %v5331
    %v5333 = vpop.xlane.xlu0 %5332
    %v5334 = vsel %vm1563, %v5327, 0.0
    %5335 = vadd.xlane.f32.xlu0 %v5334
    %v5336 = vpop.xlane.xlu0 %5335
    %v5337 = vrcp.pop %v5330
    %v5338 = vrcp.pop %v5333
    %v5339 = vrcp.pop %v5336
    %v5340 = vmul.f32 %v5323, %v5337
    %v5341 = vmul.f32 %v5325, %v5338
    %v5342 = vmul.f32 %v5327, %v5339
    %v5343 = vpack.c.bf16 %v5341, %v5340
    %v5344 = vpack.c.bf16 %v5342, %v5342
    %v5346 = vsel %vm1556, %v5343, 0
    %v5349 = vsel %vm1556, %v5344, 0
    %v5352 = vand.u32 %v4575, %v1601
    %5354 = vmatprep.subr.bf16.mxu0 0
    %5355 = vmatpush1.bf16.msra.mxu0 %v4574
    %5356 = vmatprep.subr.bf16.mxu0 0
    %5357 = vmatpush1.bf16.msra.mxu0 %v5352
    %5358 = vmatprep.subr.bf16.mxu0 0
    %5359 = vmatpush1.bf16.msra.mxu0 0
    %5360 = vmatprep.subr.bf16.mxu0 0
    %5361 = vmatpush1.bf16.msra.mxu0 0
    %5362 = vmatprep.subr.bf16.mxu0 0
    %5363 = vmatpush1.bf16.msra.mxu0 0
    %5364 = vmatprep.subr.bf16.mxu0 0
    %5365 = vmatpush1.bf16.msra.mxu0 0
    %5366 = vmatprep.subr.bf16.mxu0 0
    %5367 = vmatpush1.bf16.msra.mxu0 0
    %5368 = vmatprep.subr.bf16.mxu0 0
    %5369 = vmatpush1.bf16.msra.mxu0 0
    %5370 = vmatprep.subr.bf16.mxu0 0
    %5371 = vmatpush1.bf16.msra.mxu0 0
    %5372 = vmatprep.subr.bf16.mxu0 0
    %5373 = vmatpush1.bf16.msra.mxu0 0
    %5374 = vmatprep.subr.bf16.mxu0 0
    %5375 = vmatpush1.bf16.msra.mxu0 0
    %5376 = vmatprep.subr.bf16.mxu0 0
    %5377 = vmatpush1.bf16.msra.mxu0 0
    %5378 = vmatprep.subr.bf16.mxu0 0
    %5379 = vmatpush1.bf16.msra.mxu0 0
    %5380 = vmatprep.subr.bf16.mxu0 0
    %5381 = vmatpush1.bf16.msra.mxu0 0
    %5382 = vmatprep.subr.bf16.mxu0 0
    %5383 = vmatpush1.bf16.msra.mxu0 0
    %5384 = vmatprep.subr.bf16.mxu0 0
    %5385 = vmatpush1.bf16.msra.mxu0 0
    %5386 = vmatprep.mubr.bf16.mxu0 0
    %5387 = vmatmul.mubr.bf16.gmra.mrb[0].mxu0 %v5346
    %v5388 = vpop.f32.mrb[0].mxu0
    %v5389 = vadd.f32 0.0, %v5388
    %v5390 = vpop.f32.mrb[0].mxu0
    %v5391 = vpop.f32.mrb[0].mxu0
    %v5392 = vadd.f32 0.0, %v5391
    %v5393 = vpop.f32.mrb[0].mxu0
    %5394 = vmatprep.mubr.bf16.mxu0 0
    %5395 = vmatmul.mubr.bf16.gmra.mrb[0].mxu0 %v5349
    %v5396 = vpop.f32.mrb[0].mxu0
    %v5397 = vadd.f32 0.0, %v5396
    %v5398 = vpop.f32.mrb[0].mxu0
    %v5399 = vpop.f32.mrb[0].mxu0
    %v5400 = vpop.f32.mrb[0].mxu0
    %5401 = vdwg.mxu0
    %v5402 = vpack.c.bf16 %v5392, %v5389
    %v5403 = vpack.c.bf16 %v5397, %v5397
    %v5408 = vunpack.c.l.b16 %v3785
    %v5409 = vunpack.c.l.b16 %v3786
    %v5410 = vunpack.c.l.b16 %v3787
    %v5411 = vunpack.c.l.b16 %v3788
    %v5412 = vpack.c.b16 %v5409, %v5408
    %v5413 = vpack.c.b16 %v5411, %v5410
    %v5415 = vsel %vm1495, %v5402, 0
    %v5418 = vsel %vm1495, %v5403, 0
    %v5421 = vsel %vm1495, %v5412, 0
    %v5424 = vsel %vm1495, %v5413, 0
    %5426 = vmatprep.subr.bf16.mxu0 0
    %5427 = vmatpush1.bf16.xpose.msra.mxu0 %v5421
    %5428 = vmatprep.subr.bf16.mxu0 0
    %5429 = vmatpush1.bf16.xpose.msra.mxu0 %v5424
    %5430 = vmatprep.subr.bf16.mxu0 0
    %5431 = vmatpush1.bf16.xpose.msra.mxu0 0
    %5432 = vmatprep.subr.bf16.mxu0 0
    %5433 = vmatpush1.bf16.xpose.msra.mxu0 0
    %5434 = vmatprep.subr.bf16.mxu0 0
    %5435 = vmatpush1.bf16.xpose.msra.mxu0 0
    %5436 = vmatprep.subr.bf16.mxu0 0
    %5437 = vmatpush1.bf16.xpose.msra.mxu0 0
    %5438 = vmatprep.subr.bf16.mxu0 0
    %5439 = vmatpush1.bf16.xpose.msra.mxu0 0
    %5440 = vmatprep.subr.bf16.mxu0 0
    %5441 = vmatpush1.bf16.xpose.msra.mxu0 0
    %5442 = vmatprep.subr.bf16.mxu0 0
    %5443 = vmatpush1.bf16.xpose.msra.mxu0 0
    %5444 = vmatprep.subr.bf16.mxu0 0
    %5445 = vmatpush1.bf16.xpose.msra.mxu0 0
    %5446 = vmatprep.subr.bf16.mxu0 0
    %5447 = vmatpush1.bf16.xpose.msra.mxu0 0
    %5448 = vmatprep.subr.bf16.mxu0 0
    %5449 = vmatpush1.bf16.xpose.msra.mxu0 0
    %5450 = vmatprep.subr.bf16.mxu0 0
    %5451 = vmatpush1.bf16.xpose.msra.mxu0 0
    %5452 = vmatprep.subr.bf16.mxu0 0
    %5453 = vmatpush1.bf16.xpose.msra.mxu0 0
    %5454 = vmatprep.subr.bf16.mxu0 0
    %5455 = vmatpush1.bf16.xpose.msra.mxu0 0
    %5456 = vmatprep.subr.bf16.mxu0 0
    %5457 = vmatpush1.bf16.xpose.msra.mxu0 0
    %5458 = vmatprep.mubr.bf16.mxu0 0
    %5459 = vmatmul.mubr.bf16.gmra.mrb[0].mxu0 %v5415
    %v5460 = vpop.f32.mrb[0].mxu0
    %v5461 = vadd.f32 0.0, %v5460
    %v5462 = vpop.f32.mrb[0].mxu0
    %v5463 = vpop.f32.mrb[0].mxu0
    %v5464 = vadd.f32 0.0, %v5463
    %v5465 = vpop.f32.mrb[0].mxu0
    %5466 = vmatprep.mubr.bf16.mxu0 0
    %5467 = vmatmul.mubr.bf16.gmra.mrb[0].mxu0 %v5418
    %v5468 = vpop.f32.mrb[0].mxu0
    %v5469 = vadd.f32 0.0, %v5468
    %v5470 = vpop.f32.mrb[0].mxu0
    %v5471 = vpop.f32.mrb[0].mxu0
    %v5472 = vpop.f32.mrb[0].mxu0
    %5473 = vdwg.mxu0
    %v5474 = vadd.f32 %v5237, %v5461
    %v5475 = vadd.f32 %v5240, %v5464
    %v5476 = vadd.f32 %v5245, %v5469
    %v5478 = vsel %vm1495, %v4793, 0
    %v5481 = vsel %vm1495, %v4794, 0
    %v5484 = vsel %vm1495, %v4796, 0
    %v5487 = vsel %vm1495, %v4797, 0
    %5489 = vmatprep.subr.bf16.mxu0 0
    %5490 = vmatpush1.bf16.xpose.msra.mxu0 %v5484
    %5491 = vmatprep.subr.bf16.mxu0 0
    %5492 = vmatpush1.bf16.xpose.msra.mxu0 %v5487
    %5493 = vmatprep.subr.bf16.mxu0 0
    %5494 = vmatpush1.bf16.xpose.msra.mxu0 0
    %5495 = vmatprep.subr.bf16.mxu0 0
    %5496 = vmatpush1.bf16.xpose.msra.mxu0 0
    %5497 = vmatprep.subr.bf16.mxu0 0
    %5498 = vmatpush1.bf16.xpose.msra.mxu0 0
    %5499 = vmatprep.subr.bf16.mxu0 0
    %5500 = vmatpush1.bf16.xpose.msra.mxu0 0
    %5501 = vmatprep.subr.bf16.mxu0 0
    %5502 = vmatpush1.bf16.xpose.msra.mxu0 0
    %5503 = vmatprep.subr.bf16.mxu0 0
    %5504 = vmatpush1.bf16.xpose.msra.mxu0 0
    %5505 = vmatprep.subr.bf16.mxu0 0
    %5506 = vmatpush1.bf16.xpose.msra.mxu0 0
    %5507 = vmatprep.subr.bf16.mxu0 0
    %5508 = vmatpush1.bf16.xpose.msra.mxu0 0
    %5509 = vmatprep.subr.bf16.mxu0 0
    %5510 = vmatpush1.bf16.xpose.msra.mxu0 0
    %5511 = vmatprep.subr.bf16.mxu0 0
    %5512 = vmatpush1.bf16.xpose.msra.mxu0 0
    %5513 = vmatprep.subr.bf16.mxu0 0
    %5514 = vmatpush1.bf16.xpose.msra.mxu0 0
    %5515 = vmatprep.subr.bf16.mxu0 0
    %5516 = vmatpush1.bf16.xpose.msra.mxu0 0
    %5517 = vmatprep.subr.bf16.mxu0 0
    %5518 = vmatpush1.bf16.xpose.msra.mxu0 0
    %5519 = vmatprep.subr.bf16.mxu0 0
    %5520 = vmatpush1.bf16.xpose.msra.mxu0 0
    %5521 = vmatprep.mubr.bf16.mxu0 0
    %5522 = vmatmul.mubr.bf16.gmra.mrb[0].mxu0 %v5478
    %v5523 = vpop.f32.mrb[0].mxu0
    %v5524 = vadd.f32 0.0, %v5523
    %v5525 = vpop.f32.mrb[0].mxu0
    %v5526 = vpop.f32.mrb[0].mxu0
    %v5527 = vadd.f32 0.0, %v5526
    %v5528 = vpop.f32.mrb[0].mxu0
    %5529 = vmatprep.mubr.bf16.mxu0 0
    %5530 = vmatmul.mubr.bf16.gmra.mrb[0].mxu0 %v5481
    %v5531 = vpop.f32.mrb[0].mxu0
    %v5532 = vadd.f32 0.0, %v5531
    %v5533 = vpop.f32.mrb[0].mxu0
    %v5534 = vpop.f32.mrb[0].mxu0
    %v5535 = vpop.f32.mrb[0].mxu0
    %5536 = vdwg.mxu0
    %v5537 = vsel %vm1556, %v5524, -inf
    %5538 = vmax.xlane.f32.xlu0 %v5537
    %v5539 = vpop.xlane.xlu0 %5538
    %v5540 = vsel %vm1556, %v5527, -inf
    %5541 = vmax.xlane.f32.xlu0 %v5540
    %v5542 = vpop.xlane.xlu0 %5541
    %v5543 = vsel %vm1563, %v5532, -inf
    %5544 = vmax.xlane.f32.xlu0 %v5543
    %v5545 = vpop.xlane.xlu0 %5544
    %v5546 = vsub.f32 %v5524, %v5539
    %v5547 = vsub.f32 %v5527, %v5542
    %v5548 = vsub.f32 %v5532, %v5545
    %v5549 = vmul.f32 %v5546, 1.442695
    %v5550 = vpow.pop %v5549
    %v5551 = vmul.f32 %v5547, 1.442695
    %v5552 = vpow.pop %v5551
    %v5553 = vmul.f32 %v5548, 1.442695
    %v5554 = vpow.pop %v5553
    %v5555 = vsel %vm1556, %v5550, 0.0
    %5556 = vadd.xlane.f32.xlu0 %v5555
    %v5557 = vpop.xlane.xlu0 %5556
    %v5558 = vsel %vm1556, %v5552, 0.0
    %5559 = vadd.xlane.f32.xlu0 %v5558
    %v5560 = vpop.xlane.xlu0 %5559
    %v5561 = vsel %vm1563, %v5554, 0.0
    %5562 = vadd.xlane.f32.xlu0 %v5561
    %v5563 = vpop.xlane.xlu0 %5562
    %v5564 = vrcp.pop %v5557
    %v5565 = vrcp.pop %v5560
    %v5566 = vrcp.pop %v5563
    %v5567 = vmul.f32 %v5550, %v5564
    %v5568 = vmul.f32 %v5552, %v5565
    %v5569 = vmul.f32 %v5554, %v5566
    %v5570 = vpack.c.bf16 %v5568, %v5567
    %v5571 = vpack.c.bf16 %v5569, %v5569
    %v5573 = vsel %vm1556, %v5570, 0
    %v5576 = vsel %vm1556, %v5571, 0
    %v5579 = vand.u32 %v4800, %v1601
    %5581 = vmatprep.subr.bf16.mxu0 0
    %5582 = vmatpush1.bf16.msra.mxu0 %v4799
    %5583 = vmatprep.subr.bf16.mxu0 0
    %5584 = vmatpush1.bf16.msra.mxu0 %v5579
    %5585 = vmatprep.subr.bf16.mxu0 0
    %5586 = vmatpush1.bf16.msra.mxu0 0
    %5587 = vmatprep.subr.bf16.mxu0 0
    %5588 = vmatpush1.bf16.msra.mxu0 0
    %5589 = vmatprep.subr.bf16.mxu0 0
    %5590 = vmatpush1.bf16.msra.mxu0 0
    %5591 = vmatprep.subr.bf16.mxu0 0
    %5592 = vmatpush1.bf16.msra.mxu0 0
    %5593 = vmatprep.subr.bf16.mxu0 0
    %5594 = vmatpush1.bf16.msra.mxu0 0
    %5595 = vmatprep.subr.bf16.mxu0 0
    %5596 = vmatpush1.bf16.msra.mxu0 0
    %5597 = vmatprep.subr.bf16.mxu0 0
    %5598 = vmatpush1.bf16.msra.mxu0 0
    %5599 = vmatprep.subr.bf16.mxu0 0
    %5600 = vmatpush1.bf16.msra.mxu0 0
    %5601 = vmatprep.subr.bf16.mxu0 0
    %5602 = vmatpush1.bf16.msra.mxu0 0
    %5603 = vmatprep.subr.bf16.mxu0 0
    %5604 = vmatpush1.bf16.msra.mxu0 0
    %5605 = vmatprep.subr.bf16.mxu0 0
    %5606 = vmatpush1.bf16.msra.mxu0 0
    %5607 = vmatprep.subr.bf16.mxu0 0
    %5608 = vmatpush1.bf16.msra.mxu0 0
    %5609 = vmatprep.subr.bf16.mxu0 0
    %5610 = vmatpush1.bf16.msra.mxu0 0
    %5611 = vmatprep.subr.bf16.mxu0 0
    %5612 = vmatpush1.bf16.msra.mxu0 0
    %5613 = vmatprep.mubr.bf16.mxu0 0
    %5614 = vmatmul.mubr.bf16.gmra.mrb[0].mxu0 %v5573
    %v5615 = vpop.f32.mrb[0].mxu0
    %v5616 = vadd.f32 0.0, %v5615
    %v5617 = vpop.f32.mrb[0].mxu0
    %v5618 = vpop.f32.mrb[0].mxu0
    %v5619 = vadd.f32 0.0, %v5618
    %v5620 = vpop.f32.mrb[0].mxu0
    %5621 = vmatprep.mubr.bf16.mxu0 0
    %5622 = vmatmul.mubr.bf16.gmra.mrb[0].mxu0 %v5576
    %v5623 = vpop.f32.mrb[0].mxu0
    %v5624 = vadd.f32 0.0, %v5623
    %v5625 = vpop.f32.mrb[0].mxu0
    %v5626 = vpop.f32.mrb[0].mxu0
    %v5627 = vpop.f32.mrb[0].mxu0
    %5628 = vdwg.mxu0
    %v5629 = vpack.c.bf16 %v5619, %v5616
    %v5630 = vpack.c.bf16 %v5624, %v5624
    %v5635 = vunpack.c.l.b16 %v3789
    %v5636 = vunpack.c.l.b16 %v3790
    %v5637 = vunpack.c.l.b16 %v3791
    %v5638 = vunpack.c.l.b16 %v3792
    %v5639 = vpack.c.b16 %v5636, %v5635
    %v5640 = vpack.c.b16 %v5638, %v5637
    %v5642 = vsel %vm1495, %v5629, 0
    %v5645 = vsel %vm1495, %v5630, 0
    %v5648 = vsel %vm1495, %v5639, 0
    %v5651 = vsel %vm1495, %v5640, 0
    %5653 = vmatprep.subr.bf16.mxu0 0
    %5654 = vmatpush1.bf16.xpose.msra.mxu0 %v5648
    %5655 = vmatprep.subr.bf16.mxu0 0
    %5656 = vmatpush1.bf16.xpose.msra.mxu0 %v5651
    %5657 = vmatprep.subr.bf16.mxu0 0
    %5658 = vmatpush1.bf16.xpose.msra.mxu0 0
    %5659 = vmatprep.subr.bf16.mxu0 0
    %5660 = vmatpush1.bf16.xpose.msra.mxu0 0
    %5661 = vmatprep.subr.bf16.mxu0 0
    %5662 = vmatpush1.bf16.xpose.msra.mxu0 0
    %5663 = vmatprep.subr.bf16.mxu0 0
    %5664 = vmatpush1.bf16.xpose.msra.mxu0 0
    %5665 = vmatprep.subr.bf16.mxu0 0
    %5666 = vmatpush1.bf16.xpose.msra.mxu0 0
    %5667 = vmatprep.subr.bf16.mxu0 0
    %5668 = vmatpush1.bf16.xpose.msra.mxu0 0
    %5669 = vmatprep.subr.bf16.mxu0 0
    %5670 = vmatpush1.bf16.xpose.msra.mxu0 0
    %5671 = vmatprep.subr.bf16.mxu0 0
    %5672 = vmatpush1.bf16.xpose.msra.mxu0 0
    %5673 = vmatprep.subr.bf16.mxu0 0
    %5674 = vmatpush1.bf16.xpose.msra.mxu0 0
    %5675 = vmatprep.subr.bf16.mxu0 0
    %5676 = vmatpush1.bf16.xpose.msra.mxu0 0
    %5677 = vmatprep.subr.bf16.mxu0 0
    %5678 = vmatpush1.bf16.xpose.msra.mxu0 0
    %5679 = vmatprep.subr.bf16.mxu0 0
    %5680 = vmatpush1.bf16.xpose.msra.mxu0 0
    %5681 = vmatprep.subr.bf16.mxu0 0
    %5682 = vmatpush1.bf16.xpose.msra.mxu0 0
    %5683 = vmatprep.subr.bf16.mxu0 0
    %5684 = vmatpush1.bf16.xpose.msra.mxu0 0
    %5685 = vmatprep.mubr.bf16.mxu0 0
    %5686 = vmatmul.mubr.bf16.gmra.mrb[0].mxu0 %v5642
    %v5687 = vpop.f32.mrb[0].mxu0
    %v5688 = vadd.f32 0.0, %v5687
    %v5689 = vpop.f32.mrb[0].mxu0
    %v5690 = vpop.f32.mrb[0].mxu0
    %v5691 = vadd.f32 0.0, %v5690
    %v5692 = vpop.f32.mrb[0].mxu0
    %5693 = vmatprep.mubr.bf16.mxu0 0
    %5694 = vmatmul.mubr.bf16.gmra.mrb[0].mxu0 %v5645
    %v5695 = vpop.f32.mrb[0].mxu0
    %v5696 = vadd.f32 0.0, %v5695
    %v5697 = vpop.f32.mrb[0].mxu0
    %v5698 = vpop.f32.mrb[0].mxu0
    %v5699 = vpop.f32.mrb[0].mxu0
    %5700 = vdwg.mxu0
    %v5701 = vadd.f32 %v5474, %v5688
    %v5702 = vadd.f32 %v5475, %v5691
    %v5703 = vadd.f32 %v5476, %v5696
    %v5704 = vshrl.u32 %v4119, 16
    %v5706 = vshll.u32 %v4119, 16
    %v5708 = vrot.slane %v5706, 1
    %v5709 = vor.u32 %v5704, %v5708
    %v5711 = vshll.u32 %v4120, 16
    %v5713 = vrot.slane %v5711, 1
    %v5714 = vsel %vm2403, %v5709, %v5713
    %v5715 = vshrl.u32 %v4120, 16
    %v5717 = vshrl.u32 %v4122, 16
    %v5719 = vshll.u32 %v4122, 16
    %v5721 = vrot.slane %v5719, 1
    %v5722 = vor.u32 %v5717, %v5721
    %v5724 = vshll.u32 %v4123, 16
    %v5726 = vrot.slane %v5724, 1
    %v5727 = vsel %vm2403, %v5722, %v5726
    %v5728 = vshrl.u32 %v4123, 16
    %v5731 = vsel %vm1495, %v5714, 0
    %v5734 = vsel %vm1495, %v5715, 0
    %v5737 = vsel %vm1495, %v5727, 0
    %v5740 = vsel %vm1495, %v5728, 0
    %5742 = vmatprep.subr.bf16.mxu0 0
    %5743 = vmatpush1.bf16.xpose.msra.mxu0 %v5737
    %5744 = vmatprep.subr.bf16.mxu0 0
    %5745 = vmatpush1.bf16.xpose.msra.mxu0 %v5740
    %5746 = vmatprep.subr.bf16.mxu0 0
    %5747 = vmatpush1.bf16.xpose.msra.mxu0 0
    %5748 = vmatprep.subr.bf16.mxu0 0
    %5749 = vmatpush1.bf16.xpose.msra.mxu0 0
    %5750 = vmatprep.subr.bf16.mxu0 0
    %5751 = vmatpush1.bf16.xpose.msra.mxu0 0
    %5752 = vmatprep.subr.bf16.mxu0 0
    %5753 = vmatpush1.bf16.xpose.msra.mxu0 0
    %5754 = vmatprep.subr.bf16.mxu0 0
    %5755 = vmatpush1.bf16.xpose.msra.mxu0 0
    %5756 = vmatprep.subr.bf16.mxu0 0
    %5757 = vmatpush1.bf16.xpose.msra.mxu0 0
    %5758 = vmatprep.subr.bf16.mxu0 0
    %5759 = vmatpush1.bf16.xpose.msra.mxu0 0
    %5760 = vmatprep.subr.bf16.mxu0 0
    %5761 = vmatpush1.bf16.xpose.msra.mxu0 0
    %5762 = vmatprep.subr.bf16.mxu0 0
    %5763 = vmatpush1.bf16.xpose.msra.mxu0 0
    %5764 = vmatprep.subr.bf16.mxu0 0
    %5765 = vmatpush1.bf16.xpose.msra.mxu0 0
    %5766 = vmatprep.subr.bf16.mxu0 0
    %5767 = vmatpush1.bf16.xpose.msra.mxu0 0
    %5768 = vmatprep.subr.bf16.mxu0 0
    %5769 = vmatpush1.bf16.xpose.msra.mxu0 0
    %5770 = vmatprep.subr.bf16.mxu0 0
    %5771 = vmatpush1.bf16.xpose.msra.mxu0 0
    %5772 = vmatprep.subr.bf16.mxu0 0
    %5773 = vmatpush1.bf16.xpose.msra.mxu0 0
    %5774 = vmatprep.mubr.bf16.mxu0 0
    %5775 = vmatmul.mubr.bf16.gmra.mrb[0].mxu0 %v5731
    %v5776 = vpop.f32.mrb[0].mxu0
    %v5777 = vadd.f32 0.0, %v5776
    %v5778 = vpop.f32.mrb[0].mxu0
    %v5779 = vpop.f32.mrb[0].mxu0
    %v5780 = vadd.f32 0.0, %v5779
    %v5781 = vpop.f32.mrb[0].mxu0
    %5782 = vmatprep.mubr.bf16.mxu0 0
    %5783 = vmatmul.mubr.bf16.gmra.mrb[0].mxu0 %v5734
    %v5784 = vpop.f32.mrb[0].mxu0
    %v5785 = vadd.f32 0.0, %v5784
    %v5786 = vpop.f32.mrb[0].mxu0
    %v5787 = vpop.f32.mrb[0].mxu0
    %v5788 = vpop.f32.mrb[0].mxu0
    %5789 = vdwg.mxu0
    %v5790 = vsel %vm1556, %v5777, -inf
    %5791 = vmax.xlane.f32.xlu0 %v5790
    %v5792 = vpop.xlane.xlu0 %5791
    %v5793 = vsel %vm1556, %v5780, -inf
    %5794 = vmax.xlane.f32.xlu0 %v5793
    %v5795 = vpop.xlane.xlu0 %5794
    %v5796 = vsel %vm1563, %v5785, -inf
    %5797 = vmax.xlane.f32.xlu0 %v5796
    %v5798 = vpop.xlane.xlu0 %5797
    %v5799 = vsub.f32 %v5777, %v5792
    %v5800 = vsub.f32 %v5780, %v5795
    %v5801 = vsub.f32 %v5785, %v5798
    %v5802 = vmul.f32 %v5799, 1.442695
    %v5803 = vpow.pop %v5802
    %v5804 = vmul.f32 %v5800, 1.442695
    %v5805 = vpow.pop %v5804
    %v5806 = vmul.f32 %v5801, 1.442695
    %v5807 = vpow.pop %v5806
    %v5808 = vsel %vm1556, %v5803, 0.0
    %5809 = vadd.xlane.f32.xlu0 %v5808
    %v5810 = vpop.xlane.xlu0 %5809
    %v5811 = vsel %vm1556, %v5805, 0.0
    %5812 = vadd.xlane.f32.xlu0 %v5811
    %v5813 = vpop.xlane.xlu0 %5812
    %v5814 = vsel %vm1563, %v5807, 0.0
    %5815 = vadd.xlane.f32.xlu0 %v5814
    %v5816 = vpop.xlane.xlu0 %5815
    %v5817 = vrcp.pop %v5810
    %v5818 = vrcp.pop %v5813
    %v5819 = vrcp.pop %v5816
    %v5820 = vmul.f32 %v5803, %v5817
    %v5821 = vmul.f32 %v5805, %v5818
    %v5822 = vmul.f32 %v5807, %v5819
    %v5823 = vpack.c.bf16 %v5821, %v5820
    %v5824 = vpack.c.bf16 %v5822, %v5822
    %v5825 = vshrl.u32 %v4125, 16
    %v5827 = vshll.u32 %v4125, 16
    %v5829 = vrot.slane %v5827, 1
    %v5830 = vor.u32 %v5825, %v5829
    %v5832 = vshll.u32 %v4126, 16
    %v5834 = vrot.slane %v5832, 1
    %v5835 = vsel %vm2403, %v5830, %v5834
    %v5836 = vshrl.u32 %v4126, 16
    %v5840 = vsel %vm1556, %v5823, 0
    %v5843 = vsel %vm1556, %v5824, 0
    %v5846 = vand.u32 %v5836, %v1601
    %5848 = vmatprep.subr.bf16.mxu0 0
    %5849 = vmatpush1.bf16.msra.mxu0 %v5835
    %5850 = vmatprep.subr.bf16.mxu0 0
    %5851 = vmatpush1.bf16.msra.mxu0 %v5846
    %5852 = vmatprep.subr.bf16.mxu0 0
    %5853 = vmatpush1.bf16.msra.mxu0 0
    %5854 = vmatprep.subr.bf16.mxu0 0
    %5855 = vmatpush1.bf16.msra.mxu0 0
    %5856 = vmatprep.subr.bf16.mxu0 0
    %5857 = vmatpush1.bf16.msra.mxu0 0
    %5858 = vmatprep.subr.bf16.mxu0 0
    %5859 = vmatpush1.bf16.msra.mxu0 0
    %5860 = vmatprep.subr.bf16.mxu0 0
    %5861 = vmatpush1.bf16.msra.mxu0 0
    %5862 = vmatprep.subr.bf16.mxu0 0
    %5863 = vmatpush1.bf16.msra.mxu0 0
    %5864 = vmatprep.subr.bf16.mxu0 0
    %5865 = vmatpush1.bf16.msra.mxu0 0
    %5866 = vmatprep.subr.bf16.mxu0 0
    %5867 = vmatpush1.bf16.msra.mxu0 0
    %5868 = vmatprep.subr.bf16.mxu0 0
    %5869 = vmatpush1.bf16.msra.mxu0 0
    %5870 = vmatprep.subr.bf16.mxu0 0
    %5871 = vmatpush1.bf16.msra.mxu0 0
    %5872 = vmatprep.subr.bf16.mxu0 0
    %5873 = vmatpush1.bf16.msra.mxu0 0
    %5874 = vmatprep.subr.bf16.mxu0 0
    %5875 = vmatpush1.bf16.msra.mxu0 0
    %5876 = vmatprep.subr.bf16.mxu0 0
    %5877 = vmatpush1.bf16.msra.mxu0 0
    %5878 = vmatprep.subr.bf16.mxu0 0
    %5879 = vmatpush1.bf16.msra.mxu0 0
    %5880 = vmatprep.mubr.bf16.mxu0 0
    %5881 = vmatmul.mubr.bf16.gmra.mrb[0].mxu0 %v5840
    %v5882 = vpop.f32.mrb[0].mxu0
    %v5883 = vadd.f32 0.0, %v5882
    %v5884 = vpop.f32.mrb[0].mxu0
    %v5885 = vpop.f32.mrb[0].mxu0
    %v5886 = vadd.f32 0.0, %v5885
    %v5887 = vpop.f32.mrb[0].mxu0
    %5888 = vmatprep.mubr.bf16.mxu0 0
    %5889 = vmatmul.mubr.bf16.gmra.mrb[0].mxu0 %v5843
    %v5890 = vpop.f32.mrb[0].mxu0
    %v5891 = vadd.f32 0.0, %v5890
    %v5892 = vpop.f32.mrb[0].mxu0
    %v5893 = vpop.f32.mrb[0].mxu0
    %v5894 = vpop.f32.mrb[0].mxu0
    %5895 = vdwg.mxu0
    %v5896 = vpack.c.bf16 %v5886, %v5883
    %v5897 = vpack.c.bf16 %v5891, %v5891
    %v5898 = vshrl.u32 %v4344, 16
    %v5900 = vshll.u32 %v4344, 16
    %v5902 = vrot.slane %v5900, 1
    %v5903 = vor.u32 %v5898, %v5902
    %v5905 = vshll.u32 %v4345, 16
    %v5907 = vrot.slane %v5905, 1
    %v5908 = vsel %vm2403, %v5903, %v5907
    %v5909 = vshrl.u32 %v4345, 16
    %v5911 = vshrl.u32 %v4347, 16
    %v5913 = vshll.u32 %v4347, 16
    %v5915 = vrot.slane %v5913, 1
    %v5916 = vor.u32 %v5911, %v5915
    %v5918 = vshll.u32 %v4348, 16
    %v5920 = vrot.slane %v5918, 1
    %v5921 = vsel %vm2403, %v5916, %v5920
    %v5922 = vshrl.u32 %v4348, 16
    %v5925 = vsel %vm1495, %v5908, 0
    %v5928 = vsel %vm1495, %v5909, 0
    %v5931 = vsel %vm1495, %v5921, 0
    %v5934 = vsel %vm1495, %v5922, 0
    %5936 = vmatprep.subr.bf16.mxu0 0
    %5937 = vmatpush1.bf16.xpose.msra.mxu0 %v5931
    %5938 = vmatprep.subr.bf16.mxu0 0
    %5939 = vmatpush1.bf16.xpose.msra.mxu0 %v5934
    %5940 = vmatprep.subr.bf16.mxu0 0
    %5941 = vmatpush1.bf16.xpose.msra.mxu0 0
    %5942 = vmatprep.subr.bf16.mxu0 0
    %5943 = vmatpush1.bf16.xpose.msra.mxu0 0
    %5944 = vmatprep.subr.bf16.mxu0 0
    %5945 = vmatpush1.bf16.xpose.msra.mxu0 0
    %5946 = vmatprep.subr.bf16.mxu0 0
    %5947 = vmatpush1.bf16.xpose.msra.mxu0 0
    %5948 = vmatprep.subr.bf16.mxu0 0
    %5949 = vmatpush1.bf16.xpose.msra.mxu0 0
    %5950 = vmatprep.subr.bf16.mxu0 0
    %5951 = vmatpush1.bf16.xpose.msra.mxu0 0
    %5952 = vmatprep.subr.bf16.mxu0 0
    %5953 = vmatpush1.bf16.xpose.msra.mxu0 0
    %5954 = vmatprep.subr.bf16.mxu0 0
    %5955 = vmatpush1.bf16.xpose.msra.mxu0 0
    %5956 = vmatprep.subr.bf16.mxu0 0
    %5957 = vmatpush1.bf16.xpose.msra.mxu0 0
    %5958 = vmatprep.subr.bf16.mxu0 0
    %5959 = vmatpush1.bf16.xpose.msra.mxu0 0
    %5960 = vmatprep.subr.bf16.mxu0 0
    %5961 = vmatpush1.bf16.xpose.msra.mxu0 0
    %5962 = vmatprep.subr.bf16.mxu0 0
    %5963 = vmatpush1.bf16.xpose.msra.mxu0 0
    %5964 = vmatprep.subr.bf16.mxu0 0
    %5965 = vmatpush1.bf16.xpose.msra.mxu0 0
    %5966 = vmatprep.subr.bf16.mxu0 0
    %5967 = vmatpush1.bf16.xpose.msra.mxu0 0
    %5968 = vmatprep.mubr.bf16.mxu0 0
    %5969 = vmatmul.mubr.bf16.gmra.mrb[0].mxu0 %v5925
    %v5970 = vpop.f32.mrb[0].mxu0
    %v5971 = vadd.f32 0.0, %v5970
    %v5972 = vpop.f32.mrb[0].mxu0
    %v5973 = vpop.f32.mrb[0].mxu0
    %v5974 = vadd.f32 0.0, %v5973
    %v5975 = vpop.f32.mrb[0].mxu0
    %5976 = vmatprep.mubr.bf16.mxu0 0
    %5977 = vmatmul.mubr.bf16.gmra.mrb[0].mxu0 %v5928
    %v5978 = vpop.f32.mrb[0].mxu0
    %v5979 = vadd.f32 0.0, %v5978
    %v5980 = vpop.f32.mrb[0].mxu0
    %v5981 = vpop.f32.mrb[0].mxu0
    %v5982 = vpop.f32.mrb[0].mxu0
    %5983 = vdwg.mxu0
    %v5984 = vsel %vm1556, %v5971, -inf
    %5985 = vmax.xlane.f32.xlu0 %v5984
    %v5986 = vpop.xlane.xlu0 %5985
    %v5987 = vsel %vm1556, %v5974, -inf
    %5988 = vmax.xlane.f32.xlu0 %v5987
    %v5989 = vpop.xlane.xlu0 %5988
    %v5990 = vsel %vm1563, %v5979, -inf
    %5991 = vmax.xlane.f32.xlu0 %v5990
    %v5992 = vpop.xlane.xlu0 %5991
    %v5993 = vsub.f32 %v5971, %v5986
    %v5994 = vsub.f32 %v5974, %v5989
    %v5995 = vsub.f32 %v5979, %v5992
    %v5996 = vmul.f32 %v5993, 1.442695
    %v5997 = vpow.pop %v5996
    %v5998 = vmul.f32 %v5994, 1.442695
    %v5999 = vpow.pop %v5998
    %v6000 = vmul.f32 %v5995, 1.442695
    %v6001 = vpow.pop %v6000
    %v6002 = vsel %vm1556, %v5997, 0.0
    %6003 = vadd.xlane.f32.xlu0 %v6002
    %v6004 = vpop.xlane.xlu0 %6003
    %v6005 = vsel %vm1556, %v5999, 0.0
    %6006 = vadd.xlane.f32.xlu0 %v6005
    %v6007 = vpop.xlane.xlu0 %6006
    %v6008 = vsel %vm1563, %v6001, 0.0
    %6009 = vadd.xlane.f32.xlu0 %v6008
    %v6010 = vpop.xlane.xlu0 %6009
    %v6011 = vrcp.pop %v6004
    %v6012 = vrcp.pop %v6007
    %v6013 = vrcp.pop %v6010
    %v6014 = vmul.f32 %v5997, %v6011
    %v6015 = vmul.f32 %v5999, %v6012
    %v6016 = vmul.f32 %v6001, %v6013
    %v6017 = vpack.c.bf16 %v6015, %v6014
    %v6018 = vpack.c.bf16 %v6016, %v6016
    %v6019 = vshrl.u32 %v4350, 16
    %v6021 = vshll.u32 %v4350, 16
    %v6023 = vrot.slane %v6021, 1
    %v6024 = vor.u32 %v6019, %v6023
    %v6026 = vshll.u32 %v4351, 16
    %v6028 = vrot.slane %v6026, 1
    %v6029 = vsel %vm2403, %v6024, %v6028
    %v6030 = vshrl.u32 %v4351, 16
    %v6034 = vsel %vm1556, %v6017, 0
    %v6037 = vsel %vm1556, %v6018, 0
    %v6040 = vand.u32 %v6030, %v1601
    %6042 = vmatprep.subr.bf16.mxu0 0
    %6043 = vmatpush1.bf16.msra.mxu0 %v6029
    %6044 = vmatprep.subr.bf16.mxu0 0
    %6045 = vmatpush1.bf16.msra.mxu0 %v6040
    %6046 = vmatprep.subr.bf16.mxu0 0
    %6047 = vmatpush1.bf16.msra.mxu0 0
    %6048 = vmatprep.subr.bf16.mxu0 0
    %6049 = vmatpush1.bf16.msra.mxu0 0
    %6050 = vmatprep.subr.bf16.mxu0 0
    %6051 = vmatpush1.bf16.msra.mxu0 0
    %6052 = vmatprep.subr.bf16.mxu0 0
    %6053 = vmatpush1.bf16.msra.mxu0 0
    %6054 = vmatprep.subr.bf16.mxu0 0
    %6055 = vmatpush1.bf16.msra.mxu0 0
    %6056 = vmatprep.subr.bf16.mxu0 0
    %6057 = vmatpush1.bf16.msra.mxu0 0
    %6058 = vmatprep.subr.bf16.mxu0 0
    %6059 = vmatpush1.bf16.msra.mxu0 0
    %6060 = vmatprep.subr.bf16.mxu0 0
    %6061 = vmatpush1.bf16.msra.mxu0 0
    %6062 = vmatprep.subr.bf16.mxu0 0
    %6063 = vmatpush1.bf16.msra.mxu0 0
    %6064 = vmatprep.subr.bf16.mxu0 0
    %6065 = vmatpush1.bf16.msra.mxu0 0
    %6066 = vmatprep.subr.bf16.mxu0 0
    %6067 = vmatpush1.bf16.msra.mxu0 0
    %6068 = vmatprep.subr.bf16.mxu0 0
    %6069 = vmatpush1.bf16.msra.mxu0 0
    %6070 = vmatprep.subr.bf16.mxu0 0
    %6071 = vmatpush1.bf16.msra.mxu0 0
    %6072 = vmatprep.subr.bf16.mxu0 0
    %6073 = vmatpush1.bf16.msra.mxu0 0
    %6074 = vmatprep.mubr.bf16.mxu0 0
    %6075 = vmatmul.mubr.bf16.gmra.mrb[0].mxu0 %v6034
    %v6076 = vpop.f32.mrb[0].mxu0
    %v6077 = vadd.f32 0.0, %v6076
    %v6078 = vpop.f32.mrb[0].mxu0
    %v6079 = vpop.f32.mrb[0].mxu0
    %v6080 = vadd.f32 0.0, %v6079
    %v6081 = vpop.f32.mrb[0].mxu0
    %6082 = vmatprep.mubr.bf16.mxu0 0
    %6083 = vmatmul.mubr.bf16.gmra.mrb[0].mxu0 %v6037
    %v6084 = vpop.f32.mrb[0].mxu0
    %v6085 = vadd.f32 0.0, %v6084
    %v6086 = vpop.f32.mrb[0].mxu0
    %v6087 = vpop.f32.mrb[0].mxu0
    %v6088 = vpop.f32.mrb[0].mxu0
    %6089 = vdwg.mxu0
    %v6090 = vpack.c.bf16 %v6080, %v6077
    %v6091 = vpack.c.bf16 %v6085, %v6085
    %v6093 = vsel %vm1495, %v6090, 0
    %v6096 = vsel %vm1495, %v6091, 0
    %6098 = vmatprep.subr.bf16.mxu0 0
    %6099 = vmatpush1.bf16.xpose.msra.mxu0 %v5127
    %6100 = vmatprep.subr.bf16.mxu0 0
    %6101 = vmatpush1.bf16.xpose.msra.mxu0 %v5130
    %6102 = vmatprep.subr.bf16.mxu0 0
    %6103 = vmatpush1.bf16.xpose.msra.mxu0 0
    %6104 = vmatprep.subr.bf16.mxu0 0
    %6105 = vmatpush1.bf16.xpose.msra.mxu0 0
    %6106 = vmatprep.subr.bf16.mxu0 0
    %6107 = vmatpush1.bf16.xpose.msra.mxu0 0
    %6108 = vmatprep.subr.bf16.mxu0 0
    %6109 = vmatpush1.bf16.xpose.msra.mxu0 0
    %6110 = vmatprep.subr.bf16.mxu0 0
    %6111 = vmatpush1.bf16.xpose.msra.mxu0 0
    %6112 = vmatprep.subr.bf16.mxu0 0
    %6113 = vmatpush1.bf16.xpose.msra.mxu0 0
    %6114 = vmatprep.subr.bf16.mxu0 0
    %6115 = vmatpush1.bf16.xpose.msra.mxu0 0
    %6116 = vmatprep.subr.bf16.mxu0 0
    %6117 = vmatpush1.bf16.xpose.msra.mxu0 0
    %6118 = vmatprep.subr.bf16.mxu0 0
    %6119 = vmatpush1.bf16.xpose.msra.mxu0 0
    %6120 = vmatprep.subr.bf16.mxu0 0
    %6121 = vmatpush1.bf16.xpose.msra.mxu0 0
    %6122 = vmatprep.subr.bf16.mxu0 0
    %6123 = vmatpush1.bf16.xpose.msra.mxu0 0
    %6124 = vmatprep.subr.bf16.mxu0 0
    %6125 = vmatpush1.bf16.xpose.msra.mxu0 0
    %6126 = vmatprep.subr.bf16.mxu0 0
    %6127 = vmatpush1.bf16.xpose.msra.mxu0 0
    %6128 = vmatprep.subr.bf16.mxu0 0
    %6129 = vmatpush1.bf16.xpose.msra.mxu0 0
    %6130 = vmatprep.mubr.bf16.mxu0 0
    %6131 = vmatmul.mubr.bf16.gmra.mrb[0].mxu0 %v6093
    %v6132 = vpop.f32.mrb[0].mxu0
    %v6133 = vadd.f32 0.0, %v6132
    %v6134 = vpop.f32.mrb[0].mxu0
    %v6135 = vpop.f32.mrb[0].mxu0
    %v6136 = vadd.f32 0.0, %v6135
    %v6137 = vpop.f32.mrb[0].mxu0
    %6138 = vmatprep.mubr.bf16.mxu0 0
    %6139 = vmatmul.mubr.bf16.gmra.mrb[0].mxu0 %v6096
    %v6140 = vpop.f32.mrb[0].mxu0
    %v6141 = vadd.f32 0.0, %v6140
    %v6142 = vpop.f32.mrb[0].mxu0
    %v6143 = vpop.f32.mrb[0].mxu0
    %v6144 = vpop.f32.mrb[0].mxu0
    %6145 = vdwg.mxu0
    %v6147 = vsel %vm1495, %v5896, 0
    %v6150 = vsel %vm1495, %v5897, 0
    %6152 = vmatprep.subr.bf16.mxu0 0
    %6153 = vmatpush1.bf16.xpose.msra.mxu0 %v5197
    %6154 = vmatprep.subr.bf16.mxu0 0
    %6155 = vmatpush1.bf16.xpose.msra.mxu0 %v5200
    %6156 = vmatprep.subr.bf16.mxu0 0
    %6157 = vmatpush1.bf16.xpose.msra.mxu0 0
    %6158 = vmatprep.subr.bf16.mxu0 0
    %6159 = vmatpush1.bf16.xpose.msra.mxu0 0
    %6160 = vmatprep.subr.bf16.mxu0 0
    %6161 = vmatpush1.bf16.xpose.msra.mxu0 0
    %6162 = vmatprep.subr.bf16.mxu0 0
    %6163 = vmatpush1.bf16.xpose.msra.mxu0 0
    %6164 = vmatprep.subr.bf16.mxu0 0
    %6165 = vmatpush1.bf16.xpose.msra.mxu0 0
    %6166 = vmatprep.subr.bf16.mxu0 0
    %6167 = vmatpush1.bf16.xpose.msra.mxu0 0
    %6168 = vmatprep.subr.bf16.mxu0 0
    %6169 = vmatpush1.bf16.xpose.msra.mxu0 0
    %6170 = vmatprep.subr.bf16.mxu0 0
    %6171 = vmatpush1.bf16.xpose.msra.mxu0 0
    %6172 = vmatprep.subr.bf16.mxu0 0
    %6173 = vmatpush1.bf16.xpose.msra.mxu0 0
    %6174 = vmatprep.subr.bf16.mxu0 0
    %6175 = vmatpush1.bf16.xpose.msra.mxu0 0
    %6176 = vmatprep.subr.bf16.mxu0 0
    %6177 = vmatpush1.bf16.xpose.msra.mxu0 0
    %6178 = vmatprep.subr.bf16.mxu0 0
    %6179 = vmatpush1.bf16.xpose.msra.mxu0 0
    %6180 = vmatprep.subr.bf16.mxu0 0
    %6181 = vmatpush1.bf16.xpose.msra.mxu0 0
    %6182 = vmatprep.subr.bf16.mxu0 0
    %6183 = vmatpush1.bf16.xpose.msra.mxu0 0
    %6184 = vmatprep.mubr.bf16.mxu0 0
    %6185 = vmatmul.mubr.bf16.gmra.mrb[0].mxu0 %v6147
    %v6186 = vpop.f32.mrb[0].mxu0
    %v6187 = vadd.f32 %v6133, %v6186
    %v6188 = vpop.f32.mrb[0].mxu0
    %v6189 = vpop.f32.mrb[0].mxu0
    %v6190 = vadd.f32 %v6136, %v6189
    %v6191 = vpop.f32.mrb[0].mxu0
    %6192 = vmatprep.mubr.bf16.mxu0 0
    %6193 = vmatmul.mubr.bf16.gmra.mrb[0].mxu0 %v6150
    %v6194 = vpop.f32.mrb[0].mxu0
    %v6195 = vadd.f32 %v6141, %v6194
    %v6196 = vpop.f32.mrb[0].mxu0
    %v6197 = vpop.f32.mrb[0].mxu0
    %v6198 = vpop.f32.mrb[0].mxu0
    %6199 = vdwg.mxu0
    %v6200 = vshrl.u32 %v4569, 16
    %v6202 = vshll.u32 %v4569, 16
    %v6204 = vrot.slane %v6202, 1
    %v6205 = vor.u32 %v6200, %v6204
    %v6207 = vshll.u32 %v4570, 16
    %v6209 = vrot.slane %v6207, 1
    %v6210 = vsel %vm2403, %v6205, %v6209
    %v6211 = vshrl.u32 %v4570, 16
    %v6213 = vshrl.u32 %v4572, 16
    %v6215 = vshll.u32 %v4572, 16
    %v6217 = vrot.slane %v6215, 1
    %v6218 = vor.u32 %v6213, %v6217
    %v6220 = vshll.u32 %v4573, 16
    %v6222 = vrot.slane %v6220, 1
    %v6223 = vsel %vm2403, %v6218, %v6222
    %v6224 = vshrl.u32 %v4573, 16
    %v6227 = vsel %vm1495, %v6210, 0
    %v6230 = vsel %vm1495, %v6211, 0
    %v6233 = vsel %vm1495, %v6223, 0
    %v6236 = vsel %vm1495, %v6224, 0
    %6238 = vmatprep.subr.bf16.mxu0 0
    %6239 = vmatpush1.bf16.xpose.msra.mxu0 %v6233
    %6240 = vmatprep.subr.bf16.mxu0 0
    %6241 = vmatpush1.bf16.xpose.msra.mxu0 %v6236
    %6242 = vmatprep.subr.bf16.mxu0 0
    %6243 = vmatpush1.bf16.xpose.msra.mxu0 0
    %6244 = vmatprep.subr.bf16.mxu0 0
    %6245 = vmatpush1.bf16.xpose.msra.mxu0 0
    %6246 = vmatprep.subr.bf16.mxu0 0
    %6247 = vmatpush1.bf16.xpose.msra.mxu0 0
    %6248 = vmatprep.subr.bf16.mxu0 0
    %6249 = vmatpush1.bf16.xpose.msra.mxu0 0
    %6250 = vmatprep.subr.bf16.mxu0 0
    %6251 = vmatpush1.bf16.xpose.msra.mxu0 0
    %6252 = vmatprep.subr.bf16.mxu0 0
    %6253 = vmatpush1.bf16.xpose.msra.mxu0 0
    %6254 = vmatprep.subr.bf16.mxu0 0
    %6255 = vmatpush1.bf16.xpose.msra.mxu0 0
    %6256 = vmatprep.subr.bf16.mxu0 0
    %6257 = vmatpush1.bf16.xpose.msra.mxu0 0
    %6258 = vmatprep.subr.bf16.mxu0 0
    %6259 = vmatpush1.bf16.xpose.msra.mxu0 0
    %6260 = vmatprep.subr.bf16.mxu0 0
    %6261 = vmatpush1.bf16.xpose.msra.mxu0 0
    %6262 = vmatprep.subr.bf16.mxu0 0
    %6263 = vmatpush1.bf16.xpose.msra.mxu0 0
    %6264 = vmatprep.subr.bf16.mxu0 0
    %6265 = vmatpush1.bf16.xpose.msra.mxu0 0
    %6266 = vmatprep.subr.bf16.mxu0 0
    %6267 = vmatpush1.bf16.xpose.msra.mxu0 0
    %6268 = vmatprep.subr.bf16.mxu0 0
    %6269 = vmatpush1.bf16.xpose.msra.mxu0 0
    %6270 = vmatprep.mubr.bf16.mxu0 0
    %6271 = vmatmul.mubr.bf16.gmra.mrb[0].mxu0 %v6227
    %v6272 = vpop.f32.mrb[0].mxu0
    %v6273 = vadd.f32 0.0, %v6272
    %v6274 = vpop.f32.mrb[0].mxu0
    %v6275 = vpop.f32.mrb[0].mxu0
    %v6276 = vadd.f32 0.0, %v6275
    %v6277 = vpop.f32.mrb[0].mxu0
    %6278 = vmatprep.mubr.bf16.mxu0 0
    %6279 = vmatmul.mubr.bf16.gmra.mrb[0].mxu0 %v6230
    %v6280 = vpop.f32.mrb[0].mxu0
    %v6281 = vadd.f32 0.0, %v6280
    %v6282 = vpop.f32.mrb[0].mxu0
    %v6283 = vpop.f32.mrb[0].mxu0
    %v6284 = vpop.f32.mrb[0].mxu0
    %6285 = vdwg.mxu0
    %v6286 = vsel %vm1556, %v6273, -inf
    %6287 = vmax.xlane.f32.xlu0 %v6286
    %v6288 = vpop.xlane.xlu0 %6287
    %v6289 = vsel %vm1556, %v6276, -inf
    %6290 = vmax.xlane.f32.xlu0 %v6289
    %v6291 = vpop.xlane.xlu0 %6290
    %v6292 = vsel %vm1563, %v6281, -inf
    %6293 = vmax.xlane.f32.xlu0 %v6292
    %v6294 = vpop.xlane.xlu0 %6293
    %v6295 = vsub.f32 %v6273, %v6288
    %v6296 = vsub.f32 %v6276, %v6291
    %v6297 = vsub.f32 %v6281, %v6294
    %v6298 = vmul.f32 %v6295, 1.442695
    %v6299 = vpow.pop %v6298
    %v6300 = vmul.f32 %v6296, 1.442695
    %v6301 = vpow.pop %v6300
    %v6302 = vmul.f32 %v6297, 1.442695
    %v6303 = vpow.pop %v6302
    %v6304 = vsel %vm1556, %v6299, 0.0
    %6305 = vadd.xlane.f32.xlu0 %v6304
    %v6306 = vpop.xlane.xlu0 %6305
    %v6307 = vsel %vm1556, %v6301, 0.0
    %6308 = vadd.xlane.f32.xlu0 %v6307
    %v6309 = vpop.xlane.xlu0 %6308
    %v6310 = vsel %vm1563, %v6303, 0.0
    %6311 = vadd.xlane.f32.xlu0 %v6310
    %v6312 = vpop.xlane.xlu0 %6311
    %v6313 = vrcp.pop %v6306
    %v6314 = vrcp.pop %v6309
    %v6315 = vrcp.pop %v6312
    %v6316 = vmul.f32 %v6299, %v6313
    %v6317 = vmul.f32 %v6301, %v6314
    %v6318 = vmul.f32 %v6303, %v6315
    %v6319 = vpack.c.bf16 %v6317, %v6316
    %v6320 = vpack.c.bf16 %v6318, %v6318
    %v6321 = vshrl.u32 %v4575, 16
    %v6323 = vshll.u32 %v4575, 16
    %v6325 = vrot.slane %v6323, 1
    %v6326 = vor.u32 %v6321, %v6325
    %v6328 = vshll.u32 %v4576, 16
    %v6330 = vrot.slane %v6328, 1
    %v6331 = vsel %vm2403, %v6326, %v6330
    %v6332 = vshrl.u32 %v4576, 16
    %v6336 = vsel %vm1556, %v6319, 0
    %v6339 = vsel %vm1556, %v6320, 0
    %v6342 = vand.u32 %v6332, %v1601
    %6344 = vmatprep.subr.bf16.mxu0 0
    %6345 = vmatpush1.bf16.msra.mxu0 %v6331
    %6346 = vmatprep.subr.bf16.mxu0 0
    %6347 = vmatpush1.bf16.msra.mxu0 %v6342
    %6348 = vmatprep.subr.bf16.mxu0 0
    %6349 = vmatpush1.bf16.msra.mxu0 0
    %6350 = vmatprep.subr.bf16.mxu0 0
    %6351 = vmatpush1.bf16.msra.mxu0 0
    %6352 = vmatprep.subr.bf16.mxu0 0
    %6353 = vmatpush1.bf16.msra.mxu0 0
    %6354 = vmatprep.subr.bf16.mxu0 0
    %6355 = vmatpush1.bf16.msra.mxu0 0
    %6356 = vmatprep.subr.bf16.mxu0 0
    %6357 = vmatpush1.bf16.msra.mxu0 0
    %6358 = vmatprep.subr.bf16.mxu0 0
    %6359 = vmatpush1.bf16.msra.mxu0 0
    %6360 = vmatprep.subr.bf16.mxu0 0
    %6361 = vmatpush1.bf16.msra.mxu0 0
    %6362 = vmatprep.subr.bf16.mxu0 0
    %6363 = vmatpush1.bf16.msra.mxu0 0
    %6364 = vmatprep.subr.bf16.mxu0 0
    %6365 = vmatpush1.bf16.msra.mxu0 0
    %6366 = vmatprep.subr.bf16.mxu0 0
    %6367 = vmatpush1.bf16.msra.mxu0 0
    %6368 = vmatprep.subr.bf16.mxu0 0
    %6369 = vmatpush1.bf16.msra.mxu0 0
    %6370 = vmatprep.subr.bf16.mxu0 0
    %6371 = vmatpush1.bf16.msra.mxu0 0
    %6372 = vmatprep.subr.bf16.mxu0 0
    %6373 = vmatpush1.bf16.msra.mxu0 0
    %6374 = vmatprep.subr.bf16.mxu0 0
    %6375 = vmatpush1.bf16.msra.mxu0 0
    %6376 = vmatprep.mubr.bf16.mxu0 0
    %6377 = vmatmul.mubr.bf16.gmra.mrb[0].mxu0 %v6336
    %v6378 = vpop.f32.mrb[0].mxu0
    %v6379 = vadd.f32 0.0, %v6378
    %v6380 = vpop.f32.mrb[0].mxu0
    %v6381 = vpop.f32.mrb[0].mxu0
    %v6382 = vadd.f32 0.0, %v6381
    %v6383 = vpop.f32.mrb[0].mxu0
    %6384 = vmatprep.mubr.bf16.mxu0 0
    %6385 = vmatmul.mubr.bf16.gmra.mrb[0].mxu0 %v6339
    %v6386 = vpop.f32.mrb[0].mxu0
    %v6387 = vadd.f32 0.0, %v6386
    %v6388 = vpop.f32.mrb[0].mxu0
    %v6389 = vpop.f32.mrb[0].mxu0
    %v6390 = vpop.f32.mrb[0].mxu0
    %6391 = vdwg.mxu0
    %v6392 = vpack.c.bf16 %v6382, %v6379
    %v6393 = vpack.c.bf16 %v6387, %v6387
    %v6395 = vsel %vm1495, %v6392, 0
    %v6398 = vsel %vm1495, %v6393, 0
    %6400 = vmatprep.subr.bf16.mxu0 0
    %6401 = vmatpush1.bf16.xpose.msra.mxu0 %v5421
    %6402 = vmatprep.subr.bf16.mxu0 0
    %6403 = vmatpush1.bf16.xpose.msra.mxu0 %v5424
    %6404 = vmatprep.subr.bf16.mxu0 0
    %6405 = vmatpush1.bf16.xpose.msra.mxu0 0
    %6406 = vmatprep.subr.bf16.mxu0 0
    %6407 = vmatpush1.bf16.xpose.msra.mxu0 0
    %6408 = vmatprep.subr.bf16.mxu0 0
    %6409 = vmatpush1.bf16.xpose.msra.mxu0 0
    %6410 = vmatprep.subr.bf16.mxu0 0
    %6411 = vmatpush1.bf16.xpose.msra.mxu0 0
    %6412 = vmatprep.subr.bf16.mxu0 0
    %6413 = vmatpush1.bf16.xpose.msra.mxu0 0
    %6414 = vmatprep.subr.bf16.mxu0 0
    %6415 = vmatpush1.bf16.xpose.msra.mxu0 0
    %6416 = vmatprep.subr.bf16.mxu0 0
    %6417 = vmatpush1.bf16.xpose.msra.mxu0 0
    %6418 = vmatprep.subr.bf16.mxu0 0
    %6419 = vmatpush1.bf16.xpose.msra.mxu0 0
    %6420 = vmatprep.subr.bf16.mxu0 0
    %6421 = vmatpush1.bf16.xpose.msra.mxu0 0
    %6422 = vmatprep.subr.bf16.mxu0 0
    %6423 = vmatpush1.bf16.xpose.msra.mxu0 0
    %6424 = vmatprep.subr.bf16.mxu0 0
    %6425 = vmatpush1.bf16.xpose.msra.mxu0 0
    %6426 = vmatprep.subr.bf16.mxu0 0
    %6427 = vmatpush1.bf16.xpose.msra.mxu0 0
    %6428 = vmatprep.subr.bf16.mxu0 0
    %6429 = vmatpush1.bf16.xpose.msra.mxu0 0
    %6430 = vmatprep.subr.bf16.mxu0 0
    %6431 = vmatpush1.bf16.xpose.msra.mxu0 0
    %6432 = vmatprep.mubr.bf16.mxu0 0
    %6433 = vmatmul.mubr.bf16.gmra.mrb[0].mxu0 %v6395
    %v6434 = vpop.f32.mrb[0].mxu0
    %v6435 = vadd.f32 0.0, %v6434
    %v6436 = vpop.f32.mrb[0].mxu0
    %v6437 = vpop.f32.mrb[0].mxu0
    %v6438 = vadd.f32 0.0, %v6437
    %v6439 = vpop.f32.mrb[0].mxu0
    %6440 = vmatprep.mubr.bf16.mxu0 0
    %6441 = vmatmul.mubr.bf16.gmra.mrb[0].mxu0 %v6398
    %v6442 = vpop.f32.mrb[0].mxu0
    %v6443 = vadd.f32 0.0, %v6442
    %v6444 = vpop.f32.mrb[0].mxu0
    %v6445 = vpop.f32.mrb[0].mxu0
    %v6446 = vpop.f32.mrb[0].mxu0
    %6447 = vdwg.mxu0
    %v6448 = vadd.f32 %v6187, %v6435
    %v6449 = vadd.f32 %v6190, %v6438
    %v6450 = vadd.f32 %v6195, %v6443
    %v6451 = vshrl.u32 %v4794, 16
    %v6453 = vshll.u32 %v4794, 16
    %v6455 = vrot.slane %v6453, 1
    %v6456 = vor.u32 %v6451, %v6455
    %v6458 = vshll.u32 %v4795, 16
    %v6460 = vrot.slane %v6458, 1
    %v6461 = vsel %vm2403, %v6456, %v6460
    %v6462 = vshrl.u32 %v4795, 16
    %v6464 = vshrl.u32 %v4797, 16
    %v6466 = vshll.u32 %v4797, 16
    %v6468 = vrot.slane %v6466, 1
    %v6469 = vor.u32 %v6464, %v6468
    %v6471 = vshll.u32 %v4798, 16
    %v6473 = vrot.slane %v6471, 1
    %v6474 = vsel %vm2403, %v6469, %v6473
    %v6475 = vshrl.u32 %v4798, 16
    %v6478 = vsel %vm1495, %v6461, 0
    %v6481 = vsel %vm1495, %v6462, 0
    %v6484 = vsel %vm1495, %v6474, 0
    %v6487 = vsel %vm1495, %v6475, 0
    %6489 = vmatprep.subr.bf16.mxu0 0
    %6490 = vmatpush1.bf16.xpose.msra.mxu0 %v6484
    %6491 = vmatprep.subr.bf16.mxu0 0
    %6492 = vmatpush1.bf16.xpose.msra.mxu0 %v6487
    %6493 = vmatprep.subr.bf16.mxu0 0
    %6494 = vmatpush1.bf16.xpose.msra.mxu0 0
    %6495 = vmatprep.subr.bf16.mxu0 0
    %6496 = vmatpush1.bf16.xpose.msra.mxu0 0
    %6497 = vmatprep.subr.bf16.mxu0 0
    %6498 = vmatpush1.bf16.xpose.msra.mxu0 0
    %6499 = vmatprep.subr.bf16.mxu0 0
    %6500 = vmatpush1.bf16.xpose.msra.mxu0 0
    %6501 = vmatprep.subr.bf16.mxu0 0
    %6502 = vmatpush1.bf16.xpose.msra.mxu0 0
    %6503 = vmatprep.subr.bf16.mxu0 0
    %6504 = vmatpush1.bf16.xpose.msra.mxu0 0
    %6505 = vmatprep.subr.bf16.mxu0 0
    %6506 = vmatpush1.bf16.xpose.msra.mxu0 0
    %6507 = vmatprep.subr.bf16.mxu0 0
    %6508 = vmatpush1.bf16.xpose.msra.mxu0 0
    %6509 = vmatprep.subr.bf16.mxu0 0
    %6510 = vmatpush1.bf16.xpose.msra.mxu0 0
    %6511 = vmatprep.subr.bf16.mxu0 0
    %6512 = vmatpush1.bf16.xpose.msra.mxu0 0
    %6513 = vmatprep.subr.bf16.mxu0 0
    %6514 = vmatpush1.bf16.xpose.msra.mxu0 0
    %6515 = vmatprep.subr.bf16.mxu0 0
    %6516 = vmatpush1.bf16.xpose.msra.mxu0 0
    %6517 = vmatprep.subr.bf16.mxu0 0
    %6518 = vmatpush1.bf16.xpose.msra.mxu0 0
    %6519 = vmatprep.subr.bf16.mxu0 0
    %6520 = vmatpush1.bf16.xpose.msra.mxu0 0
    %6521 = vmatprep.mubr.bf16.mxu0 0
    %6522 = vmatmul.mubr.bf16.gmra.mrb[0].mxu0 %v6478
    %v6523 = vpop.f32.mrb[0].mxu0
    %v6524 = vadd.f32 0.0, %v6523
    %v6525 = vpop.f32.mrb[0].mxu0
    %v6526 = vpop.f32.mrb[0].mxu0
    %v6527 = vadd.f32 0.0, %v6526
    %v6528 = vpop.f32.mrb[0].mxu0
    %6529 = vmatprep.mubr.bf16.mxu0 0
    %6530 = vmatmul.mubr.bf16.gmra.mrb[0].mxu0 %v6481
    %v6531 = vpop.f32.mrb[0].mxu0
    %v6532 = vadd.f32 0.0, %v6531
    %v6533 = vpop.f32.mrb[0].mxu0
    %v6534 = vpop.f32.mrb[0].mxu0
    %v6535 = vpop.f32.mrb[0].mxu0
    %6536 = vdwg.mxu0
    %v6537 = vsel %vm1556, %v6524, -inf
    %6538 = vmax.xlane.f32.xlu0 %v6537
    %v6539 = vpop.xlane.xlu0 %6538
    %v6540 = vsel %vm1556, %v6527, -inf
    %6541 = vmax.xlane.f32.xlu0 %v6540
    %v6542 = vpop.xlane.xlu0 %6541
    %v6543 = vsel %vm1563, %v6532, -inf
    %6544 = vmax.xlane.f32.xlu0 %v6543
    %v6545 = vpop.xlane.xlu0 %6544
    %v6546 = vsub.f32 %v6524, %v6539
    %v6547 = vsub.f32 %v6527, %v6542
    %v6548 = vsub.f32 %v6532, %v6545
    %v6549 = vmul.f32 %v6546, 1.442695
    %v6550 = vpow.pop %v6549
    %v6551 = vmul.f32 %v6547, 1.442695
    %v6552 = vpow.pop %v6551
    %v6553 = vmul.f32 %v6548, 1.442695
    %v6554 = vpow.pop %v6553
    %v6555 = vsel %vm1556, %v6550, 0.0
    %6556 = vadd.xlane.f32.xlu0 %v6555
    %v6557 = vpop.xlane.xlu0 %6556
    %v6558 = vsel %vm1556, %v6552, 0.0
    %6559 = vadd.xlane.f32.xlu0 %v6558
    %v6560 = vpop.xlane.xlu0 %6559
    %v6561 = vsel %vm1563, %v6554, 0.0
    %6562 = vadd.xlane.f32.xlu0 %v6561
    %v6563 = vpop.xlane.xlu0 %6562
    %v6564 = vrcp.pop %v6557
    %v6565 = vrcp.pop %v6560
    %v6566 = vrcp.pop %v6563
    %v6567 = vmul.f32 %v6550, %v6564
    %v6568 = vmul.f32 %v6552, %v6565
    %v6569 = vmul.f32 %v6554, %v6566
    %v6570 = vpack.c.bf16 %v6568, %v6567
    %v6571 = vpack.c.bf16 %v6569, %v6569
    %v6572 = vshrl.u32 %v4800, 16
    %v6574 = vshll.u32 %v4800, 16
    %v6576 = vrot.slane %v6574, 1
    %v6577 = vor.u32 %v6572, %v6576
    %v6579 = vshll.u32 %v4801, 16
    %v6581 = vrot.slane %v6579, 1
    %v6582 = vsel %vm2403, %v6577, %v6581
    %v6583 = vshrl.u32 %v4801, 16
    %v6587 = vsel %vm1556, %v6570, 0
    %v6590 = vsel %vm1556, %v6571, 0
    %v6593 = vand.u32 %v6583, %v1601
    %6595 = vmatprep.subr.bf16.mxu0 0
    %6596 = vmatpush1.bf16.msra.mxu0 %v6582
    %6597 = vmatprep.subr.bf16.mxu0 0
    %6598 = vmatpush1.bf16.msra.mxu0 %v6593
    %6599 = vmatprep.subr.bf16.mxu0 0
    %6600 = vmatpush1.bf16.msra.mxu0 0
    %6601 = vmatprep.subr.bf16.mxu0 0
    %6602 = vmatpush1.bf16.msra.mxu0 0
    %6603 = vmatprep.subr.bf16.mxu0 0
    %6604 = vmatpush1.bf16.msra.mxu0 0
    %6605 = vmatprep.subr.bf16.mxu0 0
    %6606 = vmatpush1.bf16.msra.mxu0 0
    %6607 = vmatprep.subr.bf16.mxu0 0
    %6608 = vmatpush1.bf16.msra.mxu0 0
    %6609 = vmatprep.subr.bf16.mxu0 0
    %6610 = vmatpush1.bf16.msra.mxu0 0
    %6611 = vmatprep.subr.bf16.mxu0 0
    %6612 = vmatpush1.bf16.msra.mxu0 0
    %6613 = vmatprep.subr.bf16.mxu0 0
    %6614 = vmatpush1.bf16.msra.mxu0 0
    %6615 = vmatprep.subr.bf16.mxu0 0
    %6616 = vmatpush1.bf16.msra.mxu0 0
    %6617 = vmatprep.subr.bf16.mxu0 0
    %6618 = vmatpush1.bf16.msra.mxu0 0
    %6619 = vmatprep.subr.bf16.mxu0 0
    %6620 = vmatpush1.bf16.msra.mxu0 0
    %6621 = vmatprep.subr.bf16.mxu0 0
    %6622 = vmatpush1.bf16.msra.mxu0 0
    %6623 = vmatprep.subr.bf16.mxu0 0
    %6624 = vmatpush1.bf16.msra.mxu0 0
    %6625 = vmatprep.subr.bf16.mxu0 0
    %6626 = vmatpush1.bf16.msra.mxu0 0
    %6627 = vmatprep.mubr.bf16.mxu0 0
    %6628 = vmatmul.mubr.bf16.gmra.mrb[0].mxu0 %v6587
    %v6629 = vpop.f32.mrb[0].mxu0
    %v6630 = vadd.f32 0.0, %v6629
    %v6631 = vpop.f32.mrb[0].mxu0
    %v6632 = vpop.f32.mrb[0].mxu0
    %v6633 = vadd.f32 0.0, %v6632
    %v6634 = vpop.f32.mrb[0].mxu0
    %6635 = vmatprep.mubr.bf16.mxu0 0
    %6636 = vmatmul.mubr.bf16.gmra.mrb[0].mxu0 %v6590
    %v6637 = vpop.f32.mrb[0].mxu0
    %v6638 = vadd.f32 0.0, %v6637
    %v6639 = vpop.f32.mrb[0].mxu0
    %v6640 = vpop.f32.mrb[0].mxu0
    %v6641 = vpop.f32.mrb[0].mxu0
    %6642 = vdwg.mxu0
    %v6643 = vpack.c.bf16 %v6633, %v6630
    %v6644 = vpack.c.bf16 %v6638, %v6638
    %v6646 = vsel %vm1495, %v6643, 0
    %v6649 = vsel %vm1495, %v6644, 0
    %6651 = vmatprep.subr.bf16.mxu0 0
    %6652 = vmatpush1.bf16.xpose.msra.mxu0 %v5648
    %6653 = vmatprep.subr.bf16.mxu0 0
    %6654 = vmatpush1.bf16.xpose.msra.mxu0 %v5651
    %6655 = vmatprep.subr.bf16.mxu0 0
    %6656 = vmatpush1.bf16.xpose.msra.mxu0 0
    %6657 = vmatprep.subr.bf16.mxu0 0
    %6658 = vmatpush1.bf16.xpose.msra.mxu0 0
    %6659 = vmatprep.subr.bf16.mxu0 0
    %6660 = vmatpush1.bf16.xpose.msra.mxu0 0
    %6661 = vmatprep.subr.bf16.mxu0 0
    %6662 = vmatpush1.bf16.xpose.msra.mxu0 0
    %6663 = vmatprep.subr.bf16.mxu0 0
    %6664 = vmatpush1.bf16.xpose.msra.mxu0 0
    %6665 = vmatprep.subr.bf16.mxu0 0
    %6666 = vmatpush1.bf16.xpose.msra.mxu0 0
    %6667 = vmatprep.subr.bf16.mxu0 0
    %6668 = vmatpush1.bf16.xpose.msra.mxu0 0
    %6669 = vmatprep.subr.bf16.mxu0 0
    %6670 = vmatpush1.bf16.xpose.msra.mxu0 0
    %6671 = vmatprep.subr.bf16.mxu0 0
    %6672 = vmatpush1.bf16.xpose.msra.mxu0 0
    %6673 = vmatprep.subr.bf16.mxu0 0
    %6674 = vmatpush1.bf16.xpose.msra.mxu0 0
    %6675 = vmatprep.subr.bf16.mxu0 0
    %6676 = vmatpush1.bf16.xpose.msra.mxu0 0
    %6677 = vmatprep.subr.bf16.mxu0 0
    %6678 = vmatpush1.bf16.xpose.msra.mxu0 0
    %6679 = vmatprep.subr.bf16.mxu0 0
    %6680 = vmatpush1.bf16.xpose.msra.mxu0 0
    %6681 = vmatprep.subr.bf16.mxu0 0
    %6682 = vmatpush1.bf16.xpose.msra.mxu0 0
    %6683 = vmatprep.mubr.bf16.mxu0 0
    %6684 = vmatmul.mubr.bf16.gmra.mrb[0].mxu0 %v6646
    %v6685 = vpop.f32.mrb[0].mxu0
    %v6686 = vadd.f32 0.0, %v6685
    %v6687 = vpop.f32.mrb[0].mxu0
    %v6688 = vpop.f32.mrb[0].mxu0
    %v6689 = vadd.f32 0.0, %v6688
    %v6690 = vpop.f32.mrb[0].mxu0
    %6691 = vmatprep.mubr.bf16.mxu0 0
    %6692 = vmatmul.mubr.bf16.gmra.mrb[0].mxu0 %v6649
    %v6693 = vpop.f32.mrb[0].mxu0
    %v6694 = vadd.f32 0.0, %v6693
    %v6695 = vpop.f32.mrb[0].mxu0
    %v6696 = vpop.f32.mrb[0].mxu0
    %v6697 = vpop.f32.mrb[0].mxu0
    %6698 = vdwg.mxu0
    %v6699 = vadd.f32 %v6448, %v6686
    %v6700 = vadd.f32 %v6449, %v6689
    %v6701 = vadd.f32 %v6450, %v6694
    %v6705 = vrot.slane %v6699, 7
    %v6706 = vrot.slane %v6700, 7
    %v6707 = vsel %vm1599, %v6705, %v6706
    %v6708 = vrot.slane %v6701, 7
    %v6709 = vsel %vm1599, %v6706, %v6708
    %v6713 = vsel %vm1599, %v5703, %v6705
    %v6714 = vadd.f32 %v3723, %v5701
    %v6715 = vadd.f32 %v3724, %v5702
    %v6716 = vadd.f32 %v3725, %v6713
    %v6717 = vadd.f32 %v3726, %v6707
    %v6718 = vadd.f32 %v3727, %v6709
    %v6719 = vlaneseq
    %v6720 = vshrl.u32 %v6719, 7
    %v6721 = vsub.s32 4, %v6720
    %v6722 = vrot.slane %v3797, %v6721
    %v6723 = vadd.f32 %v6714, %v6722
    %v6724 = vadd.f32 %v6715, %v6722
    %v6725 = vadd.f32 %v6716, %v6722
    %v6726 = vadd.f32 %v6717, %v6722
    %v6727 = vadd.f32 %v6718, %v6722
    %v6728 = vsel %vm339, %v6723, 0.0
    %6729 = vadd.xlane.f32.xlu0 %v6728
    %v6730 = vpop.xlane.xlu0 %6729
    %v6731 = vsel %vm339, %v6724, 0.0
    %6732 = vadd.xlane.f32.xlu0 %v6731
    %v6733 = vpop.xlane.xlu0 %6732
    %v6734 = vsel %vm339, %v6725, 0.0
    %6735 = vadd.xlane.f32.xlu0 %v6734
    %v6736 = vpop.xlane.xlu0 %6735
    %v6737 = vsel %vm339, %v6726, 0.0
    %6738 = vadd.xlane.f32.xlu0 %v6737
    %v6739 = vpop.xlane.xlu0 %6738
    %v6740 = vsel %vm352, %v6727, 0.0
    %6741 = vadd.xlane.f32.xlu0 %v6740
    %v6742 = vpop.xlane.xlu0 %6741
    %v6743 = vmul.f32 %v6730, %v356
    %v6744 = vmul.f32 %v6733, %v356
    %v6745 = vmul.f32 %v6736, %v356
    %v6746 = vmul.f32 %v6739, %v356
    %v6747 = vmul.f32 %v6742, %v356
    %v6748 = vsub.f32 %v6723, %v6743
    %v6749 = vsub.f32 %v6724, %v6744
    %v6750 = vsub.f32 %v6725, %v6745
    %v6751 = vsub.f32 %v6726, %v6746
    %v6752 = vsub.f32 %v6727, %v6747
    %v6753 = vmul.f32 %v6748, %v6748
    %v6754 = vmul.f32 %v6749, %v6749
    %v6755 = vmul.f32 %v6750, %v6750
    %v6756 = vmul.f32 %v6751, %v6751
    %v6757 = vmul.f32 %v6752, %v6752
    %v6758 = vsel %vm339, %v6753, 0.0
    %6759 = vadd.xlane.f32.xlu0 %v6758
    %v6760 = vpop.xlane.xlu0 %6759
    %v6761 = vsel %vm339, %v6754, 0.0
    %6762 = vadd.xlane.f32.xlu0 %v6761
    %v6763 = vpop.xlane.xlu0 %6762
    %v6764 = vsel %vm339, %v6755, 0.0
    %6765 = vadd.xlane.f32.xlu0 %v6764
    %v6766 = vpop.xlane.xlu0 %6765
    %v6767 = vsel %vm339, %v6756, 0.0
    %6768 = vadd.xlane.f32.xlu0 %v6767
    %v6769 = vpop.xlane.xlu0 %6768
    %v6770 = vsel %vm352, %v6757, 0.0
    %6771 = vadd.xlane.f32.xlu0 %v6770
    %v6772 = vpop.xlane.xlu0 %6771
    %v6773 = vmul.f32 %v6760, %v356
    %v6774 = vmul.f32 %v6763, %v356
    %v6775 = vmul.f32 %v6766, %v356
    %v6776 = vmul.f32 %v6769, %v356
    %v6777 = vmul.f32 %v6772, %v356
    %v6778 = vadd.f32 %v6773, 1e-05
    %v6779 = vadd.f32 %v6774, 1e-05
    %v6780 = vadd.f32 %v6775, 1e-05
    %v6781 = vadd.f32 %v6776, 1e-05
    %v6782 = vadd.f32 %v6777, 1e-05
    %v6783 = vrsqrt.pop %v6778
    %v6784 = vrsqrt.pop %v6779
    %v6785 = vrsqrt.pop %v6780
    %v6786 = vrsqrt.pop %v6781
    %v6787 = vrsqrt.pop %v6782
    %v6788 = vmul.f32 %v6748, %v6783
    %v6789 = vmul.f32 %v6749, %v6784
    %v6790 = vmul.f32 %v6750, %v6785
    %v6791 = vmul.f32 %v6751, %v6786
    %v6792 = vmul.f32 %v6752, %v6787
    %v6793 = vlaneseq
    %v6794 = vshrl.u32 %v6793, 7
    %v6795 = vsub.s32 2, %v6794
    %v6796 = vrot.slane %v3797, %v6795
    %v6797 = vmul.f32 %v6788, %v6796
    %v6798 = vmul.f32 %v6789, %v6796
    %v6799 = vmul.f32 %v6790, %v6796
    %v6800 = vmul.f32 %v6791, %v6796
    %v6801 = vmul.f32 %v6792, %v6796
    %v6802 = vlaneseq
    %v6803 = vshrl.u32 %v6802, 7
    %v6804 = vsub.s32 3, %v6803
    %v6805 = vrot.slane %v3797, %v6804
    %v6806 = vadd.f32 %v6797, %v6805
    %v6807 = vadd.f32 %v6798, %v6805
    %v6808 = vadd.f32 %v6799, %v6805
    %v6809 = vadd.f32 %v6800, %v6805
    %v6810 = vadd.f32 %v6801, %v6805
    %v6811 = vpack.c.bf16 %v6807, %v6806
    %v6812 = vpack.c.bf16 %v6809, %v6808
    %v6813 = vpack.c.bf16 %v6810, %v6810
    %v6814 = vlaneseq
    %v6815 = vshrl.u32 %v6814, 7
    %v6816 = vsub.s32 6, %v6815
    %v6817 = vrot.slane %v3797, %v6816
    %v6822 = vunpack.c.l.b16 %v3799
    %v6823 = vunpack.c.l.b16 %v3800
    %v6824 = vunpack.c.l.b16 %v3801
    %v6825 = vunpack.c.l.b16 %v3802
    %v6826 = vpack.c.b16 %v6823, %v6822
    %v6827 = vpack.c.b16 %v6825, %v6824
    %v6831 = vsel %vm339, %v6811, 0
    %v6834 = vsel %vm339, %v6812, 0
    %v6837 = vsel %vm339, %v6813, 0
    %6839 = vmatprep.subr.bf16.mxu0 0
    %6840 = vmatpush1.bf16.msra.mxu0 %v6826
    %6841 = vmatprep.subr.bf16.mxu0 0
    %6842 = vmatpush1.bf16.msra.mxu0 %v6827
    %6843 = vmatprep.subr.bf16.mxu0 0
    %6844 = vmatpush1.bf16.msra.mxu0 0
    %6845 = vmatprep.subr.bf16.mxu0 0
    %6846 = vmatpush1.bf16.msra.mxu0 0
    %6847 = vmatprep.subr.bf16.mxu0 0
    %6848 = vmatpush1.bf16.msra.mxu0 0
    %6849 = vmatprep.subr.bf16.mxu0 0
    %6850 = vmatpush1.bf16.msra.mxu0 0
    %6851 = vmatprep.subr.bf16.mxu0 0
    %6852 = vmatpush1.bf16.msra.mxu0 0
    %6853 = vmatprep.subr.bf16.mxu0 0
    %6854 = vmatpush1.bf16.msra.mxu0 0
    %6855 = vmatprep.subr.bf16.mxu0 0
    %6856 = vmatpush1.bf16.msra.mxu0 0
    %6857 = vmatprep.subr.bf16.mxu0 0
    %6858 = vmatpush1.bf16.msra.mxu0 0
    %6859 = vmatprep.subr.bf16.mxu0 0
    %6860 = vmatpush1.bf16.msra.mxu0 0
    %6861 = vmatprep.subr.bf16.mxu0 0
    %6862 = vmatpush1.bf16.msra.mxu0 0
    %6863 = vmatprep.subr.bf16.mxu0 0
    %6864 = vmatpush1.bf16.msra.mxu0 0
    %6865 = vmatprep.subr.bf16.mxu0 0
    %6866 = vmatpush1.bf16.msra.mxu0 0
    %6867 = vmatprep.subr.bf16.mxu0 0
    %6868 = vmatpush1.bf16.msra.mxu0 0
    %6869 = vmatprep.subr.bf16.mxu0 0
    %6870 = vmatpush1.bf16.msra.mxu0 0
    %6871 = vmatprep.mubr.bf16.mxu0 0
    %6872 = vmatmul.mubr.bf16.gmra.mrb[0].mxu0 %v6831
    %v6873 = vpop.f32.mrb[0].mxu0
    %v6874 = vadd.f32 %v6817, %v6873
    %v6875 = vpop.f32.mrb[0].mxu0
    %v6876 = vpop.f32.mrb[0].mxu0
    %v6877 = vadd.f32 %v6817, %v6876
    %v6878 = vpop.f32.mrb[0].mxu0
    %6879 = vmatprep.mubr.bf16.mxu0 0
    %6880 = vmatmul.mubr.bf16.gmra.mrb[0].mxu0 %v6834
    %v6881 = vpop.f32.mrb[0].mxu0
    %v6882 = vadd.f32 %v6817, %v6881
    %v6883 = vpop.f32.mrb[0].mxu0
    %v6884 = vpop.f32.mrb[0].mxu0
    %v6885 = vadd.f32 %v6817, %v6884
    %v6886 = vpop.f32.mrb[0].mxu0
    %6887 = vmatprep.mubr.bf16.mxu0 0
    %6888 = vmatmul.mubr.bf16.gmra.mrb[0].mxu0 %v6837
    %v6889 = vpop.f32.mrb[0].mxu0
    %v6890 = vadd.f32 %v6817, %v6889
    %v6891 = vpop.f32.mrb[0].mxu0
    %v6892 = vpop.f32.mrb[0].mxu0
    %v6893 = vpop.f32.mrb[0].mxu0
    %6894 = vdwg.mxu0
    %v6895 = vmul.f32 %v6874, 1.702
    %v6896 = vmul.f32 %v6877, 1.702
    %v6897 = vmul.f32 %v6882, 1.702
    %v6898 = vmul.f32 %v6885, 1.702
    %v6899 = vmul.f32 %v6890, 1.702
    %v6900 = vxor.u32 %v6895, 2147483648
    %v6901 = vxor.u32 %v6896, 2147483648
    %v6902 = vxor.u32 %v6897, 2147483648
    %v6903 = vxor.u32 %v6898, 2147483648
    %v6904 = vxor.u32 %v6899, 2147483648
    %v6905 = vmul.f32 %v6900, 1.442695
    %v6906 = vpow.pop %v6905
    %v6907 = vmul.f32 %v6901, 1.442695
    %v6908 = vpow.pop %v6907
    %v6909 = vmul.f32 %v6902, 1.442695
    %v6910 = vpow.pop %v6909
    %v6911 = vmul.f32 %v6903, 1.442695
    %v6912 = vpow.pop %v6911
    %v6913 = vmul.f32 %v6904, 1.442695
    %v6914 = vpow.pop %v6913
    %v6915 = vadd.f32 %v6906, 1.0
    %v6916 = vadd.f32 %v6908, 1.0
    %v6917 = vadd.f32 %v6910, 1.0
    %v6918 = vadd.f32 %v6912, 1.0
    %v6919 = vadd.f32 %v6914, 1.0
    %v6920 = vrcp.pop %v6915
    %v6921 = vmul.f32 1.0, %v6920
    %v6922 = vrcp.pop %v6916
    %v6923 = vmul.f32 1.0, %v6922
    %v6924 = vrcp.pop %v6917
    %v6925 = vmul.f32 1.0, %v6924
    %v6926 = vrcp.pop %v6918
    %v6927 = vmul.f32 1.0, %v6926
    %v6928 = vrcp.pop %v6919
    %v6929 = vmul.f32 1.0, %v6928
    %v6930 = vmul.f32 %v6874, %v6921
    %v6931 = vmul.f32 %v6877, %v6923
    %v6932 = vmul.f32 %v6882, %v6925
    %v6933 = vmul.f32 %v6885, %v6927
    %v6934 = vmul.f32 %v6890, %v6929
    %v6935 = vpack.c.bf16 %v6931, %v6930
    %v6936 = vpack.c.bf16 %v6933, %v6932
    %v6937 = vpack.c.bf16 %v6934, %v6934
    %v6938 = vlaneseq
    %v6939 = vshrl.u32 %v6938, 7
    %v6940 = vsub.s32 5, %v6939
    %v6941 = vrot.slane %v3797, %v6940
    %v6946 = vunpack.c.l.b16 %v3803
    %v6947 = vunpack.c.l.b16 %v3804
    %v6948 = vunpack.c.l.b16 %v3805
    %v6949 = vunpack.c.l.b16 %v3806
    %v6950 = vpack.c.b16 %v6947, %v6946
    %v6951 = vpack.c.b16 %v6949, %v6948
    %v6953 = vsel %vm271, %v6935, 0
    %v6956 = vsel %vm271, %v6936, 0
    %v6959 = vsel %vm271, %v6937, 0
    %v6962 = vsel %vm271, %v6950, 0
    %v6965 = vsel %vm271, %v6951, 0
    %6967 = vmatprep.subr.bf16.mxu0 0
    %6968 = vmatpush1.bf16.xpose.msra.mxu0 %v6962
    %6969 = vmatprep.subr.bf16.mxu0 0
    %6970 = vmatpush1.bf16.xpose.msra.mxu0 %v6965
    %6971 = vmatprep.subr.bf16.mxu0 0
    %6972 = vmatpush1.bf16.xpose.msra.mxu0 0
    %6973 = vmatprep.subr.bf16.mxu0 0
    %6974 = vmatpush1.bf16.xpose.msra.mxu0 0
    %6975 = vmatprep.subr.bf16.mxu0 0
    %6976 = vmatpush1.bf16.xpose.msra.mxu0 0
    %6977 = vmatprep.subr.bf16.mxu0 0
    %6978 = vmatpush1.bf16.xpose.msra.mxu0 0
    %6979 = vmatprep.subr.bf16.mxu0 0
    %6980 = vmatpush1.bf16.xpose.msra.mxu0 0
    %6981 = vmatprep.subr.bf16.mxu0 0
    %6982 = vmatpush1.bf16.xpose.msra.mxu0 0
    %6983 = vmatprep.subr.bf16.mxu0 0
    %6984 = vmatpush1.bf16.xpose.msra.mxu0 0
    %6985 = vmatprep.subr.bf16.mxu0 0
    %6986 = vmatpush1.bf16.xpose.msra.mxu0 0
    %6987 = vmatprep.subr.bf16.mxu0 0
    %6988 = vmatpush1.bf16.xpose.msra.mxu0 0
    %6989 = vmatprep.subr.bf16.mxu0 0
    %6990 = vmatpush1.bf16.xpose.msra.mxu0 0
    %6991 = vmatprep.subr.bf16.mxu0 0
    %6992 = vmatpush1.bf16.xpose.msra.mxu0 0
    %6993 = vmatprep.subr.bf16.mxu0 0
    %6994 = vmatpush1.bf16.xpose.msra.mxu0 0
    %6995 = vmatprep.subr.bf16.mxu0 0
    %6996 = vmatpush1.bf16.xpose.msra.mxu0 0
    %6997 = vmatprep.subr.bf16.mxu0 0
    %6998 = vmatpush1.bf16.xpose.msra.mxu0 0
    %6999 = vmatprep.mubr.bf16.mxu0 0
    %7000 = vmatmul.mubr.bf16.gmra.mrb[0].mxu0 %v6953
    %v7001 = vpop.f32.mrb[0].mxu0
    %v7002 = vadd.f32 %v6941, %v7001
    %v7003 = vpop.f32.mrb[0].mxu0
    %v7004 = vpop.f32.mrb[0].mxu0
    %v7005 = vpop.f32.mrb[0].mxu0
    %7006 = vmatprep.mubr.bf16.mxu0 0
    %7007 = vmatmul.mubr.bf16.gmra.mrb[0].mxu0 %v6956
    %v7008 = vpop.f32.mrb[0].mxu0
    %v7009 = vadd.f32 %v6941, %v7008
    %v7010 = vpop.f32.mrb[0].mxu0
    %v7011 = vpop.f32.mrb[0].mxu0
    %v7012 = vpop.f32.mrb[0].mxu0
    %7013 = vmatprep.mubr.bf16.mxu0 0
    %7014 = vmatmul.mubr.bf16.gmra.mrb[0].mxu0 %v6959
    %v7015 = vpop.f32.mrb[0].mxu0
    %v7016 = vpop.f32.mrb[0].mxu0
    %v7017 = vpop.f32.mrb[0].mxu0
    %v7018 = vpop.f32.mrb[0].mxu0
    %7019 = vdwg.mxu0
    %v7020 = vadd.f32 %v6723, %v7002
    %v7021 = vadd.f32 %v6725, %v7009
    %v7022 = vsel %vm1599, %v7020, %v7021
    %v7023 = vld [vmem:[#allocation8 + $0x2] sm:$0x1]
    %v7024 = vld [vmem:[#allocation8 + $0x3] sm:$0x1]
    %v7025 = vsel %vm352, %v7022, 0.0
    %7026 = vadd.xlane.f32.xlu0 %v7025
    %v7027 = vpop.xlane.xlu0 %7026
    %v7028 = vmul.f32 %v7027, %v356
    %v7029 = vsub.f32 %v7022, %v7028
    %v7030 = vmul.f32 %v7029, %v7029
    %v7031 = vsel %vm352, %v7030, 0.0
    %7032 = vadd.xlane.f32.xlu0 %v7031
    %v7033 = vpop.xlane.xlu0 %7032
    %v7034 = vmul.f32 %v7033, %v356
    %v7035 = vadd.f32 %v7034, 1e-05
    %v7036 = vrsqrt.pop %v7035
    %v7037 = vmul.f32 %v7029, %v7036
    %v7038 = vlaneseq
    %v7039 = vshrl.u32 %v7038, 7
    %v7040 = vsub.s32 0, %v7039
    %v7041 = vrot.slane %v7023, %v7040
    %v7042 = vmul.f32 %v7037, %v7041
    %v7043 = vlaneseq
    %v7044 = vshrl.u32 %v7043, 7
    %v7045 = vsub.s32 0, %v7044
    %v7046 = vrot.slane %v7024, %v7045
    %v7047 = vadd.f32 %v7042, %v7046
    %v7048 = vpack.c.bf16 %v7047, %v7047
    %v7049 = vld [vmem:[#allocation16] sm:$0xf]
    %v7050 = vld [vmem:[#allocation16 + $0x4] sm:$0xf]
    %v7051 = vld [vmem:[#allocation16 + $0x8] sm:$0xf]
    %v7052 = vld [vmem:[#allocation16 + $0xc] sm:$0xf]
    %v7057 = vunpack.c.l.b16 %v7049
    %v7058 = vunpack.c.l.b16 %v7050
    %v7059 = vunpack.c.l.b16 %v7051
    %v7060 = vunpack.c.l.b16 %v7052
    %v7061 = vpack.c.b16 %v7058, %v7057
    %v7062 = vpack.c.b16 %v7060, %v7059
    %v7066 = vsel %vm339, %v7048, 0
    %7068 = vmatprep.subr.bf16.mxu0 0
    %7069 = vmatpush1.bf16.msra.mxu0 %v7061
    %7070 = vmatprep.subr.bf16.mxu0 0
    %7071 = vmatpush1.bf16.msra.mxu0 %v7062
    %7072 = vmatprep.subr.bf16.mxu0 0
    %7073 = vmatpush1.bf16.msra.mxu0 0
    %7074 = vmatprep.subr.bf16.mxu0 0
    %7075 = vmatpush1.bf16.msra.mxu0 0
    %7076 = vmatprep.subr.bf16.mxu0 0
    %7077 = vmatpush1.bf16.msra.mxu0 0
    %7078 = vmatprep.subr.bf16.mxu0 0
    %7079 = vmatpush1.bf16.msra.mxu0 0
    %7080 = vmatprep.subr.bf16.mxu0 0
    %7081 = vmatpush1.bf16.msra.mxu0 0
    %7082 = vmatprep.subr.bf16.mxu0 0
    %7083 = vmatpush1.bf16.msra.mxu0 0
    %7084 = vmatprep.subr.bf16.mxu0 0
    %7085 = vmatpush1.bf16.msra.mxu0 0
    %7086 = vmatprep.subr.bf16.mxu0 0
    %7087 = vmatpush1.bf16.msra.mxu0 0
    %7088 = vmatprep.subr.bf16.mxu0 0
    %7089 = vmatpush1.bf16.msra.mxu0 0
    %7090 = vmatprep.subr.bf16.mxu0 0
    %7091 = vmatpush1.bf16.msra.mxu0 0
    %7092 = vmatprep.subr.bf16.mxu0 0
    %7093 = vmatpush1.bf16.msra.mxu0 0
    %7094 = vmatprep.subr.bf16.mxu0 0
    %7095 = vmatpush1.bf16.msra.mxu0 0
    %7096 = vmatprep.subr.bf16.mxu0 0
    %7097 = vmatpush1.bf16.msra.mxu0 0
    %7098 = vmatprep.subr.bf16.mxu0 0
    %7099 = vmatpush1.bf16.msra.mxu0 0
    %7100 = vmatprep.mubr.bf16.mxu0 0
    %7101 = vmatmul.mubr.bf16.gmra.mrb[0].mxu0 %v7066
    %v7102 = vpop.f32.mrb[0].mxu0
    %v7103 = vadd.f32 0.0, %v7102
    %v7104 = vpop.f32.mrb[0].mxu0
    %v7105 = vpop.f32.mrb[0].mxu0
    %v7106 = vpop.f32.mrb[0].mxu0
    %7107 = vdwg.mxu0
    %vm7108 = vcmask 189440
    %7109 = vst.msk [vmem:[#allocation17] sm:$0x3] %vm7108, %v7103
    // Predicated region
    $region74: #{tpu_custom_call.1} parent=1 // pred_check
      _
    $region75: #{tpu_custom_call.1} parent=1 // pred_check_branch
      %7111 = sbr.rel (0) target = $region77
    $region76: #{tpu_custom_call.1} parent=1 // pred_region
      %s7113 = ssub.s32 32, 32
      %7114 = vsyncadd [#allocation4], %s7113
      %s7116 = sshll.u32 [#allocation17], 4
      %s7117 = int_to_ptr.vmem [resolvable:$true] %s7116
      %7119 = dma.vmem_to_hbm [thread:$0]  %s7117, 32, %s9, [#allocation4]
    $region77: #{tpu_custom_call.1} parent=1 // pred_fallthru
      _
    // Predicated region
    $region78: #{tpu_custom_call.1} parent=1 // pred_check
      _
    $region79: #{tpu_custom_call.1} parent=1 // pred_check_branch
      %7121 = sbr.rel (0) target = $region81
    $region80: #{tpu_custom_call.1} parent=1 // pred_region
      %7122 = dma.done [#allocation4], 32
    $region81: #{tpu_custom_call.1} parent=1 // pred_fallthru
      _
    %7123 = vsyncpa [#allocation3], 1
    %7124 = vsyncpa [#allocation6], 1
    %7125 = vsyncpa [#allocation9], 1
    %7126 = vsyncpa [#allocation12], 1
    %7127 = vsyncpa [#allocation15], 1
    %7128 = vsyncpa [#allocation4], 1

</llo_original>
